<compile_context>
chip_gen: v7x
topology: tpu7x:2x2x1
jax: 0.10.0
libtpu: 0.0.40
codegen_flags: <defaults>
</compile_context>

<pallas_src>
import functools
import math

import jax
import jax.numpy as jnp
from jax.experimental import pallas as pl
from jax.experimental.pallas import tpu as pltpu

_EPS = 1e-5                    # nn.LayerNorm / TransformerEncoderLayer default
_MXU_DTYPE = jnp.bfloat16      # weights live in HBM as bf16; f32 accumulation


def _vmem():
    return pl.BlockSpec(memory_space=pltpu.MemorySpace.VMEM)


def _mm(x, w_bf16):
    """x @ w.T with PyTorch-layout (out, in) bf16 weight; f32 accumulation."""
    return jax.lax.dot_general(
        x.astype(_MXU_DTYPE), w_bf16,
        (((1,), (1,)), ((), ())),
        preferred_element_type=jnp.float32)


def _layernorm(x, g, b):
    mu = jnp.mean(x, axis=-1, keepdims=True)
    var = jnp.mean(jnp.square(x - mu), axis=-1, keepdims=True)
    return (x - mu) * jax.lax.rsqrt(var + _EPS) * g + b


# ------------------------- single fused forward kernel ----------------------

def _sad_fused_kernel(x_ref, emb_w_ref, posb_ref, ln0_ref,
                      wq_ref, wk_ref, wv_ref, wo_ref,
                      w1_ref, w2_ref, vecs_ref, b1_ref, fc_ref,
                      o_ref, *, num_heads, seq_len, num_layers):
    x = x_ref[...].astype(jnp.float32)                       # (M, F), m = b*S + s

    # ---- embedding + positional encoding + LayerNorm ----
    # posb already holds tiled positional encoding + embedding bias.
    h = _mm(x, emb_w_ref[...]) + posb_ref[...]               # (M, E)
    h = _layernorm(h, ln0_ref[0:1, :], ln0_ref[1:2, :])

    m, e = h.shape
    dh = e // num_heads
    scale = 1.0 / math.sqrt(dh)

    # batch_first=False: row m attends to every row with the same sequence
    # index s = m % seq_len (attention runs across the batch axis).
    ri = jax.lax.broadcasted_iota(jnp.int32, (m, m), 0) % seq_len
    ci = jax.lax.broadcasted_iota(jnp.int32, (m, m), 1) % seq_len
    same = ri == ci

    # ---- encoder layers (statically unrolled, post-norm, relu, eval-mode) ----
    for layer in range(num_layers):
        vec = vecs_ref[layer]                                # (9, E) f32
        bq, bk, bv = vec[0:1, :], vec[1:2, :], vec[2:3, :]
        bo = vec[3:4, :]
        g1, t1 = vec[4:5, :], vec[5:6, :]
        b2 = vec[6:7, :]
        g2, t2 = vec[7:8, :], vec[8:9, :]
        b1 = b1_ref[layer]                                   # (1, dim_ff) f32

        # self-attention: separate lane-dense Q/K/V projections (bf16 weights).
        q = _mm(h, wq_ref[layer]) + bq                       # (M, E) f32
        k = _mm(h, wk_ref[layer]) + bk
        v = _mm(h, wv_ref[layer]) + bv

        heads = []
        for hh in range(num_heads):                          # static unroll
            sl = slice(hh * dh, (hh + 1) * dh)
            s = jax.lax.dot_general(                         # f32 QK^T, K = dh
                q[:, sl], k[:, sl], (((1,), (1,)), ((), ())),
                preferred_element_type=jnp.float32) * scale
            s = jnp.where(same, s, jnp.float32(-1e30))       # block-diagonal mask
            s = s - jnp.max(s, axis=-1, keepdims=True)
            p = jnp.exp(s)
            p = p * pl.reciprocal(jnp.sum(p, axis=-1, keepdims=True), approx=True)
            heads.append(jnp.dot(p, v[:, sl],                # f32 PV
                                 preferred_element_type=jnp.float32))
        attn = jnp.concatenate(heads, axis=-1)               # (M, E): head concat
        attn = _mm(attn, wo_ref[layer]) + bo                 # single out-proj matmul

        # TODO(synk): dropout (p=0.1) omitted -> eval()-mode semantics.
        h1 = _layernorm(h + attn, g1, t1)

        # feed-forward (bf16 weights, f32 accumulate)
        ff = jnp.maximum(_mm(h1, w1_ref[layer]) + b1, 0.0)   # (M, dim_ff)
        ff = _mm(ff, w2_ref[layer]) + b2                     # (M, E)
        h = _layernorm(h1 + ff, g2, t2)

    # ---- fc_out head: Linear(E, 1) as a lane reduction ----
    fc = fc_ref[...]                                         # (2, E): [w; b@[1,0]]
    y = jnp.sum(h * fc[0:1, :], axis=-1, keepdims=True) + fc[1:2, 0:1]
    o_ref[...] = y.astype(o_ref.dtype)


# ------------------------------ model glue ----------------------------------

def sad_forward(x, kp, *, num_heads):
    b, s, f = x.shape
    m = b * s
    num_layers = kp["wq"].shape[0]

    out = pl.pallas_call(
        functools.partial(_sad_fused_kernel, num_heads=num_heads, seq_len=s,
                          num_layers=num_layers),
        out_shape=jax.ShapeDtypeStruct((m, 1), jnp.float32),
        in_specs=[_vmem()] * 13,
        out_specs=_vmem(),
    )(x.reshape(m, f),
      kp["emb_w"], kp["pos_bias"], kp["ln0"],
      kp["wq"], kp["wk"], kp["wv"], kp["wo"],
      kp["lin1_w"], kp["lin2_w"], kp["vecs"], kp["lin1_b"], kp["fc"])
    return out.reshape(b, s, 1)


def init_params(key, input_size, embed_size, num_heads, num_layers, seq_length,
                dim_ff=2048):  # 2048 = PyTorch TransformerEncoderLayer default
    """PyTorch-layout parameters (weights are (out, in); biases 1-D)."""
    def nrm(k, shape, scale=0.05):
        return scale * jax.random.normal(k, shape, dtype=jnp.float32)

    keys = jax.random.split(key, 4 + num_layers)
    params = {
        "emb_w": nrm(keys[0], (embed_size, input_size)),
        "emb_b": nrm(keys[1], (embed_size,), 0.02),
        # PyTorch initializes positional_encoding to zeros (learnable param).
        "pos": jnp.zeros((seq_length, embed_size), jnp.float32),
        "ln_g": jnp.ones((embed_size,), jnp.float32),
        "ln_b": jnp.zeros((embed_size,), jnp.float32),
        "fc_w": nrm(keys[2], (1, embed_size)),
        "fc_b": nrm(keys[3], (), 0.02),
        "layers": [],
    }
    for i in range(num_layers):
        lk = jax.random.split(keys[4 + i], 8)
        params["layers"].append({
            "in_proj_w": nrm(lk[0], (3 * embed_size, embed_size)),
            "in_proj_b": nrm(lk[1], (3 * embed_size,), 0.02),
            "out_proj_w": nrm(lk[2], (embed_size, embed_size)),
            "out_proj_b": nrm(lk[3], (embed_size,), 0.02),
            "ln1_g": jnp.ones((embed_size,), jnp.float32),
            "ln1_b": jnp.zeros((embed_size,), jnp.float32),
            "lin1_w": nrm(lk[4], (dim_ff, embed_size)),
            "lin1_b": nrm(lk[5], (dim_ff,), 0.02),
            "lin2_w": nrm(lk[6], (embed_size, dim_ff)),
            "lin2_b": nrm(lk[7], (embed_size,), 0.02),
            "ln2_g": jnp.ones((embed_size,), jnp.float32),
            "ln2_b": jnp.zeros((embed_size,), jnp.float32),
        })
    return params


def pack_params(params, batch):
    """One-time conversion to kernel-ready form: bf16 weights, stacked layers,
    pre-tiled positional encoding, bundled small vectors."""
    e = params["emb_w"].shape[0]
    layers = params["layers"]

    def stack(name):
        return jnp.stack([lp[name] for lp in layers])        # leading axis = L

    in_w = stack("in_proj_w")                                # (L, 3E, E)
    in_b = stack("in_proj_b")                                # (L, 3E)
    vecs = jnp.stack([
        in_b[:, :e], in_b[:, e:2 * e], in_b[:, 2 * e:],      # bq, bk, bv
        stack("out_proj_b"),                                 # bo
        stack("ln1_g"), stack("ln1_b"),                      # LN1
        stack("lin2_b"),                                     # FFN second bias
        stack("ln2_g"), stack("ln2_b"),                      # LN2
    ], axis=1).astype(jnp.float32)                           # (L, 9, E)

    pos_bias = (jnp.tile(params["pos"], (batch, 1))
                + params["emb_b"][None, :]).astype(jnp.float32)   # (M, E)

    fc = jnp.zeros((2, e), jnp.float32)
    fc = fc.at[0].set(params["fc_w"][0]).at[1, 0].set(params["fc_b"])

    return {
        "emb_w": params["emb_w"].astype(_MXU_DTYPE),          # (E, F) bf16
        "pos_bias": pos_bias,                                 # (M, E) f32
        "ln0": jnp.stack([params["ln_g"], params["ln_b"]]),   # (2, E) f32
        "wq": in_w[:, :e, :].astype(_MXU_DTYPE),              # (L, E, E) bf16
        "wk": in_w[:, e:2 * e, :].astype(_MXU_DTYPE),
        "wv": in_w[:, 2 * e:, :].astype(_MXU_DTYPE),
        "wo": stack("out_proj_w").astype(_MXU_DTYPE),         # (L, E, E) bf16
        "lin1_w": stack("lin1_w").astype(_MXU_DTYPE),         # (L, dim_ff, E) bf16
        "lin2_w": stack("lin2_w").astype(_MXU_DTYPE),         # (L, E, dim_ff) bf16
        "vecs": vecs,                                         # (L, 9, E) f32
        "lin1_b": stack("lin1_b")[:, None, :],                # (L, 1, dim_ff) f32
        "fc": fc,                                             # (2, E) f32
    }


if __name__ == "__main__":
    input_size, embed_size, num_heads, num_layers, seq_length = 16, 32, 4, 2, 8
    batch = 2

    key = jax.random.PRNGKey(0)
    pkey, xkey = jax.random.split(key)
    params = init_params(pkey, input_size, embed_size, num_heads, num_layers,
                         seq_length)
    kernel_params = pack_params(params, batch)
    x = jax.random.normal(xkey, (batch, seq_length, input_size), dtype=jnp.float32)

    fwd = jax.jit(functools.partial(sad_forward, num_heads=num_heads))
    out = fwd(x, kernel_params)
    jax.block_until_ready(out)
    assert out.shape == (batch, seq_length, 1)
    assert bool(jnp.all(jnp.isfinite(out)))
    print("KERNEL_OK")
</pallas_src>

<mosaic_0001>
module attributes {stable_mosaic.version = 11 : i64} {
  func.func @_sad_fused_kernel(%arg0: memref<16x16xf32, #tpu.memory_space<vmem>>, %arg1: memref<32x16xbf16, #tpu.memory_space<vmem>>, %arg2: memref<16x32xf32, #tpu.memory_space<vmem>>, %arg3: memref<2x32xf32, #tpu.memory_space<vmem>>, %arg4: memref<2x32x32xbf16, #tpu.memory_space<vmem>>, %arg5: memref<2x32x32xbf16, #tpu.memory_space<vmem>>, %arg6: memref<2x32x32xbf16, #tpu.memory_space<vmem>>, %arg7: memref<2x32x32xbf16, #tpu.memory_space<vmem>>, %arg8: memref<2x2048x32xbf16, #tpu.memory_space<vmem>>, %arg9: memref<2x32x2048xbf16, #tpu.memory_space<vmem>>, %arg10: memref<2x9x32xf32, #tpu.memory_space<vmem>>, %arg11: memref<2x1x2048xf32, #tpu.memory_space<vmem>>, %arg12: memref<2x32xf32, #tpu.memory_space<vmem>>, %arg13: memref<16x1xf32, #tpu.memory_space<vmem>>) attributes {dimension_semantics = [], scalar_prefetch = 0 : i64, scratch_operands = 0 : i64, tpu.core_type = #tpu.core_type<tc>} {
    %c0 = arith.constant 0 : index
    %c0_0 = arith.constant 0 : index
    %0 = vector.load %arg0[%c0, %c0_0] : memref<16x16xf32, #tpu.memory_space<vmem>>, vector<16x16xf32>
    %c0_1 = arith.constant 0 : index
    %c0_2 = arith.constant 0 : index
    %1 = vector.load %arg1[%c0_1, %c0_2] : memref<32x16xbf16, #tpu.memory_space<vmem>>, vector<32x16xbf16>
    %2 = arith.truncf %0 : vector<16x16xf32> to vector<16x16xbf16>
    %cst = arith.constant dense<0.000000e+00> : vector<16x32xf32>
    %3 = tpu.matmul %2, %1, %cst {dimension_numbers = #tpu.dot_dimension_numbers<[1], [1], [0], [0], [0, 0, 1, 0], [], []>} : vector<16x16xbf16>, vector<32x16xbf16>, vector<16x32xf32> -> vector<16x32xf32>
    %c0_3 = arith.constant 0 : index
    %c0_4 = arith.constant 0 : index
    %4 = vector.load %arg2[%c0_3, %c0_4] : memref<16x32xf32, #tpu.memory_space<vmem>>, vector<16x32xf32>
    %5 = arith.addf %3, %4 : vector<16x32xf32>
    %c0_5 = arith.constant 0 : index
    %c0_6 = arith.constant 0 : index
    %6 = vector.load %arg3[%c0_5, %c0_6] : memref<2x32xf32, #tpu.memory_space<vmem>>, vector<1x32xf32>
    %c1 = arith.constant 1 : index
    %c0_7 = arith.constant 0 : index
    %7 = vector.load %arg3[%c1, %c0_7] : memref<2x32xf32, #tpu.memory_space<vmem>>, vector<1x32xf32>
    %cst_8 = arith.constant dense<0.000000e+00> : vector<16xf32>
    %8 = vector.multi_reduction <add>, %5, %cst_8 [1] : vector<16x32xf32> to vector<16xf32>
    %9 = vector.shape_cast %8 : vector<16xf32> to vector<16x1xf32>
    %cst_9 = arith.constant 3.200000e+01 : f32
    %10 = vector.broadcast %cst_9 : f32 to vector<16x1xf32>
    %11 = arith.divf %9, %10 : vector<16x1xf32>
    %12 = vector.broadcast %11 : vector<16x1xf32> to vector<16x32xf32>
    %13 = arith.subf %5, %12 : vector<16x32xf32>
    %14 = arith.mulf %13, %13 : vector<16x32xf32>
    %cst_10 = arith.constant dense<0.000000e+00> : vector<16xf32>
    %15 = vector.multi_reduction <add>, %14, %cst_10 [1] : vector<16x32xf32> to vector<16xf32>
    %16 = vector.shape_cast %15 : vector<16xf32> to vector<16x1xf32>
    %cst_11 = arith.constant 3.200000e+01 : f32
    %17 = vector.broadcast %cst_11 : f32 to vector<16x1xf32>
    %18 = arith.divf %16, %17 : vector<16x1xf32>
    %19 = vector.broadcast %11 : vector<16x1xf32> to vector<16x32xf32>
    %20 = arith.subf %5, %19 : vector<16x32xf32>
    %cst_12 = arith.constant 9.99999974E-6 : f32
    %21 = vector.broadcast %cst_12 : f32 to vector<16x1xf32>
    %22 = arith.addf %18, %21 : vector<16x1xf32>
    %23 = math.rsqrt %22 : vector<16x1xf32>
    %24 = vector.broadcast %23 : vector<16x1xf32> to vector<16x32xf32>
    %25 = arith.mulf %20, %24 : vector<16x32xf32>
    %26 = vector.broadcast %6 : vector<1x32xf32> to vector<16x32xf32>
    %27 = arith.mulf %25, %26 : vector<16x32xf32>
    %28 = vector.broadcast %7 : vector<1x32xf32> to vector<16x32xf32>
    %29 = arith.addf %27, %28 : vector<16x32xf32>
    %30 = tpu.iota {dimensions = array<i32: 0>} : vector<16x16xi32>
    %c8_i32 = arith.constant 8 : i32
    %c0_i32 = arith.constant 0 : i32
    %31 = arith.cmpi eq, %c8_i32, %c0_i32 : i32
    %c1_i32 = arith.constant 1 : i32
    %32 = arith.select %31, %c1_i32, %c8_i32 : i32
    %33 = vector.broadcast %32 : i32 to vector<16x16xi32>
    %34 = arith.remsi %30, %33 : vector<16x16xi32>
    %c0_i32_13 = arith.constant 0 : i32
    %35 = vector.broadcast %c0_i32_13 : i32 to vector<16x16xi32>
    %36 = arith.cmpi ne, %34, %35 : vector<16x16xi32>
    %c0_i32_14 = arith.constant 0 : i32
    %37 = vector.broadcast %c0_i32_14 : i32 to vector<16x16xi32>
    %38 = arith.cmpi slt, %34, %37 : vector<16x16xi32>
    %c0_i32_15 = arith.constant 0 : i32
    %39 = arith.cmpi slt, %32, %c0_i32_15 : i32
    %40 = vector.broadcast %39 : i1 to vector<16x16xi1>
    %41 = vector.broadcast %40 : vector<16x16xi1> to vector<16x16xi1>
    %42 = arith.xori %38, %41 : vector<16x16xi1>
    %43 = arith.andi %42, %36 : vector<16x16xi1>
    %44 = vector.broadcast %32 : i32 to vector<16x16xi32>
    %45 = arith.addi %34, %44 : vector<16x16xi32>
    %46 = arith.select %43, %45, %34 : vector<16x16xi1>, vector<16x16xi32>
    %47 = tpu.iota {dimensions = array<i32: 1>} : vector<16x16xi32>
    %c8_i32_16 = arith.constant 8 : i32
    %c0_i32_17 = arith.constant 0 : i32
    %48 = arith.cmpi eq, %c8_i32_16, %c0_i32_17 : i32
    %c1_i32_18 = arith.constant 1 : i32
    %49 = arith.select %48, %c1_i32_18, %c8_i32_16 : i32
    %50 = vector.broadcast %49 : i32 to vector<16x16xi32>
    %51 = arith.remsi %47, %50 : vector<16x16xi32>
    %c0_i32_19 = arith.constant 0 : i32
    %52 = vector.broadcast %c0_i32_19 : i32 to vector<16x16xi32>
    %53 = arith.cmpi ne, %51, %52 : vector<16x16xi32>
    %c0_i32_20 = arith.constant 0 : i32
    %54 = vector.broadcast %c0_i32_20 : i32 to vector<16x16xi32>
    %55 = arith.cmpi slt, %51, %54 : vector<16x16xi32>
    %c0_i32_21 = arith.constant 0 : i32
    %56 = arith.cmpi slt, %49, %c0_i32_21 : i32
    %57 = vector.broadcast %56 : i1 to vector<16x16xi1>
    %58 = vector.broadcast %57 : vector<16x16xi1> to vector<16x16xi1>
    %59 = arith.xori %55, %58 : vector<16x16xi1>
    %60 = arith.andi %59, %53 : vector<16x16xi1>
    %61 = vector.broadcast %49 : i32 to vector<16x16xi32>
    %62 = arith.addi %51, %61 : vector<16x16xi32>
    %63 = arith.select %60, %62, %51 : vector<16x16xi1>, vector<16x16xi32>
    %64 = arith.cmpi eq, %46, %63 : vector<16x16xi32>
    %c0_22 = arith.constant 0 : index
    %c0_23 = arith.constant 0 : index
    %c0_24 = arith.constant 0 : index
    %65 = vector.load %arg10[%c0_22, %c0_23, %c0_24] : memref<2x9x32xf32, #tpu.memory_space<vmem>>, vector<1x9x32xf32>
    %66 = vector.shape_cast %65 : vector<1x9x32xf32> to vector<9x32xf32>
    %67 = vector.extract_strided_slice %66 {offsets = [0, 0], sizes = [1, 32], strides = [1, 1]} : vector<9x32xf32> to vector<1x32xf32>
    %68 = vector.extract_strided_slice %66 {offsets = [1, 0], sizes = [1, 32], strides = [1, 1]} : vector<9x32xf32> to vector<1x32xf32>
    %69 = vector.extract_strided_slice %66 {offsets = [2, 0], sizes = [1, 32], strides = [1, 1]} : vector<9x32xf32> to vector<1x32xf32>
    %70 = vector.extract_strided_slice %66 {offsets = [3, 0], sizes = [1, 32], strides = [1, 1]} : vector<9x32xf32> to vector<1x32xf32>
    %71 = vector.extract_strided_slice %66 {offsets = [4, 0], sizes = [1, 32], strides = [1, 1]} : vector<9x32xf32> to vector<1x32xf32>
    %72 = vector.extract_strided_slice %66 {offsets = [5, 0], sizes = [1, 32], strides = [1, 1]} : vector<9x32xf32> to vector<1x32xf32>
    %73 = vector.extract_strided_slice %66 {offsets = [6, 0], sizes = [1, 32], strides = [1, 1]} : vector<9x32xf32> to vector<1x32xf32>
    %74 = vector.extract_strided_slice %66 {offsets = [7, 0], sizes = [1, 32], strides = [1, 1]} : vector<9x32xf32> to vector<1x32xf32>
    %75 = vector.extract_strided_slice %66 {offsets = [8, 0], sizes = [1, 32], strides = [1, 1]} : vector<9x32xf32> to vector<1x32xf32>
    %c0_25 = arith.constant 0 : index
    %c0_26 = arith.constant 0 : index
    %c0_27 = arith.constant 0 : index
    %76 = vector.load %arg11[%c0_25, %c0_26, %c0_27] : memref<2x1x2048xf32, #tpu.memory_space<vmem>>, vector<1x1x2048xf32>
    %77 = vector.shape_cast %76 : vector<1x1x2048xf32> to vector<1x2048xf32>
    %c0_28 = arith.constant 0 : index
    %c0_29 = arith.constant 0 : index
    %c0_30 = arith.constant 0 : index
    %78 = vector.load %arg4[%c0_28, %c0_29, %c0_30] : memref<2x32x32xbf16, #tpu.memory_space<vmem>>, vector<1x32x32xbf16>
    %79 = vector.shape_cast %78 : vector<1x32x32xbf16> to vector<32x32xbf16>
    %80 = arith.truncf %29 : vector<16x32xf32> to vector<16x32xbf16>
    %cst_31 = arith.constant dense<0.000000e+00> : vector<16x32xf32>
    %81 = tpu.matmul %80, %79, %cst_31 {dimension_numbers = #tpu.dot_dimension_numbers<[1], [1], [0], [0], [0, 0, 1, 0], [], []>} : vector<16x32xbf16>, vector<32x32xbf16>, vector<16x32xf32> -> vector<16x32xf32>
    %82 = vector.broadcast %67 : vector<1x32xf32> to vector<16x32xf32>
    %83 = arith.addf %81, %82 : vector<16x32xf32>
    %c0_32 = arith.constant 0 : index
    %c0_33 = arith.constant 0 : index
    %c0_34 = arith.constant 0 : index
    %84 = vector.load %arg5[%c0_32, %c0_33, %c0_34] : memref<2x32x32xbf16, #tpu.memory_space<vmem>>, vector<1x32x32xbf16>
    %85 = vector.shape_cast %84 : vector<1x32x32xbf16> to vector<32x32xbf16>
    %86 = arith.truncf %29 : vector<16x32xf32> to vector<16x32xbf16>
    %cst_35 = arith.constant dense<0.000000e+00> : vector<16x32xf32>
    %87 = tpu.matmul %86, %85, %cst_35 {dimension_numbers = #tpu.dot_dimension_numbers<[1], [1], [0], [0], [0, 0, 1, 0], [], []>} : vector<16x32xbf16>, vector<32x32xbf16>, vector<16x32xf32> -> vector<16x32xf32>
    %88 = vector.broadcast %68 : vector<1x32xf32> to vector<16x32xf32>
    %89 = arith.addf %87, %88 : vector<16x32xf32>
    %c0_36 = arith.constant 0 : index
    %c0_37 = arith.constant 0 : index
    %c0_38 = arith.constant 0 : index
    %90 = vector.load %arg6[%c0_36, %c0_37, %c0_38] : memref<2x32x32xbf16, #tpu.memory_space<vmem>>, vector<1x32x32xbf16>
    %91 = vector.shape_cast %90 : vector<1x32x32xbf16> to vector<32x32xbf16>
    %92 = arith.truncf %29 : vector<16x32xf32> to vector<16x32xbf16>
    %cst_39 = arith.constant dense<0.000000e+00> : vector<16x32xf32>
    %93 = tpu.matmul %92, %91, %cst_39 {dimension_numbers = #tpu.dot_dimension_numbers<[1], [1], [0], [0], [0, 0, 1, 0], [], []>} : vector<16x32xbf16>, vector<32x32xbf16>, vector<16x32xf32> -> vector<16x32xf32>
    %94 = vector.broadcast %69 : vector<1x32xf32> to vector<16x32xf32>
    %95 = arith.addf %93, %94 : vector<16x32xf32>
    %96 = vector.extract_strided_slice %83 {offsets = [0, 0], sizes = [16, 8], strides = [1, 1]} : vector<16x32xf32> to vector<16x8xf32>
    %97 = vector.extract_strided_slice %89 {offsets = [0, 0], sizes = [16, 8], strides = [1, 1]} : vector<16x32xf32> to vector<16x8xf32>
    %cst_40 = arith.constant dense<0.000000e+00> : vector<16x16xf32>
    %98 = tpu.matmul %96, %97, %cst_40 {dimension_numbers = #tpu.dot_dimension_numbers<[1], [1], [0], [0], [0, 0, 1, 0], [], []>} : vector<16x8xf32>, vector<16x8xf32>, vector<16x16xf32> -> vector<16x16xf32>
    %cst_41 = arith.constant 0.353553385 : f32
    %99 = vector.broadcast %cst_41 : f32 to vector<16x16xf32>
    %100 = arith.mulf %98, %99 : vector<16x16xf32>
    %cst_42 = arith.constant -1.000000e+30 : f32
    %101 = vector.broadcast %cst_42 : f32 to vector<16x16xf32>
    %102 = arith.select %64, %100, %101 : vector<16x16xi1>, vector<16x16xf32>
    %cst_43 = arith.constant dense<0xFF800000> : vector<16xf32>
    %103 = vector.multi_reduction <maximumf>, %102, %cst_43 [1] : vector<16x16xf32> to vector<16xf32>
    %104 = vector.shape_cast %103 : vector<16xf32> to vector<16x1xf32>
    %105 = vector.broadcast %104 : vector<16x1xf32> to vector<16x16xf32>
    %106 = arith.subf %102, %105 : vector<16x16xf32>
    %107 = math.exp %106 : vector<16x16xf32>
    %cst_44 = arith.constant dense<0.000000e+00> : vector<16xf32>
    %108 = vector.multi_reduction <add>, %107, %cst_44 [1] : vector<16x16xf32> to vector<16xf32>
    %109 = vector.shape_cast %108 : vector<16xf32> to vector<16x1xf32>
    %110 = tpu.reciprocal %109 {approx = true} : vector<16x1xf32> -> vector<16x1xf32>
    %111 = vector.broadcast %110 : vector<16x1xf32> to vector<16x16xf32>
    %112 = arith.mulf %107, %111 : vector<16x16xf32>
    %113 = vector.extract_strided_slice %95 {offsets = [0, 0], sizes = [16, 8], strides = [1, 1]} : vector<16x32xf32> to vector<16x8xf32>
    %cst_45 = arith.constant dense<0.000000e+00> : vector<16x8xf32>
    %114 = tpu.matmul %112, %113, %cst_45 {dimension_numbers = #tpu.dot_dimension_numbers<[1], [0], [0], [1], [0, 0, 1, 1], [], []>} : vector<16x16xf32>, vector<16x8xf32>, vector<16x8xf32> -> vector<16x8xf32>
    %115 = vector.extract_strided_slice %83 {offsets = [0, 8], sizes = [16, 8], strides = [1, 1]} : vector<16x32xf32> to vector<16x8xf32>
    %116 = vector.extract_strided_slice %89 {offsets = [0, 8], sizes = [16, 8], strides = [1, 1]} : vector<16x32xf32> to vector<16x8xf32>
    %cst_46 = arith.constant dense<0.000000e+00> : vector<16x16xf32>
    %117 = tpu.matmul %115, %116, %cst_46 {dimension_numbers = #tpu.dot_dimension_numbers<[1], [1], [0], [0], [0, 0, 1, 0], [], []>} : vector<16x8xf32>, vector<16x8xf32>, vector<16x16xf32> -> vector<16x16xf32>
    %cst_47 = arith.constant 0.353553385 : f32
    %118 = vector.broadcast %cst_47 : f32 to vector<16x16xf32>
    %119 = arith.mulf %117, %118 : vector<16x16xf32>
    %cst_48 = arith.constant -1.000000e+30 : f32
    %120 = vector.broadcast %cst_48 : f32 to vector<16x16xf32>
    %121 = arith.select %64, %119, %120 : vector<16x16xi1>, vector<16x16xf32>
    %cst_49 = arith.constant dense<0xFF800000> : vector<16xf32>
    %122 = vector.multi_reduction <maximumf>, %121, %cst_49 [1] : vector<16x16xf32> to vector<16xf32>
    %123 = vector.shape_cast %122 : vector<16xf32> to vector<16x1xf32>
    %124 = vector.broadcast %123 : vector<16x1xf32> to vector<16x16xf32>
    %125 = arith.subf %121, %124 : vector<16x16xf32>
    %126 = math.exp %125 : vector<16x16xf32>
    %cst_50 = arith.constant dense<0.000000e+00> : vector<16xf32>
    %127 = vector.multi_reduction <add>, %126, %cst_50 [1] : vector<16x16xf32> to vector<16xf32>
    %128 = vector.shape_cast %127 : vector<16xf32> to vector<16x1xf32>
    %129 = tpu.reciprocal %128 {approx = true} : vector<16x1xf32> -> vector<16x1xf32>
    %130 = vector.broadcast %129 : vector<16x1xf32> to vector<16x16xf32>
    %131 = arith.mulf %126, %130 : vector<16x16xf32>
    %132 = vector.extract_strided_slice %95 {offsets = [0, 8], sizes = [16, 8], strides = [1, 1]} : vector<16x32xf32> to vector<16x8xf32>
    %cst_51 = arith.constant dense<0.000000e+00> : vector<16x8xf32>
    %133 = tpu.matmul %131, %132, %cst_51 {dimension_numbers = #tpu.dot_dimension_numbers<[1], [0], [0], [1], [0, 0, 1, 1], [], []>} : vector<16x16xf32>, vector<16x8xf32>, vector<16x8xf32> -> vector<16x8xf32>
    %134 = vector.extract_strided_slice %83 {offsets = [0, 16], sizes = [16, 8], strides = [1, 1]} : vector<16x32xf32> to vector<16x8xf32>
    %135 = vector.extract_strided_slice %89 {offsets = [0, 16], sizes = [16, 8], strides = [1, 1]} : vector<16x32xf32> to vector<16x8xf32>
    %cst_52 = arith.constant dense<0.000000e+00> : vector<16x16xf32>
    %136 = tpu.matmul %134, %135, %cst_52 {dimension_numbers = #tpu.dot_dimension_numbers<[1], [1], [0], [0], [0, 0, 1, 0], [], []>} : vector<16x8xf32>, vector<16x8xf32>, vector<16x16xf32> -> vector<16x16xf32>
    %cst_53 = arith.constant 0.353553385 : f32
    %137 = vector.broadcast %cst_53 : f32 to vector<16x16xf32>
    %138 = arith.mulf %136, %137 : vector<16x16xf32>
    %cst_54 = arith.constant -1.000000e+30 : f32
    %139 = vector.broadcast %cst_54 : f32 to vector<16x16xf32>
    %140 = arith.select %64, %138, %139 : vector<16x16xi1>, vector<16x16xf32>
    %cst_55 = arith.constant dense<0xFF800000> : vector<16xf32>
    %141 = vector.multi_reduction <maximumf>, %140, %cst_55 [1] : vector<16x16xf32> to vector<16xf32>
    %142 = vector.shape_cast %141 : vector<16xf32> to vector<16x1xf32>
    %143 = vector.broadcast %142 : vector<16x1xf32> to vector<16x16xf32>
    %144 = arith.subf %140, %143 : vector<16x16xf32>
    %145 = math.exp %144 : vector<16x16xf32>
    %cst_56 = arith.constant dense<0.000000e+00> : vector<16xf32>
    %146 = vector.multi_reduction <add>, %145, %cst_56 [1] : vector<16x16xf32> to vector<16xf32>
    %147 = vector.shape_cast %146 : vector<16xf32> to vector<16x1xf32>
    %148 = tpu.reciprocal %147 {approx = true} : vector<16x1xf32> -> vector<16x1xf32>
    %149 = vector.broadcast %148 : vector<16x1xf32> to vector<16x16xf32>
    %150 = arith.mulf %145, %149 : vector<16x16xf32>
    %151 = vector.extract_strided_slice %95 {offsets = [0, 16], sizes = [16, 8], strides = [1, 1]} : vector<16x32xf32> to vector<16x8xf32>
    %cst_57 = arith.constant dense<0.000000e+00> : vector<16x8xf32>
    %152 = tpu.matmul %150, %151, %cst_57 {dimension_numbers = #tpu.dot_dimension_numbers<[1], [0], [0], [1], [0, 0, 1, 1], [], []>} : vector<16x16xf32>, vector<16x8xf32>, vector<16x8xf32> -> vector<16x8xf32>
    %153 = vector.extract_strided_slice %83 {offsets = [0, 24], sizes = [16, 8], strides = [1, 1]} : vector<16x32xf32> to vector<16x8xf32>
    %154 = vector.extract_strided_slice %89 {offsets = [0, 24], sizes = [16, 8], strides = [1, 1]} : vector<16x32xf32> to vector<16x8xf32>
    %cst_58 = arith.constant dense<0.000000e+00> : vector<16x16xf32>
    %155 = tpu.matmul %153, %154, %cst_58 {dimension_numbers = #tpu.dot_dimension_numbers<[1], [1], [0], [0], [0, 0, 1, 0], [], []>} : vector<16x8xf32>, vector<16x8xf32>, vector<16x16xf32> -> vector<16x16xf32>
    %cst_59 = arith.constant 0.353553385 : f32
    %156 = vector.broadcast %cst_59 : f32 to vector<16x16xf32>
    %157 = arith.mulf %155, %156 : vector<16x16xf32>
    %cst_60 = arith.constant -1.000000e+30 : f32
    %158 = vector.broadcast %cst_60 : f32 to vector<16x16xf32>
    %159 = arith.select %64, %157, %158 : vector<16x16xi1>, vector<16x16xf32>
    %cst_61 = arith.constant dense<0xFF800000> : vector<16xf32>
    %160 = vector.multi_reduction <maximumf>, %159, %cst_61 [1] : vector<16x16xf32> to vector<16xf32>
    %161 = vector.shape_cast %160 : vector<16xf32> to vector<16x1xf32>
    %162 = vector.broadcast %161 : vector<16x1xf32> to vector<16x16xf32>
    %163 = arith.subf %159, %162 : vector<16x16xf32>
    %164 = math.exp %163 : vector<16x16xf32>
    %cst_62 = arith.constant dense<0.000000e+00> : vector<16xf32>
    %165 = vector.multi_reduction <add>, %164, %cst_62 [1] : vector<16x16xf32> to vector<16xf32>
    %166 = vector.shape_cast %165 : vector<16xf32> to vector<16x1xf32>
    %167 = tpu.reciprocal %166 {approx = true} : vector<16x1xf32> -> vector<16x1xf32>
    %168 = vector.broadcast %167 : vector<16x1xf32> to vector<16x16xf32>
    %169 = arith.mulf %164, %168 : vector<16x16xf32>
    %170 = vector.extract_strided_slice %95 {offsets = [0, 24], sizes = [16, 8], strides = [1, 1]} : vector<16x32xf32> to vector<16x8xf32>
    %cst_63 = arith.constant dense<0.000000e+00> : vector<16x8xf32>
    %171 = tpu.matmul %169, %170, %cst_63 {dimension_numbers = #tpu.dot_dimension_numbers<[1], [0], [0], [1], [0, 0, 1, 1], [], []>} : vector<16x16xf32>, vector<16x8xf32>, vector<16x8xf32> -> vector<16x8xf32>
    %172 = tpu.concatenate %114, %133, %152, %171 in 1 : vector<16x8xf32>, vector<16x8xf32>, vector<16x8xf32>, vector<16x8xf32> -> vector<16x32xf32>
    %c0_64 = arith.constant 0 : index
    %c0_65 = arith.constant 0 : index
    %c0_66 = arith.constant 0 : index
    %173 = vector.load %arg7[%c0_64, %c0_65, %c0_66] : memref<2x32x32xbf16, #tpu.memory_space<vmem>>, vector<1x32x32xbf16>
    %174 = vector.shape_cast %173 : vector<1x32x32xbf16> to vector<32x32xbf16>
    %175 = arith.truncf %172 : vector<16x32xf32> to vector<16x32xbf16>
    %cst_67 = arith.constant dense<0.000000e+00> : vector<16x32xf32>
    %176 = tpu.matmul %175, %174, %cst_67 {dimension_numbers = #tpu.dot_dimension_numbers<[1], [1], [0], [0], [0, 0, 1, 0], [], []>} : vector<16x32xbf16>, vector<32x32xbf16>, vector<16x32xf32> -> vector<16x32xf32>
    %177 = vector.broadcast %70 : vector<1x32xf32> to vector<16x32xf32>
    %178 = arith.addf %176, %177 : vector<16x32xf32>
    %179 = arith.addf %29, %178 : vector<16x32xf32>
    %cst_68 = arith.constant dense<0.000000e+00> : vector<16xf32>
    %180 = vector.multi_reduction <add>, %179, %cst_68 [1] : vector<16x32xf32> to vector<16xf32>
    %181 = vector.shape_cast %180 : vector<16xf32> to vector<16x1xf32>
    %cst_69 = arith.constant 3.200000e+01 : f32
    %182 = vector.broadcast %cst_69 : f32 to vector<16x1xf32>
    %183 = arith.divf %181, %182 : vector<16x1xf32>
    %184 = vector.broadcast %183 : vector<16x1xf32> to vector<16x32xf32>
    %185 = arith.subf %179, %184 : vector<16x32xf32>
    %186 = arith.mulf %185, %185 : vector<16x32xf32>
    %cst_70 = arith.constant dense<0.000000e+00> : vector<16xf32>
    %187 = vector.multi_reduction <add>, %186, %cst_70 [1] : vector<16x32xf32> to vector<16xf32>
    %188 = vector.shape_cast %187 : vector<16xf32> to vector<16x1xf32>
    %cst_71 = arith.constant 3.200000e+01 : f32
    %189 = vector.broadcast %cst_71 : f32 to vector<16x1xf32>
    %190 = arith.divf %188, %189 : vector<16x1xf32>
    %191 = vector.broadcast %183 : vector<16x1xf32> to vector<16x32xf32>
    %192 = arith.subf %179, %191 : vector<16x32xf32>
    %cst_72 = arith.constant 9.99999974E-6 : f32
    %193 = vector.broadcast %cst_72 : f32 to vector<16x1xf32>
    %194 = arith.addf %190, %193 : vector<16x1xf32>
    %195 = math.rsqrt %194 : vector<16x1xf32>
    %196 = vector.broadcast %195 : vector<16x1xf32> to vector<16x32xf32>
    %197 = arith.mulf %192, %196 : vector<16x32xf32>
    %198 = vector.broadcast %71 : vector<1x32xf32> to vector<16x32xf32>
    %199 = arith.mulf %197, %198 : vector<16x32xf32>
    %200 = vector.broadcast %72 : vector<1x32xf32> to vector<16x32xf32>
    %201 = arith.addf %199, %200 : vector<16x32xf32>
    %c0_73 = arith.constant 0 : index
    %c0_74 = arith.constant 0 : index
    %c0_75 = arith.constant 0 : index
    %202 = vector.load %arg8[%c0_73, %c0_74, %c0_75] : memref<2x2048x32xbf16, #tpu.memory_space<vmem>>, vector<1x2048x32xbf16>
    %203 = vector.shape_cast %202 : vector<1x2048x32xbf16> to vector<2048x32xbf16>
    %204 = arith.truncf %201 : vector<16x32xf32> to vector<16x32xbf16>
    %cst_76 = arith.constant dense<0.000000e+00> : vector<16x2048xf32>
    %205 = tpu.matmul %204, %203, %cst_76 {dimension_numbers = #tpu.dot_dimension_numbers<[1], [1], [0], [0], [0, 0, 1, 0], [], []>} : vector<16x32xbf16>, vector<2048x32xbf16>, vector<16x2048xf32> -> vector<16x2048xf32>
    %206 = vector.broadcast %77 : vector<1x2048xf32> to vector<16x2048xf32>
    %207 = arith.addf %205, %206 : vector<16x2048xf32>
    %cst_77 = arith.constant 0.000000e+00 : f32
    %208 = vector.broadcast %cst_77 : f32 to vector<16x2048xf32>
    %209 = arith.maximumf %207, %208 : vector<16x2048xf32>
    %c0_78 = arith.constant 0 : index
    %c0_79 = arith.constant 0 : index
    %c0_80 = arith.constant 0 : index
    %210 = vector.load %arg9[%c0_78, %c0_79, %c0_80] : memref<2x32x2048xbf16, #tpu.memory_space<vmem>>, vector<1x32x2048xbf16>
    %211 = vector.shape_cast %210 : vector<1x32x2048xbf16> to vector<32x2048xbf16>
    %212 = arith.truncf %209 : vector<16x2048xf32> to vector<16x2048xbf16>
    %cst_81 = arith.constant dense<0.000000e+00> : vector<16x32xf32>
    %213 = tpu.matmul %212, %211, %cst_81 {dimension_numbers = #tpu.dot_dimension_numbers<[1], [1], [0], [0], [0, 0, 1, 0], [], []>} : vector<16x2048xbf16>, vector<32x2048xbf16>, vector<16x32xf32> -> vector<16x32xf32>
    %214 = vector.broadcast %73 : vector<1x32xf32> to vector<16x32xf32>
    %215 = arith.addf %213, %214 : vector<16x32xf32>
    %216 = arith.addf %201, %215 : vector<16x32xf32>
    %cst_82 = arith.constant dense<0.000000e+00> : vector<16xf32>
    %217 = vector.multi_reduction <add>, %216, %cst_82 [1] : vector<16x32xf32> to vector<16xf32>
    %218 = vector.shape_cast %217 : vector<16xf32> to vector<16x1xf32>
    %cst_83 = arith.constant 3.200000e+01 : f32
    %219 = vector.broadcast %cst_83 : f32 to vector<16x1xf32>
    %220 = arith.divf %218, %219 : vector<16x1xf32>
    %221 = vector.broadcast %220 : vector<16x1xf32> to vector<16x32xf32>
    %222 = arith.subf %216, %221 : vector<16x32xf32>
    %223 = arith.mulf %222, %222 : vector<16x32xf32>
    %cst_84 = arith.constant dense<0.000000e+00> : vector<16xf32>
    %224 = vector.multi_reduction <add>, %223, %cst_84 [1] : vector<16x32xf32> to vector<16xf32>
    %225 = vector.shape_cast %224 : vector<16xf32> to vector<16x1xf32>
    %cst_85 = arith.constant 3.200000e+01 : f32
    %226 = vector.broadcast %cst_85 : f32 to vector<16x1xf32>
    %227 = arith.divf %225, %226 : vector<16x1xf32>
    %228 = vector.broadcast %220 : vector<16x1xf32> to vector<16x32xf32>
    %229 = arith.subf %216, %228 : vector<16x32xf32>
    %cst_86 = arith.constant 9.99999974E-6 : f32
    %230 = vector.broadcast %cst_86 : f32 to vector<16x1xf32>
    %231 = arith.addf %227, %230 : vector<16x1xf32>
    %232 = math.rsqrt %231 : vector<16x1xf32>
    %233 = vector.broadcast %232 : vector<16x1xf32> to vector<16x32xf32>
    %234 = arith.mulf %229, %233 : vector<16x32xf32>
    %235 = vector.broadcast %74 : vector<1x32xf32> to vector<16x32xf32>
    %236 = arith.mulf %234, %235 : vector<16x32xf32>
    %237 = vector.broadcast %75 : vector<1x32xf32> to vector<16x32xf32>
    %238 = arith.addf %236, %237 : vector<16x32xf32>
    %c1_87 = arith.constant 1 : index
    %c0_88 = arith.constant 0 : index
    %c0_89 = arith.constant 0 : index
    %239 = vector.load %arg10[%c1_87, %c0_88, %c0_89] : memref<2x9x32xf32, #tpu.memory_space<vmem>>, vector<1x9x32xf32>
    %240 = vector.shape_cast %239 : vector<1x9x32xf32> to vector<9x32xf32>
    %241 = vector.extract_strided_slice %240 {offsets = [0, 0], sizes = [1, 32], strides = [1, 1]} : vector<9x32xf32> to vector<1x32xf32>
    %242 = vector.extract_strided_slice %240 {offsets = [1, 0], sizes = [1, 32], strides = [1, 1]} : vector<9x32xf32> to vector<1x32xf32>
    %243 = vector.extract_strided_slice %240 {offsets = [2, 0], sizes = [1, 32], strides = [1, 1]} : vector<9x32xf32> to vector<1x32xf32>
    %244 = vector.extract_strided_slice %240 {offsets = [3, 0], sizes = [1, 32], strides = [1, 1]} : vector<9x32xf32> to vector<1x32xf32>
    %245 = vector.extract_strided_slice %240 {offsets = [4, 0], sizes = [1, 32], strides = [1, 1]} : vector<9x32xf32> to vector<1x32xf32>
    %246 = vector.extract_strided_slice %240 {offsets = [5, 0], sizes = [1, 32], strides = [1, 1]} : vector<9x32xf32> to vector<1x32xf32>
    %247 = vector.extract_strided_slice %240 {offsets = [6, 0], sizes = [1, 32], strides = [1, 1]} : vector<9x32xf32> to vector<1x32xf32>
    %248 = vector.extract_strided_slice %240 {offsets = [7, 0], sizes = [1, 32], strides = [1, 1]} : vector<9x32xf32> to vector<1x32xf32>
    %249 = vector.extract_strided_slice %240 {offsets = [8, 0], sizes = [1, 32], strides = [1, 1]} : vector<9x32xf32> to vector<1x32xf32>
    %c1_90 = arith.constant 1 : index
    %c0_91 = arith.constant 0 : index
    %c0_92 = arith.constant 0 : index
    %250 = vector.load %arg11[%c1_90, %c0_91, %c0_92] : memref<2x1x2048xf32, #tpu.memory_space<vmem>>, vector<1x1x2048xf32>
    %251 = vector.shape_cast %250 : vector<1x1x2048xf32> to vector<1x2048xf32>
    %c1_93 = arith.constant 1 : index
    %c0_94 = arith.constant 0 : index
    %c0_95 = arith.constant 0 : index
    %252 = vector.load %arg4[%c1_93, %c0_94, %c0_95] : memref<2x32x32xbf16, #tpu.memory_space<vmem>>, vector<1x32x32xbf16>
    %253 = vector.shape_cast %252 : vector<1x32x32xbf16> to vector<32x32xbf16>
    %254 = arith.truncf %238 : vector<16x32xf32> to vector<16x32xbf16>
    %cst_96 = arith.constant dense<0.000000e+00> : vector<16x32xf32>
    %255 = tpu.matmul %254, %253, %cst_96 {dimension_numbers = #tpu.dot_dimension_numbers<[1], [1], [0], [0], [0, 0, 1, 0], [], []>} : vector<16x32xbf16>, vector<32x32xbf16>, vector<16x32xf32> -> vector<16x32xf32>
    %256 = vector.broadcast %241 : vector<1x32xf32> to vector<16x32xf32>
    %257 = arith.addf %255, %256 : vector<16x32xf32>
    %c1_97 = arith.constant 1 : index
    %c0_98 = arith.constant 0 : index
    %c0_99 = arith.constant 0 : index
    %258 = vector.load %arg5[%c1_97, %c0_98, %c0_99] : memref<2x32x32xbf16, #tpu.memory_space<vmem>>, vector<1x32x32xbf16>
    %259 = vector.shape_cast %258 : vector<1x32x32xbf16> to vector<32x32xbf16>
    %260 = arith.truncf %238 : vector<16x32xf32> to vector<16x32xbf16>
    %cst_100 = arith.constant dense<0.000000e+00> : vector<16x32xf32>
    %261 = tpu.matmul %260, %259, %cst_100 {dimension_numbers = #tpu.dot_dimension_numbers<[1], [1], [0], [0], [0, 0, 1, 0], [], []>} : vector<16x32xbf16>, vector<32x32xbf16>, vector<16x32xf32> -> vector<16x32xf32>
    %262 = vector.broadcast %242 : vector<1x32xf32> to vector<16x32xf32>
    %263 = arith.addf %261, %262 : vector<16x32xf32>
    %c1_101 = arith.constant 1 : index
    %c0_102 = arith.constant 0 : index
    %c0_103 = arith.constant 0 : index
    %264 = vector.load %arg6[%c1_101, %c0_102, %c0_103] : memref<2x32x32xbf16, #tpu.memory_space<vmem>>, vector<1x32x32xbf16>
    %265 = vector.shape_cast %264 : vector<1x32x32xbf16> to vector<32x32xbf16>
    %266 = arith.truncf %238 : vector<16x32xf32> to vector<16x32xbf16>
    %cst_104 = arith.constant dense<0.000000e+00> : vector<16x32xf32>
    %267 = tpu.matmul %266, %265, %cst_104 {dimension_numbers = #tpu.dot_dimension_numbers<[1], [1], [0], [0], [0, 0, 1, 0], [], []>} : vector<16x32xbf16>, vector<32x32xbf16>, vector<16x32xf32> -> vector<16x32xf32>
    %268 = vector.broadcast %243 : vector<1x32xf32> to vector<16x32xf32>
    %269 = arith.addf %267, %268 : vector<16x32xf32>
    %270 = vector.extract_strided_slice %257 {offsets = [0, 0], sizes = [16, 8], strides = [1, 1]} : vector<16x32xf32> to vector<16x8xf32>
    %271 = vector.extract_strided_slice %263 {offsets = [0, 0], sizes = [16, 8], strides = [1, 1]} : vector<16x32xf32> to vector<16x8xf32>
    %cst_105 = arith.constant dense<0.000000e+00> : vector<16x16xf32>
    %272 = tpu.matmul %270, %271, %cst_105 {dimension_numbers = #tpu.dot_dimension_numbers<[1], [1], [0], [0], [0, 0, 1, 0], [], []>} : vector<16x8xf32>, vector<16x8xf32>, vector<16x16xf32> -> vector<16x16xf32>
    %cst_106 = arith.constant 0.353553385 : f32
    %273 = vector.broadcast %cst_106 : f32 to vector<16x16xf32>
    %274 = arith.mulf %272, %273 : vector<16x16xf32>
    %cst_107 = arith.constant -1.000000e+30 : f32
    %275 = vector.broadcast %cst_107 : f32 to vector<16x16xf32>
    %276 = arith.select %64, %274, %275 : vector<16x16xi1>, vector<16x16xf32>
    %cst_108 = arith.constant dense<0xFF800000> : vector<16xf32>
    %277 = vector.multi_reduction <maximumf>, %276, %cst_108 [1] : vector<16x16xf32> to vector<16xf32>
    %278 = vector.shape_cast %277 : vector<16xf32> to vector<16x1xf32>
    %279 = vector.broadcast %278 : vector<16x1xf32> to vector<16x16xf32>
    %280 = arith.subf %276, %279 : vector<16x16xf32>
    %281 = math.exp %280 : vector<16x16xf32>
    %cst_109 = arith.constant dense<0.000000e+00> : vector<16xf32>
    %282 = vector.multi_reduction <add>, %281, %cst_109 [1] : vector<16x16xf32> to vector<16xf32>
    %283 = vector.shape_cast %282 : vector<16xf32> to vector<16x1xf32>
    %284 = tpu.reciprocal %283 {approx = true} : vector<16x1xf32> -> vector<16x1xf32>
    %285 = vector.broadcast %284 : vector<16x1xf32> to vector<16x16xf32>
    %286 = arith.mulf %281, %285 : vector<16x16xf32>
    %287 = vector.extract_strided_slice %269 {offsets = [0, 0], sizes = [16, 8], strides = [1, 1]} : vector<16x32xf32> to vector<16x8xf32>
    %cst_110 = arith.constant dense<0.000000e+00> : vector<16x8xf32>
    %288 = tpu.matmul %286, %287, %cst_110 {dimension_numbers = #tpu.dot_dimension_numbers<[1], [0], [0], [1], [0, 0, 1, 1], [], []>} : vector<16x16xf32>, vector<16x8xf32>, vector<16x8xf32> -> vector<16x8xf32>
    %289 = vector.extract_strided_slice %257 {offsets = [0, 8], sizes = [16, 8], strides = [1, 1]} : vector<16x32xf32> to vector<16x8xf32>
    %290 = vector.extract_strided_slice %263 {offsets = [0, 8], sizes = [16, 8], strides = [1, 1]} : vector<16x32xf32> to vector<16x8xf32>
    %cst_111 = arith.constant dense<0.000000e+00> : vector<16x16xf32>
    %291 = tpu.matmul %289, %290, %cst_111 {dimension_numbers = #tpu.dot_dimension_numbers<[1], [1], [0], [0], [0, 0, 1, 0], [], []>} : vector<16x8xf32>, vector<16x8xf32>, vector<16x16xf32> -> vector<16x16xf32>
    %cst_112 = arith.constant 0.353553385 : f32
    %292 = vector.broadcast %cst_112 : f32 to vector<16x16xf32>
    %293 = arith.mulf %291, %292 : vector<16x16xf32>
    %cst_113 = arith.constant -1.000000e+30 : f32
    %294 = vector.broadcast %cst_113 : f32 to vector<16x16xf32>
    %295 = arith.select %64, %293, %294 : vector<16x16xi1>, vector<16x16xf32>
    %cst_114 = arith.constant dense<0xFF800000> : vector<16xf32>
    %296 = vector.multi_reduction <maximumf>, %295, %cst_114 [1] : vector<16x16xf32> to vector<16xf32>
    %297 = vector.shape_cast %296 : vector<16xf32> to vector<16x1xf32>
    %298 = vector.broadcast %297 : vector<16x1xf32> to vector<16x16xf32>
    %299 = arith.subf %295, %298 : vector<16x16xf32>
    %300 = math.exp %299 : vector<16x16xf32>
    %cst_115 = arith.constant dense<0.000000e+00> : vector<16xf32>
    %301 = vector.multi_reduction <add>, %300, %cst_115 [1] : vector<16x16xf32> to vector<16xf32>
    %302 = vector.shape_cast %301 : vector<16xf32> to vector<16x1xf32>
    %303 = tpu.reciprocal %302 {approx = true} : vector<16x1xf32> -> vector<16x1xf32>
    %304 = vector.broadcast %303 : vector<16x1xf32> to vector<16x16xf32>
    %305 = arith.mulf %300, %304 : vector<16x16xf32>
    %306 = vector.extract_strided_slice %269 {offsets = [0, 8], sizes = [16, 8], strides = [1, 1]} : vector<16x32xf32> to vector<16x8xf32>
    %cst_116 = arith.constant dense<0.000000e+00> : vector<16x8xf32>
    %307 = tpu.matmul %305, %306, %cst_116 {dimension_numbers = #tpu.dot_dimension_numbers<[1], [0], [0], [1], [0, 0, 1, 1], [], []>} : vector<16x16xf32>, vector<16x8xf32>, vector<16x8xf32> -> vector<16x8xf32>
    %308 = vector.extract_strided_slice %257 {offsets = [0, 16], sizes = [16, 8], strides = [1, 1]} : vector<16x32xf32> to vector<16x8xf32>
    %309 = vector.extract_strided_slice %263 {offsets = [0, 16], sizes = [16, 8], strides = [1, 1]} : vector<16x32xf32> to vector<16x8xf32>
    %cst_117 = arith.constant dense<0.000000e+00> : vector<16x16xf32>
    %310 = tpu.matmul %308, %309, %cst_117 {dimension_numbers = #tpu.dot_dimension_numbers<[1], [1], [0], [0], [0, 0, 1, 0], [], []>} : vector<16x8xf32>, vector<16x8xf32>, vector<16x16xf32> -> vector<16x16xf32>
    %cst_118 = arith.constant 0.353553385 : f32
    %311 = vector.broadcast %cst_118 : f32 to vector<16x16xf32>
    %312 = arith.mulf %310, %311 : vector<16x16xf32>
    %cst_119 = arith.constant -1.000000e+30 : f32
    %313 = vector.broadcast %cst_119 : f32 to vector<16x16xf32>
    %314 = arith.select %64, %312, %313 : vector<16x16xi1>, vector<16x16xf32>
    %cst_120 = arith.constant dense<0xFF800000> : vector<16xf32>
    %315 = vector.multi_reduction <maximumf>, %314, %cst_120 [1] : vector<16x16xf32> to vector<16xf32>
    %316 = vector.shape_cast %315 : vector<16xf32> to vector<16x1xf32>
    %317 = vector.broadcast %316 : vector<16x1xf32> to vector<16x16xf32>
    %318 = arith.subf %314, %317 : vector<16x16xf32>
    %319 = math.exp %318 : vector<16x16xf32>
    %cst_121 = arith.constant dense<0.000000e+00> : vector<16xf32>
    %320 = vector.multi_reduction <add>, %319, %cst_121 [1] : vector<16x16xf32> to vector<16xf32>
    %321 = vector.shape_cast %320 : vector<16xf32> to vector<16x1xf32>
    %322 = tpu.reciprocal %321 {approx = true} : vector<16x1xf32> -> vector<16x1xf32>
    %323 = vector.broadcast %322 : vector<16x1xf32> to vector<16x16xf32>
    %324 = arith.mulf %319, %323 : vector<16x16xf32>
    %325 = vector.extract_strided_slice %269 {offsets = [0, 16], sizes = [16, 8], strides = [1, 1]} : vector<16x32xf32> to vector<16x8xf32>
    %cst_122 = arith.constant dense<0.000000e+00> : vector<16x8xf32>
    %326 = tpu.matmul %324, %325, %cst_122 {dimension_numbers = #tpu.dot_dimension_numbers<[1], [0], [0], [1], [0, 0, 1, 1], [], []>} : vector<16x16xf32>, vector<16x8xf32>, vector<16x8xf32> -> vector<16x8xf32>
    %327 = vector.extract_strided_slice %257 {offsets = [0, 24], sizes = [16, 8], strides = [1, 1]} : vector<16x32xf32> to vector<16x8xf32>
    %328 = vector.extract_strided_slice %263 {offsets = [0, 24], sizes = [16, 8], strides = [1, 1]} : vector<16x32xf32> to vector<16x8xf32>
    %cst_123 = arith.constant dense<0.000000e+00> : vector<16x16xf32>
    %329 = tpu.matmul %327, %328, %cst_123 {dimension_numbers = #tpu.dot_dimension_numbers<[1], [1], [0], [0], [0, 0, 1, 0], [], []>} : vector<16x8xf32>, vector<16x8xf32>, vector<16x16xf32> -> vector<16x16xf32>
    %cst_124 = arith.constant 0.353553385 : f32
    %330 = vector.broadcast %cst_124 : f32 to vector<16x16xf32>
    %331 = arith.mulf %329, %330 : vector<16x16xf32>
    %cst_125 = arith.constant -1.000000e+30 : f32
    %332 = vector.broadcast %cst_125 : f32 to vector<16x16xf32>
    %333 = arith.select %64, %331, %332 : vector<16x16xi1>, vector<16x16xf32>
    %cst_126 = arith.constant dense<0xFF800000> : vector<16xf32>
    %334 = vector.multi_reduction <maximumf>, %333, %cst_126 [1] : vector<16x16xf32> to vector<16xf32>
    %335 = vector.shape_cast %334 : vector<16xf32> to vector<16x1xf32>
    %336 = vector.broadcast %335 : vector<16x1xf32> to vector<16x16xf32>
    %337 = arith.subf %333, %336 : vector<16x16xf32>
    %338 = math.exp %337 : vector<16x16xf32>
    %cst_127 = arith.constant dense<0.000000e+00> : vector<16xf32>
    %339 = vector.multi_reduction <add>, %338, %cst_127 [1] : vector<16x16xf32> to vector<16xf32>
    %340 = vector.shape_cast %339 : vector<16xf32> to vector<16x1xf32>
    %341 = tpu.reciprocal %340 {approx = true} : vector<16x1xf32> -> vector<16x1xf32>
    %342 = vector.broadcast %341 : vector<16x1xf32> to vector<16x16xf32>
    %343 = arith.mulf %338, %342 : vector<16x16xf32>
    %344 = vector.extract_strided_slice %269 {offsets = [0, 24], sizes = [16, 8], strides = [1, 1]} : vector<16x32xf32> to vector<16x8xf32>
    %cst_128 = arith.constant dense<0.000000e+00> : vector<16x8xf32>
    %345 = tpu.matmul %343, %344, %cst_128 {dimension_numbers = #tpu.dot_dimension_numbers<[1], [0], [0], [1], [0, 0, 1, 1], [], []>} : vector<16x16xf32>, vector<16x8xf32>, vector<16x8xf32> -> vector<16x8xf32>
    %346 = tpu.concatenate %288, %307, %326, %345 in 1 : vector<16x8xf32>, vector<16x8xf32>, vector<16x8xf32>, vector<16x8xf32> -> vector<16x32xf32>
    %c1_129 = arith.constant 1 : index
    %c0_130 = arith.constant 0 : index
    %c0_131 = arith.constant 0 : index
    %347 = vector.load %arg7[%c1_129, %c0_130, %c0_131] : memref<2x32x32xbf16, #tpu.memory_space<vmem>>, vector<1x32x32xbf16>
    %348 = vector.shape_cast %347 : vector<1x32x32xbf16> to vector<32x32xbf16>
    %349 = arith.truncf %346 : vector<16x32xf32> to vector<16x32xbf16>
    %cst_132 = arith.constant dense<0.000000e+00> : vector<16x32xf32>
    %350 = tpu.matmul %349, %348, %cst_132 {dimension_numbers = #tpu.dot_dimension_numbers<[1], [1], [0], [0], [0, 0, 1, 0], [], []>} : vector<16x32xbf16>, vector<32x32xbf16>, vector<16x32xf32> -> vector<16x32xf32>
    %351 = vector.broadcast %244 : vector<1x32xf32> to vector<16x32xf32>
    %352 = arith.addf %350, %351 : vector<16x32xf32>
    %353 = arith.addf %238, %352 : vector<16x32xf32>
    %cst_133 = arith.constant dense<0.000000e+00> : vector<16xf32>
    %354 = vector.multi_reduction <add>, %353, %cst_133 [1] : vector<16x32xf32> to vector<16xf32>
    %355 = vector.shape_cast %354 : vector<16xf32> to vector<16x1xf32>
    %cst_134 = arith.constant 3.200000e+01 : f32
    %356 = vector.broadcast %cst_134 : f32 to vector<16x1xf32>
    %357 = arith.divf %355, %356 : vector<16x1xf32>
    %358 = vector.broadcast %357 : vector<16x1xf32> to vector<16x32xf32>
    %359 = arith.subf %353, %358 : vector<16x32xf32>
    %360 = arith.mulf %359, %359 : vector<16x32xf32>
    %cst_135 = arith.constant dense<0.000000e+00> : vector<16xf32>
    %361 = vector.multi_reduction <add>, %360, %cst_135 [1] : vector<16x32xf32> to vector<16xf32>
    %362 = vector.shape_cast %361 : vector<16xf32> to vector<16x1xf32>
    %cst_136 = arith.constant 3.200000e+01 : f32
    %363 = vector.broadcast %cst_136 : f32 to vector<16x1xf32>
    %364 = arith.divf %362, %363 : vector<16x1xf32>
    %365 = vector.broadcast %357 : vector<16x1xf32> to vector<16x32xf32>
    %366 = arith.subf %353, %365 : vector<16x32xf32>
    %cst_137 = arith.constant 9.99999974E-6 : f32
    %367 = vector.broadcast %cst_137 : f32 to vector<16x1xf32>
    %368 = arith.addf %364, %367 : vector<16x1xf32>
    %369 = math.rsqrt %368 : vector<16x1xf32>
    %370 = vector.broadcast %369 : vector<16x1xf32> to vector<16x32xf32>
    %371 = arith.mulf %366, %370 : vector<16x32xf32>
    %372 = vector.broadcast %245 : vector<1x32xf32> to vector<16x32xf32>
    %373 = arith.mulf %371, %372 : vector<16x32xf32>
    %374 = vector.broadcast %246 : vector<1x32xf32> to vector<16x32xf32>
    %375 = arith.addf %373, %374 : vector<16x32xf32>
    %c1_138 = arith.constant 1 : index
    %c0_139 = arith.constant 0 : index
    %c0_140 = arith.constant 0 : index
    %376 = vector.load %arg8[%c1_138, %c0_139, %c0_140] : memref<2x2048x32xbf16, #tpu.memory_space<vmem>>, vector<1x2048x32xbf16>
    %377 = vector.shape_cast %376 : vector<1x2048x32xbf16> to vector<2048x32xbf16>
    %378 = arith.truncf %375 : vector<16x32xf32> to vector<16x32xbf16>
    %cst_141 = arith.constant dense<0.000000e+00> : vector<16x2048xf32>
    %379 = tpu.matmul %378, %377, %cst_141 {dimension_numbers = #tpu.dot_dimension_numbers<[1], [1], [0], [0], [0, 0, 1, 0], [], []>} : vector<16x32xbf16>, vector<2048x32xbf16>, vector<16x2048xf32> -> vector<16x2048xf32>
    %380 = vector.broadcast %251 : vector<1x2048xf32> to vector<16x2048xf32>
    %381 = arith.addf %379, %380 : vector<16x2048xf32>
    %cst_142 = arith.constant 0.000000e+00 : f32
    %382 = vector.broadcast %cst_142 : f32 to vector<16x2048xf32>
    %383 = arith.maximumf %381, %382 : vector<16x2048xf32>
    %c1_143 = arith.constant 1 : index
    %c0_144 = arith.constant 0 : index
    %c0_145 = arith.constant 0 : index
    %384 = vector.load %arg9[%c1_143, %c0_144, %c0_145] : memref<2x32x2048xbf16, #tpu.memory_space<vmem>>, vector<1x32x2048xbf16>
    %385 = vector.shape_cast %384 : vector<1x32x2048xbf16> to vector<32x2048xbf16>
    %386 = arith.truncf %383 : vector<16x2048xf32> to vector<16x2048xbf16>
    %cst_146 = arith.constant dense<0.000000e+00> : vector<16x32xf32>
    %387 = tpu.matmul %386, %385, %cst_146 {dimension_numbers = #tpu.dot_dimension_numbers<[1], [1], [0], [0], [0, 0, 1, 0], [], []>} : vector<16x2048xbf16>, vector<32x2048xbf16>, vector<16x32xf32> -> vector<16x32xf32>
    %388 = vector.broadcast %247 : vector<1x32xf32> to vector<16x32xf32>
    %389 = arith.addf %387, %388 : vector<16x32xf32>
    %390 = arith.addf %375, %389 : vector<16x32xf32>
    %cst_147 = arith.constant dense<0.000000e+00> : vector<16xf32>
    %391 = vector.multi_reduction <add>, %390, %cst_147 [1] : vector<16x32xf32> to vector<16xf32>
    %392 = vector.shape_cast %391 : vector<16xf32> to vector<16x1xf32>
    %cst_148 = arith.constant 3.200000e+01 : f32
    %393 = vector.broadcast %cst_148 : f32 to vector<16x1xf32>
    %394 = arith.divf %392, %393 : vector<16x1xf32>
    %395 = vector.broadcast %394 : vector<16x1xf32> to vector<16x32xf32>
    %396 = arith.subf %390, %395 : vector<16x32xf32>
    %397 = arith.mulf %396, %396 : vector<16x32xf32>
    %cst_149 = arith.constant dense<0.000000e+00> : vector<16xf32>
    %398 = vector.multi_reduction <add>, %397, %cst_149 [1] : vector<16x32xf32> to vector<16xf32>
    %399 = vector.shape_cast %398 : vector<16xf32> to vector<16x1xf32>
    %cst_150 = arith.constant 3.200000e+01 : f32
    %400 = vector.broadcast %cst_150 : f32 to vector<16x1xf32>
    %401 = arith.divf %399, %400 : vector<16x1xf32>
    %402 = vector.broadcast %394 : vector<16x1xf32> to vector<16x32xf32>
    %403 = arith.subf %390, %402 : vector<16x32xf32>
    %cst_151 = arith.constant 9.99999974E-6 : f32
    %404 = vector.broadcast %cst_151 : f32 to vector<16x1xf32>
    %405 = arith.addf %401, %404 : vector<16x1xf32>
    %406 = math.rsqrt %405 : vector<16x1xf32>
    %407 = vector.broadcast %406 : vector<16x1xf32> to vector<16x32xf32>
    %408 = arith.mulf %403, %407 : vector<16x32xf32>
    %409 = vector.broadcast %248 : vector<1x32xf32> to vector<16x32xf32>
    %410 = arith.mulf %408, %409 : vector<16x32xf32>
    %411 = vector.broadcast %249 : vector<1x32xf32> to vector<16x32xf32>
    %412 = arith.addf %410, %411 : vector<16x32xf32>
    %c0_152 = arith.constant 0 : index
    %c0_153 = arith.constant 0 : index
    %413 = vector.load %arg12[%c0_152, %c0_153] : memref<2x32xf32, #tpu.memory_space<vmem>>, vector<2x32xf32>
    %414 = vector.extract_strided_slice %413 {offsets = [0, 0], sizes = [1, 32], strides = [1, 1]} : vector<2x32xf32> to vector<1x32xf32>
    %415 = vector.broadcast %414 : vector<1x32xf32> to vector<16x32xf32>
    %416 = arith.mulf %412, %415 : vector<16x32xf32>
    %cst_154 = arith.constant dense<0.000000e+00> : vector<16xf32>
    %417 = vector.multi_reduction <add>, %416, %cst_154 [1] : vector<16x32xf32> to vector<16xf32>
    %418 = vector.shape_cast %417 : vector<16xf32> to vector<16x1xf32>
    %419 = vector.extract_strided_slice %413 {offsets = [1, 0], sizes = [1, 1], strides = [1, 1]} : vector<2x32xf32> to vector<1x1xf32>
    %420 = vector.broadcast %419 : vector<1x1xf32> to vector<16x1xf32>
    %421 = arith.addf %418, %420 : vector<16x1xf32>
    %c0_155 = arith.constant 0 : index
    %c0_156 = arith.constant 0 : index
    %422 = vector.load %arg13[%c0_155, %c0_156] : memref<16x1xf32, #tpu.memory_space<vmem>>, vector<16x1xf32>
    tpu.vector_store %arg13[%c0_155, %c0_156], %421 {strides = array<i32>} : memref<16x1xf32, #tpu.memory_space<vmem>>, vector<16x1xf32>,
    return
  }
}

</mosaic_0001>

<llo_original>
// kernel: sad_forward.1
$region0: #{sad_forward.1}
  #allocation0 [shape = 'u32[]', space=smem, size = 0x4, offset = 0x4, fixed_abs, tag = 'smem constant byte address 0x4 - core index']
  #allocation1 [shape = 'u32[144,128]{1,0:T(1,128)}', space=vmem, size = 0x12000, scoped, tag = 'internal scratch']
  %s0 = inlined_call_operand.vmem [shape: f32[16,16], index: 0, kind: input, shape index: {}]
  %s1 = inlined_call_operand.vmem [shape: bf16[32,16], index: 1, kind: input, shape index: {}]
  %s2 = inlined_call_operand.vmem [shape: f32[16,32], index: 2, kind: input, shape index: {}]
  %s3 = inlined_call_operand.vmem [shape: f32[2,32], index: 3, kind: input, shape index: {}]
  %s4 = inlined_call_operand.vmem [shape: bf16[2,32,32], index: 4, kind: input, shape index: {}]
  %s5 = inlined_call_operand.vmem [shape: bf16[2,32,32], index: 5, kind: input, shape index: {}]
  %s6 = inlined_call_operand.vmem [shape: bf16[2,32,32], index: 6, kind: input, shape index: {}]
  %s7 = inlined_call_operand.vmem [shape: bf16[2,32,32], index: 7, kind: input, shape index: {}]
  %s8 = inlined_call_operand.vmem [shape: bf16[2,2048,32], index: 8, kind: input, shape index: {}]
  %s9 = inlined_call_operand.vmem [shape: bf16[2,32,2048], index: 9, kind: input, shape index: {}]
  %s10 = inlined_call_operand.vmem [shape: f32[2,9,32], index: 10, kind: input, shape index: {}]
  %s11 = inlined_call_operand.vmem [shape: f32[2,1,2048], index: 11, kind: input, shape index: {}]
  %s12 = inlined_call_operand.vmem [shape: f32[2,32], index: 12, kind: input, shape index: {}]
  %s13 = inlined_call_operand.vmem [shape: f32[16,1], index: 13, kind: output, shape index: {}]
  %s14 = sld [smem:[#allocation0]]
  $region62: #{sad_forward.1} parent=0
    _
  %s16 = ssub.s32 1, %s14
  %s17 = scalar_select 0, %s16, %s14
  // Predicated region
  $region2: #{sad_forward.1} parent=0 // pred_check
    _
  $region3: #{sad_forward.1} parent=0 // pred_check_branch
    %19 = sbr.rel (0) target = $region5
  $region4: #{sad_forward.1} parent=0 // pred_region
    _
  $region5: #{sad_forward.1} parent=0 // pred_fallthru
    _
  // Predicated region
  $region6: #{sad_forward.1} parent=0 // pred_check
    _
  $region7: #{sad_forward.1} parent=0 // pred_check_branch
    %21 = sbr.rel (0) target = $region9
  $region8: #{sad_forward.1} parent=0 // pred_region
    _
  $region9: #{sad_forward.1} parent=0 // pred_fallthru
    _
  // Predicated region
  $region10: #{sad_forward.1} parent=0 // pred_check
    _
  $region11: #{sad_forward.1} parent=0 // pred_check_branch
    %23 = sbr.rel (0) target = $region13
  $region12: #{sad_forward.1} parent=0 // pred_region
    _
  $region13: #{sad_forward.1} parent=0 // pred_fallthru
    _
  // Predicated region
  $region14: #{sad_forward.1} parent=0 // pred_check
    _
  $region15: #{sad_forward.1} parent=0 // pred_check_branch
    %25 = sbr.rel (0) target = $region17
  $region16: #{sad_forward.1} parent=0 // pred_region
    _
  $region17: #{sad_forward.1} parent=0 // pred_fallthru
    _
  // Predicated region
  $region18: #{sad_forward.1} parent=0 // pred_check
    _
  $region19: #{sad_forward.1} parent=0 // pred_check_branch
    %27 = sbr.rel (0) target = $region21
  $region20: #{sad_forward.1} parent=0 // pred_region
    _
  $region21: #{sad_forward.1} parent=0 // pred_fallthru
    _
  // Predicated region
  $region22: #{sad_forward.1} parent=0 // pred_check
    _
  $region23: #{sad_forward.1} parent=0 // pred_check_branch
    %29 = sbr.rel (0) target = $region25
  $region24: #{sad_forward.1} parent=0 // pred_region
    _
  $region25: #{sad_forward.1} parent=0 // pred_fallthru
    _
  // Predicated region
  $region26: #{sad_forward.1} parent=0 // pred_check
    _
  $region27: #{sad_forward.1} parent=0 // pred_check_branch
    %31 = sbr.rel (0) target = $region29
  $region28: #{sad_forward.1} parent=0 // pred_region
    _
  $region29: #{sad_forward.1} parent=0 // pred_fallthru
    _
  // Predicated region
  $region30: #{sad_forward.1} parent=0 // pred_check
    _
  $region31: #{sad_forward.1} parent=0 // pred_check_branch
    %33 = sbr.rel (0) target = $region33
  $region32: #{sad_forward.1} parent=0 // pred_region
    _
  $region33: #{sad_forward.1} parent=0 // pred_fallthru
    _
  // Predicated region
  $region34: #{sad_forward.1} parent=0 // pred_check
    _
  $region35: #{sad_forward.1} parent=0 // pred_check_branch
    %35 = sbr.rel (0) target = $region37
  $region36: #{sad_forward.1} parent=0 // pred_region
    _
  $region37: #{sad_forward.1} parent=0 // pred_fallthru
    _
  // Predicated region
  $region38: #{sad_forward.1} parent=0 // pred_check
    _
  $region39: #{sad_forward.1} parent=0 // pred_check_branch
    %37 = sbr.rel (0) target = $region41
  $region40: #{sad_forward.1} parent=0 // pred_region
    _
  $region41: #{sad_forward.1} parent=0 // pred_fallthru
    _
  // Predicated region
  $region42: #{sad_forward.1} parent=0 // pred_check
    _
  $region43: #{sad_forward.1} parent=0 // pred_check_branch
    %39 = sbr.rel (0) target = $region45
  $region44: #{sad_forward.1} parent=0 // pred_region
    _
  $region45: #{sad_forward.1} parent=0 // pred_fallthru
    _
  // Predicated region
  $region46: #{sad_forward.1} parent=0 // pred_check
    _
  $region47: #{sad_forward.1} parent=0 // pred_check_branch
    %41 = sbr.rel (0) target = $region49
  $region48: #{sad_forward.1} parent=0 // pred_region
    _
  $region49: #{sad_forward.1} parent=0 // pred_fallthru
    _
  // Predicated region
  $region50: #{sad_forward.1} parent=0 // pred_check
    _
  $region51: #{sad_forward.1} parent=0 // pred_check_branch
    %43 = sbr.rel (0) target = $region53
  $region52: #{sad_forward.1} parent=0 // pred_region
    _
  $region53: #{sad_forward.1} parent=0 // pred_fallthru
    _
  %v45 = vld [vmem:[%s0] sm:$0xff]
  %v46 = vld [vmem:[%s0 + $0x8] sm:$0xff]
  %v47 = vld [vmem:[%s1] sm:$0xf]
  %v48 = vld [vmem:[%s1 + $0x4] sm:$0xf]
  %v49 = vld [vmem:[%s1 + $0x8] sm:$0xf]
  %v50 = vld [vmem:[%s1 + $0xc] sm:$0xf]
  %v51 = vpack.c.bf16 %v46, %v45
  %v52 = vld [vmem:[%s2] sm:$0xff]
  %v53 = vld [vmem:[%s2 + $0x8] sm:$0xff]
  %v58 = vunpack.c.l.b16 %v47
  %v59 = vunpack.c.l.b16 %v48
  %v60 = vunpack.c.l.b16 %v49
  %v61 = vunpack.c.l.b16 %v50
  %v62 = vpack.c.b16 %v59, %v58
  %v63 = vpack.c.b16 %v61, %v60
  %vm64 = vcmask 130048
  %v66 = vsel %vm64, %v51, 0
  %v69 = vsel %vm64, %v62, 0
  %v72 = vsel %vm64, %v63, 0
  %74 = vmatprep.subr.bf16.mxu0 0
  %75 = vmatpush1.bf16.xpose.msra.mxu0 %v69
  %76 = vmatprep.subr.bf16.mxu0 0
  %77 = vmatpush1.bf16.xpose.msra.mxu0 %v72
  %78 = vmatprep.subr.bf16.mxu0 0
  %79 = vmatpush1.bf16.xpose.msra.mxu0 0
  %80 = vmatprep.subr.bf16.mxu0 0
  %81 = vmatpush1.bf16.xpose.msra.mxu0 0
  %82 = vmatprep.subr.bf16.mxu0 0
  %83 = vmatpush1.bf16.xpose.msra.mxu0 0
  %84 = vmatprep.subr.bf16.mxu0 0
  %85 = vmatpush1.bf16.xpose.msra.mxu0 0
  %86 = vmatprep.subr.bf16.mxu0 0
  %87 = vmatpush1.bf16.xpose.msra.mxu0 0
  %88 = vmatprep.subr.bf16.mxu0 0
  %89 = vmatpush1.bf16.xpose.msra.mxu0 0
  %90 = vmatprep.subr.bf16.mxu0 0
  %91 = vmatpush1.bf16.xpose.msra.mxu0 0
  %92 = vmatprep.subr.bf16.mxu0 0
  %93 = vmatpush1.bf16.xpose.msra.mxu0 0
  %94 = vmatprep.subr.bf16.mxu0 0
  %95 = vmatpush1.bf16.xpose.msra.mxu0 0
  %96 = vmatprep.subr.bf16.mxu0 0
  %97 = vmatpush1.bf16.xpose.msra.mxu0 0
  %98 = vmatprep.subr.bf16.mxu0 0
  %99 = vmatpush1.bf16.xpose.msra.mxu0 0
  %100 = vmatprep.subr.bf16.mxu0 0
  %101 = vmatpush1.bf16.xpose.msra.mxu0 0
  %102 = vmatprep.subr.bf16.mxu0 0
  %103 = vmatpush1.bf16.xpose.msra.mxu0 0
  %104 = vmatprep.subr.bf16.mxu0 0
  %105 = vmatpush1.bf16.xpose.msra.mxu0 0
  %106 = vmatprep.mubr.bf16.mxu0 0
  %107 = vmatmul.mubr.bf16.gmra.mrb[0].mxu0 %v66
  %v108 = vpop.f32.mrb[0].mxu0
  %v109 = vadd.f32 %v52, %v108
  %v110 = vpop.f32.mrb[0].mxu0
  %v111 = vpop.f32.mrb[0].mxu0
  %v112 = vadd.f32 %v53, %v111
  %v113 = vpop.f32.mrb[0].mxu0
  %114 = vdwg.mxu0
  %v115 = vld [vmem:[%s3] sm:$0x1]
  %v116 = vld [vmem:[%s3 + $0x1] sm:$0x1]
  %vm117 = vcmask 261120
  %v118 = vsel %vm117, %v109, 0.0
  %119 = vadd.xlane.f32.xlu0 %v118
  %v120 = vpop.xlane.xlu0 %119
  %v121 = vsel %vm117, %v112, 0.0
  %122 = vadd.xlane.f32.xlu0 %v121
  %v123 = vpop.xlane.xlu0 %122
  %v124 = vrcp.pop 32.0
  %v125 = vmul.f32 %v120, %v124
  %v126 = vmul.f32 %v123, %v124
  %v127 = vsub.f32 %v109, %v125
  %v128 = vsub.f32 %v112, %v126
  %v129 = vmul.f32 %v127, %v127
  %v130 = vmul.f32 %v128, %v128
  %v131 = vsel %vm117, %v129, 0.0
  %132 = vadd.xlane.f32.xlu0 %v131
  %v133 = vpop.xlane.xlu0 %132
  %v134 = vsel %vm117, %v130, 0.0
  %135 = vadd.xlane.f32.xlu0 %v134
  %v136 = vpop.xlane.xlu0 %135
  %v137 = vmul.f32 %v133, %v124
  %v138 = vmul.f32 %v136, %v124
  %v139 = vadd.f32 %v137, 1e-05
  %v140 = vadd.f32 %v138, 1e-05
  %v141 = vrsqrt.pop %v139
  %v142 = vrsqrt.pop %v140
  %v143 = vmul.f32 %v127, %v141
  %v144 = vmul.f32 %v128, %v142
  %v145 = vlaneseq
  %v146 = vshrl.u32 %v145, 7
  %v147 = vsub.s32 0, %v146
  %v148 = vrot.slane %v115, %v147
  %v149 = vmul.f32 %v143, %v148
  %v150 = vmul.f32 %v144, %v148
  %v151 = vlaneseq
  %v152 = vshrl.u32 %v151, 7
  %v153 = vsub.s32 0, %v152
  %v154 = vrot.slane %v116, %v153
  %v155 = vadd.f32 %v149, %v154
  %v156 = vadd.f32 %v150, %v154
  %v157 = vlaneseq
  %v158 = vshrl.u32 %v157, 7
  %v159 = vadd.s32 %v158, 8
  %vm160 = vcmp.lt.s32.totalorder %v158, 0
  %v161 = vsub.s32 0, %v158
  %v162 = vsel %vm160, %v161, %v158
  %v163 = vshrl.u32 %v162, 3
  %v164 = vand.u32 %v162, 7
  %v165 = vsub.s32 0, %v164
  %v166 = vsel %vm160, %v165, %v164
  %vm167 = vcmp.lt.s32.totalorder %v159, 0
  %v168 = vsub.s32 0, %v159
  %v169 = vsel %vm167, %v168, %v159
  %v170 = vshrl.u32 %v169, 3
  %v171 = vand.u32 %v169, 7
  %v172 = vsub.s32 0, %v171
  %v173 = vsel %vm167, %v172, %v171
  %vm174 = vcmp.ne.s32.totalorder %v166, 0
  %vm175 = vcmp.ne.s32.totalorder %v173, 0
  %vm176 = vcmp.lt.s32.totalorder %v166, 0
  %vm177 = vcmp.lt.s32.totalorder %v173, 0
  %vm178 = vmand %vm176, %vm174
  %vm179 = vmand %vm177, %vm175
  %v180 = vadd.s32 %v166, 8
  %v181 = vadd.s32 %v173, 8
  %v182 = vsel %vm178, %v180, %v166
  %v183 = vsel %vm179, %v181, %v173
  %v184 = vlaneseq
  %v185 = vand.u32 %v184, 127
  %vm186 = vcmp.lt.s32.totalorder %v185, 0
  %v187 = vsub.s32 0, %v185
  %v188 = vsel %vm186, %v187, %v185
  %v189 = vshrl.u32 %v188, 3
  %v190 = vand.u32 %v188, 7
  %v191 = vsub.s32 0, %v190
  %v192 = vsel %vm186, %v191, %v190
  %vm193 = vcmp.ne.s32.totalorder %v192, 0
  %vm194 = vcmp.lt.s32.totalorder %v192, 0
  %vm195 = vmand %vm194, %vm193
  %v196 = vadd.s32 %v192, 8
  %v197 = vsel %vm195, %v196, %v192
  %vm198 = vcmp.eq.s32.totalorder %v182, %v197
  %vm199 = vcmp.eq.s32.totalorder %v183, %v197
  %v200 = vld [vmem:[%s10] sm:$0xff]
  %v201 = vld [vmem:[%s10 + $0x8] sm:$0x1]
  %v202 = vld [vmem:[%s11] sm:$0xff]
  %v203 = vld [vmem:[%s11 + $0x8] sm:$0xff]
  %v204 = vld [vmem:[%s4] sm:$0xf]
  %v205 = vld [vmem:[%s4 + $0x4] sm:$0xf]
  %v206 = vld [vmem:[%s4 + $0x8] sm:$0xf]
  %v207 = vld [vmem:[%s4 + $0xc] sm:$0xf]
  %v208 = vpack.c.bf16 %v156, %v155
  %v209 = vlaneseq
  %v210 = vshrl.u32 %v209, 7
  %v211 = vsub.s32 0, %v210
  %v212 = vrot.slane %v200, %v211
  %v217 = vunpack.c.l.b16 %v204
  %v218 = vunpack.c.l.b16 %v205
  %v219 = vunpack.c.l.b16 %v206
  %v220 = vunpack.c.l.b16 %v207
  %v221 = vpack.c.b16 %v218, %v217
  %v222 = vpack.c.b16 %v220, %v219
  %v224 = vsel %vm117, %v208, 0
  %v227 = vsel %vm117, %v221, 0
  %v230 = vsel %vm117, %v222, 0
  %232 = vmatprep.subr.bf16.mxu0 0
  %233 = vmatpush1.bf16.xpose.msra.mxu0 %v227
  %234 = vmatprep.subr.bf16.mxu0 0
  %235 = vmatpush1.bf16.xpose.msra.mxu0 %v230
  %236 = vmatprep.subr.bf16.mxu0 0
  %237 = vmatpush1.bf16.xpose.msra.mxu0 0
  %238 = vmatprep.subr.bf16.mxu0 0
  %239 = vmatpush1.bf16.xpose.msra.mxu0 0
  %240 = vmatprep.subr.bf16.mxu0 0
  %241 = vmatpush1.bf16.xpose.msra.mxu0 0
  %242 = vmatprep.subr.bf16.mxu0 0
  %243 = vmatpush1.bf16.xpose.msra.mxu0 0
  %244 = vmatprep.subr.bf16.mxu0 0
  %245 = vmatpush1.bf16.xpose.msra.mxu0 0
  %246 = vmatprep.subr.bf16.mxu0 0
  %247 = vmatpush1.bf16.xpose.msra.mxu0 0
  %248 = vmatprep.subr.bf16.mxu0 0
  %249 = vmatpush1.bf16.xpose.msra.mxu0 0
  %250 = vmatprep.subr.bf16.mxu0 0
  %251 = vmatpush1.bf16.xpose.msra.mxu0 0
  %252 = vmatprep.subr.bf16.mxu0 0
  %253 = vmatpush1.bf16.xpose.msra.mxu0 0
  %254 = vmatprep.subr.bf16.mxu0 0
  %255 = vmatpush1.bf16.xpose.msra.mxu0 0
  %256 = vmatprep.subr.bf16.mxu0 0
  %257 = vmatpush1.bf16.xpose.msra.mxu0 0
  %258 = vmatprep.subr.bf16.mxu0 0
  %259 = vmatpush1.bf16.xpose.msra.mxu0 0
  %260 = vmatprep.subr.bf16.mxu0 0
  %261 = vmatpush1.bf16.xpose.msra.mxu0 0
  %262 = vmatprep.subr.bf16.mxu0 0
  %263 = vmatpush1.bf16.xpose.msra.mxu0 0
  %264 = vmatprep.mubr.bf16.mxu0 0
  %265 = vmatmul.mubr.bf16.gmra.mrb[0].mxu0 %v224
  %v266 = vpop.f32.mrb[0].mxu0
  %v267 = vadd.f32 %v212, %v266
  %v268 = vpop.f32.mrb[0].mxu0
  %v269 = vpop.f32.mrb[0].mxu0
  %v270 = vadd.f32 %v212, %v269
  %v271 = vpop.f32.mrb[0].mxu0
  %272 = vdwg.mxu0
  %v273 = vld [vmem:[%s5] sm:$0xf]
  %v274 = vld [vmem:[%s5 + $0x4] sm:$0xf]
  %v275 = vld [vmem:[%s5 + $0x8] sm:$0xf]
  %v276 = vld [vmem:[%s5 + $0xc] sm:$0xf]
  %v277 = vlaneseq
  %v278 = vshrl.u32 %v277, 7
  %v279 = vsub.s32 1, %v278
  %v280 = vrot.slane %v200, %v279
  %v285 = vunpack.c.l.b16 %v273
  %v286 = vunpack.c.l.b16 %v274
  %v287 = vunpack.c.l.b16 %v275
  %v288 = vunpack.c.l.b16 %v276
  %v289 = vpack.c.b16 %v286, %v285
  %v290 = vpack.c.b16 %v288, %v287
  %v292 = vsel %vm117, %v289, 0
  %v295 = vsel %vm117, %v290, 0
  %297 = vmatprep.subr.bf16.mxu0 0
  %298 = vmatpush1.bf16.xpose.msra.mxu0 %v292
  %299 = vmatprep.subr.bf16.mxu0 0
  %300 = vmatpush1.bf16.xpose.msra.mxu0 %v295
  %301 = vmatprep.subr.bf16.mxu0 0
  %302 = vmatpush1.bf16.xpose.msra.mxu0 0
  %303 = vmatprep.subr.bf16.mxu0 0
  %304 = vmatpush1.bf16.xpose.msra.mxu0 0
  %305 = vmatprep.subr.bf16.mxu0 0
  %306 = vmatpush1.bf16.xpose.msra.mxu0 0
  %307 = vmatprep.subr.bf16.mxu0 0
  %308 = vmatpush1.bf16.xpose.msra.mxu0 0
  %309 = vmatprep.subr.bf16.mxu0 0
  %310 = vmatpush1.bf16.xpose.msra.mxu0 0
  %311 = vmatprep.subr.bf16.mxu0 0
  %312 = vmatpush1.bf16.xpose.msra.mxu0 0
  %313 = vmatprep.subr.bf16.mxu0 0
  %314 = vmatpush1.bf16.xpose.msra.mxu0 0
  %315 = vmatprep.subr.bf16.mxu0 0
  %316 = vmatpush1.bf16.xpose.msra.mxu0 0
  %317 = vmatprep.subr.bf16.mxu0 0
  %318 = vmatpush1.bf16.xpose.msra.mxu0 0
  %319 = vmatprep.subr.bf16.mxu0 0
  %320 = vmatpush1.bf16.xpose.msra.mxu0 0
  %321 = vmatprep.subr.bf16.mxu0 0
  %322 = vmatpush1.bf16.xpose.msra.mxu0 0
  %323 = vmatprep.subr.bf16.mxu0 0
  %324 = vmatpush1.bf16.xpose.msra.mxu0 0
  %325 = vmatprep.subr.bf16.mxu0 0
  %326 = vmatpush1.bf16.xpose.msra.mxu0 0
  %327 = vmatprep.subr.bf16.mxu0 0
  %328 = vmatpush1.bf16.xpose.msra.mxu0 0
  %329 = vmatprep.mubr.bf16.mxu0 0
  %330 = vmatmul.mubr.bf16.gmra.mrb[0].mxu0 %v224
  %v331 = vpop.f32.mrb[0].mxu0
  %v332 = vadd.f32 %v280, %v331
  %v333 = vpop.f32.mrb[0].mxu0
  %v334 = vpop.f32.mrb[0].mxu0
  %v335 = vadd.f32 %v280, %v334
  %v336 = vpop.f32.mrb[0].mxu0
  %337 = vdwg.mxu0
  %v338 = vld [vmem:[%s6] sm:$0xf]
  %v339 = vld [vmem:[%s6 + $0x4] sm:$0xf]
  %v340 = vld [vmem:[%s6 + $0x8] sm:$0xf]
  %v341 = vld [vmem:[%s6 + $0xc] sm:$0xf]
  %v342 = vlaneseq
  %v343 = vshrl.u32 %v342, 7
  %v344 = vsub.s32 2, %v343
  %v345 = vrot.slane %v200, %v344
  %v350 = vunpack.c.l.b16 %v338
  %v351 = vunpack.c.l.b16 %v339
  %v352 = vunpack.c.l.b16 %v340
  %v353 = vunpack.c.l.b16 %v341
  %v354 = vpack.c.b16 %v351, %v350
  %v355 = vpack.c.b16 %v353, %v352
  %v357 = vsel %vm117, %v354, 0
  %v360 = vsel %vm117, %v355, 0
  %362 = vmatprep.subr.bf16.mxu0 0
  %363 = vmatpush1.bf16.xpose.msra.mxu0 %v357
  %364 = vmatprep.subr.bf16.mxu0 0
  %365 = vmatpush1.bf16.xpose.msra.mxu0 %v360
  %366 = vmatprep.subr.bf16.mxu0 0
  %367 = vmatpush1.bf16.xpose.msra.mxu0 0
  %368 = vmatprep.subr.bf16.mxu0 0
  %369 = vmatpush1.bf16.xpose.msra.mxu0 0
  %370 = vmatprep.subr.bf16.mxu0 0
  %371 = vmatpush1.bf16.xpose.msra.mxu0 0
  %372 = vmatprep.subr.bf16.mxu0 0
  %373 = vmatpush1.bf16.xpose.msra.mxu0 0
  %374 = vmatprep.subr.bf16.mxu0 0
  %375 = vmatpush1.bf16.xpose.msra.mxu0 0
  %376 = vmatprep.subr.bf16.mxu0 0
  %377 = vmatpush1.bf16.xpose.msra.mxu0 0
  %378 = vmatprep.subr.bf16.mxu0 0
  %379 = vmatpush1.bf16.xpose.msra.mxu0 0
  %380 = vmatprep.subr.bf16.mxu0 0
  %381 = vmatpush1.bf16.xpose.msra.mxu0 0
  %382 = vmatprep.subr.bf16.mxu0 0
  %383 = vmatpush1.bf16.xpose.msra.mxu0 0
  %384 = vmatprep.subr.bf16.mxu0 0
  %385 = vmatpush1.bf16.xpose.msra.mxu0 0
  %386 = vmatprep.subr.bf16.mxu0 0
  %387 = vmatpush1.bf16.xpose.msra.mxu0 0
  %388 = vmatprep.subr.bf16.mxu0 0
  %389 = vmatpush1.bf16.xpose.msra.mxu0 0
  %390 = vmatprep.subr.bf16.mxu0 0
  %391 = vmatpush1.bf16.xpose.msra.mxu0 0
  %392 = vmatprep.subr.bf16.mxu0 0
  %393 = vmatpush1.bf16.xpose.msra.mxu0 0
  %394 = vmatprep.mubr.bf16.mxu0 0
  %395 = vmatmul.mubr.bf16.gmra.mrb[0].mxu0 %v224
  %v396 = vpop.f32.mrb[0].mxu0
  %v397 = vadd.f32 %v345, %v396
  %v398 = vpop.f32.mrb[0].mxu0
  %v399 = vpop.f32.mrb[0].mxu0
  %v400 = vadd.f32 %v345, %v399
  %v401 = vpop.f32.mrb[0].mxu0
  %402 = vdwg.mxu0
  %vm403 = vcmask 64512
  %v405 = vsel %vm403, %v267, 0
  %v408 = vsel %vm403, %v270, 0
  %v411 = vsel %vm403, %v332, 0
  %v414 = vsel %vm403, %v335, 0
  %416 = vmatprep.subr.mxu0 0.0
  %417 = vmatpush1.xpose.msra.mxu0 %v411
  %418 = vmatprep.subr.mxu0 0.0
  %419 = vmatpush1.xpose.msra.mxu0 %v414
  %420 = vmatprep.subr.mxu0 0.0
  %421 = vmatpush1.xpose.msra.mxu0 0.0
  %422 = vmatprep.subr.mxu0 0.0
  %423 = vmatpush1.xpose.msra.mxu0 0.0
  %424 = vmatprep.subr.mxu0 0.0
  %425 = vmatpush1.xpose.msra.mxu0 0.0
  %426 = vmatprep.subr.mxu0 0.0
  %427 = vmatpush1.xpose.msra.mxu0 0.0
  %428 = vmatprep.subr.mxu0 0.0
  %429 = vmatpush1.xpose.msra.mxu0 0.0
  %430 = vmatprep.subr.mxu0 0.0
  %431 = vmatpush1.xpose.msra.mxu0 0.0
  %432 = vmatprep.subr.mxu0 0.0
  %433 = vmatpush1.xpose.msra.mxu0 0.0
  %434 = vmatprep.subr.mxu0 0.0
  %435 = vmatpush1.xpose.msra.mxu0 0.0
  %436 = vmatprep.subr.mxu0 0.0
  %437 = vmatpush1.xpose.msra.mxu0 0.0
  %438 = vmatprep.subr.mxu0 0.0
  %439 = vmatpush1.xpose.msra.mxu0 0.0
  %440 = vmatprep.subr.mxu0 0.0
  %441 = vmatpush1.xpose.msra.mxu0 0.0
  %442 = vmatprep.subr.mxu0 0.0
  %443 = vmatpush1.xpose.msra.mxu0 0.0
  %444 = vmatprep.subr.mxu0 0.0
  %445 = vmatpush1.xpose.msra.mxu0 0.0
  %446 = vmatprep.subr.mxu0 0.0
  %447 = vmatpush1.xpose.msra.mxu0 0.0
  %448 = vmatprep.subr.mxu0 0.0
  %449 = vmatpush1.xpose.msra.mxu0 0.0
  %450 = vmatprep.subr.mxu0 0.0
  %451 = vmatpush1.xpose.msra.mxu0 0.0
  %452 = vmatprep.subr.mxu0 0.0
  %453 = vmatpush1.xpose.msra.mxu0 0.0
  %454 = vmatprep.subr.mxu0 0.0
  %455 = vmatpush1.xpose.msra.mxu0 0.0
  %456 = vmatprep.subr.mxu0 0.0
  %457 = vmatpush1.xpose.msra.mxu0 0.0
  %458 = vmatprep.subr.mxu0 0.0
  %459 = vmatpush1.xpose.msra.mxu0 0.0
  %460 = vmatprep.subr.mxu0 0.0
  %461 = vmatpush1.xpose.msra.mxu0 0.0
  %462 = vmatprep.subr.mxu0 0.0
  %463 = vmatpush1.xpose.msra.mxu0 0.0
  %464 = vmatprep.subr.mxu0 0.0
  %465 = vmatpush1.xpose.msra.mxu0 0.0
  %466 = vmatprep.subr.mxu0 0.0
  %467 = vmatpush1.xpose.msra.mxu0 0.0
  %468 = vmatprep.subr.mxu0 0.0
  %469 = vmatpush1.xpose.msra.mxu0 0.0
  %470 = vmatprep.subr.mxu0 0.0
  %471 = vmatpush1.xpose.msra.mxu0 0.0
  %472 = vmatprep.subr.mxu0 0.0
  %473 = vmatpush1.xpose.msra.mxu0 0.0
  %474 = vmatprep.subr.mxu0 0.0
  %475 = vmatpush1.xpose.msra.mxu0 0.0
  %476 = vmatprep.subr.mxu0 0.0
  %477 = vmatpush1.xpose.msra.mxu0 0.0
  %478 = vmatprep.subr.mxu0 0.0
  %479 = vmatpush1.xpose.msra.mxu0 0.0
  %480 = vmatprep.mubr.f32.mxu0 0.0
  %481 = vmatmul.mubr.f32.gmra.mrb[0].mxu0 %v405
  %v482 = vpop.f32.mrb[0].mxu0
  %v483 = vadd.f32 0.0, %v482
  %v484 = vpop.f32.mrb[0].mxu0
  %485 = vmatprep.mubr.f32.mxu0 0.0
  %486 = vmatmul.mubr.f32.gmra.mrb[0].mxu0 %v408
  %v487 = vpop.f32.mrb[0].mxu0
  %v488 = vadd.f32 0.0, %v487
  %v489 = vpop.f32.mrb[0].mxu0
  %490 = vdwg.mxu0
  %v491 = vmul.f32 %v483, 0.35355338
  %v492 = vmul.f32 %v488, 0.35355338
  %v493 = vsel %vm198, %v491, -1e+30
  %v494 = vsel %vm199, %v492, -1e+30
  %v495 = vsel %vm64, %v493, -inf
  %496 = vmax.xlane.f32.xlu0 %v495
  %v497 = vpop.xlane.xlu0 %496
  %v498 = vsel %vm64, %v494, -inf
  %499 = vmax.xlane.f32.xlu0 %v498
  %v500 = vpop.xlane.xlu0 %499
  %v501 = vsub.f32 %v493, %v497
  %v502 = vsub.f32 %v494, %v500
  %v503 = vmul.f32 %v501, 1.442695
  %v504 = vpow.pop %v503
  %v505 = vmul.f32 %v502, 1.442695
  %v506 = vpow.pop %v505
  %v507 = vsel %vm64, %v504, 0.0
  %508 = vadd.xlane.f32.xlu0 %v507
  %v509 = vpop.xlane.xlu0 %508
  %v510 = vsel %vm64, %v506, 0.0
  %511 = vadd.xlane.f32.xlu0 %v510
  %v512 = vpop.xlane.xlu0 %511
  %v513 = vrcp.pop %v509
  %v514 = vrcp.pop %v512
  %v515 = vmul.f32 %v504, %v513
  %v516 = vmul.f32 %v506, %v514
  %v518 = vsel %vm64, %v515, 0
  %v521 = vsel %vm64, %v516, 0
  %523 = vmatprep.subr.mxu0 0.0
  %524 = vmatpush1.msra.mxu0 %v397
  %525 = vmatprep.subr.mxu0 0.0
  %526 = vmatpush1.msra.mxu0 %v400
  %527 = vmatprep.subr.mxu0 0.0
  %528 = vmatpush1.msra.mxu0 0.0
  %529 = vmatprep.subr.mxu0 0.0
  %530 = vmatpush1.msra.mxu0 0.0
  %531 = vmatprep.subr.mxu0 0.0
  %532 = vmatpush1.msra.mxu0 0.0
  %533 = vmatprep.subr.mxu0 0.0
  %534 = vmatpush1.msra.mxu0 0.0
  %535 = vmatprep.subr.mxu0 0.0
  %536 = vmatpush1.msra.mxu0 0.0
  %537 = vmatprep.subr.mxu0 0.0
  %538 = vmatpush1.msra.mxu0 0.0
  %539 = vmatprep.subr.mxu0 0.0
  %540 = vmatpush1.msra.mxu0 0.0
  %541 = vmatprep.subr.mxu0 0.0
  %542 = vmatpush1.msra.mxu0 0.0
  %543 = vmatprep.subr.mxu0 0.0
  %544 = vmatpush1.msra.mxu0 0.0
  %545 = vmatprep.subr.mxu0 0.0
  %546 = vmatpush1.msra.mxu0 0.0
  %547 = vmatprep.subr.mxu0 0.0
  %548 = vmatpush1.msra.mxu0 0.0
  %549 = vmatprep.subr.mxu0 0.0
  %550 = vmatpush1.msra.mxu0 0.0
  %551 = vmatprep.subr.mxu0 0.0
  %552 = vmatpush1.msra.mxu0 0.0
  %553 = vmatprep.subr.mxu0 0.0
  %554 = vmatpush1.msra.mxu0 0.0
  %555 = vmatprep.subr.mxu0 0.0
  %556 = vmatpush1.msra.mxu0 0.0
  %557 = vmatprep.subr.mxu0 0.0
  %558 = vmatpush1.msra.mxu0 0.0
  %559 = vmatprep.subr.mxu0 0.0
  %560 = vmatpush1.msra.mxu0 0.0
  %561 = vmatprep.subr.mxu0 0.0
  %562 = vmatpush1.msra.mxu0 0.0
  %563 = vmatprep.subr.mxu0 0.0
  %564 = vmatpush1.msra.mxu0 0.0
  %565 = vmatprep.subr.mxu0 0.0
  %566 = vmatpush1.msra.mxu0 0.0
  %567 = vmatprep.subr.mxu0 0.0
  %568 = vmatpush1.msra.mxu0 0.0
  %569 = vmatprep.subr.mxu0 0.0
  %570 = vmatpush1.msra.mxu0 0.0
  %571 = vmatprep.subr.mxu0 0.0
  %572 = vmatpush1.msra.mxu0 0.0
  %573 = vmatprep.subr.mxu0 0.0
  %574 = vmatpush1.msra.mxu0 0.0
  %575 = vmatprep.subr.mxu0 0.0
  %576 = vmatpush1.msra.mxu0 0.0
  %577 = vmatprep.subr.mxu0 0.0
  %578 = vmatpush1.msra.mxu0 0.0
  %579 = vmatprep.subr.mxu0 0.0
  %580 = vmatpush1.msra.mxu0 0.0
  %581 = vmatprep.subr.mxu0 0.0
  %582 = vmatpush1.msra.mxu0 0.0
  %583 = vmatprep.subr.mxu0 0.0
  %584 = vmatpush1.msra.mxu0 0.0
  %585 = vmatprep.subr.mxu0 0.0
  %586 = vmatpush1.msra.mxu0 0.0
  %587 = vmatprep.mubr.f32.mxu0 0.0
  %588 = vmatmul.mubr.f32.gmra.mrb[0].mxu0 %v518
  %v589 = vpop.f32.mrb[0].mxu0
  %v590 = vadd.f32 0.0, %v589
  %v591 = vpop.f32.mrb[0].mxu0
  %592 = vmatprep.mubr.f32.mxu0 0.0
  %593 = vmatmul.mubr.f32.gmra.mrb[0].mxu0 %v521
  %v594 = vpop.f32.mrb[0].mxu0
  %v595 = vadd.f32 0.0, %v594
  %v596 = vpop.f32.mrb[0].mxu0
  %597 = vdwg.mxu0
  %598 = vrot.lane.b32.xlu0 %v267, 120
  %v599 = vpop.permute.xlu0 %598
  %600 = vrot.lane.b32.xlu0 %v270, 120
  %v601 = vpop.permute.xlu0 %600
  %602 = vrot.lane.b32.xlu0 %v332, 120
  %v603 = vpop.permute.xlu0 %602
  %604 = vrot.lane.b32.xlu0 %v335, 120
  %v605 = vpop.permute.xlu0 %604
  %v606 = vsel %vm403, %v599, 0
  %v608 = vsel %vm403, %v601, 0
  %v610 = vsel %vm403, %v603, 0
  %v612 = vsel %vm403, %v605, 0
  %614 = vmatprep.subr.mxu0 0.0
  %615 = vmatpush1.xpose.msra.mxu0 %v610
  %616 = vmatprep.subr.mxu0 0.0
  %617 = vmatpush1.xpose.msra.mxu0 %v612
  %618 = vmatprep.subr.mxu0 0.0
  %619 = vmatpush1.xpose.msra.mxu0 0.0
  %620 = vmatprep.subr.mxu0 0.0
  %621 = vmatpush1.xpose.msra.mxu0 0.0
  %622 = vmatprep.subr.mxu0 0.0
  %623 = vmatpush1.xpose.msra.mxu0 0.0
  %624 = vmatprep.subr.mxu0 0.0
  %625 = vmatpush1.xpose.msra.mxu0 0.0
  %626 = vmatprep.subr.mxu0 0.0
  %627 = vmatpush1.xpose.msra.mxu0 0.0
  %628 = vmatprep.subr.mxu0 0.0
  %629 = vmatpush1.xpose.msra.mxu0 0.0
  %630 = vmatprep.subr.mxu0 0.0
  %631 = vmatpush1.xpose.msra.mxu0 0.0
  %632 = vmatprep.subr.mxu0 0.0
  %633 = vmatpush1.xpose.msra.mxu0 0.0
  %634 = vmatprep.subr.mxu0 0.0
  %635 = vmatpush1.xpose.msra.mxu0 0.0
  %636 = vmatprep.subr.mxu0 0.0
  %637 = vmatpush1.xpose.msra.mxu0 0.0
  %638 = vmatprep.subr.mxu0 0.0
  %639 = vmatpush1.xpose.msra.mxu0 0.0
  %640 = vmatprep.subr.mxu0 0.0
  %641 = vmatpush1.xpose.msra.mxu0 0.0
  %642 = vmatprep.subr.mxu0 0.0
  %643 = vmatpush1.xpose.msra.mxu0 0.0
  %644 = vmatprep.subr.mxu0 0.0
  %645 = vmatpush1.xpose.msra.mxu0 0.0
  %646 = vmatprep.subr.mxu0 0.0
  %647 = vmatpush1.xpose.msra.mxu0 0.0
  %648 = vmatprep.subr.mxu0 0.0
  %649 = vmatpush1.xpose.msra.mxu0 0.0
  %650 = vmatprep.subr.mxu0 0.0
  %651 = vmatpush1.xpose.msra.mxu0 0.0
  %652 = vmatprep.subr.mxu0 0.0
  %653 = vmatpush1.xpose.msra.mxu0 0.0
  %654 = vmatprep.subr.mxu0 0.0
  %655 = vmatpush1.xpose.msra.mxu0 0.0
  %656 = vmatprep.subr.mxu0 0.0
  %657 = vmatpush1.xpose.msra.mxu0 0.0
  %658 = vmatprep.subr.mxu0 0.0
  %659 = vmatpush1.xpose.msra.mxu0 0.0
  %660 = vmatprep.subr.mxu0 0.0
  %661 = vmatpush1.xpose.msra.mxu0 0.0
  %662 = vmatprep.subr.mxu0 0.0
  %663 = vmatpush1.xpose.msra.mxu0 0.0
  %664 = vmatprep.subr.mxu0 0.0
  %665 = vmatpush1.xpose.msra.mxu0 0.0
  %666 = vmatprep.subr.mxu0 0.0
  %667 = vmatpush1.xpose.msra.mxu0 0.0
  %668 = vmatprep.subr.mxu0 0.0
  %669 = vmatpush1.xpose.msra.mxu0 0.0
  %670 = vmatprep.subr.mxu0 0.0
  %671 = vmatpush1.xpose.msra.mxu0 0.0
  %672 = vmatprep.subr.mxu0 0.0
  %673 = vmatpush1.xpose.msra.mxu0 0.0
  %674 = vmatprep.subr.mxu0 0.0
  %675 = vmatpush1.xpose.msra.mxu0 0.0
  %676 = vmatprep.subr.mxu0 0.0
  %677 = vmatpush1.xpose.msra.mxu0 0.0
  %678 = vmatprep.mubr.f32.mxu0 0.0
  %679 = vmatmul.mubr.f32.gmra.mrb[0].mxu0 %v606
  %v680 = vpop.f32.mrb[0].mxu0
  %v681 = vadd.f32 0.0, %v680
  %v682 = vpop.f32.mrb[0].mxu0
  %683 = vmatprep.mubr.f32.mxu0 0.0
  %684 = vmatmul.mubr.f32.gmra.mrb[0].mxu0 %v608
  %v685 = vpop.f32.mrb[0].mxu0
  %v686 = vadd.f32 0.0, %v685
  %v687 = vpop.f32.mrb[0].mxu0
  %688 = vdwg.mxu0
  %v689 = vmul.f32 %v681, 0.35355338
  %v690 = vmul.f32 %v686, 0.35355338
  %v691 = vsel %vm198, %v689, -1e+30
  %v692 = vsel %vm199, %v690, -1e+30
  %v693 = vsel %vm64, %v691, -inf
  %694 = vmax.xlane.f32.xlu0 %v693
  %v695 = vpop.xlane.xlu0 %694
  %v696 = vsel %vm64, %v692, -inf
  %697 = vmax.xlane.f32.xlu0 %v696
  %v698 = vpop.xlane.xlu0 %697
  %v699 = vsub.f32 %v691, %v695
  %v700 = vsub.f32 %v692, %v698
  %v701 = vmul.f32 %v699, 1.442695
  %v702 = vpow.pop %v701
  %v703 = vmul.f32 %v700, 1.442695
  %v704 = vpow.pop %v703
  %v705 = vsel %vm64, %v702, 0.0
  %706 = vadd.xlane.f32.xlu0 %v705
  %v707 = vpop.xlane.xlu0 %706
  %v708 = vsel %vm64, %v704, 0.0
  %709 = vadd.xlane.f32.xlu0 %v708
  %v710 = vpop.xlane.xlu0 %709
  %v711 = vrcp.pop %v707
  %v712 = vrcp.pop %v710
  %v713 = vmul.f32 %v702, %v711
  %v714 = vmul.f32 %v704, %v712
  %717 = vrot.lane.b32.xlu0 %v397, 120
  %v718 = vpop.permute.xlu0 %717
  %719 = vrot.lane.b32.xlu0 %v400, 120
  %v720 = vpop.permute.xlu0 %719
  %v724 = vsel %vm64, %v713, 0
  %v727 = vsel %vm64, %v714, 0
  %729 = vmatprep.subr.mxu0 0.0
  %730 = vmatpush1.msra.mxu0 %v718
  %731 = vmatprep.subr.mxu0 0.0
  %732 = vmatpush1.msra.mxu0 %v720
  %733 = vmatprep.subr.mxu0 0.0
  %734 = vmatpush1.msra.mxu0 0.0
  %735 = vmatprep.subr.mxu0 0.0
  %736 = vmatpush1.msra.mxu0 0.0
  %737 = vmatprep.subr.mxu0 0.0
  %738 = vmatpush1.msra.mxu0 0.0
  %739 = vmatprep.subr.mxu0 0.0
  %740 = vmatpush1.msra.mxu0 0.0
  %741 = vmatprep.subr.mxu0 0.0
  %742 = vmatpush1.msra.mxu0 0.0
  %743 = vmatprep.subr.mxu0 0.0
  %744 = vmatpush1.msra.mxu0 0.0
  %745 = vmatprep.subr.mxu0 0.0
  %746 = vmatpush1.msra.mxu0 0.0
  %747 = vmatprep.subr.mxu0 0.0
  %748 = vmatpush1.msra.mxu0 0.0
  %749 = vmatprep.subr.mxu0 0.0
  %750 = vmatpush1.msra.mxu0 0.0
  %751 = vmatprep.subr.mxu0 0.0
  %752 = vmatpush1.msra.mxu0 0.0
  %753 = vmatprep.subr.mxu0 0.0
  %754 = vmatpush1.msra.mxu0 0.0
  %755 = vmatprep.subr.mxu0 0.0
  %756 = vmatpush1.msra.mxu0 0.0
  %757 = vmatprep.subr.mxu0 0.0
  %758 = vmatpush1.msra.mxu0 0.0
  %759 = vmatprep.subr.mxu0 0.0
  %760 = vmatpush1.msra.mxu0 0.0
  %761 = vmatprep.subr.mxu0 0.0
  %762 = vmatpush1.msra.mxu0 0.0
  %763 = vmatprep.subr.mxu0 0.0
  %764 = vmatpush1.msra.mxu0 0.0
  %765 = vmatprep.subr.mxu0 0.0
  %766 = vmatpush1.msra.mxu0 0.0
  %767 = vmatprep.subr.mxu0 0.0
  %768 = vmatpush1.msra.mxu0 0.0
  %769 = vmatprep.subr.mxu0 0.0
  %770 = vmatpush1.msra.mxu0 0.0
  %771 = vmatprep.subr.mxu0 0.0
  %772 = vmatpush1.msra.mxu0 0.0
  %773 = vmatprep.subr.mxu0 0.0
  %774 = vmatpush1.msra.mxu0 0.0
  %775 = vmatprep.subr.mxu0 0.0
  %776 = vmatpush1.msra.mxu0 0.0
  %777 = vmatprep.subr.mxu0 0.0
  %778 = vmatpush1.msra.mxu0 0.0
  %779 = vmatprep.subr.mxu0 0.0
  %780 = vmatpush1.msra.mxu0 0.0
  %781 = vmatprep.subr.mxu0 0.0
  %782 = vmatpush1.msra.mxu0 0.0
  %783 = vmatprep.subr.mxu0 0.0
  %784 = vmatpush1.msra.mxu0 0.0
  %785 = vmatprep.subr.mxu0 0.0
  %786 = vmatpush1.msra.mxu0 0.0
  %787 = vmatprep.subr.mxu0 0.0
  %788 = vmatpush1.msra.mxu0 0.0
  %789 = vmatprep.subr.mxu0 0.0
  %790 = vmatpush1.msra.mxu0 0.0
  %791 = vmatprep.subr.mxu0 0.0
  %792 = vmatpush1.msra.mxu0 0.0
  %793 = vmatprep.mubr.f32.mxu0 0.0
  %794 = vmatmul.mubr.f32.gmra.mrb[0].mxu0 %v724
  %v795 = vpop.f32.mrb[0].mxu0
  %v796 = vadd.f32 0.0, %v795
  %v797 = vpop.f32.mrb[0].mxu0
  %798 = vmatprep.mubr.f32.mxu0 0.0
  %799 = vmatmul.mubr.f32.gmra.mrb[0].mxu0 %v727
  %v800 = vpop.f32.mrb[0].mxu0
  %v801 = vadd.f32 0.0, %v800
  %v802 = vpop.f32.mrb[0].mxu0
  %803 = vdwg.mxu0
  %804 = vrot.lane.b32.xlu0 %v267, 112
  %v805 = vpop.permute.xlu0 %804
  %806 = vrot.lane.b32.xlu0 %v270, 112
  %v807 = vpop.permute.xlu0 %806
  %808 = vrot.lane.b32.xlu0 %v332, 112
  %v809 = vpop.permute.xlu0 %808
  %810 = vrot.lane.b32.xlu0 %v335, 112
  %v811 = vpop.permute.xlu0 %810
  %v812 = vsel %vm403, %v805, 0
  %v814 = vsel %vm403, %v807, 0
  %v816 = vsel %vm403, %v809, 0
  %v818 = vsel %vm403, %v811, 0
  %820 = vmatprep.subr.mxu0 0.0
  %821 = vmatpush1.xpose.msra.mxu0 %v816
  %822 = vmatprep.subr.mxu0 0.0
  %823 = vmatpush1.xpose.msra.mxu0 %v818
  %824 = vmatprep.subr.mxu0 0.0
  %825 = vmatpush1.xpose.msra.mxu0 0.0
  %826 = vmatprep.subr.mxu0 0.0
  %827 = vmatpush1.xpose.msra.mxu0 0.0
  %828 = vmatprep.subr.mxu0 0.0
  %829 = vmatpush1.xpose.msra.mxu0 0.0
  %830 = vmatprep.subr.mxu0 0.0
  %831 = vmatpush1.xpose.msra.mxu0 0.0
  %832 = vmatprep.subr.mxu0 0.0
  %833 = vmatpush1.xpose.msra.mxu0 0.0
  %834 = vmatprep.subr.mxu0 0.0
  %835 = vmatpush1.xpose.msra.mxu0 0.0
  %836 = vmatprep.subr.mxu0 0.0
  %837 = vmatpush1.xpose.msra.mxu0 0.0
  %838 = vmatprep.subr.mxu0 0.0
  %839 = vmatpush1.xpose.msra.mxu0 0.0
  %840 = vmatprep.subr.mxu0 0.0
  %841 = vmatpush1.xpose.msra.mxu0 0.0
  %842 = vmatprep.subr.mxu0 0.0
  %843 = vmatpush1.xpose.msra.mxu0 0.0
  %844 = vmatprep.subr.mxu0 0.0
  %845 = vmatpush1.xpose.msra.mxu0 0.0
  %846 = vmatprep.subr.mxu0 0.0
  %847 = vmatpush1.xpose.msra.mxu0 0.0
  %848 = vmatprep.subr.mxu0 0.0
  %849 = vmatpush1.xpose.msra.mxu0 0.0
  %850 = vmatprep.subr.mxu0 0.0
  %851 = vmatpush1.xpose.msra.mxu0 0.0
  %852 = vmatprep.subr.mxu0 0.0
  %853 = vmatpush1.xpose.msra.mxu0 0.0
  %854 = vmatprep.subr.mxu0 0.0
  %855 = vmatpush1.xpose.msra.mxu0 0.0
  %856 = vmatprep.subr.mxu0 0.0
  %857 = vmatpush1.xpose.msra.mxu0 0.0
  %858 = vmatprep.subr.mxu0 0.0
  %859 = vmatpush1.xpose.msra.mxu0 0.0
  %860 = vmatprep.subr.mxu0 0.0
  %861 = vmatpush1.xpose.msra.mxu0 0.0
  %862 = vmatprep.subr.mxu0 0.0
  %863 = vmatpush1.xpose.msra.mxu0 0.0
  %864 = vmatprep.subr.mxu0 0.0
  %865 = vmatpush1.xpose.msra.mxu0 0.0
  %866 = vmatprep.subr.mxu0 0.0
  %867 = vmatpush1.xpose.msra.mxu0 0.0
  %868 = vmatprep.subr.mxu0 0.0
  %869 = vmatpush1.xpose.msra.mxu0 0.0
  %870 = vmatprep.subr.mxu0 0.0
  %871 = vmatpush1.xpose.msra.mxu0 0.0
  %872 = vmatprep.subr.mxu0 0.0
  %873 = vmatpush1.xpose.msra.mxu0 0.0
  %874 = vmatprep.subr.mxu0 0.0
  %875 = vmatpush1.xpose.msra.mxu0 0.0
  %876 = vmatprep.subr.mxu0 0.0
  %877 = vmatpush1.xpose.msra.mxu0 0.0
  %878 = vmatprep.subr.mxu0 0.0
  %879 = vmatpush1.xpose.msra.mxu0 0.0
  %880 = vmatprep.subr.mxu0 0.0
  %881 = vmatpush1.xpose.msra.mxu0 0.0
  %882 = vmatprep.subr.mxu0 0.0
  %883 = vmatpush1.xpose.msra.mxu0 0.0
  %884 = vmatprep.mubr.f32.mxu0 0.0
  %885 = vmatmul.mubr.f32.gmra.mrb[0].mxu0 %v812
  %v886 = vpop.f32.mrb[0].mxu0
  %v887 = vadd.f32 0.0, %v886
  %v888 = vpop.f32.mrb[0].mxu0
  %889 = vmatprep.mubr.f32.mxu0 0.0
  %890 = vmatmul.mubr.f32.gmra.mrb[0].mxu0 %v814
  %v891 = vpop.f32.mrb[0].mxu0
  %v892 = vadd.f32 0.0, %v891
  %v893 = vpop.f32.mrb[0].mxu0
  %894 = vdwg.mxu0
  %v895 = vmul.f32 %v887, 0.35355338
  %v896 = vmul.f32 %v892, 0.35355338
  %v897 = vsel %vm198, %v895, -1e+30
  %v898 = vsel %vm199, %v896, -1e+30
  %v899 = vsel %vm64, %v897, -inf
  %900 = vmax.xlane.f32.xlu0 %v899
  %v901 = vpop.xlane.xlu0 %900
  %v902 = vsel %vm64, %v898, -inf
  %903 = vmax.xlane.f32.xlu0 %v902
  %v904 = vpop.xlane.xlu0 %903
  %v905 = vsub.f32 %v897, %v901
  %v906 = vsub.f32 %v898, %v904
  %v907 = vmul.f32 %v905, 1.442695
  %v908 = vpow.pop %v907
  %v909 = vmul.f32 %v906, 1.442695
  %v910 = vpow.pop %v909
  %v911 = vsel %vm64, %v908, 0.0
  %912 = vadd.xlane.f32.xlu0 %v911
  %v913 = vpop.xlane.xlu0 %912
  %v914 = vsel %vm64, %v910, 0.0
  %915 = vadd.xlane.f32.xlu0 %v914
  %v916 = vpop.xlane.xlu0 %915
  %v917 = vrcp.pop %v913
  %v918 = vrcp.pop %v916
  %v919 = vmul.f32 %v908, %v917
  %v920 = vmul.f32 %v910, %v918
  %921 = vrot.lane.b32.xlu0 %v397, 112
  %v922 = vpop.permute.xlu0 %921
  %923 = vrot.lane.b32.xlu0 %v400, 112
  %v924 = vpop.permute.xlu0 %923
  %v928 = vsel %vm64, %v919, 0
  %v931 = vsel %vm64, %v920, 0
  %933 = vmatprep.subr.mxu0 0.0
  %934 = vmatpush1.msra.mxu0 %v922
  %935 = vmatprep.subr.mxu0 0.0
  %936 = vmatpush1.msra.mxu0 %v924
  %937 = vmatprep.subr.mxu0 0.0
  %938 = vmatpush1.msra.mxu0 0.0
  %939 = vmatprep.subr.mxu0 0.0
  %940 = vmatpush1.msra.mxu0 0.0
  %941 = vmatprep.subr.mxu0 0.0
  %942 = vmatpush1.msra.mxu0 0.0
  %943 = vmatprep.subr.mxu0 0.0
  %944 = vmatpush1.msra.mxu0 0.0
  %945 = vmatprep.subr.mxu0 0.0
  %946 = vmatpush1.msra.mxu0 0.0
  %947 = vmatprep.subr.mxu0 0.0
  %948 = vmatpush1.msra.mxu0 0.0
  %949 = vmatprep.subr.mxu0 0.0
  %950 = vmatpush1.msra.mxu0 0.0
  %951 = vmatprep.subr.mxu0 0.0
  %952 = vmatpush1.msra.mxu0 0.0
  %953 = vmatprep.subr.mxu0 0.0
  %954 = vmatpush1.msra.mxu0 0.0
  %955 = vmatprep.subr.mxu0 0.0
  %956 = vmatpush1.msra.mxu0 0.0
  %957 = vmatprep.subr.mxu0 0.0
  %958 = vmatpush1.msra.mxu0 0.0
  %959 = vmatprep.subr.mxu0 0.0
  %960 = vmatpush1.msra.mxu0 0.0
  %961 = vmatprep.subr.mxu0 0.0
  %962 = vmatpush1.msra.mxu0 0.0
  %963 = vmatprep.subr.mxu0 0.0
  %964 = vmatpush1.msra.mxu0 0.0
  %965 = vmatprep.subr.mxu0 0.0
  %966 = vmatpush1.msra.mxu0 0.0
  %967 = vmatprep.subr.mxu0 0.0
  %968 = vmatpush1.msra.mxu0 0.0
  %969 = vmatprep.subr.mxu0 0.0
  %970 = vmatpush1.msra.mxu0 0.0
  %971 = vmatprep.subr.mxu0 0.0
  %972 = vmatpush1.msra.mxu0 0.0
  %973 = vmatprep.subr.mxu0 0.0
  %974 = vmatpush1.msra.mxu0 0.0
  %975 = vmatprep.subr.mxu0 0.0
  %976 = vmatpush1.msra.mxu0 0.0
  %977 = vmatprep.subr.mxu0 0.0
  %978 = vmatpush1.msra.mxu0 0.0
  %979 = vmatprep.subr.mxu0 0.0
  %980 = vmatpush1.msra.mxu0 0.0
  %981 = vmatprep.subr.mxu0 0.0
  %982 = vmatpush1.msra.mxu0 0.0
  %983 = vmatprep.subr.mxu0 0.0
  %984 = vmatpush1.msra.mxu0 0.0
  %985 = vmatprep.subr.mxu0 0.0
  %986 = vmatpush1.msra.mxu0 0.0
  %987 = vmatprep.subr.mxu0 0.0
  %988 = vmatpush1.msra.mxu0 0.0
  %989 = vmatprep.subr.mxu0 0.0
  %990 = vmatpush1.msra.mxu0 0.0
  %991 = vmatprep.subr.mxu0 0.0
  %992 = vmatpush1.msra.mxu0 0.0
  %993 = vmatprep.subr.mxu0 0.0
  %994 = vmatpush1.msra.mxu0 0.0
  %995 = vmatprep.subr.mxu0 0.0
  %996 = vmatpush1.msra.mxu0 0.0
  %997 = vmatprep.mubr.f32.mxu0 0.0
  %998 = vmatmul.mubr.f32.gmra.mrb[0].mxu0 %v928
  %v999 = vpop.f32.mrb[0].mxu0
  %v1000 = vadd.f32 0.0, %v999
  %v1001 = vpop.f32.mrb[0].mxu0
  %1002 = vmatprep.mubr.f32.mxu0 0.0
  %1003 = vmatmul.mubr.f32.gmra.mrb[0].mxu0 %v931
  %v1004 = vpop.f32.mrb[0].mxu0
  %v1005 = vadd.f32 0.0, %v1004
  %v1006 = vpop.f32.mrb[0].mxu0
  %1007 = vdwg.mxu0
  %1008 = vrot.lane.b32.xlu0 %v267, 104
  %v1009 = vpop.permute.xlu0 %1008
  %1010 = vrot.lane.b32.xlu0 %v270, 104
  %v1011 = vpop.permute.xlu0 %1010
  %1012 = vrot.lane.b32.xlu0 %v332, 104
  %v1013 = vpop.permute.xlu0 %1012
  %1014 = vrot.lane.b32.xlu0 %v335, 104
  %v1015 = vpop.permute.xlu0 %1014
  %v1016 = vsel %vm403, %v1009, 0
  %v1018 = vsel %vm403, %v1011, 0
  %v1020 = vsel %vm403, %v1013, 0
  %v1022 = vsel %vm403, %v1015, 0
  %1024 = vmatprep.subr.mxu0 0.0
  %1025 = vmatpush1.xpose.msra.mxu0 %v1020
  %1026 = vmatprep.subr.mxu0 0.0
  %1027 = vmatpush1.xpose.msra.mxu0 %v1022
  %1028 = vmatprep.subr.mxu0 0.0
  %1029 = vmatpush1.xpose.msra.mxu0 0.0
  %1030 = vmatprep.subr.mxu0 0.0
  %1031 = vmatpush1.xpose.msra.mxu0 0.0
  %1032 = vmatprep.subr.mxu0 0.0
  %1033 = vmatpush1.xpose.msra.mxu0 0.0
  %1034 = vmatprep.subr.mxu0 0.0
  %1035 = vmatpush1.xpose.msra.mxu0 0.0
  %1036 = vmatprep.subr.mxu0 0.0
  %1037 = vmatpush1.xpose.msra.mxu0 0.0
  %1038 = vmatprep.subr.mxu0 0.0
  %1039 = vmatpush1.xpose.msra.mxu0 0.0
  %1040 = vmatprep.subr.mxu0 0.0
  %1041 = vmatpush1.xpose.msra.mxu0 0.0
  %1042 = vmatprep.subr.mxu0 0.0
  %1043 = vmatpush1.xpose.msra.mxu0 0.0
  %1044 = vmatprep.subr.mxu0 0.0
  %1045 = vmatpush1.xpose.msra.mxu0 0.0
  %1046 = vmatprep.subr.mxu0 0.0
  %1047 = vmatpush1.xpose.msra.mxu0 0.0
  %1048 = vmatprep.subr.mxu0 0.0
  %1049 = vmatpush1.xpose.msra.mxu0 0.0
  %1050 = vmatprep.subr.mxu0 0.0
  %1051 = vmatpush1.xpose.msra.mxu0 0.0
  %1052 = vmatprep.subr.mxu0 0.0
  %1053 = vmatpush1.xpose.msra.mxu0 0.0
  %1054 = vmatprep.subr.mxu0 0.0
  %1055 = vmatpush1.xpose.msra.mxu0 0.0
  %1056 = vmatprep.subr.mxu0 0.0
  %1057 = vmatpush1.xpose.msra.mxu0 0.0
  %1058 = vmatprep.subr.mxu0 0.0
  %1059 = vmatpush1.xpose.msra.mxu0 0.0
  %1060 = vmatprep.subr.mxu0 0.0
  %1061 = vmatpush1.xpose.msra.mxu0 0.0
  %1062 = vmatprep.subr.mxu0 0.0
  %1063 = vmatpush1.xpose.msra.mxu0 0.0
  %1064 = vmatprep.subr.mxu0 0.0
  %1065 = vmatpush1.xpose.msra.mxu0 0.0
  %1066 = vmatprep.subr.mxu0 0.0
  %1067 = vmatpush1.xpose.msra.mxu0 0.0
  %1068 = vmatprep.subr.mxu0 0.0
  %1069 = vmatpush1.xpose.msra.mxu0 0.0
  %1070 = vmatprep.subr.mxu0 0.0
  %1071 = vmatpush1.xpose.msra.mxu0 0.0
  %1072 = vmatprep.subr.mxu0 0.0
  %1073 = vmatpush1.xpose.msra.mxu0 0.0
  %1074 = vmatprep.subr.mxu0 0.0
  %1075 = vmatpush1.xpose.msra.mxu0 0.0
  %1076 = vmatprep.subr.mxu0 0.0
  %1077 = vmatpush1.xpose.msra.mxu0 0.0
  %1078 = vmatprep.subr.mxu0 0.0
  %1079 = vmatpush1.xpose.msra.mxu0 0.0
  %1080 = vmatprep.subr.mxu0 0.0
  %1081 = vmatpush1.xpose.msra.mxu0 0.0
  %1082 = vmatprep.subr.mxu0 0.0
  %1083 = vmatpush1.xpose.msra.mxu0 0.0
  %1084 = vmatprep.subr.mxu0 0.0
  %1085 = vmatpush1.xpose.msra.mxu0 0.0
  %1086 = vmatprep.subr.mxu0 0.0
  %1087 = vmatpush1.xpose.msra.mxu0 0.0
  %1088 = vmatprep.mubr.f32.mxu0 0.0
  %1089 = vmatmul.mubr.f32.gmra.mrb[0].mxu0 %v1016
  %v1090 = vpop.f32.mrb[0].mxu0
  %v1091 = vadd.f32 0.0, %v1090
  %v1092 = vpop.f32.mrb[0].mxu0
  %1093 = vmatprep.mubr.f32.mxu0 0.0
  %1094 = vmatmul.mubr.f32.gmra.mrb[0].mxu0 %v1018
  %v1095 = vpop.f32.mrb[0].mxu0
  %v1096 = vadd.f32 0.0, %v1095
  %v1097 = vpop.f32.mrb[0].mxu0
  %1098 = vdwg.mxu0
  %v1099 = vmul.f32 %v1091, 0.35355338
  %v1100 = vmul.f32 %v1096, 0.35355338
  %v1101 = vsel %vm198, %v1099, -1e+30
  %v1102 = vsel %vm199, %v1100, -1e+30
  %v1103 = vsel %vm64, %v1101, -inf
  %1104 = vmax.xlane.f32.xlu0 %v1103
  %v1105 = vpop.xlane.xlu0 %1104
  %v1106 = vsel %vm64, %v1102, -inf
  %1107 = vmax.xlane.f32.xlu0 %v1106
  %v1108 = vpop.xlane.xlu0 %1107
  %v1109 = vsub.f32 %v1101, %v1105
  %v1110 = vsub.f32 %v1102, %v1108
  %v1111 = vmul.f32 %v1109, 1.442695
  %v1112 = vpow.pop %v1111
  %v1113 = vmul.f32 %v1110, 1.442695
  %v1114 = vpow.pop %v1113
  %v1115 = vsel %vm64, %v1112, 0.0
  %1116 = vadd.xlane.f32.xlu0 %v1115
  %v1117 = vpop.xlane.xlu0 %1116
  %v1118 = vsel %vm64, %v1114, 0.0
  %1119 = vadd.xlane.f32.xlu0 %v1118
  %v1120 = vpop.xlane.xlu0 %1119
  %v1121 = vrcp.pop %v1117
  %v1122 = vrcp.pop %v1120
  %v1123 = vmul.f32 %v1112, %v1121
  %v1124 = vmul.f32 %v1114, %v1122
  %1125 = vrot.lane.b32.xlu0 %v397, 104
  %v1126 = vpop.permute.xlu0 %1125
  %1127 = vrot.lane.b32.xlu0 %v400, 104
  %v1128 = vpop.permute.xlu0 %1127
  %v1132 = vsel %vm64, %v1123, 0
  %v1135 = vsel %vm64, %v1124, 0
  %1137 = vmatprep.subr.mxu0 0.0
  %1138 = vmatpush1.msra.mxu0 %v1126
  %1139 = vmatprep.subr.mxu0 0.0
  %1140 = vmatpush1.msra.mxu0 %v1128
  %1141 = vmatprep.subr.mxu0 0.0
  %1142 = vmatpush1.msra.mxu0 0.0
  %1143 = vmatprep.subr.mxu0 0.0
  %1144 = vmatpush1.msra.mxu0 0.0
  %1145 = vmatprep.subr.mxu0 0.0
  %1146 = vmatpush1.msra.mxu0 0.0
  %1147 = vmatprep.subr.mxu0 0.0
  %1148 = vmatpush1.msra.mxu0 0.0
  %1149 = vmatprep.subr.mxu0 0.0
  %1150 = vmatpush1.msra.mxu0 0.0
  %1151 = vmatprep.subr.mxu0 0.0
  %1152 = vmatpush1.msra.mxu0 0.0
  %1153 = vmatprep.subr.mxu0 0.0
  %1154 = vmatpush1.msra.mxu0 0.0
  %1155 = vmatprep.subr.mxu0 0.0
  %1156 = vmatpush1.msra.mxu0 0.0
  %1157 = vmatprep.subr.mxu0 0.0
  %1158 = vmatpush1.msra.mxu0 0.0
  %1159 = vmatprep.subr.mxu0 0.0
  %1160 = vmatpush1.msra.mxu0 0.0
  %1161 = vmatprep.subr.mxu0 0.0
  %1162 = vmatpush1.msra.mxu0 0.0
  %1163 = vmatprep.subr.mxu0 0.0
  %1164 = vmatpush1.msra.mxu0 0.0
  %1165 = vmatprep.subr.mxu0 0.0
  %1166 = vmatpush1.msra.mxu0 0.0
  %1167 = vmatprep.subr.mxu0 0.0
  %1168 = vmatpush1.msra.mxu0 0.0
  %1169 = vmatprep.subr.mxu0 0.0
  %1170 = vmatpush1.msra.mxu0 0.0
  %1171 = vmatprep.subr.mxu0 0.0
  %1172 = vmatpush1.msra.mxu0 0.0
  %1173 = vmatprep.subr.mxu0 0.0
  %1174 = vmatpush1.msra.mxu0 0.0
  %1175 = vmatprep.subr.mxu0 0.0
  %1176 = vmatpush1.msra.mxu0 0.0
  %1177 = vmatprep.subr.mxu0 0.0
  %1178 = vmatpush1.msra.mxu0 0.0
  %1179 = vmatprep.subr.mxu0 0.0
  %1180 = vmatpush1.msra.mxu0 0.0
  %1181 = vmatprep.subr.mxu0 0.0
  %1182 = vmatpush1.msra.mxu0 0.0
  %1183 = vmatprep.subr.mxu0 0.0
  %1184 = vmatpush1.msra.mxu0 0.0
  %1185 = vmatprep.subr.mxu0 0.0
  %1186 = vmatpush1.msra.mxu0 0.0
  %1187 = vmatprep.subr.mxu0 0.0
  %1188 = vmatpush1.msra.mxu0 0.0
  %1189 = vmatprep.subr.mxu0 0.0
  %1190 = vmatpush1.msra.mxu0 0.0
  %1191 = vmatprep.subr.mxu0 0.0
  %1192 = vmatpush1.msra.mxu0 0.0
  %1193 = vmatprep.subr.mxu0 0.0
  %1194 = vmatpush1.msra.mxu0 0.0
  %1195 = vmatprep.subr.mxu0 0.0
  %1196 = vmatpush1.msra.mxu0 0.0
  %1197 = vmatprep.subr.mxu0 0.0
  %1198 = vmatpush1.msra.mxu0 0.0
  %1199 = vmatprep.subr.mxu0 0.0
  %1200 = vmatpush1.msra.mxu0 0.0
  %1201 = vmatprep.mubr.f32.mxu0 0.0
  %1202 = vmatmul.mubr.f32.gmra.mrb[0].mxu0 %v1132
  %v1203 = vpop.f32.mrb[0].mxu0
  %v1204 = vadd.f32 0.0, %v1203
  %v1205 = vpop.f32.mrb[0].mxu0
  %1206 = vmatprep.mubr.f32.mxu0 0.0
  %1207 = vmatmul.mubr.f32.gmra.mrb[0].mxu0 %v1135
  %v1208 = vpop.f32.mrb[0].mxu0
  %v1209 = vadd.f32 0.0, %v1208
  %v1210 = vpop.f32.mrb[0].mxu0
  %1211 = vdwg.mxu0
  %1214 = vrot.lane.b32.xlu0 %v796, 8
  %v1215 = vpop.permute.xlu0 %1214
  %1216 = vrot.lane.b32.xlu0 %v801, 8
  %v1217 = vpop.permute.xlu0 %1216
  %1222 = vrot.lane.b32.xlu0 %v1000, 16
  %v1223 = vpop.permute.xlu0 %1222
  %1224 = vrot.lane.b32.xlu0 %v1005, 16
  %v1225 = vpop.permute.xlu0 %1224
  %1230 = vrot.lane.b32.xlu0 %v1204, 24
  %v1231 = vpop.permute.xlu0 %1230
  %1232 = vrot.lane.b32.xlu0 %v1209, 24
  %v1233 = vpop.permute.xlu0 %1232
  %v1236 = vsel %vm403, %v590, %v1215
  %v1237 = vsel %vm403, %v595, %v1217
  %v1238 = vsel %vm64, %v1236, %v1223
  %v1239 = vsel %vm64, %v1237, %v1225
  %vm1240 = vcmask 195584
  %v1241 = vsel %vm1240, %v1238, %v1231
  %v1242 = vsel %vm1240, %v1239, %v1233
  %v1243 = vld [vmem:[%s7] sm:$0xf]
  %v1244 = vld [vmem:[%s7 + $0x4] sm:$0xf]
  %v1245 = vld [vmem:[%s7 + $0x8] sm:$0xf]
  %v1246 = vld [vmem:[%s7 + $0xc] sm:$0xf]
  %v1247 = vpack.c.bf16 %v1242, %v1241
  %v1248 = vlaneseq
  %v1249 = vshrl.u32 %v1248, 7
  %v1250 = vsub.s32 3, %v1249
  %v1251 = vrot.slane %v200, %v1250
  %v1256 = vunpack.c.l.b16 %v1243
  %v1257 = vunpack.c.l.b16 %v1244
  %v1258 = vunpack.c.l.b16 %v1245
  %v1259 = vunpack.c.l.b16 %v1246
  %v1260 = vpack.c.b16 %v1257, %v1256
  %v1261 = vpack.c.b16 %v1259, %v1258
  %v1263 = vsel %vm117, %v1247, 0
  %v1266 = vsel %vm117, %v1260, 0
  %v1269 = vsel %vm117, %v1261, 0
  %1271 = vmatprep.subr.bf16.mxu0 0
  %1272 = vmatpush1.bf16.xpose.msra.mxu0 %v1266
  %1273 = vmatprep.subr.bf16.mxu0 0
  %1274 = vmatpush1.bf16.xpose.msra.mxu0 %v1269
  %1275 = vmatprep.subr.bf16.mxu0 0
  %1276 = vmatpush1.bf16.xpose.msra.mxu0 0
  %1277 = vmatprep.subr.bf16.mxu0 0
  %1278 = vmatpush1.bf16.xpose.msra.mxu0 0
  %1279 = vmatprep.subr.bf16.mxu0 0
  %1280 = vmatpush1.bf16.xpose.msra.mxu0 0
  %1281 = vmatprep.subr.bf16.mxu0 0
  %1282 = vmatpush1.bf16.xpose.msra.mxu0 0
  %1283 = vmatprep.subr.bf16.mxu0 0
  %1284 = vmatpush1.bf16.xpose.msra.mxu0 0
  %1285 = vmatprep.subr.bf16.mxu0 0
  %1286 = vmatpush1.bf16.xpose.msra.mxu0 0
  %1287 = vmatprep.subr.bf16.mxu0 0
  %1288 = vmatpush1.bf16.xpose.msra.mxu0 0
  %1289 = vmatprep.subr.bf16.mxu0 0
  %1290 = vmatpush1.bf16.xpose.msra.mxu0 0
  %1291 = vmatprep.subr.bf16.mxu0 0
  %1292 = vmatpush1.bf16.xpose.msra.mxu0 0
  %1293 = vmatprep.subr.bf16.mxu0 0
  %1294 = vmatpush1.bf16.xpose.msra.mxu0 0
  %1295 = vmatprep.subr.bf16.mxu0 0
  %1296 = vmatpush1.bf16.xpose.msra.mxu0 0
  %1297 = vmatprep.subr.bf16.mxu0 0
  %1298 = vmatpush1.bf16.xpose.msra.mxu0 0
  %1299 = vmatprep.subr.bf16.mxu0 0
  %1300 = vmatpush1.bf16.xpose.msra.mxu0 0
  %1301 = vmatprep.subr.bf16.mxu0 0
  %1302 = vmatpush1.bf16.xpose.msra.mxu0 0
  %1303 = vmatprep.mubr.bf16.mxu0 0
  %1304 = vmatmul.mubr.bf16.gmra.mrb[0].mxu0 %v1263
  %v1305 = vpop.f32.mrb[0].mxu0
  %v1306 = vadd.f32 %v1251, %v1305
  %v1307 = vpop.f32.mrb[0].mxu0
  %v1308 = vpop.f32.mrb[0].mxu0
  %v1309 = vadd.f32 %v1251, %v1308
  %v1310 = vpop.f32.mrb[0].mxu0
  %1311 = vdwg.mxu0
  %v1312 = vadd.f32 %v155, %v1306
  %v1313 = vadd.f32 %v156, %v1309
  %v1314 = vsel %vm117, %v1312, 0.0
  %1315 = vadd.xlane.f32.xlu0 %v1314
  %v1316 = vpop.xlane.xlu0 %1315
  %v1317 = vsel %vm117, %v1313, 0.0
  %1318 = vadd.xlane.f32.xlu0 %v1317
  %v1319 = vpop.xlane.xlu0 %1318
  %v1320 = vmul.f32 %v1316, %v124
  %v1321 = vmul.f32 %v1319, %v124
  %v1322 = vsub.f32 %v1312, %v1320
  %v1323 = vsub.f32 %v1313, %v1321
  %v1324 = vmul.f32 %v1322, %v1322
  %v1325 = vmul.f32 %v1323, %v1323
  %v1326 = vsel %vm117, %v1324, 0.0
  %1327 = vadd.xlane.f32.xlu0 %v1326
  %v1328 = vpop.xlane.xlu0 %1327
  %v1329 = vsel %vm117, %v1325, 0.0
  %1330 = vadd.xlane.f32.xlu0 %v1329
  %v1331 = vpop.xlane.xlu0 %1330
  %v1332 = vmul.f32 %v1328, %v124
  %v1333 = vmul.f32 %v1331, %v124
  %v1334 = vadd.f32 %v1332, 1e-05
  %v1335 = vadd.f32 %v1333, 1e-05
  %v1336 = vrsqrt.pop %v1334
  %v1337 = vrsqrt.pop %v1335
  %v1338 = vmul.f32 %v1322, %v1336
  %v1339 = vmul.f32 %v1323, %v1337
  %v1340 = vlaneseq
  %v1341 = vshrl.u32 %v1340, 7
  %v1342 = vsub.s32 4, %v1341
  %v1343 = vrot.slane %v200, %v1342
  %v1344 = vmul.f32 %v1338, %v1343
  %v1345 = vmul.f32 %v1339, %v1343
  %v1346 = vlaneseq
  %v1347 = vshrl.u32 %v1346, 7
  %v1348 = vsub.s32 5, %v1347
  %v1349 = vrot.slane %v200, %v1348
  %v1350 = vadd.f32 %v1344, %v1349
  %v1351 = vadd.f32 %v1345, %v1349
  %v1352 = vld [vmem:[%s8] sm:$0xf]
  %v1353 = vld [vmem:[%s8 + $0x4] sm:$0xf]
  %v1354 = vld [vmem:[%s8 + $0x8] sm:$0xf]
  %v1355 = vld [vmem:[%s8 + $0xc] sm:$0xf]
  %v1356 = vld [vmem:[%s8 + $0x10] sm:$0xf]
  %v1357 = vld [vmem:[%s8 + $0x14] sm:$0xf]
  %v1358 = vld [vmem:[%s8 + $0x18] sm:$0xf]
  %v1359 = vld [vmem:[%s8 + $0x1c] sm:$0xf]
  %v1360 = vld [vmem:[%s8 + $0x20] sm:$0xf]
  %v1361 = vld [vmem:[%s8 + $0x24] sm:$0xf]
  %v1362 = vld [vmem:[%s8 + $0x28] sm:$0xf]
  %v1363 = vld [vmem:[%s8 + $0x2c] sm:$0xf]
  %v1364 = vld [vmem:[%s8 + $0x30] sm:$0xf]
  %v1365 = vld [vmem:[%s8 + $0x34] sm:$0xf]
  %v1366 = vld [vmem:[%s8 + $0x38] sm:$0xf]
  %v1367 = vld [vmem:[%s8 + $0x3c] sm:$0xf]
  %v1368 = vld [vmem:[%s8 + $0x40] sm:$0xf]
  %v1369 = vld [vmem:[%s8 + $0x44] sm:$0xf]
  %v1370 = vld [vmem:[%s8 + $0x48] sm:$0xf]
  %v1371 = vld [vmem:[%s8 + $0x4c] sm:$0xf]
  %v1372 = vld [vmem:[%s8 + $0x50] sm:$0xf]
  %v1373 = vld [vmem:[%s8 + $0x54] sm:$0xf]
  %v1374 = vld [vmem:[%s8 + $0x58] sm:$0xf]
  %v1375 = vld [vmem:[%s8 + $0x5c] sm:$0xf]
  %v1376 = vld [vmem:[%s8 + $0x60] sm:$0xf]
  %v1377 = vld [vmem:[%s8 + $0x64] sm:$0xf]
  %v1378 = vld [vmem:[%s8 + $0x68] sm:$0xf]
  %v1379 = vld [vmem:[%s8 + $0x6c] sm:$0xf]
  %v1380 = vld [vmem:[%s8 + $0x70] sm:$0xf]
  %v1381 = vld [vmem:[%s8 + $0x74] sm:$0xf]
  %v1382 = vld [vmem:[%s8 + $0x78] sm:$0xf]
  %v1383 = vld [vmem:[%s8 + $0x7c] sm:$0xf]
  %v1384 = vld [vmem:[%s8 + $0x80] sm:$0xf]
  %v1385 = vld [vmem:[%s8 + $0x84] sm:$0xf]
  %v1386 = vld [vmem:[%s8 + $0x88] sm:$0xf]
  %v1387 = vld [vmem:[%s8 + $0x8c] sm:$0xf]
  %v1388 = vld [vmem:[%s8 + $0x90] sm:$0xf]
  %v1389 = vld [vmem:[%s8 + $0x94] sm:$0xf]
  %v1390 = vld [vmem:[%s8 + $0x98] sm:$0xf]
  %v1391 = vld [vmem:[%s8 + $0x9c] sm:$0xf]
  %v1392 = vld [vmem:[%s8 + $0xa0] sm:$0xf]
  %v1393 = vld [vmem:[%s8 + $0xa4] sm:$0xf]
  %v1394 = vld [vmem:[%s8 + $0xa8] sm:$0xf]
  %v1395 = vld [vmem:[%s8 + $0xac] sm:$0xf]
  %v1396 = vld [vmem:[%s8 + $0xb0] sm:$0xf]
  %v1397 = vld [vmem:[%s8 + $0xb4] sm:$0xf]
  %v1398 = vld [vmem:[%s8 + $0xb8] sm:$0xf]
  %v1399 = vld [vmem:[%s8 + $0xbc] sm:$0xf]
  %v1400 = vld [vmem:[%s8 + $0xc0] sm:$0xf]
  %v1401 = vld [vmem:[%s8 + $0xc4] sm:$0xf]
  %v1402 = vld [vmem:[%s8 + $0xc8] sm:$0xf]
  %v1403 = vld [vmem:[%s8 + $0xcc] sm:$0xf]
  %v1404 = vld [vmem:[%s8 + $0xd0] sm:$0xf]
  %v1405 = vld [vmem:[%s8 + $0xd4] sm:$0xf]
  %v1406 = vld [vmem:[%s8 + $0xd8] sm:$0xf]
  %v1407 = vld [vmem:[%s8 + $0xdc] sm:$0xf]
  %v1408 = vld [vmem:[%s8 + $0xe0] sm:$0xf]
  %v1409 = vld [vmem:[%s8 + $0xe4] sm:$0xf]
  %v1410 = vld [vmem:[%s8 + $0xe8] sm:$0xf]
  %v1411 = vld [vmem:[%s8 + $0xec] sm:$0xf]
  %v1412 = vld [vmem:[%s8 + $0xf0] sm:$0xf]
  %v1413 = vld [vmem:[%s8 + $0xf4] sm:$0xf]
  %v1414 = vld [vmem:[%s8 + $0xf8] sm:$0xf]
  %v1415 = vld [vmem:[%s8 + $0xfc] sm:$0xf]
  %v1416 = vld [vmem:[%s8 + $0x100] sm:$0xf]
  %v1417 = vld [vmem:[%s8 + $0x104] sm:$0xf]
  %v1418 = vld [vmem:[%s8 + $0x108] sm:$0xf]
  %v1419 = vld [vmem:[%s8 + $0x10c] sm:$0xf]
  %v1420 = vld [vmem:[%s8 + $0x110] sm:$0xf]
  %v1421 = vld [vmem:[%s8 + $0x114] sm:$0xf]
  %v1422 = vld [vmem:[%s8 + $0x118] sm:$0xf]
  %v1423 = vld [vmem:[%s8 + $0x11c] sm:$0xf]
  %v1424 = vld [vmem:[%s8 + $0x120] sm:$0xf]
  %v1425 = vld [vmem:[%s8 + $0x124] sm:$0xf]
  %v1426 = vld [vmem:[%s8 + $0x128] sm:$0xf]
  %v1427 = vld [vmem:[%s8 + $0x12c] sm:$0xf]
  %v1428 = vld [vmem:[%s8 + $0x130] sm:$0xf]
  %v1429 = vld [vmem:[%s8 + $0x134] sm:$0xf]
  %v1430 = vld [vmem:[%s8 + $0x138] sm:$0xf]
  %v1431 = vld [vmem:[%s8 + $0x13c] sm:$0xf]
  %v1432 = vld [vmem:[%s8 + $0x140] sm:$0xf]
  %v1433 = vld [vmem:[%s8 + $0x144] sm:$0xf]
  %v1434 = vld [vmem:[%s8 + $0x148] sm:$0xf]
  %v1435 = vld [vmem:[%s8 + $0x14c] sm:$0xf]
  %v1436 = vld [vmem:[%s8 + $0x150] sm:$0xf]
  %v1437 = vld [vmem:[%s8 + $0x154] sm:$0xf]
  %v1438 = vld [vmem:[%s8 + $0x158] sm:$0xf]
  %v1439 = vld [vmem:[%s8 + $0x15c] sm:$0xf]
  %v1440 = vld [vmem:[%s8 + $0x160] sm:$0xf]
  %v1441 = vld [vmem:[%s8 + $0x164] sm:$0xf]
  %v1442 = vld [vmem:[%s8 + $0x168] sm:$0xf]
  %v1443 = vld [vmem:[%s8 + $0x16c] sm:$0xf]
  %v1444 = vld [vmem:[%s8 + $0x170] sm:$0xf]
  %v1445 = vld [vmem:[%s8 + $0x174] sm:$0xf]
  %v1446 = vld [vmem:[%s8 + $0x178] sm:$0xf]
  %v1447 = vld [vmem:[%s8 + $0x17c] sm:$0xf]
  %v1448 = vld [vmem:[%s8 + $0x180] sm:$0xf]
  %v1449 = vld [vmem:[%s8 + $0x184] sm:$0xf]
  %v1450 = vld [vmem:[%s8 + $0x188] sm:$0xf]
  %v1451 = vld [vmem:[%s8 + $0x18c] sm:$0xf]
  %v1452 = vld [vmem:[%s8 + $0x190] sm:$0xf]
  %v1453 = vld [vmem:[%s8 + $0x194] sm:$0xf]
  %v1454 = vld [vmem:[%s8 + $0x198] sm:$0xf]
  %v1455 = vld [vmem:[%s8 + $0x19c] sm:$0xf]
  %v1456 = vld [vmem:[%s8 + $0x1a0] sm:$0xf]
  %v1457 = vld [vmem:[%s8 + $0x1a4] sm:$0xf]
  %v1458 = vld [vmem:[%s8 + $0x1a8] sm:$0xf]
  %v1459 = vld [vmem:[%s8 + $0x1ac] sm:$0xf]
  %v1460 = vld [vmem:[%s8 + $0x1b0] sm:$0xf]
  %v1461 = vld [vmem:[%s8 + $0x1b4] sm:$0xf]
  %v1462 = vld [vmem:[%s8 + $0x1b8] sm:$0xf]
  %v1463 = vld [vmem:[%s8 + $0x1bc] sm:$0xf]
  %v1464 = vld [vmem:[%s8 + $0x1c0] sm:$0xf]
  %v1465 = vld [vmem:[%s8 + $0x1c4] sm:$0xf]
  %v1466 = vld [vmem:[%s8 + $0x1c8] sm:$0xf]
  %v1467 = vld [vmem:[%s8 + $0x1cc] sm:$0xf]
  %v1468 = vld [vmem:[%s8 + $0x1d0] sm:$0xf]
  %v1469 = vld [vmem:[%s8 + $0x1d4] sm:$0xf]
  %v1470 = vld [vmem:[%s8 + $0x1d8] sm:$0xf]
  %v1471 = vld [vmem:[%s8 + $0x1dc] sm:$0xf]
  %v1472 = vld [vmem:[%s8 + $0x1e0] sm:$0xf]
  %v1473 = vld [vmem:[%s8 + $0x1e4] sm:$0xf]
  %v1474 = vld [vmem:[%s8 + $0x1e8] sm:$0xf]
  %v1475 = vld [vmem:[%s8 + $0x1ec] sm:$0xf]
  %v1476 = vld [vmem:[%s8 + $0x1f0] sm:$0xf]
  %v1477 = vld [vmem:[%s8 + $0x1f4] sm:$0xf]
  %v1478 = vld [vmem:[%s8 + $0x1f8] sm:$0xf]
  %v1479 = vld [vmem:[%s8 + $0x1fc] sm:$0xf]
  %v1480 = vld [vmem:[%s8 + $0x200] sm:$0xf]
  %v1481 = vld [vmem:[%s8 + $0x204] sm:$0xf]
  %v1482 = vld [vmem:[%s8 + $0x208] sm:$0xf]
  %v1483 = vld [vmem:[%s8 + $0x20c] sm:$0xf]
  %v1484 = vld [vmem:[%s8 + $0x210] sm:$0xf]
  %v1485 = vld [vmem:[%s8 + $0x214] sm:$0xf]
  %v1486 = vld [vmem:[%s8 + $0x218] sm:$0xf]
  %v1487 = vld [vmem:[%s8 + $0x21c] sm:$0xf]
  %v1488 = vld [vmem:[%s8 + $0x220] sm:$0xf]
  %v1489 = vld [vmem:[%s8 + $0x224] sm:$0xf]
  %v1490 = vld [vmem:[%s8 + $0x228] sm:$0xf]
  %v1491 = vld [vmem:[%s8 + $0x22c] sm:$0xf]
  %v1492 = vld [vmem:[%s8 + $0x230] sm:$0xf]
  %v1493 = vld [vmem:[%s8 + $0x234] sm:$0xf]
  %v1494 = vld [vmem:[%s8 + $0x238] sm:$0xf]
  %v1495 = vld [vmem:[%s8 + $0x23c] sm:$0xf]
  %v1496 = vld [vmem:[%s8 + $0x240] sm:$0xf]
  %v1497 = vld [vmem:[%s8 + $0x244] sm:$0xf]
  %v1498 = vld [vmem:[%s8 + $0x248] sm:$0xf]
  %v1499 = vld [vmem:[%s8 + $0x24c] sm:$0xf]
  %v1500 = vld [vmem:[%s8 + $0x250] sm:$0xf]
  %v1501 = vld [vmem:[%s8 + $0x254] sm:$0xf]
  %v1502 = vld [vmem:[%s8 + $0x258] sm:$0xf]
  %v1503 = vld [vmem:[%s8 + $0x25c] sm:$0xf]
  %v1504 = vld [vmem:[%s8 + $0x260] sm:$0xf]
  %v1505 = vld [vmem:[%s8 + $0x264] sm:$0xf]
  %v1506 = vld [vmem:[%s8 + $0x268] sm:$0xf]
  %v1507 = vld [vmem:[%s8 + $0x26c] sm:$0xf]
  %v1508 = vld [vmem:[%s8 + $0x270] sm:$0xf]
  %v1509 = vld [vmem:[%s8 + $0x274] sm:$0xf]
  %v1510 = vld [vmem:[%s8 + $0x278] sm:$0xf]
  %v1511 = vld [vmem:[%s8 + $0x27c] sm:$0xf]
  %v1512 = vld [vmem:[%s8 + $0x280] sm:$0xf]
  %v1513 = vld [vmem:[%s8 + $0x284] sm:$0xf]
  %v1514 = vld [vmem:[%s8 + $0x288] sm:$0xf]
  %v1515 = vld [vmem:[%s8 + $0x28c] sm:$0xf]
  %v1516 = vld [vmem:[%s8 + $0x290] sm:$0xf]
  %v1517 = vld [vmem:[%s8 + $0x294] sm:$0xf]
  %v1518 = vld [vmem:[%s8 + $0x298] sm:$0xf]
  %v1519 = vld [vmem:[%s8 + $0x29c] sm:$0xf]
  %v1520 = vld [vmem:[%s8 + $0x2a0] sm:$0xf]
  %v1521 = vld [vmem:[%s8 + $0x2a4] sm:$0xf]
  %v1522 = vld [vmem:[%s8 + $0x2a8] sm:$0xf]
  %v1523 = vld [vmem:[%s8 + $0x2ac] sm:$0xf]
  %v1524 = vld [vmem:[%s8 + $0x2b0] sm:$0xf]
  %v1525 = vld [vmem:[%s8 + $0x2b4] sm:$0xf]
  %v1526 = vld [vmem:[%s8 + $0x2b8] sm:$0xf]
  %v1527 = vld [vmem:[%s8 + $0x2bc] sm:$0xf]
  %v1528 = vld [vmem:[%s8 + $0x2c0] sm:$0xf]
  %v1529 = vld [vmem:[%s8 + $0x2c4] sm:$0xf]
  %v1530 = vld [vmem:[%s8 + $0x2c8] sm:$0xf]
  %v1531 = vld [vmem:[%s8 + $0x2cc] sm:$0xf]
  %v1532 = vld [vmem:[%s8 + $0x2d0] sm:$0xf]
  %v1533 = vld [vmem:[%s8 + $0x2d4] sm:$0xf]
  %v1534 = vld [vmem:[%s8 + $0x2d8] sm:$0xf]
  %v1535 = vld [vmem:[%s8 + $0x2dc] sm:$0xf]
  %v1536 = vld [vmem:[%s8 + $0x2e0] sm:$0xf]
  %v1537 = vld [vmem:[%s8 + $0x2e4] sm:$0xf]
  %v1538 = vld [vmem:[%s8 + $0x2e8] sm:$0xf]
  %v1539 = vld [vmem:[%s8 + $0x2ec] sm:$0xf]
  %v1540 = vld [vmem:[%s8 + $0x2f0] sm:$0xf]
  %v1541 = vld [vmem:[%s8 + $0x2f4] sm:$0xf]
  %v1542 = vld [vmem:[%s8 + $0x2f8] sm:$0xf]
  %v1543 = vld [vmem:[%s8 + $0x2fc] sm:$0xf]
  %v1544 = vld [vmem:[%s8 + $0x300] sm:$0xf]
  %v1545 = vld [vmem:[%s8 + $0x304] sm:$0xf]
  %v1546 = vld [vmem:[%s8 + $0x308] sm:$0xf]
  %v1547 = vld [vmem:[%s8 + $0x30c] sm:$0xf]
  %v1548 = vld [vmem:[%s8 + $0x310] sm:$0xf]
  %v1549 = vld [vmem:[%s8 + $0x314] sm:$0xf]
  %v1550 = vld [vmem:[%s8 + $0x318] sm:$0xf]
  %v1551 = vld [vmem:[%s8 + $0x31c] sm:$0xf]
  %v1552 = vld [vmem:[%s8 + $0x320] sm:$0xf]
  %v1553 = vld [vmem:[%s8 + $0x324] sm:$0xf]
  %v1554 = vld [vmem:[%s8 + $0x328] sm:$0xf]
  %v1555 = vld [vmem:[%s8 + $0x32c] sm:$0xf]
  %v1556 = vld [vmem:[%s8 + $0x330] sm:$0xf]
  %v1557 = vld [vmem:[%s8 + $0x334] sm:$0xf]
  %v1558 = vld [vmem:[%s8 + $0x338] sm:$0xf]
  %v1559 = vld [vmem:[%s8 + $0x33c] sm:$0xf]
  %v1560 = vld [vmem:[%s8 + $0x340] sm:$0xf]
  %v1561 = vld [vmem:[%s8 + $0x344] sm:$0xf]
  %v1562 = vld [vmem:[%s8 + $0x348] sm:$0xf]
  %v1563 = vld [vmem:[%s8 + $0x34c] sm:$0xf]
  %v1564 = vld [vmem:[%s8 + $0x350] sm:$0xf]
  %v1565 = vld [vmem:[%s8 + $0x354] sm:$0xf]
  %v1566 = vld [vmem:[%s8 + $0x358] sm:$0xf]
  %v1567 = vld [vmem:[%s8 + $0x35c] sm:$0xf]
  %v1568 = vld [vmem:[%s8 + $0x360] sm:$0xf]
  %v1569 = vld [vmem:[%s8 + $0x364] sm:$0xf]
  %v1570 = vld [vmem:[%s8 + $0x368] sm:$0xf]
  %v1571 = vld [vmem:[%s8 + $0x36c] sm:$0xf]
  %v1572 = vld [vmem:[%s8 + $0x370] sm:$0xf]
  %v1573 = vld [vmem:[%s8 + $0x374] sm:$0xf]
  %v1574 = vld [vmem:[%s8 + $0x378] sm:$0xf]
  %v1575 = vld [vmem:[%s8 + $0x37c] sm:$0xf]
  %v1576 = vld [vmem:[%s8 + $0x380] sm:$0xf]
  %v1577 = vld [vmem:[%s8 + $0x384] sm:$0xf]
  %v1578 = vld [vmem:[%s8 + $0x388] sm:$0xf]
  %v1579 = vld [vmem:[%s8 + $0x38c] sm:$0xf]
  %v1580 = vld [vmem:[%s8 + $0x390] sm:$0xf]
  %v1581 = vld [vmem:[%s8 + $0x394] sm:$0xf]
  %v1582 = vld [vmem:[%s8 + $0x398] sm:$0xf]
  %v1583 = vld [vmem:[%s8 + $0x39c] sm:$0xf]
  %v1584 = vld [vmem:[%s8 + $0x3a0] sm:$0xf]
  %v1585 = vld [vmem:[%s8 + $0x3a4] sm:$0xf]
  %v1586 = vld [vmem:[%s8 + $0x3a8] sm:$0xf]
  %v1587 = vld [vmem:[%s8 + $0x3ac] sm:$0xf]
  %v1588 = vld [vmem:[%s8 + $0x3b0] sm:$0xf]
  %v1589 = vld [vmem:[%s8 + $0x3b4] sm:$0xf]
  %v1590 = vld [vmem:[%s8 + $0x3b8] sm:$0xf]
  %v1591 = vld [vmem:[%s8 + $0x3bc] sm:$0xf]
  %v1592 = vld [vmem:[%s8 + $0x3c0] sm:$0xf]
  %v1593 = vld [vmem:[%s8 + $0x3c4] sm:$0xf]
  %v1594 = vld [vmem:[%s8 + $0x3c8] sm:$0xf]
  %v1595 = vld [vmem:[%s8 + $0x3cc] sm:$0xf]
  %v1596 = vld [vmem:[%s8 + $0x3d0] sm:$0xf]
  %v1597 = vld [vmem:[%s8 + $0x3d4] sm:$0xf]
  %v1598 = vld [vmem:[%s8 + $0x3d8] sm:$0xf]
  %v1599 = vld [vmem:[%s8 + $0x3dc] sm:$0xf]
  %v1600 = vld [vmem:[%s8 + $0x3e0] sm:$0xf]
  %v1601 = vld [vmem:[%s8 + $0x3e4] sm:$0xf]
  %v1602 = vld [vmem:[%s8 + $0x3e8] sm:$0xf]
  %v1603 = vld [vmem:[%s8 + $0x3ec] sm:$0xf]
  %v1604 = vld [vmem:[%s8 + $0x3f0] sm:$0xf]
  %v1605 = vld [vmem:[%s8 + $0x3f4] sm:$0xf]
  %v1606 = vld [vmem:[%s8 + $0x3f8] sm:$0xf]
  %v1607 = vld [vmem:[%s8 + $0x3fc] sm:$0xf]
  %v1608 = vpack.c.bf16 %v1351, %v1350
  %v1611 = vlaneseq
  %v1612 = vshrl.u32 %v1611, 7
  %v1613 = vsub.s32 0, %v1612
  %v1614 = vrot.slane %v202, %v1613
  %v1615 = vlaneseq
  %v1616 = vshrl.u32 %v1615, 7
  %v1617 = vsub.s32 1, %v1616
  %v1618 = vrot.slane %v202, %v1617
  %v1619 = vlaneseq
  %v1620 = vshrl.u32 %v1619, 7
  %v1621 = vsub.s32 2, %v1620
  %v1622 = vrot.slane %v202, %v1621
  %v1623 = vlaneseq
  %v1624 = vshrl.u32 %v1623, 7
  %v1625 = vsub.s32 3, %v1624
  %v1626 = vrot.slane %v202, %v1625
  %v1627 = vlaneseq
  %v1628 = vshrl.u32 %v1627, 7
  %v1629 = vsub.s32 4, %v1628
  %v1630 = vrot.slane %v202, %v1629
  %v1631 = vlaneseq
  %v1632 = vshrl.u32 %v1631, 7
  %v1633 = vsub.s32 5, %v1632
  %v1634 = vrot.slane %v202, %v1633
  %v1635 = vlaneseq
  %v1636 = vshrl.u32 %v1635, 7
  %v1637 = vsub.s32 6, %v1636
  %v1638 = vrot.slane %v202, %v1637
  %v1639 = vlaneseq
  %v1640 = vshrl.u32 %v1639, 7
  %v1641 = vsub.s32 7, %v1640
  %v1642 = vrot.slane %v202, %v1641
  %v1643 = vlaneseq
  %v1644 = vshrl.u32 %v1643, 7
  %v1645 = vsub.s32 0, %v1644
  %v1646 = vrot.slane %v203, %v1645
  %v1647 = vlaneseq
  %v1648 = vshrl.u32 %v1647, 7
  %v1649 = vsub.s32 1, %v1648
  %v1650 = vrot.slane %v203, %v1649
  %v1651 = vlaneseq
  %v1652 = vshrl.u32 %v1651, 7
  %v1653 = vsub.s32 2, %v1652
  %v1654 = vrot.slane %v203, %v1653
  %v1655 = vlaneseq
  %v1656 = vshrl.u32 %v1655, 7
  %v1657 = vsub.s32 3, %v1656
  %v1658 = vrot.slane %v203, %v1657
  %v1659 = vlaneseq
  %v1660 = vshrl.u32 %v1659, 7
  %v1661 = vsub.s32 4, %v1660
  %v1662 = vrot.slane %v203, %v1661
  %v1663 = vlaneseq
  %v1664 = vshrl.u32 %v1663, 7
  %v1665 = vsub.s32 5, %v1664
  %v1666 = vrot.slane %v203, %v1665
  %v1667 = vlaneseq
  %v1668 = vshrl.u32 %v1667, 7
  %v1669 = vsub.s32 6, %v1668
  %v1670 = vrot.slane %v203, %v1669
  %v1671 = vlaneseq
  %v1672 = vshrl.u32 %v1671, 7
  %v1673 = vsub.s32 7, %v1672
  %v1674 = vrot.slane %v203, %v1673
  %v1947 = vunpack.c.l.b16 %v1352
  %v1948 = vunpack.c.l.b16 %v1353
  %v1949 = vunpack.c.l.b16 %v1354
  %v1950 = vunpack.c.l.b16 %v1355
  %v1951 = vunpack.c.l.b16 %v1356
  %v1952 = vunpack.c.l.b16 %v1357
  %v1953 = vunpack.c.l.b16 %v1358
  %v1954 = vunpack.c.l.b16 %v1359
  %v1955 = vunpack.c.l.b16 %v1360
  %v1956 = vunpack.c.l.b16 %v1361
  %v1957 = vunpack.c.l.b16 %v1362
  %v1958 = vunpack.c.l.b16 %v1363
  %v1959 = vunpack.c.l.b16 %v1364
  %v1960 = vunpack.c.l.b16 %v1365
  %v1961 = vunpack.c.l.b16 %v1366
  %v1962 = vunpack.c.l.b16 %v1367
  %v1963 = vunpack.c.l.b16 %v1368
  %v1964 = vunpack.c.l.b16 %v1369
  %v1965 = vunpack.c.l.b16 %v1370
  %v1966 = vunpack.c.l.b16 %v1371
  %v1967 = vunpack.c.l.b16 %v1372
  %v1968 = vunpack.c.l.b16 %v1373
  %v1969 = vunpack.c.l.b16 %v1374
  %v1970 = vunpack.c.l.b16 %v1375
  %v1971 = vunpack.c.l.b16 %v1376
  %v1972 = vunpack.c.l.b16 %v1377
  %v1973 = vunpack.c.l.b16 %v1378
  %v1974 = vunpack.c.l.b16 %v1379
  %v1975 = vunpack.c.l.b16 %v1380
  %v1976 = vunpack.c.l.b16 %v1381
  %v1977 = vunpack.c.l.b16 %v1382
  %v1978 = vunpack.c.l.b16 %v1383
  %v1979 = vunpack.c.l.b16 %v1384
  %v1980 = vunpack.c.l.b16 %v1385
  %v1981 = vunpack.c.l.b16 %v1386
  %v1982 = vunpack.c.l.b16 %v1387
  %v1983 = vunpack.c.l.b16 %v1388
  %v1984 = vunpack.c.l.b16 %v1389
  %v1985 = vunpack.c.l.b16 %v1390
  %v1986 = vunpack.c.l.b16 %v1391
  %v1987 = vunpack.c.l.b16 %v1392
  %v1988 = vunpack.c.l.b16 %v1393
  %v1989 = vunpack.c.l.b16 %v1394
  %v1990 = vunpack.c.l.b16 %v1395
  %v1991 = vunpack.c.l.b16 %v1396
  %v1992 = vunpack.c.l.b16 %v1397
  %v1993 = vunpack.c.l.b16 %v1398
  %v1994 = vunpack.c.l.b16 %v1399
  %v1995 = vunpack.c.l.b16 %v1400
  %v1996 = vunpack.c.l.b16 %v1401
  %v1997 = vunpack.c.l.b16 %v1402
  %v1998 = vunpack.c.l.b16 %v1403
  %v1999 = vunpack.c.l.b16 %v1404
  %v2000 = vunpack.c.l.b16 %v1405
  %v2001 = vunpack.c.l.b16 %v1406
  %v2002 = vunpack.c.l.b16 %v1407
  %v2003 = vunpack.c.l.b16 %v1408
  %v2004 = vunpack.c.l.b16 %v1409
  %v2005 = vunpack.c.l.b16 %v1410
  %v2006 = vunpack.c.l.b16 %v1411
  %v2007 = vunpack.c.l.b16 %v1412
  %v2008 = vunpack.c.l.b16 %v1413
  %v2009 = vunpack.c.l.b16 %v1414
  %v2010 = vunpack.c.l.b16 %v1415
  %v2011 = vunpack.c.l.b16 %v1416
  %v2012 = vunpack.c.l.b16 %v1417
  %v2013 = vunpack.c.l.b16 %v1418
  %v2014 = vunpack.c.l.b16 %v1419
  %v2015 = vunpack.c.l.b16 %v1420
  %v2016 = vunpack.c.l.b16 %v1421
  %v2017 = vunpack.c.l.b16 %v1422
  %v2018 = vunpack.c.l.b16 %v1423
  %v2019 = vunpack.c.l.b16 %v1424
  %v2020 = vunpack.c.l.b16 %v1425
  %v2021 = vunpack.c.l.b16 %v1426
  %v2022 = vunpack.c.l.b16 %v1427
  %v2023 = vunpack.c.l.b16 %v1428
  %v2024 = vunpack.c.l.b16 %v1429
  %v2025 = vunpack.c.l.b16 %v1430
  %v2026 = vunpack.c.l.b16 %v1431
  %v2027 = vunpack.c.l.b16 %v1432
  %v2028 = vunpack.c.l.b16 %v1433
  %v2029 = vunpack.c.l.b16 %v1434
  %v2030 = vunpack.c.l.b16 %v1435
  %v2031 = vunpack.c.l.b16 %v1436
  %v2032 = vunpack.c.l.b16 %v1437
  %v2033 = vunpack.c.l.b16 %v1438
  %v2034 = vunpack.c.l.b16 %v1439
  %v2035 = vunpack.c.l.b16 %v1440
  %v2036 = vunpack.c.l.b16 %v1441
  %v2037 = vunpack.c.l.b16 %v1442
  %v2038 = vunpack.c.l.b16 %v1443
  %v2039 = vunpack.c.l.b16 %v1444
  %v2040 = vunpack.c.l.b16 %v1445
  %v2041 = vunpack.c.l.b16 %v1446
  %v2042 = vunpack.c.l.b16 %v1447
  %v2043 = vunpack.c.l.b16 %v1448
  %v2044 = vunpack.c.l.b16 %v1449
  %v2045 = vunpack.c.l.b16 %v1450
  %v2046 = vunpack.c.l.b16 %v1451
  %v2047 = vunpack.c.l.b16 %v1452
  %v2048 = vunpack.c.l.b16 %v1453
  %v2049 = vunpack.c.l.b16 %v1454
  %v2050 = vunpack.c.l.b16 %v1455
  %v2051 = vunpack.c.l.b16 %v1456
  %v2052 = vunpack.c.l.b16 %v1457
  %v2053 = vunpack.c.l.b16 %v1458
  %v2054 = vunpack.c.l.b16 %v1459
  %v2055 = vunpack.c.l.b16 %v1460
  %v2056 = vunpack.c.l.b16 %v1461
  %v2057 = vunpack.c.l.b16 %v1462
  %v2058 = vunpack.c.l.b16 %v1463
  %v2059 = vunpack.c.l.b16 %v1464
  %v2060 = vunpack.c.l.b16 %v1465
  %v2061 = vunpack.c.l.b16 %v1466
  %v2062 = vunpack.c.l.b16 %v1467
  %v2063 = vunpack.c.l.b16 %v1468
  %v2064 = vunpack.c.l.b16 %v1469
  %v2065 = vunpack.c.l.b16 %v1470
  %v2066 = vunpack.c.l.b16 %v1471
  %v2067 = vunpack.c.l.b16 %v1472
  %v2068 = vunpack.c.l.b16 %v1473
  %v2069 = vunpack.c.l.b16 %v1474
  %v2070 = vunpack.c.l.b16 %v1475
  %v2071 = vunpack.c.l.b16 %v1476
  %v2072 = vunpack.c.l.b16 %v1477
  %v2073 = vunpack.c.l.b16 %v1478
  %v2074 = vunpack.c.l.b16 %v1479
  %v2075 = vunpack.c.l.b16 %v1480
  %v2076 = vunpack.c.l.b16 %v1481
  %v2077 = vunpack.c.l.b16 %v1482
  %v2078 = vunpack.c.l.b16 %v1483
  %v2079 = vunpack.c.l.b16 %v1484
  %v2080 = vunpack.c.l.b16 %v1485
  %v2081 = vunpack.c.l.b16 %v1486
  %v2082 = vunpack.c.l.b16 %v1487
  %v2083 = vunpack.c.l.b16 %v1488
  %v2084 = vunpack.c.l.b16 %v1489
  %v2085 = vunpack.c.l.b16 %v1490
  %v2086 = vunpack.c.l.b16 %v1491
  %v2087 = vunpack.c.l.b16 %v1492
  %v2088 = vunpack.c.l.b16 %v1493
  %v2089 = vunpack.c.l.b16 %v1494
  %v2090 = vunpack.c.l.b16 %v1495
  %v2091 = vunpack.c.l.b16 %v1496
  %v2092 = vunpack.c.l.b16 %v1497
  %v2093 = vunpack.c.l.b16 %v1498
  %v2094 = vunpack.c.l.b16 %v1499
  %v2095 = vunpack.c.l.b16 %v1500
  %v2096 = vunpack.c.l.b16 %v1501
  %v2097 = vunpack.c.l.b16 %v1502
  %v2098 = vunpack.c.l.b16 %v1503
  %v2099 = vunpack.c.l.b16 %v1504
  %v2100 = vunpack.c.l.b16 %v1505
  %v2101 = vunpack.c.l.b16 %v1506
  %v2102 = vunpack.c.l.b16 %v1507
  %v2103 = vunpack.c.l.b16 %v1508
  %v2104 = vunpack.c.l.b16 %v1509
  %v2105 = vunpack.c.l.b16 %v1510
  %v2106 = vunpack.c.l.b16 %v1511
  %v2107 = vunpack.c.l.b16 %v1512
  %v2108 = vunpack.c.l.b16 %v1513
  %v2109 = vunpack.c.l.b16 %v1514
  %v2110 = vunpack.c.l.b16 %v1515
  %v2111 = vunpack.c.l.b16 %v1516
  %v2112 = vunpack.c.l.b16 %v1517
  %v2113 = vunpack.c.l.b16 %v1518
  %v2114 = vunpack.c.l.b16 %v1519
  %v2115 = vunpack.c.l.b16 %v1520
  %v2116 = vunpack.c.l.b16 %v1521
  %v2117 = vunpack.c.l.b16 %v1522
  %v2118 = vunpack.c.l.b16 %v1523
  %v2119 = vunpack.c.l.b16 %v1524
  %v2120 = vunpack.c.l.b16 %v1525
  %v2121 = vunpack.c.l.b16 %v1526
  %v2122 = vunpack.c.l.b16 %v1527
  %v2123 = vunpack.c.l.b16 %v1528
  %v2124 = vunpack.c.l.b16 %v1529
  %v2125 = vunpack.c.l.b16 %v1530
  %v2126 = vunpack.c.l.b16 %v1531
  %v2127 = vunpack.c.l.b16 %v1532
  %v2128 = vunpack.c.l.b16 %v1533
  %v2129 = vunpack.c.l.b16 %v1534
  %v2130 = vunpack.c.l.b16 %v1535
  %v2131 = vunpack.c.l.b16 %v1536
  %v2132 = vunpack.c.l.b16 %v1537
  %v2133 = vunpack.c.l.b16 %v1538
  %v2134 = vunpack.c.l.b16 %v1539
  %v2135 = vunpack.c.l.b16 %v1540
  %v2136 = vunpack.c.l.b16 %v1541
  %v2137 = vunpack.c.l.b16 %v1542
  %v2138 = vunpack.c.l.b16 %v1543
  %v2139 = vunpack.c.l.b16 %v1544
  %v2140 = vunpack.c.l.b16 %v1545
  %v2141 = vunpack.c.l.b16 %v1546
  %v2142 = vunpack.c.l.b16 %v1547
  %v2143 = vunpack.c.l.b16 %v1548
  %v2144 = vunpack.c.l.b16 %v1549
  %v2145 = vunpack.c.l.b16 %v1550
  %v2146 = vunpack.c.l.b16 %v1551
  %v2147 = vunpack.c.l.b16 %v1552
  %v2148 = vunpack.c.l.b16 %v1553
  %v2149 = vunpack.c.l.b16 %v1554
  %v2150 = vunpack.c.l.b16 %v1555
  %v2151 = vunpack.c.l.b16 %v1556
  %v2152 = vunpack.c.l.b16 %v1557
  %v2153 = vunpack.c.l.b16 %v1558
  %v2154 = vunpack.c.l.b16 %v1559
  %v2155 = vunpack.c.l.b16 %v1560
  %v2156 = vunpack.c.l.b16 %v1561
  %v2157 = vunpack.c.l.b16 %v1562
  %v2158 = vunpack.c.l.b16 %v1563
  %v2159 = vunpack.c.l.b16 %v1564
  %v2160 = vunpack.c.l.b16 %v1565
  %v2161 = vunpack.c.l.b16 %v1566
  %v2162 = vunpack.c.l.b16 %v1567
  %v2163 = vunpack.c.l.b16 %v1568
  %v2164 = vunpack.c.l.b16 %v1569
  %v2165 = vunpack.c.l.b16 %v1570
  %v2166 = vunpack.c.l.b16 %v1571
  %v2167 = vunpack.c.l.b16 %v1572
  %v2168 = vunpack.c.l.b16 %v1573
  %v2169 = vunpack.c.l.b16 %v1574
  %v2170 = vunpack.c.l.b16 %v1575
  %v2171 = vunpack.c.l.b16 %v1576
  %v2172 = vunpack.c.l.b16 %v1577
  %v2173 = vunpack.c.l.b16 %v1578
  %v2174 = vunpack.c.l.b16 %v1579
  %v2175 = vunpack.c.l.b16 %v1580
  %v2176 = vunpack.c.l.b16 %v1581
  %v2177 = vunpack.c.l.b16 %v1582
  %v2178 = vunpack.c.l.b16 %v1583
  %v2179 = vunpack.c.l.b16 %v1584
  %v2180 = vunpack.c.l.b16 %v1585
  %v2181 = vunpack.c.l.b16 %v1586
  %v2182 = vunpack.c.l.b16 %v1587
  %v2183 = vunpack.c.l.b16 %v1588
  %v2184 = vunpack.c.l.b16 %v1589
  %v2185 = vunpack.c.l.b16 %v1590
  %v2186 = vunpack.c.l.b16 %v1591
  %v2187 = vunpack.c.l.b16 %v1592
  %v2188 = vunpack.c.l.b16 %v1593
  %v2189 = vunpack.c.l.b16 %v1594
  %v2190 = vunpack.c.l.b16 %v1595
  %v2191 = vunpack.c.l.b16 %v1596
  %v2192 = vunpack.c.l.b16 %v1597
  %v2193 = vunpack.c.l.b16 %v1598
  %v2194 = vunpack.c.l.b16 %v1599
  %v2195 = vunpack.c.l.b16 %v1600
  %v2196 = vunpack.c.l.b16 %v1601
  %v2197 = vunpack.c.l.b16 %v1602
  %v2198 = vunpack.c.l.b16 %v1603
  %v2199 = vunpack.c.l.b16 %v1604
  %v2200 = vunpack.c.l.b16 %v1605
  %v2201 = vunpack.c.l.b16 %v1606
  %v2202 = vunpack.c.l.b16 %v1607
  %v2203 = vpack.c.b16 %v1948, %v1947
  %v2204 = vpack.c.b16 %v1950, %v1949
  %v2205 = vpack.c.b16 %v1952, %v1951
  %v2206 = vpack.c.b16 %v1954, %v1953
  %v2207 = vpack.c.b16 %v1956, %v1955
  %v2208 = vpack.c.b16 %v1958, %v1957
  %v2209 = vpack.c.b16 %v1960, %v1959
  %v2210 = vpack.c.b16 %v1962, %v1961
  %v2211 = vpack.c.b16 %v1964, %v1963
  %v2212 = vpack.c.b16 %v1966, %v1965
  %v2213 = vpack.c.b16 %v1968, %v1967
  %v2214 = vpack.c.b16 %v1970, %v1969
  %v2215 = vpack.c.b16 %v1972, %v1971
  %v2216 = vpack.c.b16 %v1974, %v1973
  %v2217 = vpack.c.b16 %v1976, %v1975
  %v2218 = vpack.c.b16 %v1978, %v1977
  %v2219 = vpack.c.b16 %v1980, %v1979
  %v2220 = vpack.c.b16 %v1982, %v1981
  %v2221 = vpack.c.b16 %v1984, %v1983
  %v2222 = vpack.c.b16 %v1986, %v1985
  %v2223 = vpack.c.b16 %v1988, %v1987
  %v2224 = vpack.c.b16 %v1990, %v1989
  %v2225 = vpack.c.b16 %v1992, %v1991
  %v2226 = vpack.c.b16 %v1994, %v1993
  %v2227 = vpack.c.b16 %v1996, %v1995
  %v2228 = vpack.c.b16 %v1998, %v1997
  %v2229 = vpack.c.b16 %v2000, %v1999
  %v2230 = vpack.c.b16 %v2002, %v2001
  %v2231 = vpack.c.b16 %v2004, %v2003
  %v2232 = vpack.c.b16 %v2006, %v2005
  %v2233 = vpack.c.b16 %v2008, %v2007
  %v2234 = vpack.c.b16 %v2010, %v2009
  %v2235 = vpack.c.b16 %v2012, %v2011
  %v2236 = vpack.c.b16 %v2014, %v2013
  %v2237 = vpack.c.b16 %v2016, %v2015
  %v2238 = vpack.c.b16 %v2018, %v2017
  %v2239 = vpack.c.b16 %v2020, %v2019
  %v2240 = vpack.c.b16 %v2022, %v2021
  %v2241 = vpack.c.b16 %v2024, %v2023
  %v2242 = vpack.c.b16 %v2026, %v2025
  %v2243 = vpack.c.b16 %v2028, %v2027
  %v2244 = vpack.c.b16 %v2030, %v2029
  %v2245 = vpack.c.b16 %v2032, %v2031
  %v2246 = vpack.c.b16 %v2034, %v2033
  %v2247 = vpack.c.b16 %v2036, %v2035
  %v2248 = vpack.c.b16 %v2038, %v2037
  %v2249 = vpack.c.b16 %v2040, %v2039
  %v2250 = vpack.c.b16 %v2042, %v2041
  %v2251 = vpack.c.b16 %v2044, %v2043
  %v2252 = vpack.c.b16 %v2046, %v2045
  %v2253 = vpack.c.b16 %v2048, %v2047
  %v2254 = vpack.c.b16 %v2050, %v2049
  %v2255 = vpack.c.b16 %v2052, %v2051
  %v2256 = vpack.c.b16 %v2054, %v2053
  %v2257 = vpack.c.b16 %v2056, %v2055
  %v2258 = vpack.c.b16 %v2058, %v2057
  %v2259 = vpack.c.b16 %v2060, %v2059
  %v2260 = vpack.c.b16 %v2062, %v2061
  %v2261 = vpack.c.b16 %v2064, %v2063
  %v2262 = vpack.c.b16 %v2066, %v2065
  %v2263 = vpack.c.b16 %v2068, %v2067
  %v2264 = vpack.c.b16 %v2070, %v2069
  %v2265 = vpack.c.b16 %v2072, %v2071
  %v2266 = vpack.c.b16 %v2074, %v2073
  %v2267 = vpack.c.b16 %v2076, %v2075
  %v2268 = vpack.c.b16 %v2078, %v2077
  %v2269 = vpack.c.b16 %v2080, %v2079
  %v2270 = vpack.c.b16 %v2082, %v2081
  %v2271 = vpack.c.b16 %v2084, %v2083
  %v2272 = vpack.c.b16 %v2086, %v2085
  %v2273 = vpack.c.b16 %v2088, %v2087
  %v2274 = vpack.c.b16 %v2090, %v2089
  %v2275 = vpack.c.b16 %v2092, %v2091
  %v2276 = vpack.c.b16 %v2094, %v2093
  %v2277 = vpack.c.b16 %v2096, %v2095
  %v2278 = vpack.c.b16 %v2098, %v2097
  %v2279 = vpack.c.b16 %v2100, %v2099
  %v2280 = vpack.c.b16 %v2102, %v2101
  %v2281 = vpack.c.b16 %v2104, %v2103
  %v2282 = vpack.c.b16 %v2106, %v2105
  %v2283 = vpack.c.b16 %v2108, %v2107
  %v2284 = vpack.c.b16 %v2110, %v2109
  %v2285 = vpack.c.b16 %v2112, %v2111
  %v2286 = vpack.c.b16 %v2114, %v2113
  %v2287 = vpack.c.b16 %v2116, %v2115
  %v2288 = vpack.c.b16 %v2118, %v2117
  %v2289 = vpack.c.b16 %v2120, %v2119
  %v2290 = vpack.c.b16 %v2122, %v2121
  %v2291 = vpack.c.b16 %v2124, %v2123
  %v2292 = vpack.c.b16 %v2126, %v2125
  %v2293 = vpack.c.b16 %v2128, %v2127
  %v2294 = vpack.c.b16 %v2130, %v2129
  %v2295 = vpack.c.b16 %v2132, %v2131
  %v2296 = vpack.c.b16 %v2134, %v2133
  %v2297 = vpack.c.b16 %v2136, %v2135
  %v2298 = vpack.c.b16 %v2138, %v2137
  %v2299 = vpack.c.b16 %v2140, %v2139
  %v2300 = vpack.c.b16 %v2142, %v2141
  %v2301 = vpack.c.b16 %v2144, %v2143
  %v2302 = vpack.c.b16 %v2146, %v2145
  %v2303 = vpack.c.b16 %v2148, %v2147
  %v2304 = vpack.c.b16 %v2150, %v2149
  %v2305 = vpack.c.b16 %v2152, %v2151
  %v2306 = vpack.c.b16 %v2154, %v2153
  %v2307 = vpack.c.b16 %v2156, %v2155
  %v2308 = vpack.c.b16 %v2158, %v2157
  %v2309 = vpack.c.b16 %v2160, %v2159
  %v2310 = vpack.c.b16 %v2162, %v2161
  %v2311 = vpack.c.b16 %v2164, %v2163
  %v2312 = vpack.c.b16 %v2166, %v2165
  %v2313 = vpack.c.b16 %v2168, %v2167
  %v2314 = vpack.c.b16 %v2170, %v2169
  %v2315 = vpack.c.b16 %v2172, %v2171
  %v2316 = vpack.c.b16 %v2174, %v2173
  %v2317 = vpack.c.b16 %v2176, %v2175
  %v2318 = vpack.c.b16 %v2178, %v2177
  %v2319 = vpack.c.b16 %v2180, %v2179
  %v2320 = vpack.c.b16 %v2182, %v2181
  %v2321 = vpack.c.b16 %v2184, %v2183
  %v2322 = vpack.c.b16 %v2186, %v2185
  %v2323 = vpack.c.b16 %v2188, %v2187
  %v2324 = vpack.c.b16 %v2190, %v2189
  %v2325 = vpack.c.b16 %v2192, %v2191
  %v2326 = vpack.c.b16 %v2194, %v2193
  %v2327 = vpack.c.b16 %v2196, %v2195
  %v2328 = vpack.c.b16 %v2198, %v2197
  %v2329 = vpack.c.b16 %v2200, %v2199
  %v2330 = vpack.c.b16 %v2202, %v2201
  %v2332 = vsel %vm117, %v1608, 0
  %v2335 = vsel %vm117, %v2203, 0
  %v2338 = vsel %vm117, %v2204, 0
  %v2341 = vsel %vm117, %v2205, 0
  %v2344 = vsel %vm117, %v2206, 0
  %v2347 = vsel %vm117, %v2207, 0
  %v2350 = vsel %vm117, %v2208, 0
  %v2353 = vsel %vm117, %v2209, 0
  %v2356 = vsel %vm117, %v2210, 0
  %v2359 = vsel %vm117, %v2211, 0
  %v2362 = vsel %vm117, %v2212, 0
  %v2365 = vsel %vm117, %v2213, 0
  %v2368 = vsel %vm117, %v2214, 0
  %v2371 = vsel %vm117, %v2215, 0
  %v2374 = vsel %vm117, %v2216, 0
  %v2377 = vsel %vm117, %v2217, 0
  %v2380 = vsel %vm117, %v2218, 0
  %v2383 = vsel %vm117, %v2219, 0
  %v2386 = vsel %vm117, %v2220, 0
  %v2389 = vsel %vm117, %v2221, 0
  %v2392 = vsel %vm117, %v2222, 0
  %v2395 = vsel %vm117, %v2223, 0
  %v2398 = vsel %vm117, %v2224, 0
  %v2401 = vsel %vm117, %v2225, 0
  %v2404 = vsel %vm117, %v2226, 0
  %v2407 = vsel %vm117, %v2227, 0
  %v2410 = vsel %vm117, %v2228, 0
  %v2413 = vsel %vm117, %v2229, 0
  %v2416 = vsel %vm117, %v2230, 0
  %v2419 = vsel %vm117, %v2231, 0
  %v2422 = vsel %vm117, %v2232, 0
  %v2425 = vsel %vm117, %v2233, 0
  %v2428 = vsel %vm117, %v2234, 0
  %v2431 = vsel %vm117, %v2235, 0
  %v2434 = vsel %vm117, %v2236, 0
  %v2437 = vsel %vm117, %v2237, 0
  %v2440 = vsel %vm117, %v2238, 0
  %v2443 = vsel %vm117, %v2239, 0
  %v2446 = vsel %vm117, %v2240, 0
  %v2449 = vsel %vm117, %v2241, 0
  %v2452 = vsel %vm117, %v2242, 0
  %v2455 = vsel %vm117, %v2243, 0
  %v2458 = vsel %vm117, %v2244, 0
  %v2461 = vsel %vm117, %v2245, 0
  %v2464 = vsel %vm117, %v2246, 0
  %v2467 = vsel %vm117, %v2247, 0
  %v2470 = vsel %vm117, %v2248, 0
  %v2473 = vsel %vm117, %v2249, 0
  %v2476 = vsel %vm117, %v2250, 0
  %v2479 = vsel %vm117, %v2251, 0
  %v2482 = vsel %vm117, %v2252, 0
  %v2485 = vsel %vm117, %v2253, 0
  %v2488 = vsel %vm117, %v2254, 0
  %v2491 = vsel %vm117, %v2255, 0
  %v2494 = vsel %vm117, %v2256, 0
  %v2497 = vsel %vm117, %v2257, 0
  %v2500 = vsel %vm117, %v2258, 0
  %v2503 = vsel %vm117, %v2259, 0
  %v2506 = vsel %vm117, %v2260, 0
  %v2509 = vsel %vm117, %v2261, 0
  %v2512 = vsel %vm117, %v2262, 0
  %v2515 = vsel %vm117, %v2263, 0
  %v2518 = vsel %vm117, %v2264, 0
  %v2521 = vsel %vm117, %v2265, 0
  %v2524 = vsel %vm117, %v2266, 0
  %v2527 = vsel %vm117, %v2267, 0
  %v2530 = vsel %vm117, %v2268, 0
  %v2533 = vsel %vm117, %v2269, 0
  %v2536 = vsel %vm117, %v2270, 0
  %v2539 = vsel %vm117, %v2271, 0
  %v2542 = vsel %vm117, %v2272, 0
  %v2545 = vsel %vm117, %v2273, 0
  %v2548 = vsel %vm117, %v2274, 0
  %v2551 = vsel %vm117, %v2275, 0
  %v2554 = vsel %vm117, %v2276, 0
  %v2557 = vsel %vm117, %v2277, 0
  %v2560 = vsel %vm117, %v2278, 0
  %v2563 = vsel %vm117, %v2279, 0
  %v2566 = vsel %vm117, %v2280, 0
  %v2569 = vsel %vm117, %v2281, 0
  %v2572 = vsel %vm117, %v2282, 0
  %v2575 = vsel %vm117, %v2283, 0
  %v2578 = vsel %vm117, %v2284, 0
  %v2581 = vsel %vm117, %v2285, 0
  %v2584 = vsel %vm117, %v2286, 0
  %v2587 = vsel %vm117, %v2287, 0
  %v2590 = vsel %vm117, %v2288, 0
  %v2593 = vsel %vm117, %v2289, 0
  %v2596 = vsel %vm117, %v2290, 0
  %v2599 = vsel %vm117, %v2291, 0
  %v2602 = vsel %vm117, %v2292, 0
  %v2605 = vsel %vm117, %v2293, 0
  %v2608 = vsel %vm117, %v2294, 0
  %v2611 = vsel %vm117, %v2295, 0
  %v2614 = vsel %vm117, %v2296, 0
  %v2617 = vsel %vm117, %v2297, 0
  %v2620 = vsel %vm117, %v2298, 0
  %v2623 = vsel %vm117, %v2299, 0
  %v2626 = vsel %vm117, %v2300, 0
  %v2629 = vsel %vm117, %v2301, 0
  %v2632 = vsel %vm117, %v2302, 0
  %v2635 = vsel %vm117, %v2303, 0
  %v2638 = vsel %vm117, %v2304, 0
  %v2641 = vsel %vm117, %v2305, 0
  %v2644 = vsel %vm117, %v2306, 0
  %v2647 = vsel %vm117, %v2307, 0
  %v2650 = vsel %vm117, %v2308, 0
  %v2653 = vsel %vm117, %v2309, 0
  %v2656 = vsel %vm117, %v2310, 0
  %v2659 = vsel %vm117, %v2311, 0
  %v2662 = vsel %vm117, %v2312, 0
  %v2665 = vsel %vm117, %v2313, 0
  %v2668 = vsel %vm117, %v2314, 0
  %v2671 = vsel %vm117, %v2315, 0
  %v2674 = vsel %vm117, %v2316, 0
  %v2677 = vsel %vm117, %v2317, 0
  %v2680 = vsel %vm117, %v2318, 0
  %v2683 = vsel %vm117, %v2319, 0
  %v2686 = vsel %vm117, %v2320, 0
  %v2689 = vsel %vm117, %v2321, 0
  %v2692 = vsel %vm117, %v2322, 0
  %v2695 = vsel %vm117, %v2323, 0
  %v2698 = vsel %vm117, %v2324, 0
  %v2701 = vsel %vm117, %v2325, 0
  %v2704 = vsel %vm117, %v2326, 0
  %v2707 = vsel %vm117, %v2327, 0
  %v2710 = vsel %vm117, %v2328, 0
  %v2713 = vsel %vm117, %v2329, 0
  %v2716 = vsel %vm117, %v2330, 0
  %2718 = vmatprep.subr.bf16.mxu0 0
  %2719 = vmatpush1.bf16.xpose.msra.mxu0 %v2335
  %2720 = vmatprep.subr.bf16.mxu0 0
  %2721 = vmatpush1.bf16.xpose.msra.mxu0 %v2338
  %2722 = vmatprep.subr.bf16.mxu0 0
  %2723 = vmatpush1.bf16.xpose.msra.mxu0 %v2341
  %2724 = vmatprep.subr.bf16.mxu0 0
  %2725 = vmatpush1.bf16.xpose.msra.mxu0 %v2344
  %2726 = vmatprep.subr.bf16.mxu0 0
  %2727 = vmatpush1.bf16.xpose.msra.mxu0 %v2347
  %2728 = vmatprep.subr.bf16.mxu0 0
  %2729 = vmatpush1.bf16.xpose.msra.mxu0 %v2350
  %2730 = vmatprep.subr.bf16.mxu0 0
  %2731 = vmatpush1.bf16.xpose.msra.mxu0 %v2353
  %2732 = vmatprep.subr.bf16.mxu0 0
  %2733 = vmatpush1.bf16.xpose.msra.mxu0 %v2356
  %2734 = vmatprep.subr.bf16.mxu0 0
  %2735 = vmatpush1.bf16.xpose.msra.mxu0 %v2359
  %2736 = vmatprep.subr.bf16.mxu0 0
  %2737 = vmatpush1.bf16.xpose.msra.mxu0 %v2362
  %2738 = vmatprep.subr.bf16.mxu0 0
  %2739 = vmatpush1.bf16.xpose.msra.mxu0 %v2365
  %2740 = vmatprep.subr.bf16.mxu0 0
  %2741 = vmatpush1.bf16.xpose.msra.mxu0 %v2368
  %2742 = vmatprep.subr.bf16.mxu0 0
  %2743 = vmatpush1.bf16.xpose.msra.mxu0 %v2371
  %2744 = vmatprep.subr.bf16.mxu0 0
  %2745 = vmatpush1.bf16.xpose.msra.mxu0 %v2374
  %2746 = vmatprep.subr.bf16.mxu0 0
  %2747 = vmatpush1.bf16.xpose.msra.mxu0 %v2377
  %2748 = vmatprep.subr.bf16.mxu0 0
  %2749 = vmatpush1.bf16.xpose.msra.mxu0 %v2380
  %2750 = vmatprep.mubr.bf16.mxu0 0
  %2751 = vmatmul.mubr.bf16.gmra.mrb[0].mxu0 %v2332
  %v2752 = vpop.f32.mrb[0].mxu0
  %v2753 = vadd.f32 %v1614, %v2752
  %v2754 = vpop.f32.mrb[0].mxu0
  %v2755 = vadd.f32 %v1618, %v2754
  %v2756 = vpop.f32.mrb[0].mxu0
  %v2757 = vadd.f32 %v1614, %v2756
  %v2758 = vpop.f32.mrb[0].mxu0
  %v2759 = vadd.f32 %v1618, %v2758
  %2760 = vdwg.mxu0
  %2761 = vmatprep.subr.bf16.mxu0 0
  %2762 = vmatpush1.bf16.xpose.msra.mxu0 %v2383
  %2763 = vmatprep.subr.bf16.mxu0 0
  %2764 = vmatpush1.bf16.xpose.msra.mxu0 %v2386
  %2765 = vmatprep.subr.bf16.mxu0 0
  %2766 = vmatpush1.bf16.xpose.msra.mxu0 %v2389
  %2767 = vmatprep.subr.bf16.mxu0 0
  %2768 = vmatpush1.bf16.xpose.msra.mxu0 %v2392
  %2769 = vmatprep.subr.bf16.mxu0 0
  %2770 = vmatpush1.bf16.xpose.msra.mxu0 %v2395
  %2771 = vmatprep.subr.bf16.mxu0 0
  %2772 = vmatpush1.bf16.xpose.msra.mxu0 %v2398
  %2773 = vmatprep.subr.bf16.mxu0 0
  %2774 = vmatpush1.bf16.xpose.msra.mxu0 %v2401
  %2775 = vmatprep.subr.bf16.mxu0 0
  %2776 = vmatpush1.bf16.xpose.msra.mxu0 %v2404
  %2777 = vmatprep.subr.bf16.mxu0 0
  %2778 = vmatpush1.bf16.xpose.msra.mxu0 %v2407
  %2779 = vmatprep.subr.bf16.mxu0 0
  %2780 = vmatpush1.bf16.xpose.msra.mxu0 %v2410
  %2781 = vmatprep.subr.bf16.mxu0 0
  %2782 = vmatpush1.bf16.xpose.msra.mxu0 %v2413
  %2783 = vmatprep.subr.bf16.mxu0 0
  %2784 = vmatpush1.bf16.xpose.msra.mxu0 %v2416
  %2785 = vmatprep.subr.bf16.mxu0 0
  %2786 = vmatpush1.bf16.xpose.msra.mxu0 %v2419
  %2787 = vmatprep.subr.bf16.mxu0 0
  %2788 = vmatpush1.bf16.xpose.msra.mxu0 %v2422
  %2789 = vmatprep.subr.bf16.mxu0 0
  %2790 = vmatpush1.bf16.xpose.msra.mxu0 %v2425
  %2791 = vmatprep.subr.bf16.mxu0 0
  %2792 = vmatpush1.bf16.xpose.msra.mxu0 %v2428
  %2793 = vmatprep.mubr.bf16.mxu0 0
  %2794 = vmatmul.mubr.bf16.gmra.mrb[0].mxu0 %v2332
  %v2795 = vpop.f32.mrb[0].mxu0
  %v2796 = vadd.f32 %v1622, %v2795
  %v2797 = vpop.f32.mrb[0].mxu0
  %v2798 = vadd.f32 %v1626, %v2797
  %v2799 = vpop.f32.mrb[0].mxu0
  %v2800 = vadd.f32 %v1622, %v2799
  %v2801 = vpop.f32.mrb[0].mxu0
  %v2802 = vadd.f32 %v1626, %v2801
  %2803 = vdwg.mxu0
  %2804 = vmatprep.subr.bf16.mxu0 0
  %2805 = vmatpush1.bf16.xpose.msra.mxu0 %v2431
  %2806 = vmatprep.subr.bf16.mxu0 0
  %2807 = vmatpush1.bf16.xpose.msra.mxu0 %v2434
  %2808 = vmatprep.subr.bf16.mxu0 0
  %2809 = vmatpush1.bf16.xpose.msra.mxu0 %v2437
  %2810 = vmatprep.subr.bf16.mxu0 0
  %2811 = vmatpush1.bf16.xpose.msra.mxu0 %v2440
  %2812 = vmatprep.subr.bf16.mxu0 0
  %2813 = vmatpush1.bf16.xpose.msra.mxu0 %v2443
  %2814 = vmatprep.subr.bf16.mxu0 0
  %2815 = vmatpush1.bf16.xpose.msra.mxu0 %v2446
  %2816 = vmatprep.subr.bf16.mxu0 0
  %2817 = vmatpush1.bf16.xpose.msra.mxu0 %v2449
  %2818 = vmatprep.subr.bf16.mxu0 0
  %2819 = vmatpush1.bf16.xpose.msra.mxu0 %v2452
  %2820 = vmatprep.subr.bf16.mxu0 0
  %2821 = vmatpush1.bf16.xpose.msra.mxu0 %v2455
  %2822 = vmatprep.subr.bf16.mxu0 0
  %2823 = vmatpush1.bf16.xpose.msra.mxu0 %v2458
  %2824 = vmatprep.subr.bf16.mxu0 0
  %2825 = vmatpush1.bf16.xpose.msra.mxu0 %v2461
  %2826 = vmatprep.subr.bf16.mxu0 0
  %2827 = vmatpush1.bf16.xpose.msra.mxu0 %v2464
  %2828 = vmatprep.subr.bf16.mxu0 0
  %2829 = vmatpush1.bf16.xpose.msra.mxu0 %v2467
  %2830 = vmatprep.subr.bf16.mxu0 0
  %2831 = vmatpush1.bf16.xpose.msra.mxu0 %v2470
  %2832 = vmatprep.subr.bf16.mxu0 0
  %2833 = vmatpush1.bf16.xpose.msra.mxu0 %v2473
  %2834 = vmatprep.subr.bf16.mxu0 0
  %2835 = vmatpush1.bf16.xpose.msra.mxu0 %v2476
  %2836 = vmatprep.mubr.bf16.mxu0 0
  %2837 = vmatmul.mubr.bf16.gmra.mrb[0].mxu0 %v2332
  %v2838 = vpop.f32.mrb[0].mxu0
  %v2839 = vadd.f32 %v1630, %v2838
  %v2840 = vpop.f32.mrb[0].mxu0
  %v2841 = vadd.f32 %v1634, %v2840
  %v2842 = vpop.f32.mrb[0].mxu0
  %v2843 = vadd.f32 %v1630, %v2842
  %v2844 = vpop.f32.mrb[0].mxu0
  %v2845 = vadd.f32 %v1634, %v2844
  %2846 = vdwg.mxu0
  %2847 = vmatprep.subr.bf16.mxu0 0
  %2848 = vmatpush1.bf16.xpose.msra.mxu0 %v2479
  %2849 = vmatprep.subr.bf16.mxu0 0
  %2850 = vmatpush1.bf16.xpose.msra.mxu0 %v2482
  %2851 = vmatprep.subr.bf16.mxu0 0
  %2852 = vmatpush1.bf16.xpose.msra.mxu0 %v2485
  %2853 = vmatprep.subr.bf16.mxu0 0
  %2854 = vmatpush1.bf16.xpose.msra.mxu0 %v2488
  %2855 = vmatprep.subr.bf16.mxu0 0
  %2856 = vmatpush1.bf16.xpose.msra.mxu0 %v2491
  %2857 = vmatprep.subr.bf16.mxu0 0
  %2858 = vmatpush1.bf16.xpose.msra.mxu0 %v2494
  %2859 = vmatprep.subr.bf16.mxu0 0
  %2860 = vmatpush1.bf16.xpose.msra.mxu0 %v2497
  %2861 = vmatprep.subr.bf16.mxu0 0
  %2862 = vmatpush1.bf16.xpose.msra.mxu0 %v2500
  %2863 = vmatprep.subr.bf16.mxu0 0
  %2864 = vmatpush1.bf16.xpose.msra.mxu0 %v2503
  %2865 = vmatprep.subr.bf16.mxu0 0
  %2866 = vmatpush1.bf16.xpose.msra.mxu0 %v2506
  %2867 = vmatprep.subr.bf16.mxu0 0
  %2868 = vmatpush1.bf16.xpose.msra.mxu0 %v2509
  %2869 = vmatprep.subr.bf16.mxu0 0
  %2870 = vmatpush1.bf16.xpose.msra.mxu0 %v2512
  %2871 = vmatprep.subr.bf16.mxu0 0
  %2872 = vmatpush1.bf16.xpose.msra.mxu0 %v2515
  %2873 = vmatprep.subr.bf16.mxu0 0
  %2874 = vmatpush1.bf16.xpose.msra.mxu0 %v2518
  %2875 = vmatprep.subr.bf16.mxu0 0
  %2876 = vmatpush1.bf16.xpose.msra.mxu0 %v2521
  %2877 = vmatprep.subr.bf16.mxu0 0
  %2878 = vmatpush1.bf16.xpose.msra.mxu0 %v2524
  %2879 = vmatprep.mubr.bf16.mxu0 0
  %2880 = vmatmul.mubr.bf16.gmra.mrb[0].mxu0 %v2332
  %v2881 = vpop.f32.mrb[0].mxu0
  %v2882 = vadd.f32 %v1638, %v2881
  %v2883 = vpop.f32.mrb[0].mxu0
  %v2884 = vadd.f32 %v1642, %v2883
  %v2885 = vpop.f32.mrb[0].mxu0
  %v2886 = vadd.f32 %v1638, %v2885
  %v2887 = vpop.f32.mrb[0].mxu0
  %v2888 = vadd.f32 %v1642, %v2887
  %2889 = vdwg.mxu0
  %2890 = vmatprep.subr.bf16.mxu0 0
  %2891 = vmatpush1.bf16.xpose.msra.mxu0 %v2527
  %2892 = vmatprep.subr.bf16.mxu0 0
  %2893 = vmatpush1.bf16.xpose.msra.mxu0 %v2530
  %2894 = vmatprep.subr.bf16.mxu0 0
  %2895 = vmatpush1.bf16.xpose.msra.mxu0 %v2533
  %2896 = vmatprep.subr.bf16.mxu0 0
  %2897 = vmatpush1.bf16.xpose.msra.mxu0 %v2536
  %2898 = vmatprep.subr.bf16.mxu0 0
  %2899 = vmatpush1.bf16.xpose.msra.mxu0 %v2539
  %2900 = vmatprep.subr.bf16.mxu0 0
  %2901 = vmatpush1.bf16.xpose.msra.mxu0 %v2542
  %2902 = vmatprep.subr.bf16.mxu0 0
  %2903 = vmatpush1.bf16.xpose.msra.mxu0 %v2545
  %2904 = vmatprep.subr.bf16.mxu0 0
  %2905 = vmatpush1.bf16.xpose.msra.mxu0 %v2548
  %2906 = vmatprep.subr.bf16.mxu0 0
  %2907 = vmatpush1.bf16.xpose.msra.mxu0 %v2551
  %2908 = vmatprep.subr.bf16.mxu0 0
  %2909 = vmatpush1.bf16.xpose.msra.mxu0 %v2554
  %2910 = vmatprep.subr.bf16.mxu0 0
  %2911 = vmatpush1.bf16.xpose.msra.mxu0 %v2557
  %2912 = vmatprep.subr.bf16.mxu0 0
  %2913 = vmatpush1.bf16.xpose.msra.mxu0 %v2560
  %2914 = vmatprep.subr.bf16.mxu0 0
  %2915 = vmatpush1.bf16.xpose.msra.mxu0 %v2563
  %2916 = vmatprep.subr.bf16.mxu0 0
  %2917 = vmatpush1.bf16.xpose.msra.mxu0 %v2566
  %2918 = vmatprep.subr.bf16.mxu0 0
  %2919 = vmatpush1.bf16.xpose.msra.mxu0 %v2569
  %2920 = vmatprep.subr.bf16.mxu0 0
  %2921 = vmatpush1.bf16.xpose.msra.mxu0 %v2572
  %2922 = vmatprep.mubr.bf16.mxu0 0
  %2923 = vmatmul.mubr.bf16.gmra.mrb[0].mxu0 %v2332
  %v2924 = vpop.f32.mrb[0].mxu0
  %v2925 = vadd.f32 %v1646, %v2924
  %v2926 = vpop.f32.mrb[0].mxu0
  %v2927 = vadd.f32 %v1650, %v2926
  %v2928 = vpop.f32.mrb[0].mxu0
  %v2929 = vadd.f32 %v1646, %v2928
  %v2930 = vpop.f32.mrb[0].mxu0
  %v2931 = vadd.f32 %v1650, %v2930
  %2932 = vdwg.mxu0
  %2933 = vmatprep.subr.bf16.mxu0 0
  %2934 = vmatpush1.bf16.xpose.msra.mxu0 %v2575
  %2935 = vmatprep.subr.bf16.mxu0 0
  %2936 = vmatpush1.bf16.xpose.msra.mxu0 %v2578
  %2937 = vmatprep.subr.bf16.mxu0 0
  %2938 = vmatpush1.bf16.xpose.msra.mxu0 %v2581
  %2939 = vmatprep.subr.bf16.mxu0 0
  %2940 = vmatpush1.bf16.xpose.msra.mxu0 %v2584
  %2941 = vmatprep.subr.bf16.mxu0 0
  %2942 = vmatpush1.bf16.xpose.msra.mxu0 %v2587
  %2943 = vmatprep.subr.bf16.mxu0 0
  %2944 = vmatpush1.bf16.xpose.msra.mxu0 %v2590
  %2945 = vmatprep.subr.bf16.mxu0 0
  %2946 = vmatpush1.bf16.xpose.msra.mxu0 %v2593
  %2947 = vmatprep.subr.bf16.mxu0 0
  %2948 = vmatpush1.bf16.xpose.msra.mxu0 %v2596
  %2949 = vmatprep.subr.bf16.mxu0 0
  %2950 = vmatpush1.bf16.xpose.msra.mxu0 %v2599
  %2951 = vmatprep.subr.bf16.mxu0 0
  %2952 = vmatpush1.bf16.xpose.msra.mxu0 %v2602
  %2953 = vmatprep.subr.bf16.mxu0 0
  %2954 = vmatpush1.bf16.xpose.msra.mxu0 %v2605
  %2955 = vmatprep.subr.bf16.mxu0 0
  %2956 = vmatpush1.bf16.xpose.msra.mxu0 %v2608
  %2957 = vmatprep.subr.bf16.mxu0 0
  %2958 = vmatpush1.bf16.xpose.msra.mxu0 %v2611
  %2959 = vmatprep.subr.bf16.mxu0 0
  %2960 = vmatpush1.bf16.xpose.msra.mxu0 %v2614
  %2961 = vmatprep.subr.bf16.mxu0 0
  %2962 = vmatpush1.bf16.xpose.msra.mxu0 %v2617
  %2963 = vmatprep.subr.bf16.mxu0 0
  %2964 = vmatpush1.bf16.xpose.msra.mxu0 %v2620
  %2965 = vmatprep.mubr.bf16.mxu0 0
  %2966 = vmatmul.mubr.bf16.gmra.mrb[0].mxu0 %v2332
  %v2967 = vpop.f32.mrb[0].mxu0
  %v2968 = vadd.f32 %v1654, %v2967
  %v2969 = vpop.f32.mrb[0].mxu0
  %v2970 = vadd.f32 %v1658, %v2969
  %v2971 = vpop.f32.mrb[0].mxu0
  %v2972 = vadd.f32 %v1654, %v2971
  %v2973 = vpop.f32.mrb[0].mxu0
  %v2974 = vadd.f32 %v1658, %v2973
  %2975 = vdwg.mxu0
  %2976 = vmatprep.subr.bf16.mxu0 0
  %2977 = vmatpush1.bf16.xpose.msra.mxu0 %v2623
  %2978 = vmatprep.subr.bf16.mxu0 0
  %2979 = vmatpush1.bf16.xpose.msra.mxu0 %v2626
  %2980 = vmatprep.subr.bf16.mxu0 0
  %2981 = vmatpush1.bf16.xpose.msra.mxu0 %v2629
  %2982 = vmatprep.subr.bf16.mxu0 0
  %2983 = vmatpush1.bf16.xpose.msra.mxu0 %v2632
  %2984 = vmatprep.subr.bf16.mxu0 0
  %2985 = vmatpush1.bf16.xpose.msra.mxu0 %v2635
  %2986 = vmatprep.subr.bf16.mxu0 0
  %2987 = vmatpush1.bf16.xpose.msra.mxu0 %v2638
  %2988 = vmatprep.subr.bf16.mxu0 0
  %2989 = vmatpush1.bf16.xpose.msra.mxu0 %v2641
  %2990 = vmatprep.subr.bf16.mxu0 0
  %2991 = vmatpush1.bf16.xpose.msra.mxu0 %v2644
  %2992 = vmatprep.subr.bf16.mxu0 0
  %2993 = vmatpush1.bf16.xpose.msra.mxu0 %v2647
  %2994 = vmatprep.subr.bf16.mxu0 0
  %2995 = vmatpush1.bf16.xpose.msra.mxu0 %v2650
  %2996 = vmatprep.subr.bf16.mxu0 0
  %2997 = vmatpush1.bf16.xpose.msra.mxu0 %v2653
  %2998 = vmatprep.subr.bf16.mxu0 0
  %2999 = vmatpush1.bf16.xpose.msra.mxu0 %v2656
  %3000 = vmatprep.subr.bf16.mxu0 0
  %3001 = vmatpush1.bf16.xpose.msra.mxu0 %v2659
  %3002 = vmatprep.subr.bf16.mxu0 0
  %3003 = vmatpush1.bf16.xpose.msra.mxu0 %v2662
  %3004 = vmatprep.subr.bf16.mxu0 0
  %3005 = vmatpush1.bf16.xpose.msra.mxu0 %v2665
  %3006 = vmatprep.subr.bf16.mxu0 0
  %3007 = vmatpush1.bf16.xpose.msra.mxu0 %v2668
  %3008 = vmatprep.mubr.bf16.mxu0 0
  %3009 = vmatmul.mubr.bf16.gmra.mrb[0].mxu0 %v2332
  %v3010 = vpop.f32.mrb[0].mxu0
  %v3011 = vadd.f32 %v1662, %v3010
  %v3012 = vpop.f32.mrb[0].mxu0
  %v3013 = vadd.f32 %v1666, %v3012
  %v3014 = vpop.f32.mrb[0].mxu0
  %v3015 = vadd.f32 %v1662, %v3014
  %v3016 = vpop.f32.mrb[0].mxu0
  %v3017 = vadd.f32 %v1666, %v3016
  %3018 = vdwg.mxu0
  %3019 = vmatprep.subr.bf16.mxu0 0
  %3020 = vmatpush1.bf16.xpose.msra.mxu0 %v2671
  %3021 = vmatprep.subr.bf16.mxu0 0
  %3022 = vmatpush1.bf16.xpose.msra.mxu0 %v2674
  %3023 = vmatprep.subr.bf16.mxu0 0
  %3024 = vmatpush1.bf16.xpose.msra.mxu0 %v2677
  %3025 = vmatprep.subr.bf16.mxu0 0
  %3026 = vmatpush1.bf16.xpose.msra.mxu0 %v2680
  %3027 = vmatprep.subr.bf16.mxu0 0
  %3028 = vmatpush1.bf16.xpose.msra.mxu0 %v2683
  %3029 = vmatprep.subr.bf16.mxu0 0
  %3030 = vmatpush1.bf16.xpose.msra.mxu0 %v2686
  %3031 = vmatprep.subr.bf16.mxu0 0
  %3032 = vmatpush1.bf16.xpose.msra.mxu0 %v2689
  %3033 = vmatprep.subr.bf16.mxu0 0
  %3034 = vmatpush1.bf16.xpose.msra.mxu0 %v2692
  %3035 = vmatprep.subr.bf16.mxu0 0
  %3036 = vmatpush1.bf16.xpose.msra.mxu0 %v2695
  %3037 = vmatprep.subr.bf16.mxu0 0
  %3038 = vmatpush1.bf16.xpose.msra.mxu0 %v2698
  %3039 = vmatprep.subr.bf16.mxu0 0
  %3040 = vmatpush1.bf16.xpose.msra.mxu0 %v2701
  %3041 = vmatprep.subr.bf16.mxu0 0
  %3042 = vmatpush1.bf16.xpose.msra.mxu0 %v2704
  %3043 = vmatprep.subr.bf16.mxu0 0
  %3044 = vmatpush1.bf16.xpose.msra.mxu0 %v2707
  %3045 = vmatprep.subr.bf16.mxu0 0
  %3046 = vmatpush1.bf16.xpose.msra.mxu0 %v2710
  %3047 = vmatprep.subr.bf16.mxu0 0
  %3048 = vmatpush1.bf16.xpose.msra.mxu0 %v2713
  %3049 = vmatprep.subr.bf16.mxu0 0
  %3050 = vmatpush1.bf16.xpose.msra.mxu0 %v2716
  %3051 = vmatprep.mubr.bf16.mxu0 0
  %3052 = vmatmul.mubr.bf16.gmra.mrb[0].mxu0 %v2332
  %v3053 = vpop.f32.mrb[0].mxu0
  %v3054 = vadd.f32 %v1670, %v3053
  %v3055 = vpop.f32.mrb[0].mxu0
  %v3056 = vadd.f32 %v1674, %v3055
  %v3057 = vpop.f32.mrb[0].mxu0
  %v3058 = vadd.f32 %v1670, %v3057
  %v3059 = vpop.f32.mrb[0].mxu0
  %v3060 = vadd.f32 %v1674, %v3059
  %3061 = vdwg.mxu0
  %v3062 = vmax.f32 %v2753, 0.0
  %v3063 = vmax.f32 %v2755, 0.0
  %v3064 = vmax.f32 %v2796, 0.0
  %v3065 = vmax.f32 %v2798, 0.0
  %v3066 = vmax.f32 %v2839, 0.0
  %v3067 = vmax.f32 %v2841, 0.0
  %v3068 = vmax.f32 %v2882, 0.0
  %v3069 = vmax.f32 %v2884, 0.0
  %v3070 = vmax.f32 %v2925, 0.0
  %v3071 = vmax.f32 %v2927, 0.0
  %v3072 = vmax.f32 %v2968, 0.0
  %v3073 = vmax.f32 %v2970, 0.0
  %v3074 = vmax.f32 %v3011, 0.0
  %v3075 = vmax.f32 %v3013, 0.0
  %v3076 = vmax.f32 %v3054, 0.0
  %v3077 = vmax.f32 %v3056, 0.0
  %v3078 = vmax.f32 %v2757, 0.0
  %v3079 = vmax.f32 %v2759, 0.0
  %v3080 = vmax.f32 %v2800, 0.0
  %v3081 = vmax.f32 %v2802, 0.0
  %v3082 = vmax.f32 %v2843, 0.0
  %v3083 = vmax.f32 %v2845, 0.0
  %v3084 = vmax.f32 %v2886, 0.0
  %v3085 = vmax.f32 %v2888, 0.0
  %v3086 = vmax.f32 %v2929, 0.0
  %v3087 = vmax.f32 %v2931, 0.0
  %v3088 = vmax.f32 %v2972, 0.0
  %v3089 = vmax.f32 %v2974, 0.0
  %v3090 = vmax.f32 %v3015, 0.0
  %v3091 = vmax.f32 %v3017, 0.0
  %v3092 = vmax.f32 %v3058, 0.0
  %v3093 = vmax.f32 %v3060, 0.0
  %v3094 = vld [vmem:[%s9] sm:$0xff]
  %v3095 = vld [vmem:[%s9 + $0x8] sm:$0xff]
  %v3096 = vld [vmem:[%s9 + $0x10] sm:$0xff]
  %v3097 = vld [vmem:[%s9 + $0x18] sm:$0xff]
  %v3098 = vld [vmem:[%s9 + $0x20] sm:$0xff]
  %v3099 = vld [vmem:[%s9 + $0x28] sm:$0xff]
  %v3100 = vld [vmem:[%s9 + $0x30] sm:$0xff]
  %v3101 = vld [vmem:[%s9 + $0x38] sm:$0xff]
  %v3102 = vld [vmem:[%s9 + $0x40] sm:$0xff]
  %v3103 = vld [vmem:[%s9 + $0x48] sm:$0xff]
  %v3104 = vld [vmem:[%s9 + $0x50] sm:$0xff]
  %v3105 = vld [vmem:[%s9 + $0x58] sm:$0xff]
  %v3106 = vld [vmem:[%s9 + $0x60] sm:$0xff]
  %v3107 = vld [vmem:[%s9 + $0x68] sm:$0xff]
  %v3108 = vld [vmem:[%s9 + $0x70] sm:$0xff]
  %v3109 = vld [vmem:[%s9 + $0x78] sm:$0xff]
  %v3110 = vld [vmem:[%s9 + $0x80] sm:$0xff]
  %v3111 = vld [vmem:[%s9 + $0x88] sm:$0xff]
  %v3112 = vld [vmem:[%s9 + $0x90] sm:$0xff]
  %v3113 = vld [vmem:[%s9 + $0x98] sm:$0xff]
  %v3114 = vld [vmem:[%s9 + $0xa0] sm:$0xff]
  %v3115 = vld [vmem:[%s9 + $0xa8] sm:$0xff]
  %v3116 = vld [vmem:[%s9 + $0xb0] sm:$0xff]
  %v3117 = vld [vmem:[%s9 + $0xb8] sm:$0xff]
  %v3118 = vld [vmem:[%s9 + $0xc0] sm:$0xff]
  %v3119 = vld [vmem:[%s9 + $0xc8] sm:$0xff]
  %v3120 = vld [vmem:[%s9 + $0xd0] sm:$0xff]
  %v3121 = vld [vmem:[%s9 + $0xd8] sm:$0xff]
  %v3122 = vld [vmem:[%s9 + $0xe0] sm:$0xff]
  %v3123 = vld [vmem:[%s9 + $0xe8] sm:$0xff]
  %v3124 = vld [vmem:[%s9 + $0xf0] sm:$0xff]
  %v3125 = vld [vmem:[%s9 + $0xf8] sm:$0xff]
  %v3126 = vpack.c.bf16 %v3078, %v3062
  %v3127 = vpack.c.bf16 %v3079, %v3063
  %v3128 = vpack.c.bf16 %v3080, %v3064
  %v3129 = vpack.c.bf16 %v3081, %v3065
  %v3130 = vpack.c.bf16 %v3082, %v3066
  %v3131 = vpack.c.bf16 %v3083, %v3067
  %v3132 = vpack.c.bf16 %v3084, %v3068
  %v3133 = vpack.c.bf16 %v3085, %v3069
  %v3134 = vpack.c.bf16 %v3086, %v3070
  %v3135 = vpack.c.bf16 %v3087, %v3071
  %v3136 = vpack.c.bf16 %v3088, %v3072
  %v3137 = vpack.c.bf16 %v3089, %v3073
  %v3138 = vpack.c.bf16 %v3090, %v3074
  %v3139 = vpack.c.bf16 %v3091, %v3075
  %v3140 = vpack.c.bf16 %v3092, %v3076
  %v3141 = vpack.c.bf16 %v3093, %v3077
  %v3142 = vlaneseq
  %v3143 = vshrl.u32 %v3142, 7
  %v3144 = vsub.s32 6, %v3143
  %v3145 = vrot.slane %v200, %v3144
  %v3178 = vunpack.c.l.b16 %v3094
  %v3179 = vunpack.c.h.b16 %v3094
  %v3180 = vunpack.c.l.b16 %v3095
  %v3181 = vunpack.c.h.b16 %v3095
  %v3182 = vunpack.c.l.b16 %v3096
  %v3183 = vunpack.c.h.b16 %v3096
  %v3184 = vunpack.c.l.b16 %v3097
  %v3185 = vunpack.c.h.b16 %v3097
  %v3186 = vunpack.c.l.b16 %v3098
  %v3187 = vunpack.c.h.b16 %v3098
  %v3188 = vunpack.c.l.b16 %v3099
  %v3189 = vunpack.c.h.b16 %v3099
  %v3190 = vunpack.c.l.b16 %v3100
  %v3191 = vunpack.c.h.b16 %v3100
  %v3192 = vunpack.c.l.b16 %v3101
  %v3193 = vunpack.c.h.b16 %v3101
  %v3194 = vunpack.c.l.b16 %v3102
  %v3195 = vunpack.c.h.b16 %v3102
  %v3196 = vunpack.c.l.b16 %v3103
  %v3197 = vunpack.c.h.b16 %v3103
  %v3198 = vunpack.c.l.b16 %v3104
  %v3199 = vunpack.c.h.b16 %v3104
  %v3200 = vunpack.c.l.b16 %v3105
  %v3201 = vunpack.c.h.b16 %v3105
  %v3202 = vunpack.c.l.b16 %v3106
  %v3203 = vunpack.c.h.b16 %v3106
  %v3204 = vunpack.c.l.b16 %v3107
  %v3205 = vunpack.c.h.b16 %v3107
  %v3206 = vunpack.c.l.b16 %v3108
  %v3207 = vunpack.c.h.b16 %v3108
  %v3208 = vunpack.c.l.b16 %v3109
  %v3209 = vunpack.c.h.b16 %v3109
  %v3210 = vunpack.c.l.b16 %v3110
  %v3211 = vunpack.c.h.b16 %v3110
  %v3212 = vunpack.c.l.b16 %v3111
  %v3213 = vunpack.c.h.b16 %v3111
  %v3214 = vunpack.c.l.b16 %v3112
  %v3215 = vunpack.c.h.b16 %v3112
  %v3216 = vunpack.c.l.b16 %v3113
  %v3217 = vunpack.c.h.b16 %v3113
  %v3218 = vunpack.c.l.b16 %v3114
  %v3219 = vunpack.c.h.b16 %v3114
  %v3220 = vunpack.c.l.b16 %v3115
  %v3221 = vunpack.c.h.b16 %v3115
  %v3222 = vunpack.c.l.b16 %v3116
  %v3223 = vunpack.c.h.b16 %v3116
  %v3224 = vunpack.c.l.b16 %v3117
  %v3225 = vunpack.c.h.b16 %v3117
  %v3226 = vunpack.c.l.b16 %v3118
  %v3227 = vunpack.c.h.b16 %v3118
  %v3228 = vunpack.c.l.b16 %v3119
  %v3229 = vunpack.c.h.b16 %v3119
  %v3230 = vunpack.c.l.b16 %v3120
  %v3231 = vunpack.c.h.b16 %v3120
  %v3232 = vunpack.c.l.b16 %v3121
  %v3233 = vunpack.c.h.b16 %v3121
  %v3234 = vunpack.c.l.b16 %v3122
  %v3235 = vunpack.c.h.b16 %v3122
  %v3236 = vunpack.c.l.b16 %v3123
  %v3237 = vunpack.c.h.b16 %v3123
  %v3238 = vunpack.c.l.b16 %v3124
  %v3239 = vunpack.c.h.b16 %v3124
  %v3240 = vunpack.c.l.b16 %v3125
  %v3241 = vunpack.c.h.b16 %v3125
  %v3242 = vpack.c.b16 %v3194, %v3178
  %v3243 = vpack.c.b16 %v3195, %v3179
  %v3244 = vpack.c.b16 %v3196, %v3180
  %v3245 = vpack.c.b16 %v3197, %v3181
  %v3246 = vpack.c.b16 %v3198, %v3182
  %v3247 = vpack.c.b16 %v3199, %v3183
  %v3248 = vpack.c.b16 %v3200, %v3184
  %v3249 = vpack.c.b16 %v3201, %v3185
  %v3250 = vpack.c.b16 %v3202, %v3186
  %v3251 = vpack.c.b16 %v3203, %v3187
  %v3252 = vpack.c.b16 %v3204, %v3188
  %v3253 = vpack.c.b16 %v3205, %v3189
  %v3254 = vpack.c.b16 %v3206, %v3190
  %v3255 = vpack.c.b16 %v3207, %v3191
  %v3256 = vpack.c.b16 %v3208, %v3192
  %v3257 = vpack.c.b16 %v3209, %v3193
  %v3258 = vpack.c.b16 %v3226, %v3210
  %v3259 = vpack.c.b16 %v3227, %v3211
  %v3260 = vpack.c.b16 %v3228, %v3212
  %v3261 = vpack.c.b16 %v3229, %v3213
  %v3262 = vpack.c.b16 %v3230, %v3214
  %v3263 = vpack.c.b16 %v3231, %v3215
  %v3264 = vpack.c.b16 %v3232, %v3216
  %v3265 = vpack.c.b16 %v3233, %v3217
  %v3266 = vpack.c.b16 %v3234, %v3218
  %v3267 = vpack.c.b16 %v3235, %v3219
  %v3268 = vpack.c.b16 %v3236, %v3220
  %v3269 = vpack.c.b16 %v3237, %v3221
  %v3270 = vpack.c.b16 %v3238, %v3222
  %v3271 = vpack.c.b16 %v3239, %v3223
  %v3272 = vpack.c.b16 %v3240, %v3224
  %v3273 = vpack.c.b16 %v3241, %v3225
  %3306 = vmatprep.subr.bf16.mxu0 %v3243
  %3307 = vmatpush1.bf16.xpose.msra.mxu0 %v3242
  %3308 = vmatprep.subr.bf16.mxu0 %v3259
  %3309 = vmatpush1.bf16.xpose.msra.mxu0 %v3258
  %3310 = vmatprep.subr.bf16.mxu0 0
  %3311 = vmatpush1.bf16.xpose.msra.mxu0 0
  %3312 = vmatprep.subr.bf16.mxu0 0
  %3313 = vmatpush1.bf16.xpose.msra.mxu0 0
  %3314 = vmatprep.subr.bf16.mxu0 0
  %3315 = vmatpush1.bf16.xpose.msra.mxu0 0
  %3316 = vmatprep.subr.bf16.mxu0 0
  %3317 = vmatpush1.bf16.xpose.msra.mxu0 0
  %3318 = vmatprep.subr.bf16.mxu0 0
  %3319 = vmatpush1.bf16.xpose.msra.mxu0 0
  %3320 = vmatprep.subr.bf16.mxu0 0
  %3321 = vmatpush1.bf16.xpose.msra.mxu0 0
  %3322 = vmatprep.subr.bf16.mxu0 0
  %3323 = vmatpush1.bf16.xpose.msra.mxu0 0
  %3324 = vmatprep.subr.bf16.mxu0 0
  %3325 = vmatpush1.bf16.xpose.msra.mxu0 0
  %3326 = vmatprep.subr.bf16.mxu0 0
  %3327 = vmatpush1.bf16.xpose.msra.mxu0 0
  %3328 = vmatprep.subr.bf16.mxu0 0
  %3329 = vmatpush1.bf16.xpose.msra.mxu0 0
  %3330 = vmatprep.subr.bf16.mxu0 0
  %3331 = vmatpush1.bf16.xpose.msra.mxu0 0
  %3332 = vmatprep.subr.bf16.mxu0 0
  %3333 = vmatpush1.bf16.xpose.msra.mxu0 0
  %3334 = vmatprep.subr.bf16.mxu0 0
  %3335 = vmatpush1.bf16.xpose.msra.mxu0 0
  %3336 = vmatprep.subr.bf16.mxu0 0
  %3337 = vmatpush1.bf16.xpose.msra.mxu0 0
  %3338 = vmatprep.mubr.bf16.mxu0 %v3127
  %3339 = vmatmul.mubr.bf16.gmra.mrb[0].mxu0 %v3126
  %v3340 = vpop.f32.mrb[0].mxu0
  %v3341 = vadd.f32 %v3145, %v3340
  %v3342 = vpop.f32.mrb[0].mxu0
  %v3343 = vpop.f32.mrb[0].mxu0
  %v3344 = vadd.f32 %v3145, %v3343
  %v3345 = vpop.f32.mrb[0].mxu0
  %3346 = vdwg.mxu0
  %3347 = vmatprep.subr.bf16.mxu0 %v3245
  %3348 = vmatpush1.bf16.xpose.msra.mxu0 %v3244
  %3349 = vmatprep.subr.bf16.mxu0 %v3261
  %3350 = vmatpush1.bf16.xpose.msra.mxu0 %v3260
  %3351 = vmatprep.subr.bf16.mxu0 0
  %3352 = vmatpush1.bf16.xpose.msra.mxu0 0
  %3353 = vmatprep.subr.bf16.mxu0 0
  %3354 = vmatpush1.bf16.xpose.msra.mxu0 0
  %3355 = vmatprep.subr.bf16.mxu0 0
  %3356 = vmatpush1.bf16.xpose.msra.mxu0 0
  %3357 = vmatprep.subr.bf16.mxu0 0
  %3358 = vmatpush1.bf16.xpose.msra.mxu0 0
  %3359 = vmatprep.subr.bf16.mxu0 0
  %3360 = vmatpush1.bf16.xpose.msra.mxu0 0
  %3361 = vmatprep.subr.bf16.mxu0 0
  %3362 = vmatpush1.bf16.xpose.msra.mxu0 0
  %3363 = vmatprep.subr.bf16.mxu0 0
  %3364 = vmatpush1.bf16.xpose.msra.mxu0 0
  %3365 = vmatprep.subr.bf16.mxu0 0
  %3366 = vmatpush1.bf16.xpose.msra.mxu0 0
  %3367 = vmatprep.subr.bf16.mxu0 0
  %3368 = vmatpush1.bf16.xpose.msra.mxu0 0
  %3369 = vmatprep.subr.bf16.mxu0 0
  %3370 = vmatpush1.bf16.xpose.msra.mxu0 0
  %3371 = vmatprep.subr.bf16.mxu0 0
  %3372 = vmatpush1.bf16.xpose.msra.mxu0 0
  %3373 = vmatprep.subr.bf16.mxu0 0
  %3374 = vmatpush1.bf16.xpose.msra.mxu0 0
  %3375 = vmatprep.subr.bf16.mxu0 0
  %3376 = vmatpush1.bf16.xpose.msra.mxu0 0
  %3377 = vmatprep.subr.bf16.mxu0 0
  %3378 = vmatpush1.bf16.xpose.msra.mxu0 0
  %3379 = vmatprep.mubr.bf16.mxu0 %v3129
  %3380 = vmatmul.mubr.bf16.gmra.mrb[0].mxu0 %v3128
  %v3381 = vpop.f32.mrb[0].mxu0
  %v3382 = vadd.f32 %v3341, %v3381
  %v3383 = vpop.f32.mrb[0].mxu0
  %v3384 = vpop.f32.mrb[0].mxu0
  %v3385 = vadd.f32 %v3344, %v3384
  %v3386 = vpop.f32.mrb[0].mxu0
  %3387 = vdwg.mxu0
  %3388 = vmatprep.subr.bf16.mxu0 %v3247
  %3389 = vmatpush1.bf16.xpose.msra.mxu0 %v3246
  %3390 = vmatprep.subr.bf16.mxu0 %v3263
  %3391 = vmatpush1.bf16.xpose.msra.mxu0 %v3262
  %3392 = vmatprep.subr.bf16.mxu0 0
  %3393 = vmatpush1.bf16.xpose.msra.mxu0 0
  %3394 = vmatprep.subr.bf16.mxu0 0
  %3395 = vmatpush1.bf16.xpose.msra.mxu0 0
  %3396 = vmatprep.subr.bf16.mxu0 0
  %3397 = vmatpush1.bf16.xpose.msra.mxu0 0
  %3398 = vmatprep.subr.bf16.mxu0 0
  %3399 = vmatpush1.bf16.xpose.msra.mxu0 0
  %3400 = vmatprep.subr.bf16.mxu0 0
  %3401 = vmatpush1.bf16.xpose.msra.mxu0 0
  %3402 = vmatprep.subr.bf16.mxu0 0
  %3403 = vmatpush1.bf16.xpose.msra.mxu0 0
  %3404 = vmatprep.subr.bf16.mxu0 0
  %3405 = vmatpush1.bf16.xpose.msra.mxu0 0
  %3406 = vmatprep.subr.bf16.mxu0 0
  %3407 = vmatpush1.bf16.xpose.msra.mxu0 0
  %3408 = vmatprep.subr.bf16.mxu0 0
  %3409 = vmatpush1.bf16.xpose.msra.mxu0 0
  %3410 = vmatprep.subr.bf16.mxu0 0
  %3411 = vmatpush1.bf16.xpose.msra.mxu0 0
  %3412 = vmatprep.subr.bf16.mxu0 0
  %3413 = vmatpush1.bf16.xpose.msra.mxu0 0
  %3414 = vmatprep.subr.bf16.mxu0 0
  %3415 = vmatpush1.bf16.xpose.msra.mxu0 0
  %3416 = vmatprep.subr.bf16.mxu0 0
  %3417 = vmatpush1.bf16.xpose.msra.mxu0 0
  %3418 = vmatprep.subr.bf16.mxu0 0
  %3419 = vmatpush1.bf16.xpose.msra.mxu0 0
  %3420 = vmatprep.mubr.bf16.mxu0 %v3131
  %3421 = vmatmul.mubr.bf16.gmra.mrb[0].mxu0 %v3130
  %v3422 = vpop.f32.mrb[0].mxu0
  %v3423 = vadd.f32 %v3382, %v3422
  %v3424 = vpop.f32.mrb[0].mxu0
  %v3425 = vpop.f32.mrb[0].mxu0
  %v3426 = vadd.f32 %v3385, %v3425
  %v3427 = vpop.f32.mrb[0].mxu0
  %3428 = vdwg.mxu0
  %3429 = vmatprep.subr.bf16.mxu0 %v3249
  %3430 = vmatpush1.bf16.xpose.msra.mxu0 %v3248
  %3431 = vmatprep.subr.bf16.mxu0 %v3265
  %3432 = vmatpush1.bf16.xpose.msra.mxu0 %v3264
  %3433 = vmatprep.subr.bf16.mxu0 0
  %3434 = vmatpush1.bf16.xpose.msra.mxu0 0
  %3435 = vmatprep.subr.bf16.mxu0 0
  %3436 = vmatpush1.bf16.xpose.msra.mxu0 0
  %3437 = vmatprep.subr.bf16.mxu0 0
  %3438 = vmatpush1.bf16.xpose.msra.mxu0 0
  %3439 = vmatprep.subr.bf16.mxu0 0
  %3440 = vmatpush1.bf16.xpose.msra.mxu0 0
  %3441 = vmatprep.subr.bf16.mxu0 0
  %3442 = vmatpush1.bf16.xpose.msra.mxu0 0
  %3443 = vmatprep.subr.bf16.mxu0 0
  %3444 = vmatpush1.bf16.xpose.msra.mxu0 0
  %3445 = vmatprep.subr.bf16.mxu0 0
  %3446 = vmatpush1.bf16.xpose.msra.mxu0 0
  %3447 = vmatprep.subr.bf16.mxu0 0
  %3448 = vmatpush1.bf16.xpose.msra.mxu0 0
  %3449 = vmatprep.subr.bf16.mxu0 0
  %3450 = vmatpush1.bf16.xpose.msra.mxu0 0
  %3451 = vmatprep.subr.bf16.mxu0 0
  %3452 = vmatpush1.bf16.xpose.msra.mxu0 0
  %3453 = vmatprep.subr.bf16.mxu0 0
  %3454 = vmatpush1.bf16.xpose.msra.mxu0 0
  %3455 = vmatprep.subr.bf16.mxu0 0
  %3456 = vmatpush1.bf16.xpose.msra.mxu0 0
  %3457 = vmatprep.subr.bf16.mxu0 0
  %3458 = vmatpush1.bf16.xpose.msra.mxu0 0
  %3459 = vmatprep.subr.bf16.mxu0 0
  %3460 = vmatpush1.bf16.xpose.msra.mxu0 0
  %3461 = vmatprep.mubr.bf16.mxu0 %v3133
  %3462 = vmatmul.mubr.bf16.gmra.mrb[0].mxu0 %v3132
  %v3463 = vpop.f32.mrb[0].mxu0
  %v3464 = vadd.f32 %v3423, %v3463
  %v3465 = vpop.f32.mrb[0].mxu0
  %v3466 = vpop.f32.mrb[0].mxu0
  %v3467 = vadd.f32 %v3426, %v3466
  %v3468 = vpop.f32.mrb[0].mxu0
  %3469 = vdwg.mxu0
  %3470 = vmatprep.subr.bf16.mxu0 %v3251
  %3471 = vmatpush1.bf16.xpose.msra.mxu0 %v3250
  %3472 = vmatprep.subr.bf16.mxu0 %v3267
  %3473 = vmatpush1.bf16.xpose.msra.mxu0 %v3266
  %3474 = vmatprep.subr.bf16.mxu0 0
  %3475 = vmatpush1.bf16.xpose.msra.mxu0 0
  %3476 = vmatprep.subr.bf16.mxu0 0
  %3477 = vmatpush1.bf16.xpose.msra.mxu0 0
  %3478 = vmatprep.subr.bf16.mxu0 0
  %3479 = vmatpush1.bf16.xpose.msra.mxu0 0
  %3480 = vmatprep.subr.bf16.mxu0 0
  %3481 = vmatpush1.bf16.xpose.msra.mxu0 0
  %3482 = vmatprep.subr.bf16.mxu0 0
  %3483 = vmatpush1.bf16.xpose.msra.mxu0 0
  %3484 = vmatprep.subr.bf16.mxu0 0
  %3485 = vmatpush1.bf16.xpose.msra.mxu0 0
  %3486 = vmatprep.subr.bf16.mxu0 0
  %3487 = vmatpush1.bf16.xpose.msra.mxu0 0
  %3488 = vmatprep.subr.bf16.mxu0 0
  %3489 = vmatpush1.bf16.xpose.msra.mxu0 0
  %3490 = vmatprep.subr.bf16.mxu0 0
  %3491 = vmatpush1.bf16.xpose.msra.mxu0 0
  %3492 = vmatprep.subr.bf16.mxu0 0
  %3493 = vmatpush1.bf16.xpose.msra.mxu0 0
  %3494 = vmatprep.subr.bf16.mxu0 0
  %3495 = vmatpush1.bf16.xpose.msra.mxu0 0
  %3496 = vmatprep.subr.bf16.mxu0 0
  %3497 = vmatpush1.bf16.xpose.msra.mxu0 0
  %3498 = vmatprep.subr.bf16.mxu0 0
  %3499 = vmatpush1.bf16.xpose.msra.mxu0 0
  %3500 = vmatprep.subr.bf16.mxu0 0
  %3501 = vmatpush1.bf16.xpose.msra.mxu0 0
  %3502 = vmatprep.mubr.bf16.mxu0 %v3135
  %3503 = vmatmul.mubr.bf16.gmra.mrb[0].mxu0 %v3134
  %v3504 = vpop.f32.mrb[0].mxu0
  %v3505 = vadd.f32 %v3464, %v3504
  %v3506 = vpop.f32.mrb[0].mxu0
  %v3507 = vpop.f32.mrb[0].mxu0
  %v3508 = vadd.f32 %v3467, %v3507
  %v3509 = vpop.f32.mrb[0].mxu0
  %3510 = vdwg.mxu0
  %3511 = vmatprep.subr.bf16.mxu0 %v3253
  %3512 = vmatpush1.bf16.xpose.msra.mxu0 %v3252
  %3513 = vmatprep.subr.bf16.mxu0 %v3269
  %3514 = vmatpush1.bf16.xpose.msra.mxu0 %v3268
  %3515 = vmatprep.subr.bf16.mxu0 0
  %3516 = vmatpush1.bf16.xpose.msra.mxu0 0
  %3517 = vmatprep.subr.bf16.mxu0 0
  %3518 = vmatpush1.bf16.xpose.msra.mxu0 0
  %3519 = vmatprep.subr.bf16.mxu0 0
  %3520 = vmatpush1.bf16.xpose.msra.mxu0 0
  %3521 = vmatprep.subr.bf16.mxu0 0
  %3522 = vmatpush1.bf16.xpose.msra.mxu0 0
  %3523 = vmatprep.subr.bf16.mxu0 0
  %3524 = vmatpush1.bf16.xpose.msra.mxu0 0
  %3525 = vmatprep.subr.bf16.mxu0 0
  %3526 = vmatpush1.bf16.xpose.msra.mxu0 0
  %3527 = vmatprep.subr.bf16.mxu0 0
  %3528 = vmatpush1.bf16.xpose.msra.mxu0 0
  %3529 = vmatprep.subr.bf16.mxu0 0
  %3530 = vmatpush1.bf16.xpose.msra.mxu0 0
  %3531 = vmatprep.subr.bf16.mxu0 0
  %3532 = vmatpush1.bf16.xpose.msra.mxu0 0
  %3533 = vmatprep.subr.bf16.mxu0 0
  %3534 = vmatpush1.bf16.xpose.msra.mxu0 0
  %3535 = vmatprep.subr.bf16.mxu0 0
  %3536 = vmatpush1.bf16.xpose.msra.mxu0 0
  %3537 = vmatprep.subr.bf16.mxu0 0
  %3538 = vmatpush1.bf16.xpose.msra.mxu0 0
  %3539 = vmatprep.subr.bf16.mxu0 0
  %3540 = vmatpush1.bf16.xpose.msra.mxu0 0
  %3541 = vmatprep.subr.bf16.mxu0 0
  %3542 = vmatpush1.bf16.xpose.msra.mxu0 0
  %3543 = vmatprep.mubr.bf16.mxu0 %v3137
  %3544 = vmatmul.mubr.bf16.gmra.mrb[0].mxu0 %v3136
  %v3545 = vpop.f32.mrb[0].mxu0
  %v3546 = vadd.f32 %v3505, %v3545
  %v3547 = vpop.f32.mrb[0].mxu0
  %v3548 = vpop.f32.mrb[0].mxu0
  %v3549 = vadd.f32 %v3508, %v3548
  %v3550 = vpop.f32.mrb[0].mxu0
  %3551 = vdwg.mxu0
  %3552 = vmatprep.subr.bf16.mxu0 %v3255
  %3553 = vmatpush1.bf16.xpose.msra.mxu0 %v3254
  %3554 = vmatprep.subr.bf16.mxu0 %v3271
  %3555 = vmatpush1.bf16.xpose.msra.mxu0 %v3270
  %3556 = vmatprep.subr.bf16.mxu0 0
  %3557 = vmatpush1.bf16.xpose.msra.mxu0 0
  %3558 = vmatprep.subr.bf16.mxu0 0
  %3559 = vmatpush1.bf16.xpose.msra.mxu0 0
  %3560 = vmatprep.subr.bf16.mxu0 0
  %3561 = vmatpush1.bf16.xpose.msra.mxu0 0
  %3562 = vmatprep.subr.bf16.mxu0 0
  %3563 = vmatpush1.bf16.xpose.msra.mxu0 0
  %3564 = vmatprep.subr.bf16.mxu0 0
  %3565 = vmatpush1.bf16.xpose.msra.mxu0 0
  %3566 = vmatprep.subr.bf16.mxu0 0
  %3567 = vmatpush1.bf16.xpose.msra.mxu0 0
  %3568 = vmatprep.subr.bf16.mxu0 0
  %3569 = vmatpush1.bf16.xpose.msra.mxu0 0
  %3570 = vmatprep.subr.bf16.mxu0 0
  %3571 = vmatpush1.bf16.xpose.msra.mxu0 0
  %3572 = vmatprep.subr.bf16.mxu0 0
  %3573 = vmatpush1.bf16.xpose.msra.mxu0 0
  %3574 = vmatprep.subr.bf16.mxu0 0
  %3575 = vmatpush1.bf16.xpose.msra.mxu0 0
  %3576 = vmatprep.subr.bf16.mxu0 0
  %3577 = vmatpush1.bf16.xpose.msra.mxu0 0
  %3578 = vmatprep.subr.bf16.mxu0 0
  %3579 = vmatpush1.bf16.xpose.msra.mxu0 0
  %3580 = vmatprep.subr.bf16.mxu0 0
  %3581 = vmatpush1.bf16.xpose.msra.mxu0 0
  %3582 = vmatprep.subr.bf16.mxu0 0
  %3583 = vmatpush1.bf16.xpose.msra.mxu0 0
  %3584 = vmatprep.mubr.bf16.mxu0 %v3139
  %3585 = vmatmul.mubr.bf16.gmra.mrb[0].mxu0 %v3138
  %v3586 = vpop.f32.mrb[0].mxu0
  %v3587 = vadd.f32 %v3546, %v3586
  %v3588 = vpop.f32.mrb[0].mxu0
  %v3589 = vpop.f32.mrb[0].mxu0
  %v3590 = vadd.f32 %v3549, %v3589
  %v3591 = vpop.f32.mrb[0].mxu0
  %3592 = vdwg.mxu0
  %3593 = vmatprep.subr.bf16.mxu0 %v3257
  %3594 = vmatpush1.bf16.xpose.msra.mxu0 %v3256
  %3595 = vmatprep.subr.bf16.mxu0 %v3273
  %3596 = vmatpush1.bf16.xpose.msra.mxu0 %v3272
  %3597 = vmatprep.subr.bf16.mxu0 0
  %3598 = vmatpush1.bf16.xpose.msra.mxu0 0
  %3599 = vmatprep.subr.bf16.mxu0 0
  %3600 = vmatpush1.bf16.xpose.msra.mxu0 0
  %3601 = vmatprep.subr.bf16.mxu0 0
  %3602 = vmatpush1.bf16.xpose.msra.mxu0 0
  %3603 = vmatprep.subr.bf16.mxu0 0
  %3604 = vmatpush1.bf16.xpose.msra.mxu0 0
  %3605 = vmatprep.subr.bf16.mxu0 0
  %3606 = vmatpush1.bf16.xpose.msra.mxu0 0
  %3607 = vmatprep.subr.bf16.mxu0 0
  %3608 = vmatpush1.bf16.xpose.msra.mxu0 0
  %3609 = vmatprep.subr.bf16.mxu0 0
  %3610 = vmatpush1.bf16.xpose.msra.mxu0 0
  %3611 = vmatprep.subr.bf16.mxu0 0
  %3612 = vmatpush1.bf16.xpose.msra.mxu0 0
  %3613 = vmatprep.subr.bf16.mxu0 0
  %3614 = vmatpush1.bf16.xpose.msra.mxu0 0
  %3615 = vmatprep.subr.bf16.mxu0 0
  %3616 = vmatpush1.bf16.xpose.msra.mxu0 0
  %3617 = vmatprep.subr.bf16.mxu0 0
  %3618 = vmatpush1.bf16.xpose.msra.mxu0 0
  %3619 = vmatprep.subr.bf16.mxu0 0
  %3620 = vmatpush1.bf16.xpose.msra.mxu0 0
  %3621 = vmatprep.subr.bf16.mxu0 0
  %3622 = vmatpush1.bf16.xpose.msra.mxu0 0
  %3623 = vmatprep.subr.bf16.mxu0 0
  %3624 = vmatpush1.bf16.xpose.msra.mxu0 0
  %3625 = vmatprep.mubr.bf16.mxu0 %v3141
  %3626 = vmatmul.mubr.bf16.gmra.mrb[0].mxu0 %v3140
  %v3627 = vpop.f32.mrb[0].mxu0
  %v3628 = vadd.f32 %v3587, %v3627
  %v3629 = vpop.f32.mrb[0].mxu0
  %v3630 = vpop.f32.mrb[0].mxu0
  %v3631 = vadd.f32 %v3590, %v3630
  %v3632 = vpop.f32.mrb[0].mxu0
  %3633 = vdwg.mxu0
  %v3634 = vadd.f32 %v1350, %v3628
  %v3635 = vadd.f32 %v1351, %v3631
  %v3636 = vsel %vm117, %v3634, 0.0
  %3637 = vadd.xlane.f32.xlu0 %v3636
  %v3638 = vpop.xlane.xlu0 %3637
  %v3639 = vsel %vm117, %v3635, 0.0
  %3640 = vadd.xlane.f32.xlu0 %v3639
  %v3641 = vpop.xlane.xlu0 %3640
  %v3642 = vmul.f32 %v3638, %v124
  %v3643 = vmul.f32 %v3641, %v124
  %v3644 = vsub.f32 %v3634, %v3642
  %v3645 = vsub.f32 %v3635, %v3643
  %v3646 = vmul.f32 %v3644, %v3644
  %v3647 = vmul.f32 %v3645, %v3645
  %v3648 = vsel %vm117, %v3646, 0.0
  %3649 = vadd.xlane.f32.xlu0 %v3648
  %v3650 = vpop.xlane.xlu0 %3649
  %v3651 = vsel %vm117, %v3647, 0.0
  %3652 = vadd.xlane.f32.xlu0 %v3651
  %v3653 = vpop.xlane.xlu0 %3652
  %v3654 = vmul.f32 %v3650, %v124
  %v3655 = vmul.f32 %v3653, %v124
  %v3656 = vadd.f32 %v3654, 1e-05
  %v3657 = vadd.f32 %v3655, 1e-05
  %v3658 = vrsqrt.pop %v3656
  %v3659 = vrsqrt.pop %v3657
  %v3660 = vmul.f32 %v3644, %v3658
  %v3661 = vmul.f32 %v3645, %v3659
  %v3662 = vlaneseq
  %v3663 = vshrl.u32 %v3662, 7
  %v3664 = vsub.s32 7, %v3663
  %v3665 = vrot.slane %v200, %v3664
  %v3666 = vmul.f32 %v3660, %v3665
  %v3667 = vmul.f32 %v3661, %v3665
  %v3668 = vlaneseq
  %v3669 = vshrl.u32 %v3668, 7
  %v3670 = vsub.s32 0, %v3669
  %v3671 = vrot.slane %v201, %v3670
  %v3672 = vadd.f32 %v3666, %v3671
  %v3673 = vadd.f32 %v3667, %v3671
  %s3674 = scalar_lea.vmem %s10, 16
  %v3675 = vld [vmem:[%s3674] sm:$0xff]
  %v3676 = vld [vmem:[%s3674 + $0x8] sm:$0x1]
  %s3677 = scalar_lea.vmem %s11, 16
  %v3678 = vld [vmem:[%s3677] sm:$0xff]
  %v3679 = vld [vmem:[%s3677 + $0x8] sm:$0xff]
  %s3680 = scalar_lea.vmem %s4, 16
  %v3681 = vld [vmem:[%s3680] sm:$0xf]
  %v3682 = vld [vmem:[%s3680 + $0x4] sm:$0xf]
  %v3683 = vld [vmem:[%s3680 + $0x8] sm:$0xf]
  %v3684 = vld [vmem:[%s3680 + $0xc] sm:$0xf]
  %v3685 = vpack.c.bf16 %v3673, %v3672
  %v3686 = vlaneseq
  %v3687 = vshrl.u32 %v3686, 7
  %v3688 = vsub.s32 0, %v3687
  %v3689 = vrot.slane %v3675, %v3688
  %v3694 = vunpack.c.l.b16 %v3681
  %v3695 = vunpack.c.l.b16 %v3682
  %v3696 = vunpack.c.l.b16 %v3683
  %v3697 = vunpack.c.l.b16 %v3684
  %v3698 = vpack.c.b16 %v3695, %v3694
  %v3699 = vpack.c.b16 %v3697, %v3696
  %v3701 = vsel %vm117, %v3685, 0
  %v3704 = vsel %vm117, %v3698, 0
  %v3707 = vsel %vm117, %v3699, 0
  %3709 = vmatprep.subr.bf16.mxu0 0
  %3710 = vmatpush1.bf16.xpose.msra.mxu0 %v3704
  %3711 = vmatprep.subr.bf16.mxu0 0
  %3712 = vmatpush1.bf16.xpose.msra.mxu0 %v3707
  %3713 = vmatprep.subr.bf16.mxu0 0
  %3714 = vmatpush1.bf16.xpose.msra.mxu0 0
  %3715 = vmatprep.subr.bf16.mxu0 0
  %3716 = vmatpush1.bf16.xpose.msra.mxu0 0
  %3717 = vmatprep.subr.bf16.mxu0 0
  %3718 = vmatpush1.bf16.xpose.msra.mxu0 0
  %3719 = vmatprep.subr.bf16.mxu0 0
  %3720 = vmatpush1.bf16.xpose.msra.mxu0 0
  %3721 = vmatprep.subr.bf16.mxu0 0
  %3722 = vmatpush1.bf16.xpose.msra.mxu0 0
  %3723 = vmatprep.subr.bf16.mxu0 0
  %3724 = vmatpush1.bf16.xpose.msra.mxu0 0
  %3725 = vmatprep.subr.bf16.mxu0 0
  %3726 = vmatpush1.bf16.xpose.msra.mxu0 0
  %3727 = vmatprep.subr.bf16.mxu0 0
  %3728 = vmatpush1.bf16.xpose.msra.mxu0 0
  %3729 = vmatprep.subr.bf16.mxu0 0
  %3730 = vmatpush1.bf16.xpose.msra.mxu0 0
  %3731 = vmatprep.subr.bf16.mxu0 0
  %3732 = vmatpush1.bf16.xpose.msra.mxu0 0
  %3733 = vmatprep.subr.bf16.mxu0 0
  %3734 = vmatpush1.bf16.xpose.msra.mxu0 0
  %3735 = vmatprep.subr.bf16.mxu0 0
  %3736 = vmatpush1.bf16.xpose.msra.mxu0 0
  %3737 = vmatprep.subr.bf16.mxu0 0
  %3738 = vmatpush1.bf16.xpose.msra.mxu0 0
  %3739 = vmatprep.subr.bf16.mxu0 0
  %3740 = vmatpush1.bf16.xpose.msra.mxu0 0
  %3741 = vmatprep.mubr.bf16.mxu0 0
  %3742 = vmatmul.mubr.bf16.gmra.mrb[0].mxu0 %v3701
  %v3743 = vpop.f32.mrb[0].mxu0
  %v3744 = vadd.f32 %v3689, %v3743
  %v3745 = vpop.f32.mrb[0].mxu0
  %v3746 = vpop.f32.mrb[0].mxu0
  %v3747 = vadd.f32 %v3689, %v3746
  %v3748 = vpop.f32.mrb[0].mxu0
  %3749 = vdwg.mxu0
  %s3750 = scalar_lea.vmem %s5, 16
  %v3751 = vld [vmem:[%s3750] sm:$0xf]
  %v3752 = vld [vmem:[%s3750 + $0x4] sm:$0xf]
  %v3753 = vld [vmem:[%s3750 + $0x8] sm:$0xf]
  %v3754 = vld [vmem:[%s3750 + $0xc] sm:$0xf]
  %v3755 = vlaneseq
  %v3756 = vshrl.u32 %v3755, 7
  %v3757 = vsub.s32 1, %v3756
  %v3758 = vrot.slane %v3675, %v3757
  %v3763 = vunpack.c.l.b16 %v3751
  %v3764 = vunpack.c.l.b16 %v3752
  %v3765 = vunpack.c.l.b16 %v3753
  %v3766 = vunpack.c.l.b16 %v3754
  %v3767 = vpack.c.b16 %v3764, %v3763
  %v3768 = vpack.c.b16 %v3766, %v3765
  %v3770 = vsel %vm117, %v3767, 0
  %v3773 = vsel %vm117, %v3768, 0
  %3775 = vmatprep.subr.bf16.mxu0 0
  %3776 = vmatpush1.bf16.xpose.msra.mxu0 %v3770
  %3777 = vmatprep.subr.bf16.mxu0 0
  %3778 = vmatpush1.bf16.xpose.msra.mxu0 %v3773
  %3779 = vmatprep.subr.bf16.mxu0 0
  %3780 = vmatpush1.bf16.xpose.msra.mxu0 0
  %3781 = vmatprep.subr.bf16.mxu0 0
  %3782 = vmatpush1.bf16.xpose.msra.mxu0 0
  %3783 = vmatprep.subr.bf16.mxu0 0
  %3784 = vmatpush1.bf16.xpose.msra.mxu0 0
  %3785 = vmatprep.subr.bf16.mxu0 0
  %3786 = vmatpush1.bf16.xpose.msra.mxu0 0
  %3787 = vmatprep.subr.bf16.mxu0 0
  %3788 = vmatpush1.bf16.xpose.msra.mxu0 0
  %3789 = vmatprep.subr.bf16.mxu0 0
  %3790 = vmatpush1.bf16.xpose.msra.mxu0 0
  %3791 = vmatprep.subr.bf16.mxu0 0
  %3792 = vmatpush1.bf16.xpose.msra.mxu0 0
  %3793 = vmatprep.subr.bf16.mxu0 0
  %3794 = vmatpush1.bf16.xpose.msra.mxu0 0
  %3795 = vmatprep.subr.bf16.mxu0 0
  %3796 = vmatpush1.bf16.xpose.msra.mxu0 0
  %3797 = vmatprep.subr.bf16.mxu0 0
  %3798 = vmatpush1.bf16.xpose.msra.mxu0 0
  %3799 = vmatprep.subr.bf16.mxu0 0
  %3800 = vmatpush1.bf16.xpose.msra.mxu0 0
  %3801 = vmatprep.subr.bf16.mxu0 0
  %3802 = vmatpush1.bf16.xpose.msra.mxu0 0
  %3803 = vmatprep.subr.bf16.mxu0 0
  %3804 = vmatpush1.bf16.xpose.msra.mxu0 0
  %3805 = vmatprep.subr.bf16.mxu0 0
  %3806 = vmatpush1.bf16.xpose.msra.mxu0 0
  %3807 = vmatprep.mubr.bf16.mxu0 0
  %3808 = vmatmul.mubr.bf16.gmra.mrb[0].mxu0 %v3701
  %v3809 = vpop.f32.mrb[0].mxu0
  %v3810 = vadd.f32 %v3758, %v3809
  %v3811 = vpop.f32.mrb[0].mxu0
  %v3812 = vpop.f32.mrb[0].mxu0
  %v3813 = vadd.f32 %v3758, %v3812
  %v3814 = vpop.f32.mrb[0].mxu0
  %3815 = vdwg.mxu0
  %s3816 = scalar_lea.vmem %s6, 16
  %v3817 = vld [vmem:[%s3816] sm:$0xf]
  %v3818 = vld [vmem:[%s3816 + $0x4] sm:$0xf]
  %v3819 = vld [vmem:[%s3816 + $0x8] sm:$0xf]
  %v3820 = vld [vmem:[%s3816 + $0xc] sm:$0xf]
  %v3821 = vlaneseq
  %v3822 = vshrl.u32 %v3821, 7
  %v3823 = vsub.s32 2, %v3822
  %v3824 = vrot.slane %v3675, %v3823
  %v3829 = vunpack.c.l.b16 %v3817
  %v3830 = vunpack.c.l.b16 %v3818
  %v3831 = vunpack.c.l.b16 %v3819
  %v3832 = vunpack.c.l.b16 %v3820
  %v3833 = vpack.c.b16 %v3830, %v3829
  %v3834 = vpack.c.b16 %v3832, %v3831
  %v3836 = vsel %vm117, %v3833, 0
  %v3839 = vsel %vm117, %v3834, 0
  %3841 = vmatprep.subr.bf16.mxu0 0
  %3842 = vmatpush1.bf16.xpose.msra.mxu0 %v3836
  %3843 = vmatprep.subr.bf16.mxu0 0
  %3844 = vmatpush1.bf16.xpose.msra.mxu0 %v3839
  %3845 = vmatprep.subr.bf16.mxu0 0
  %3846 = vmatpush1.bf16.xpose.msra.mxu0 0
  %3847 = vmatprep.subr.bf16.mxu0 0
  %3848 = vmatpush1.bf16.xpose.msra.mxu0 0
  %3849 = vmatprep.subr.bf16.mxu0 0
  %3850 = vmatpush1.bf16.xpose.msra.mxu0 0
  %3851 = vmatprep.subr.bf16.mxu0 0
  %3852 = vmatpush1.bf16.xpose.msra.mxu0 0
  %3853 = vmatprep.subr.bf16.mxu0 0
  %3854 = vmatpush1.bf16.xpose.msra.mxu0 0
  %3855 = vmatprep.subr.bf16.mxu0 0
  %3856 = vmatpush1.bf16.xpose.msra.mxu0 0
  %3857 = vmatprep.subr.bf16.mxu0 0
  %3858 = vmatpush1.bf16.xpose.msra.mxu0 0
  %3859 = vmatprep.subr.bf16.mxu0 0
  %3860 = vmatpush1.bf16.xpose.msra.mxu0 0
  %3861 = vmatprep.subr.bf16.mxu0 0
  %3862 = vmatpush1.bf16.xpose.msra.mxu0 0
  %3863 = vmatprep.subr.bf16.mxu0 0
  %3864 = vmatpush1.bf16.xpose.msra.mxu0 0
  %3865 = vmatprep.subr.bf16.mxu0 0
  %3866 = vmatpush1.bf16.xpose.msra.mxu0 0
  %3867 = vmatprep.subr.bf16.mxu0 0
  %3868 = vmatpush1.bf16.xpose.msra.mxu0 0
  %3869 = vmatprep.subr.bf16.mxu0 0
  %3870 = vmatpush1.bf16.xpose.msra.mxu0 0
  %3871 = vmatprep.subr.bf16.mxu0 0
  %3872 = vmatpush1.bf16.xpose.msra.mxu0 0
  %3873 = vmatprep.mubr.bf16.mxu0 0
  %3874 = vmatmul.mubr.bf16.gmra.mrb[0].mxu0 %v3701
  %v3875 = vpop.f32.mrb[0].mxu0
  %v3876 = vadd.f32 %v3824, %v3875
  %v3877 = vpop.f32.mrb[0].mxu0
  %v3878 = vpop.f32.mrb[0].mxu0
  %v3879 = vadd.f32 %v3824, %v3878
  %v3880 = vpop.f32.mrb[0].mxu0
  %3881 = vdwg.mxu0
  %v3883 = vsel %vm403, %v3744, 0
  %v3886 = vsel %vm403, %v3747, 0
  %v3889 = vsel %vm403, %v3810, 0
  %v3892 = vsel %vm403, %v3813, 0
  %3894 = vmatprep.subr.mxu0 0.0
  %3895 = vmatpush1.xpose.msra.mxu0 %v3889
  %3896 = vmatprep.subr.mxu0 0.0
  %3897 = vmatpush1.xpose.msra.mxu0 %v3892
  %3898 = vmatprep.subr.mxu0 0.0
  %3899 = vmatpush1.xpose.msra.mxu0 0.0
  %3900 = vmatprep.subr.mxu0 0.0
  %3901 = vmatpush1.xpose.msra.mxu0 0.0
  %3902 = vmatprep.subr.mxu0 0.0
  %3903 = vmatpush1.xpose.msra.mxu0 0.0
  %3904 = vmatprep.subr.mxu0 0.0
  %3905 = vmatpush1.xpose.msra.mxu0 0.0
  %3906 = vmatprep.subr.mxu0 0.0
  %3907 = vmatpush1.xpose.msra.mxu0 0.0
  %3908 = vmatprep.subr.mxu0 0.0
  %3909 = vmatpush1.xpose.msra.mxu0 0.0
  %3910 = vmatprep.subr.mxu0 0.0
  %3911 = vmatpush1.xpose.msra.mxu0 0.0
  %3912 = vmatprep.subr.mxu0 0.0
  %3913 = vmatpush1.xpose.msra.mxu0 0.0
  %3914 = vmatprep.subr.mxu0 0.0
  %3915 = vmatpush1.xpose.msra.mxu0 0.0
  %3916 = vmatprep.subr.mxu0 0.0
  %3917 = vmatpush1.xpose.msra.mxu0 0.0
  %3918 = vmatprep.subr.mxu0 0.0
  %3919 = vmatpush1.xpose.msra.mxu0 0.0
  %3920 = vmatprep.subr.mxu0 0.0
  %3921 = vmatpush1.xpose.msra.mxu0 0.0
  %3922 = vmatprep.subr.mxu0 0.0
  %3923 = vmatpush1.xpose.msra.mxu0 0.0
  %3924 = vmatprep.subr.mxu0 0.0
  %3925 = vmatpush1.xpose.msra.mxu0 0.0
  %3926 = vmatprep.subr.mxu0 0.0
  %3927 = vmatpush1.xpose.msra.mxu0 0.0
  %3928 = vmatprep.subr.mxu0 0.0
  %3929 = vmatpush1.xpose.msra.mxu0 0.0
  %3930 = vmatprep.subr.mxu0 0.0
  %3931 = vmatpush1.xpose.msra.mxu0 0.0
  %3932 = vmatprep.subr.mxu0 0.0
  %3933 = vmatpush1.xpose.msra.mxu0 0.0
  %3934 = vmatprep.subr.mxu0 0.0
  %3935 = vmatpush1.xpose.msra.mxu0 0.0
  %3936 = vmatprep.subr.mxu0 0.0
  %3937 = vmatpush1.xpose.msra.mxu0 0.0
  %3938 = vmatprep.subr.mxu0 0.0
  %3939 = vmatpush1.xpose.msra.mxu0 0.0
  %3940 = vmatprep.subr.mxu0 0.0
  %3941 = vmatpush1.xpose.msra.mxu0 0.0
  %3942 = vmatprep.subr.mxu0 0.0
  %3943 = vmatpush1.xpose.msra.mxu0 0.0
  %3944 = vmatprep.subr.mxu0 0.0
  %3945 = vmatpush1.xpose.msra.mxu0 0.0
  %3946 = vmatprep.subr.mxu0 0.0
  %3947 = vmatpush1.xpose.msra.mxu0 0.0
  %3948 = vmatprep.subr.mxu0 0.0
  %3949 = vmatpush1.xpose.msra.mxu0 0.0
  %3950 = vmatprep.subr.mxu0 0.0
  %3951 = vmatpush1.xpose.msra.mxu0 0.0
  %3952 = vmatprep.subr.mxu0 0.0
  %3953 = vmatpush1.xpose.msra.mxu0 0.0
  %3954 = vmatprep.subr.mxu0 0.0
  %3955 = vmatpush1.xpose.msra.mxu0 0.0
  %3956 = vmatprep.subr.mxu0 0.0
  %3957 = vmatpush1.xpose.msra.mxu0 0.0
  %3958 = vmatprep.mubr.f32.mxu0 0.0
  %3959 = vmatmul.mubr.f32.gmra.mrb[0].mxu0 %v3883
  %v3960 = vpop.f32.mrb[0].mxu0
  %v3961 = vadd.f32 0.0, %v3960
  %v3962 = vpop.f32.mrb[0].mxu0
  %3963 = vmatprep.mubr.f32.mxu0 0.0
  %3964 = vmatmul.mubr.f32.gmra.mrb[0].mxu0 %v3886
  %v3965 = vpop.f32.mrb[0].mxu0
  %v3966 = vadd.f32 0.0, %v3965
  %v3967 = vpop.f32.mrb[0].mxu0
  %3968 = vdwg.mxu0
  %v3969 = vmul.f32 %v3961, 0.35355338
  %v3970 = vmul.f32 %v3966, 0.35355338
  %v3971 = vsel %vm198, %v3969, -1e+30
  %v3972 = vsel %vm199, %v3970, -1e+30
  %v3973 = vsel %vm64, %v3971, -inf
  %3974 = vmax.xlane.f32.xlu0 %v3973
  %v3975 = vpop.xlane.xlu0 %3974
  %v3976 = vsel %vm64, %v3972, -inf
  %3977 = vmax.xlane.f32.xlu0 %v3976
  %v3978 = vpop.xlane.xlu0 %3977
  %v3979 = vsub.f32 %v3971, %v3975
  %v3980 = vsub.f32 %v3972, %v3978
  %v3981 = vmul.f32 %v3979, 1.442695
  %v3982 = vpow.pop %v3981
  %v3983 = vmul.f32 %v3980, 1.442695
  %v3984 = vpow.pop %v3983
  %v3985 = vsel %vm64, %v3982, 0.0
  %3986 = vadd.xlane.f32.xlu0 %v3985
  %v3987 = vpop.xlane.xlu0 %3986
  %v3988 = vsel %vm64, %v3984, 0.0
  %3989 = vadd.xlane.f32.xlu0 %v3988
  %v3990 = vpop.xlane.xlu0 %3989
  %v3991 = vrcp.pop %v3987
  %v3992 = vrcp.pop %v3990
  %v3993 = vmul.f32 %v3982, %v3991
  %v3994 = vmul.f32 %v3984, %v3992
  %v3996 = vsel %vm64, %v3993, 0
  %v3999 = vsel %vm64, %v3994, 0
  %4001 = vmatprep.subr.mxu0 0.0
  %4002 = vmatpush1.msra.mxu0 %v3876
  %4003 = vmatprep.subr.mxu0 0.0
  %4004 = vmatpush1.msra.mxu0 %v3879
  %4005 = vmatprep.subr.mxu0 0.0
  %4006 = vmatpush1.msra.mxu0 0.0
  %4007 = vmatprep.subr.mxu0 0.0
  %4008 = vmatpush1.msra.mxu0 0.0
  %4009 = vmatprep.subr.mxu0 0.0
  %4010 = vmatpush1.msra.mxu0 0.0
  %4011 = vmatprep.subr.mxu0 0.0
  %4012 = vmatpush1.msra.mxu0 0.0
  %4013 = vmatprep.subr.mxu0 0.0
  %4014 = vmatpush1.msra.mxu0 0.0
  %4015 = vmatprep.subr.mxu0 0.0
  %4016 = vmatpush1.msra.mxu0 0.0
  %4017 = vmatprep.subr.mxu0 0.0
  %4018 = vmatpush1.msra.mxu0 0.0
  %4019 = vmatprep.subr.mxu0 0.0
  %4020 = vmatpush1.msra.mxu0 0.0
  %4021 = vmatprep.subr.mxu0 0.0
  %4022 = vmatpush1.msra.mxu0 0.0
  %4023 = vmatprep.subr.mxu0 0.0
  %4024 = vmatpush1.msra.mxu0 0.0
  %4025 = vmatprep.subr.mxu0 0.0
  %4026 = vmatpush1.msra.mxu0 0.0
  %4027 = vmatprep.subr.mxu0 0.0
  %4028 = vmatpush1.msra.mxu0 0.0
  %4029 = vmatprep.subr.mxu0 0.0
  %4030 = vmatpush1.msra.mxu0 0.0
  %4031 = vmatprep.subr.mxu0 0.0
  %4032 = vmatpush1.msra.mxu0 0.0
  %4033 = vmatprep.subr.mxu0 0.0
  %4034 = vmatpush1.msra.mxu0 0.0
  %4035 = vmatprep.subr.mxu0 0.0
  %4036 = vmatpush1.msra.mxu0 0.0
  %4037 = vmatprep.subr.mxu0 0.0
  %4038 = vmatpush1.msra.mxu0 0.0
  %4039 = vmatprep.subr.mxu0 0.0
  %4040 = vmatpush1.msra.mxu0 0.0
  %4041 = vmatprep.subr.mxu0 0.0
  %4042 = vmatpush1.msra.mxu0 0.0
  %4043 = vmatprep.subr.mxu0 0.0
  %4044 = vmatpush1.msra.mxu0 0.0
  %4045 = vmatprep.subr.mxu0 0.0
  %4046 = vmatpush1.msra.mxu0 0.0
  %4047 = vmatprep.subr.mxu0 0.0
  %4048 = vmatpush1.msra.mxu0 0.0
  %4049 = vmatprep.subr.mxu0 0.0
  %4050 = vmatpush1.msra.mxu0 0.0
  %4051 = vmatprep.subr.mxu0 0.0
  %4052 = vmatpush1.msra.mxu0 0.0
  %4053 = vmatprep.subr.mxu0 0.0
  %4054 = vmatpush1.msra.mxu0 0.0
  %4055 = vmatprep.subr.mxu0 0.0
  %4056 = vmatpush1.msra.mxu0 0.0
  %4057 = vmatprep.subr.mxu0 0.0
  %4058 = vmatpush1.msra.mxu0 0.0
  %4059 = vmatprep.subr.mxu0 0.0
  %4060 = vmatpush1.msra.mxu0 0.0
  %4061 = vmatprep.subr.mxu0 0.0
  %4062 = vmatpush1.msra.mxu0 0.0
  %4063 = vmatprep.subr.mxu0 0.0
  %4064 = vmatpush1.msra.mxu0 0.0
  %4065 = vmatprep.mubr.f32.mxu0 0.0
  %4066 = vmatmul.mubr.f32.gmra.mrb[0].mxu0 %v3996
  %v4067 = vpop.f32.mrb[0].mxu0
  %v4068 = vadd.f32 0.0, %v4067
  %v4069 = vpop.f32.mrb[0].mxu0
  %4070 = vmatprep.mubr.f32.mxu0 0.0
  %4071 = vmatmul.mubr.f32.gmra.mrb[0].mxu0 %v3999
  %v4072 = vpop.f32.mrb[0].mxu0
  %v4073 = vadd.f32 0.0, %v4072
  %v4074 = vpop.f32.mrb[0].mxu0
  %4075 = vdwg.mxu0
  %4076 = vrot.lane.b32.xlu0 %v3744, 120
  %v4077 = vpop.permute.xlu0 %4076
  %4078 = vrot.lane.b32.xlu0 %v3747, 120
  %v4079 = vpop.permute.xlu0 %4078
  %4080 = vrot.lane.b32.xlu0 %v3810, 120
  %v4081 = vpop.permute.xlu0 %4080
  %4082 = vrot.lane.b32.xlu0 %v3813, 120
  %v4083 = vpop.permute.xlu0 %4082
  %v4084 = vsel %vm403, %v4077, 0
  %v4086 = vsel %vm403, %v4079, 0
  %v4088 = vsel %vm403, %v4081, 0
  %v4090 = vsel %vm403, %v4083, 0
  %4092 = vmatprep.subr.mxu0 0.0
  %4093 = vmatpush1.xpose.msra.mxu0 %v4088
  %4094 = vmatprep.subr.mxu0 0.0
  %4095 = vmatpush1.xpose.msra.mxu0 %v4090
  %4096 = vmatprep.subr.mxu0 0.0
  %4097 = vmatpush1.xpose.msra.mxu0 0.0
  %4098 = vmatprep.subr.mxu0 0.0
  %4099 = vmatpush1.xpose.msra.mxu0 0.0
  %4100 = vmatprep.subr.mxu0 0.0
  %4101 = vmatpush1.xpose.msra.mxu0 0.0
  %4102 = vmatprep.subr.mxu0 0.0
  %4103 = vmatpush1.xpose.msra.mxu0 0.0
  %4104 = vmatprep.subr.mxu0 0.0
  %4105 = vmatpush1.xpose.msra.mxu0 0.0
  %4106 = vmatprep.subr.mxu0 0.0
  %4107 = vmatpush1.xpose.msra.mxu0 0.0
  %4108 = vmatprep.subr.mxu0 0.0
  %4109 = vmatpush1.xpose.msra.mxu0 0.0
  %4110 = vmatprep.subr.mxu0 0.0
  %4111 = vmatpush1.xpose.msra.mxu0 0.0
  %4112 = vmatprep.subr.mxu0 0.0
  %4113 = vmatpush1.xpose.msra.mxu0 0.0
  %4114 = vmatprep.subr.mxu0 0.0
  %4115 = vmatpush1.xpose.msra.mxu0 0.0
  %4116 = vmatprep.subr.mxu0 0.0
  %4117 = vmatpush1.xpose.msra.mxu0 0.0
  %4118 = vmatprep.subr.mxu0 0.0
  %4119 = vmatpush1.xpose.msra.mxu0 0.0
  %4120 = vmatprep.subr.mxu0 0.0
  %4121 = vmatpush1.xpose.msra.mxu0 0.0
  %4122 = vmatprep.subr.mxu0 0.0
  %4123 = vmatpush1.xpose.msra.mxu0 0.0
  %4124 = vmatprep.subr.mxu0 0.0
  %4125 = vmatpush1.xpose.msra.mxu0 0.0
  %4126 = vmatprep.subr.mxu0 0.0
  %4127 = vmatpush1.xpose.msra.mxu0 0.0
  %4128 = vmatprep.subr.mxu0 0.0
  %4129 = vmatpush1.xpose.msra.mxu0 0.0
  %4130 = vmatprep.subr.mxu0 0.0
  %4131 = vmatpush1.xpose.msra.mxu0 0.0
  %4132 = vmatprep.subr.mxu0 0.0
  %4133 = vmatpush1.xpose.msra.mxu0 0.0
  %4134 = vmatprep.subr.mxu0 0.0
  %4135 = vmatpush1.xpose.msra.mxu0 0.0
  %4136 = vmatprep.subr.mxu0 0.0
  %4137 = vmatpush1.xpose.msra.mxu0 0.0
  %4138 = vmatprep.subr.mxu0 0.0
  %4139 = vmatpush1.xpose.msra.mxu0 0.0
  %4140 = vmatprep.subr.mxu0 0.0
  %4141 = vmatpush1.xpose.msra.mxu0 0.0
  %4142 = vmatprep.subr.mxu0 0.0
  %4143 = vmatpush1.xpose.msra.mxu0 0.0
  %4144 = vmatprep.subr.mxu0 0.0
  %4145 = vmatpush1.xpose.msra.mxu0 0.0
  %4146 = vmatprep.subr.mxu0 0.0
  %4147 = vmatpush1.xpose.msra.mxu0 0.0
  %4148 = vmatprep.subr.mxu0 0.0
  %4149 = vmatpush1.xpose.msra.mxu0 0.0
  %4150 = vmatprep.subr.mxu0 0.0
  %4151 = vmatpush1.xpose.msra.mxu0 0.0
  %4152 = vmatprep.subr.mxu0 0.0
  %4153 = vmatpush1.xpose.msra.mxu0 0.0
  %4154 = vmatprep.subr.mxu0 0.0
  %4155 = vmatpush1.xpose.msra.mxu0 0.0
  %4156 = vmatprep.mubr.f32.mxu0 0.0
  %4157 = vmatmul.mubr.f32.gmra.mrb[0].mxu0 %v4084
  %v4158 = vpop.f32.mrb[0].mxu0
  %v4159 = vadd.f32 0.0, %v4158
  %v4160 = vpop.f32.mrb[0].mxu0
  %4161 = vmatprep.mubr.f32.mxu0 0.0
  %4162 = vmatmul.mubr.f32.gmra.mrb[0].mxu0 %v4086
  %v4163 = vpop.f32.mrb[0].mxu0
  %v4164 = vadd.f32 0.0, %v4163
  %v4165 = vpop.f32.mrb[0].mxu0
  %4166 = vdwg.mxu0
  %v4167 = vmul.f32 %v4159, 0.35355338
  %v4168 = vmul.f32 %v4164, 0.35355338
  %v4169 = vsel %vm198, %v4167, -1e+30
  %v4170 = vsel %vm199, %v4168, -1e+30
  %v4171 = vsel %vm64, %v4169, -inf
  %4172 = vmax.xlane.f32.xlu0 %v4171
  %v4173 = vpop.xlane.xlu0 %4172
  %v4174 = vsel %vm64, %v4170, -inf
  %4175 = vmax.xlane.f32.xlu0 %v4174
  %v4176 = vpop.xlane.xlu0 %4175
  %v4177 = vsub.f32 %v4169, %v4173
  %v4178 = vsub.f32 %v4170, %v4176
  %v4179 = vmul.f32 %v4177, 1.442695
  %v4180 = vpow.pop %v4179
  %v4181 = vmul.f32 %v4178, 1.442695
  %v4182 = vpow.pop %v4181
  %v4183 = vsel %vm64, %v4180, 0.0
  %4184 = vadd.xlane.f32.xlu0 %v4183
  %v4185 = vpop.xlane.xlu0 %4184
  %v4186 = vsel %vm64, %v4182, 0.0
  %4187 = vadd.xlane.f32.xlu0 %v4186
  %v4188 = vpop.xlane.xlu0 %4187
  %v4189 = vrcp.pop %v4185
  %v4190 = vrcp.pop %v4188
  %v4191 = vmul.f32 %v4180, %v4189
  %v4192 = vmul.f32 %v4182, %v4190
  %4195 = vrot.lane.b32.xlu0 %v3876, 120
  %v4196 = vpop.permute.xlu0 %4195
  %4197 = vrot.lane.b32.xlu0 %v3879, 120
  %v4198 = vpop.permute.xlu0 %4197
  %v4202 = vsel %vm64, %v4191, 0
  %v4205 = vsel %vm64, %v4192, 0
  %4207 = vmatprep.subr.mxu0 0.0
  %4208 = vmatpush1.msra.mxu0 %v4196
  %4209 = vmatprep.subr.mxu0 0.0
  %4210 = vmatpush1.msra.mxu0 %v4198
  %4211 = vmatprep.subr.mxu0 0.0
  %4212 = vmatpush1.msra.mxu0 0.0
  %4213 = vmatprep.subr.mxu0 0.0
  %4214 = vmatpush1.msra.mxu0 0.0
  %4215 = vmatprep.subr.mxu0 0.0
  %4216 = vmatpush1.msra.mxu0 0.0
  %4217 = vmatprep.subr.mxu0 0.0
  %4218 = vmatpush1.msra.mxu0 0.0
  %4219 = vmatprep.subr.mxu0 0.0
  %4220 = vmatpush1.msra.mxu0 0.0
  %4221 = vmatprep.subr.mxu0 0.0
  %4222 = vmatpush1.msra.mxu0 0.0
  %4223 = vmatprep.subr.mxu0 0.0
  %4224 = vmatpush1.msra.mxu0 0.0
  %4225 = vmatprep.subr.mxu0 0.0
  %4226 = vmatpush1.msra.mxu0 0.0
  %4227 = vmatprep.subr.mxu0 0.0
  %4228 = vmatpush1.msra.mxu0 0.0
  %4229 = vmatprep.subr.mxu0 0.0
  %4230 = vmatpush1.msra.mxu0 0.0
  %4231 = vmatprep.subr.mxu0 0.0
  %4232 = vmatpush1.msra.mxu0 0.0
  %4233 = vmatprep.subr.mxu0 0.0
  %4234 = vmatpush1.msra.mxu0 0.0
  %4235 = vmatprep.subr.mxu0 0.0
  %4236 = vmatpush1.msra.mxu0 0.0
  %4237 = vmatprep.subr.mxu0 0.0
  %4238 = vmatpush1.msra.mxu0 0.0
  %4239 = vmatprep.subr.mxu0 0.0
  %4240 = vmatpush1.msra.mxu0 0.0
  %4241 = vmatprep.subr.mxu0 0.0
  %4242 = vmatpush1.msra.mxu0 0.0
  %4243 = vmatprep.subr.mxu0 0.0
  %4244 = vmatpush1.msra.mxu0 0.0
  %4245 = vmatprep.subr.mxu0 0.0
  %4246 = vmatpush1.msra.mxu0 0.0
  %4247 = vmatprep.subr.mxu0 0.0
  %4248 = vmatpush1.msra.mxu0 0.0
  %4249 = vmatprep.subr.mxu0 0.0
  %4250 = vmatpush1.msra.mxu0 0.0
  %4251 = vmatprep.subr.mxu0 0.0
  %4252 = vmatpush1.msra.mxu0 0.0
  %4253 = vmatprep.subr.mxu0 0.0
  %4254 = vmatpush1.msra.mxu0 0.0
  %4255 = vmatprep.subr.mxu0 0.0
  %4256 = vmatpush1.msra.mxu0 0.0
  %4257 = vmatprep.subr.mxu0 0.0
  %4258 = vmatpush1.msra.mxu0 0.0
  %4259 = vmatprep.subr.mxu0 0.0
  %4260 = vmatpush1.msra.mxu0 0.0
  %4261 = vmatprep.subr.mxu0 0.0
  %4262 = vmatpush1.msra.mxu0 0.0
  %4263 = vmatprep.subr.mxu0 0.0
  %4264 = vmatpush1.msra.mxu0 0.0
  %4265 = vmatprep.subr.mxu0 0.0
  %4266 = vmatpush1.msra.mxu0 0.0
  %4267 = vmatprep.subr.mxu0 0.0
  %4268 = vmatpush1.msra.mxu0 0.0
  %4269 = vmatprep.subr.mxu0 0.0
  %4270 = vmatpush1.msra.mxu0 0.0
  %4271 = vmatprep.mubr.f32.mxu0 0.0
  %4272 = vmatmul.mubr.f32.gmra.mrb[0].mxu0 %v4202
  %v4273 = vpop.f32.mrb[0].mxu0
  %v4274 = vadd.f32 0.0, %v4273
  %v4275 = vpop.f32.mrb[0].mxu0
  %4276 = vmatprep.mubr.f32.mxu0 0.0
  %4277 = vmatmul.mubr.f32.gmra.mrb[0].mxu0 %v4205
  %v4278 = vpop.f32.mrb[0].mxu0
  %v4279 = vadd.f32 0.0, %v4278
  %v4280 = vpop.f32.mrb[0].mxu0
  %4281 = vdwg.mxu0
  %4282 = vrot.lane.b32.xlu0 %v3744, 112
  %v4283 = vpop.permute.xlu0 %4282
  %4284 = vrot.lane.b32.xlu0 %v3747, 112
  %v4285 = vpop.permute.xlu0 %4284
  %4286 = vrot.lane.b32.xlu0 %v3810, 112
  %v4287 = vpop.permute.xlu0 %4286
  %4288 = vrot.lane.b32.xlu0 %v3813, 112
  %v4289 = vpop.permute.xlu0 %4288
  %v4290 = vsel %vm403, %v4283, 0
  %v4292 = vsel %vm403, %v4285, 0
  %v4294 = vsel %vm403, %v4287, 0
  %v4296 = vsel %vm403, %v4289, 0
  %4298 = vmatprep.subr.mxu0 0.0
  %4299 = vmatpush1.xpose.msra.mxu0 %v4294
  %4300 = vmatprep.subr.mxu0 0.0
  %4301 = vmatpush1.xpose.msra.mxu0 %v4296
  %4302 = vmatprep.subr.mxu0 0.0
  %4303 = vmatpush1.xpose.msra.mxu0 0.0
  %4304 = vmatprep.subr.mxu0 0.0
  %4305 = vmatpush1.xpose.msra.mxu0 0.0
  %4306 = vmatprep.subr.mxu0 0.0
  %4307 = vmatpush1.xpose.msra.mxu0 0.0
  %4308 = vmatprep.subr.mxu0 0.0
  %4309 = vmatpush1.xpose.msra.mxu0 0.0
  %4310 = vmatprep.subr.mxu0 0.0
  %4311 = vmatpush1.xpose.msra.mxu0 0.0
  %4312 = vmatprep.subr.mxu0 0.0
  %4313 = vmatpush1.xpose.msra.mxu0 0.0
  %4314 = vmatprep.subr.mxu0 0.0
  %4315 = vmatpush1.xpose.msra.mxu0 0.0
  %4316 = vmatprep.subr.mxu0 0.0
  %4317 = vmatpush1.xpose.msra.mxu0 0.0
  %4318 = vmatprep.subr.mxu0 0.0
  %4319 = vmatpush1.xpose.msra.mxu0 0.0
  %4320 = vmatprep.subr.mxu0 0.0
  %4321 = vmatpush1.xpose.msra.mxu0 0.0
  %4322 = vmatprep.subr.mxu0 0.0
  %4323 = vmatpush1.xpose.msra.mxu0 0.0
  %4324 = vmatprep.subr.mxu0 0.0
  %4325 = vmatpush1.xpose.msra.mxu0 0.0
  %4326 = vmatprep.subr.mxu0 0.0
  %4327 = vmatpush1.xpose.msra.mxu0 0.0
  %4328 = vmatprep.subr.mxu0 0.0
  %4329 = vmatpush1.xpose.msra.mxu0 0.0
  %4330 = vmatprep.subr.mxu0 0.0
  %4331 = vmatpush1.xpose.msra.mxu0 0.0
  %4332 = vmatprep.subr.mxu0 0.0
  %4333 = vmatpush1.xpose.msra.mxu0 0.0
  %4334 = vmatprep.subr.mxu0 0.0
  %4335 = vmatpush1.xpose.msra.mxu0 0.0
  %4336 = vmatprep.subr.mxu0 0.0
  %4337 = vmatpush1.xpose.msra.mxu0 0.0
  %4338 = vmatprep.subr.mxu0 0.0
  %4339 = vmatpush1.xpose.msra.mxu0 0.0
  %4340 = vmatprep.subr.mxu0 0.0
  %4341 = vmatpush1.xpose.msra.mxu0 0.0
  %4342 = vmatprep.subr.mxu0 0.0
  %4343 = vmatpush1.xpose.msra.mxu0 0.0
  %4344 = vmatprep.subr.mxu0 0.0
  %4345 = vmatpush1.xpose.msra.mxu0 0.0
  %4346 = vmatprep.subr.mxu0 0.0
  %4347 = vmatpush1.xpose.msra.mxu0 0.0
  %4348 = vmatprep.subr.mxu0 0.0
  %4349 = vmatpush1.xpose.msra.mxu0 0.0
  %4350 = vmatprep.subr.mxu0 0.0
  %4351 = vmatpush1.xpose.msra.mxu0 0.0
  %4352 = vmatprep.subr.mxu0 0.0
  %4353 = vmatpush1.xpose.msra.mxu0 0.0
  %4354 = vmatprep.subr.mxu0 0.0
  %4355 = vmatpush1.xpose.msra.mxu0 0.0
  %4356 = vmatprep.subr.mxu0 0.0
  %4357 = vmatpush1.xpose.msra.mxu0 0.0
  %4358 = vmatprep.subr.mxu0 0.0
  %4359 = vmatpush1.xpose.msra.mxu0 0.0
  %4360 = vmatprep.subr.mxu0 0.0
  %4361 = vmatpush1.xpose.msra.mxu0 0.0
  %4362 = vmatprep.mubr.f32.mxu0 0.0
  %4363 = vmatmul.mubr.f32.gmra.mrb[0].mxu0 %v4290
  %v4364 = vpop.f32.mrb[0].mxu0
  %v4365 = vadd.f32 0.0, %v4364
  %v4366 = vpop.f32.mrb[0].mxu0
  %4367 = vmatprep.mubr.f32.mxu0 0.0
  %4368 = vmatmul.mubr.f32.gmra.mrb[0].mxu0 %v4292
  %v4369 = vpop.f32.mrb[0].mxu0
  %v4370 = vadd.f32 0.0, %v4369
  %v4371 = vpop.f32.mrb[0].mxu0
  %4372 = vdwg.mxu0
  %v4373 = vmul.f32 %v4365, 0.35355338
  %v4374 = vmul.f32 %v4370, 0.35355338
  %v4375 = vsel %vm198, %v4373, -1e+30
  %v4376 = vsel %vm199, %v4374, -1e+30
  %v4377 = vsel %vm64, %v4375, -inf
  %4378 = vmax.xlane.f32.xlu0 %v4377
  %v4379 = vpop.xlane.xlu0 %4378
  %v4380 = vsel %vm64, %v4376, -inf
  %4381 = vmax.xlane.f32.xlu0 %v4380
  %v4382 = vpop.xlane.xlu0 %4381
  %v4383 = vsub.f32 %v4375, %v4379
  %v4384 = vsub.f32 %v4376, %v4382
  %v4385 = vmul.f32 %v4383, 1.442695
  %v4386 = vpow.pop %v4385
  %v4387 = vmul.f32 %v4384, 1.442695
  %v4388 = vpow.pop %v4387
  %v4389 = vsel %vm64, %v4386, 0.0
  %4390 = vadd.xlane.f32.xlu0 %v4389
  %v4391 = vpop.xlane.xlu0 %4390
  %v4392 = vsel %vm64, %v4388, 0.0
  %4393 = vadd.xlane.f32.xlu0 %v4392
  %v4394 = vpop.xlane.xlu0 %4393
  %v4395 = vrcp.pop %v4391
  %v4396 = vrcp.pop %v4394
  %v4397 = vmul.f32 %v4386, %v4395
  %v4398 = vmul.f32 %v4388, %v4396
  %4399 = vrot.lane.b32.xlu0 %v3876, 112
  %v4400 = vpop.permute.xlu0 %4399
  %4401 = vrot.lane.b32.xlu0 %v3879, 112
  %v4402 = vpop.permute.xlu0 %4401
  %v4406 = vsel %vm64, %v4397, 0
  %v4409 = vsel %vm64, %v4398, 0
  %4411 = vmatprep.subr.mxu0 0.0
  %4412 = vmatpush1.msra.mxu0 %v4400
  %4413 = vmatprep.subr.mxu0 0.0
  %4414 = vmatpush1.msra.mxu0 %v4402
  %4415 = vmatprep.subr.mxu0 0.0
  %4416 = vmatpush1.msra.mxu0 0.0
  %4417 = vmatprep.subr.mxu0 0.0
  %4418 = vmatpush1.msra.mxu0 0.0
  %4419 = vmatprep.subr.mxu0 0.0
  %4420 = vmatpush1.msra.mxu0 0.0
  %4421 = vmatprep.subr.mxu0 0.0
  %4422 = vmatpush1.msra.mxu0 0.0
  %4423 = vmatprep.subr.mxu0 0.0
  %4424 = vmatpush1.msra.mxu0 0.0
  %4425 = vmatprep.subr.mxu0 0.0
  %4426 = vmatpush1.msra.mxu0 0.0
  %4427 = vmatprep.subr.mxu0 0.0
  %4428 = vmatpush1.msra.mxu0 0.0
  %4429 = vmatprep.subr.mxu0 0.0
  %4430 = vmatpush1.msra.mxu0 0.0
  %4431 = vmatprep.subr.mxu0 0.0
  %4432 = vmatpush1.msra.mxu0 0.0
  %4433 = vmatprep.subr.mxu0 0.0
  %4434 = vmatpush1.msra.mxu0 0.0
  %4435 = vmatprep.subr.mxu0 0.0
  %4436 = vmatpush1.msra.mxu0 0.0
  %4437 = vmatprep.subr.mxu0 0.0
  %4438 = vmatpush1.msra.mxu0 0.0
  %4439 = vmatprep.subr.mxu0 0.0
  %4440 = vmatpush1.msra.mxu0 0.0
  %4441 = vmatprep.subr.mxu0 0.0
  %4442 = vmatpush1.msra.mxu0 0.0
  %4443 = vmatprep.subr.mxu0 0.0
  %4444 = vmatpush1.msra.mxu0 0.0
  %4445 = vmatprep.subr.mxu0 0.0
  %4446 = vmatpush1.msra.mxu0 0.0
  %4447 = vmatprep.subr.mxu0 0.0
  %4448 = vmatpush1.msra.mxu0 0.0
  %4449 = vmatprep.subr.mxu0 0.0
  %4450 = vmatpush1.msra.mxu0 0.0
  %4451 = vmatprep.subr.mxu0 0.0
  %4452 = vmatpush1.msra.mxu0 0.0
  %4453 = vmatprep.subr.mxu0 0.0
  %4454 = vmatpush1.msra.mxu0 0.0
  %4455 = vmatprep.subr.mxu0 0.0
  %4456 = vmatpush1.msra.mxu0 0.0
  %4457 = vmatprep.subr.mxu0 0.0
  %4458 = vmatpush1.msra.mxu0 0.0
  %4459 = vmatprep.subr.mxu0 0.0
  %4460 = vmatpush1.msra.mxu0 0.0
  %4461 = vmatprep.subr.mxu0 0.0
  %4462 = vmatpush1.msra.mxu0 0.0
  %4463 = vmatprep.subr.mxu0 0.0
  %4464 = vmatpush1.msra.mxu0 0.0
  %4465 = vmatprep.subr.mxu0 0.0
  %4466 = vmatpush1.msra.mxu0 0.0
  %4467 = vmatprep.subr.mxu0 0.0
  %4468 = vmatpush1.msra.mxu0 0.0
  %4469 = vmatprep.subr.mxu0 0.0
  %4470 = vmatpush1.msra.mxu0 0.0
  %4471 = vmatprep.subr.mxu0 0.0
  %4472 = vmatpush1.msra.mxu0 0.0
  %4473 = vmatprep.subr.mxu0 0.0
  %4474 = vmatpush1.msra.mxu0 0.0
  %4475 = vmatprep.mubr.f32.mxu0 0.0
  %4476 = vmatmul.mubr.f32.gmra.mrb[0].mxu0 %v4406
  %v4477 = vpop.f32.mrb[0].mxu0
  %v4478 = vadd.f32 0.0, %v4477
  %v4479 = vpop.f32.mrb[0].mxu0
  %4480 = vmatprep.mubr.f32.mxu0 0.0
  %4481 = vmatmul.mubr.f32.gmra.mrb[0].mxu0 %v4409
  %v4482 = vpop.f32.mrb[0].mxu0
  %v4483 = vadd.f32 0.0, %v4482
  %v4484 = vpop.f32.mrb[0].mxu0
  %4485 = vdwg.mxu0
  %4486 = vrot.lane.b32.xlu0 %v3744, 104
  %v4487 = vpop.permute.xlu0 %4486
  %4488 = vrot.lane.b32.xlu0 %v3747, 104
  %v4489 = vpop.permute.xlu0 %4488
  %4490 = vrot.lane.b32.xlu0 %v3810, 104
  %v4491 = vpop.permute.xlu0 %4490
  %4492 = vrot.lane.b32.xlu0 %v3813, 104
  %v4493 = vpop.permute.xlu0 %4492
  %v4494 = vsel %vm403, %v4487, 0
  %v4496 = vsel %vm403, %v4489, 0
  %v4498 = vsel %vm403, %v4491, 0
  %v4500 = vsel %vm403, %v4493, 0
  %4502 = vmatprep.subr.mxu0 0.0
  %4503 = vmatpush1.xpose.msra.mxu0 %v4498
  %4504 = vmatprep.subr.mxu0 0.0
  %4505 = vmatpush1.xpose.msra.mxu0 %v4500
  %4506 = vmatprep.subr.mxu0 0.0
  %4507 = vmatpush1.xpose.msra.mxu0 0.0
  %4508 = vmatprep.subr.mxu0 0.0
  %4509 = vmatpush1.xpose.msra.mxu0 0.0
  %4510 = vmatprep.subr.mxu0 0.0
  %4511 = vmatpush1.xpose.msra.mxu0 0.0
  %4512 = vmatprep.subr.mxu0 0.0
  %4513 = vmatpush1.xpose.msra.mxu0 0.0
  %4514 = vmatprep.subr.mxu0 0.0
  %4515 = vmatpush1.xpose.msra.mxu0 0.0
  %4516 = vmatprep.subr.mxu0 0.0
  %4517 = vmatpush1.xpose.msra.mxu0 0.0
  %4518 = vmatprep.subr.mxu0 0.0
  %4519 = vmatpush1.xpose.msra.mxu0 0.0
  %4520 = vmatprep.subr.mxu0 0.0
  %4521 = vmatpush1.xpose.msra.mxu0 0.0
  %4522 = vmatprep.subr.mxu0 0.0
  %4523 = vmatpush1.xpose.msra.mxu0 0.0
  %4524 = vmatprep.subr.mxu0 0.0
  %4525 = vmatpush1.xpose.msra.mxu0 0.0
  %4526 = vmatprep.subr.mxu0 0.0
  %4527 = vmatpush1.xpose.msra.mxu0 0.0
  %4528 = vmatprep.subr.mxu0 0.0
  %4529 = vmatpush1.xpose.msra.mxu0 0.0
  %4530 = vmatprep.subr.mxu0 0.0
  %4531 = vmatpush1.xpose.msra.mxu0 0.0
  %4532 = vmatprep.subr.mxu0 0.0
  %4533 = vmatpush1.xpose.msra.mxu0 0.0
  %4534 = vmatprep.subr.mxu0 0.0
  %4535 = vmatpush1.xpose.msra.mxu0 0.0
  %4536 = vmatprep.subr.mxu0 0.0
  %4537 = vmatpush1.xpose.msra.mxu0 0.0
  %4538 = vmatprep.subr.mxu0 0.0
  %4539 = vmatpush1.xpose.msra.mxu0 0.0
  %4540 = vmatprep.subr.mxu0 0.0
  %4541 = vmatpush1.xpose.msra.mxu0 0.0
  %4542 = vmatprep.subr.mxu0 0.0
  %4543 = vmatpush1.xpose.msra.mxu0 0.0
  %4544 = vmatprep.subr.mxu0 0.0
  %4545 = vmatpush1.xpose.msra.mxu0 0.0
  %4546 = vmatprep.subr.mxu0 0.0
  %4547 = vmatpush1.xpose.msra.mxu0 0.0
  %4548 = vmatprep.subr.mxu0 0.0
  %4549 = vmatpush1.xpose.msra.mxu0 0.0
  %4550 = vmatprep.subr.mxu0 0.0
  %4551 = vmatpush1.xpose.msra.mxu0 0.0
  %4552 = vmatprep.subr.mxu0 0.0
  %4553 = vmatpush1.xpose.msra.mxu0 0.0
  %4554 = vmatprep.subr.mxu0 0.0
  %4555 = vmatpush1.xpose.msra.mxu0 0.0
  %4556 = vmatprep.subr.mxu0 0.0
  %4557 = vmatpush1.xpose.msra.mxu0 0.0
  %4558 = vmatprep.subr.mxu0 0.0
  %4559 = vmatpush1.xpose.msra.mxu0 0.0
  %4560 = vmatprep.subr.mxu0 0.0
  %4561 = vmatpush1.xpose.msra.mxu0 0.0
  %4562 = vmatprep.subr.mxu0 0.0
  %4563 = vmatpush1.xpose.msra.mxu0 0.0
  %4564 = vmatprep.subr.mxu0 0.0
  %4565 = vmatpush1.xpose.msra.mxu0 0.0
  %4566 = vmatprep.mubr.f32.mxu0 0.0
  %4567 = vmatmul.mubr.f32.gmra.mrb[0].mxu0 %v4494
  %v4568 = vpop.f32.mrb[0].mxu0
  %v4569 = vadd.f32 0.0, %v4568
  %v4570 = vpop.f32.mrb[0].mxu0
  %4571 = vmatprep.mubr.f32.mxu0 0.0
  %4572 = vmatmul.mubr.f32.gmra.mrb[0].mxu0 %v4496
  %v4573 = vpop.f32.mrb[0].mxu0
  %v4574 = vadd.f32 0.0, %v4573
  %v4575 = vpop.f32.mrb[0].mxu0
  %4576 = vdwg.mxu0
  %v4577 = vmul.f32 %v4569, 0.35355338
  %v4578 = vmul.f32 %v4574, 0.35355338
  %v4579 = vsel %vm198, %v4577, -1e+30
  %v4580 = vsel %vm199, %v4578, -1e+30
  %v4581 = vsel %vm64, %v4579, -inf
  %4582 = vmax.xlane.f32.xlu0 %v4581
  %v4583 = vpop.xlane.xlu0 %4582
  %v4584 = vsel %vm64, %v4580, -inf
  %4585 = vmax.xlane.f32.xlu0 %v4584
  %v4586 = vpop.xlane.xlu0 %4585
  %v4587 = vsub.f32 %v4579, %v4583
  %v4588 = vsub.f32 %v4580, %v4586
  %v4589 = vmul.f32 %v4587, 1.442695
  %v4590 = vpow.pop %v4589
  %v4591 = vmul.f32 %v4588, 1.442695
  %v4592 = vpow.pop %v4591
  %v4593 = vsel %vm64, %v4590, 0.0
  %4594 = vadd.xlane.f32.xlu0 %v4593
  %v4595 = vpop.xlane.xlu0 %4594
  %v4596 = vsel %vm64, %v4592, 0.0
  %4597 = vadd.xlane.f32.xlu0 %v4596
  %v4598 = vpop.xlane.xlu0 %4597
  %v4599 = vrcp.pop %v4595
  %v4600 = vrcp.pop %v4598
  %v4601 = vmul.f32 %v4590, %v4599
  %v4602 = vmul.f32 %v4592, %v4600
  %4603 = vrot.lane.b32.xlu0 %v3876, 104
  %v4604 = vpop.permute.xlu0 %4603
  %4605 = vrot.lane.b32.xlu0 %v3879, 104
  %v4606 = vpop.permute.xlu0 %4605
  %v4610 = vsel %vm64, %v4601, 0
  %v4613 = vsel %vm64, %v4602, 0
  %4615 = vmatprep.subr.mxu0 0.0
  %4616 = vmatpush1.msra.mxu0 %v4604
  %4617 = vmatprep.subr.mxu0 0.0
  %4618 = vmatpush1.msra.mxu0 %v4606
  %4619 = vmatprep.subr.mxu0 0.0
  %4620 = vmatpush1.msra.mxu0 0.0
  %4621 = vmatprep.subr.mxu0 0.0
  %4622 = vmatpush1.msra.mxu0 0.0
  %4623 = vmatprep.subr.mxu0 0.0
  %4624 = vmatpush1.msra.mxu0 0.0
  %4625 = vmatprep.subr.mxu0 0.0
  %4626 = vmatpush1.msra.mxu0 0.0
  %4627 = vmatprep.subr.mxu0 0.0
  %4628 = vmatpush1.msra.mxu0 0.0
  %4629 = vmatprep.subr.mxu0 0.0
  %4630 = vmatpush1.msra.mxu0 0.0
  %4631 = vmatprep.subr.mxu0 0.0
  %4632 = vmatpush1.msra.mxu0 0.0
  %4633 = vmatprep.subr.mxu0 0.0
  %4634 = vmatpush1.msra.mxu0 0.0
  %4635 = vmatprep.subr.mxu0 0.0
  %4636 = vmatpush1.msra.mxu0 0.0
  %4637 = vmatprep.subr.mxu0 0.0
  %4638 = vmatpush1.msra.mxu0 0.0
  %4639 = vmatprep.subr.mxu0 0.0
  %4640 = vmatpush1.msra.mxu0 0.0
  %4641 = vmatprep.subr.mxu0 0.0
  %4642 = vmatpush1.msra.mxu0 0.0
  %4643 = vmatprep.subr.mxu0 0.0
  %4644 = vmatpush1.msra.mxu0 0.0
  %4645 = vmatprep.subr.mxu0 0.0
  %4646 = vmatpush1.msra.mxu0 0.0
  %4647 = vmatprep.subr.mxu0 0.0
  %4648 = vmatpush1.msra.mxu0 0.0
  %4649 = vmatprep.subr.mxu0 0.0
  %4650 = vmatpush1.msra.mxu0 0.0
  %4651 = vmatprep.subr.mxu0 0.0
  %4652 = vmatpush1.msra.mxu0 0.0
  %4653 = vmatprep.subr.mxu0 0.0
  %4654 = vmatpush1.msra.mxu0 0.0
  %4655 = vmatprep.subr.mxu0 0.0
  %4656 = vmatpush1.msra.mxu0 0.0
  %4657 = vmatprep.subr.mxu0 0.0
  %4658 = vmatpush1.msra.mxu0 0.0
  %4659 = vmatprep.subr.mxu0 0.0
  %4660 = vmatpush1.msra.mxu0 0.0
  %4661 = vmatprep.subr.mxu0 0.0
  %4662 = vmatpush1.msra.mxu0 0.0
  %4663 = vmatprep.subr.mxu0 0.0
  %4664 = vmatpush1.msra.mxu0 0.0
  %4665 = vmatprep.subr.mxu0 0.0
  %4666 = vmatpush1.msra.mxu0 0.0
  %4667 = vmatprep.subr.mxu0 0.0
  %4668 = vmatpush1.msra.mxu0 0.0
  %4669 = vmatprep.subr.mxu0 0.0
  %4670 = vmatpush1.msra.mxu0 0.0
  %4671 = vmatprep.subr.mxu0 0.0
  %4672 = vmatpush1.msra.mxu0 0.0
  %4673 = vmatprep.subr.mxu0 0.0
  %4674 = vmatpush1.msra.mxu0 0.0
  %4675 = vmatprep.subr.mxu0 0.0
  %4676 = vmatpush1.msra.mxu0 0.0
  %4677 = vmatprep.subr.mxu0 0.0
  %4678 = vmatpush1.msra.mxu0 0.0
  %4679 = vmatprep.mubr.f32.mxu0 0.0
  %4680 = vmatmul.mubr.f32.gmra.mrb[0].mxu0 %v4610
  %v4681 = vpop.f32.mrb[0].mxu0
  %v4682 = vadd.f32 0.0, %v4681
  %v4683 = vpop.f32.mrb[0].mxu0
  %4684 = vmatprep.mubr.f32.mxu0 0.0
  %4685 = vmatmul.mubr.f32.gmra.mrb[0].mxu0 %v4613
  %v4686 = vpop.f32.mrb[0].mxu0
  %v4687 = vadd.f32 0.0, %v4686
  %v4688 = vpop.f32.mrb[0].mxu0
  %4689 = vdwg.mxu0
  %4692 = vrot.lane.b32.xlu0 %v4274, 8
  %v4693 = vpop.permute.xlu0 %4692
  %4694 = vrot.lane.b32.xlu0 %v4279, 8
  %v4695 = vpop.permute.xlu0 %4694
  %4700 = vrot.lane.b32.xlu0 %v4478, 16
  %v4701 = vpop.permute.xlu0 %4700
  %4702 = vrot.lane.b32.xlu0 %v4483, 16
  %v4703 = vpop.permute.xlu0 %4702
  %4708 = vrot.lane.b32.xlu0 %v4682, 24
  %v4709 = vpop.permute.xlu0 %4708
  %4710 = vrot.lane.b32.xlu0 %v4687, 24
  %v4711 = vpop.permute.xlu0 %4710
  %v4714 = vsel %vm403, %v4068, %v4693
  %v4715 = vsel %vm403, %v4073, %v4695
  %v4716 = vsel %vm64, %v4714, %v4701
  %v4717 = vsel %vm64, %v4715, %v4703
  %v4718 = vsel %vm1240, %v4716, %v4709
  %v4719 = vsel %vm1240, %v4717, %v4711
  %s4720 = scalar_lea.vmem %s7, 16
  %v4721 = vld [vmem:[%s4720] sm:$0xf]
  %v4722 = vld [vmem:[%s4720 + $0x4] sm:$0xf]
  %v4723 = vld [vmem:[%s4720 + $0x8] sm:$0xf]
  %v4724 = vld [vmem:[%s4720 + $0xc] sm:$0xf]
  %v4725 = vpack.c.bf16 %v4719, %v4718
  %v4726 = vlaneseq
  %v4727 = vshrl.u32 %v4726, 7
  %v4728 = vsub.s32 3, %v4727
  %v4729 = vrot.slane %v3675, %v4728
  %v4734 = vunpack.c.l.b16 %v4721
  %v4735 = vunpack.c.l.b16 %v4722
  %v4736 = vunpack.c.l.b16 %v4723
  %v4737 = vunpack.c.l.b16 %v4724
  %v4738 = vpack.c.b16 %v4735, %v4734
  %v4739 = vpack.c.b16 %v4737, %v4736
  %v4741 = vsel %vm117, %v4725, 0
  %v4744 = vsel %vm117, %v4738, 0
  %v4747 = vsel %vm117, %v4739, 0
  %4749 = vmatprep.subr.bf16.mxu0 0
  %4750 = vmatpush1.bf16.xpose.msra.mxu0 %v4744
  %4751 = vmatprep.subr.bf16.mxu0 0
  %4752 = vmatpush1.bf16.xpose.msra.mxu0 %v4747
  %4753 = vmatprep.subr.bf16.mxu0 0
  %4754 = vmatpush1.bf16.xpose.msra.mxu0 0
  %4755 = vmatprep.subr.bf16.mxu0 0
  %4756 = vmatpush1.bf16.xpose.msra.mxu0 0
  %4757 = vmatprep.subr.bf16.mxu0 0
  %4758 = vmatpush1.bf16.xpose.msra.mxu0 0
  %4759 = vmatprep.subr.bf16.mxu0 0
  %4760 = vmatpush1.bf16.xpose.msra.mxu0 0
  %4761 = vmatprep.subr.bf16.mxu0 0
  %4762 = vmatpush1.bf16.xpose.msra.mxu0 0
  %4763 = vmatprep.subr.bf16.mxu0 0
  %4764 = vmatpush1.bf16.xpose.msra.mxu0 0
  %4765 = vmatprep.subr.bf16.mxu0 0
  %4766 = vmatpush1.bf16.xpose.msra.mxu0 0
  %4767 = vmatprep.subr.bf16.mxu0 0
  %4768 = vmatpush1.bf16.xpose.msra.mxu0 0
  %4769 = vmatprep.subr.bf16.mxu0 0
  %4770 = vmatpush1.bf16.xpose.msra.mxu0 0
  %4771 = vmatprep.subr.bf16.mxu0 0
  %4772 = vmatpush1.bf16.xpose.msra.mxu0 0
  %4773 = vmatprep.subr.bf16.mxu0 0
  %4774 = vmatpush1.bf16.xpose.msra.mxu0 0
  %4775 = vmatprep.subr.bf16.mxu0 0
  %4776 = vmatpush1.bf16.xpose.msra.mxu0 0
  %4777 = vmatprep.subr.bf16.mxu0 0
  %4778 = vmatpush1.bf16.xpose.msra.mxu0 0
  %4779 = vmatprep.subr.bf16.mxu0 0
  %4780 = vmatpush1.bf16.xpose.msra.mxu0 0
  %4781 = vmatprep.mubr.bf16.mxu0 0
  %4782 = vmatmul.mubr.bf16.gmra.mrb[0].mxu0 %v4741
  %v4783 = vpop.f32.mrb[0].mxu0
  %v4784 = vadd.f32 %v4729, %v4783
  %v4785 = vpop.f32.mrb[0].mxu0
  %v4786 = vpop.f32.mrb[0].mxu0
  %v4787 = vadd.f32 %v4729, %v4786
  %v4788 = vpop.f32.mrb[0].mxu0
  %4789 = vdwg.mxu0
  %v4790 = vadd.f32 %v3672, %v4784
  %v4791 = vadd.f32 %v3673, %v4787
  %v4792 = vsel %vm117, %v4790, 0.0
  %4793 = vadd.xlane.f32.xlu0 %v4792
  %v4794 = vpop.xlane.xlu0 %4793
  %v4795 = vsel %vm117, %v4791, 0.0
  %4796 = vadd.xlane.f32.xlu0 %v4795
  %v4797 = vpop.xlane.xlu0 %4796
  %v4798 = vmul.f32 %v4794, %v124
  %v4799 = vmul.f32 %v4797, %v124
  %v4800 = vsub.f32 %v4790, %v4798
  %v4801 = vsub.f32 %v4791, %v4799
  %v4802 = vmul.f32 %v4800, %v4800
  %v4803 = vmul.f32 %v4801, %v4801
  %v4804 = vsel %vm117, %v4802, 0.0
  %4805 = vadd.xlane.f32.xlu0 %v4804
  %v4806 = vpop.xlane.xlu0 %4805
  %v4807 = vsel %vm117, %v4803, 0.0
  %4808 = vadd.xlane.f32.xlu0 %v4807
  %v4809 = vpop.xlane.xlu0 %4808
  %v4810 = vmul.f32 %v4806, %v124
  %v4811 = vmul.f32 %v4809, %v124
  %v4812 = vadd.f32 %v4810, 1e-05
  %v4813 = vadd.f32 %v4811, 1e-05
  %v4814 = vrsqrt.pop %v4812
  %v4815 = vrsqrt.pop %v4813
  %v4816 = vmul.f32 %v4800, %v4814
  %v4817 = vmul.f32 %v4801, %v4815
  %v4818 = vlaneseq
  %v4819 = vshrl.u32 %v4818, 7
  %v4820 = vsub.s32 4, %v4819
  %v4821 = vrot.slane %v3675, %v4820
  %v4822 = vmul.f32 %v4816, %v4821
  %v4823 = vmul.f32 %v4817, %v4821
  %v4824 = vlaneseq
  %v4825 = vshrl.u32 %v4824, 7
  %v4826 = vsub.s32 5, %v4825
  %v4827 = vrot.slane %v3675, %v4826
  %v4828 = vadd.f32 %v4822, %v4827
  %v4829 = vadd.f32 %v4823, %v4827
  %s4830 = scalar_lea.vmem %s8, 1024
  %v4831 = vld [vmem:[%s4830] sm:$0xf]
  %v4832 = vld [vmem:[%s4830 + $0x4] sm:$0xf]
  %v4833 = vld [vmem:[%s4830 + $0x8] sm:$0xf]
  %v4834 = vld [vmem:[%s4830 + $0xc] sm:$0xf]
  %v4835 = vld [vmem:[%s4830 + $0x10] sm:$0xf]
  %v4836 = vld [vmem:[%s4830 + $0x14] sm:$0xf]
  %v4837 = vld [vmem:[%s4830 + $0x18] sm:$0xf]
  %v4838 = vld [vmem:[%s4830 + $0x1c] sm:$0xf]
  %v4839 = vld [vmem:[%s4830 + $0x20] sm:$0xf]
  %v4840 = vld [vmem:[%s4830 + $0x24] sm:$0xf]
  %v4841 = vld [vmem:[%s4830 + $0x28] sm:$0xf]
  %v4842 = vld [vmem:[%s4830 + $0x2c] sm:$0xf]
  %v4843 = vld [vmem:[%s4830 + $0x30] sm:$0xf]
  %v4844 = vld [vmem:[%s4830 + $0x34] sm:$0xf]
  %v4845 = vld [vmem:[%s4830 + $0x38] sm:$0xf]
  %v4846 = vld [vmem:[%s4830 + $0x3c] sm:$0xf]
  %v4847 = vld [vmem:[%s4830 + $0x40] sm:$0xf]
  %v4848 = vld [vmem:[%s4830 + $0x44] sm:$0xf]
  %v4849 = vld [vmem:[%s4830 + $0x48] sm:$0xf]
  %v4850 = vld [vmem:[%s4830 + $0x4c] sm:$0xf]
  %v4851 = vld [vmem:[%s4830 + $0x50] sm:$0xf]
  %v4852 = vld [vmem:[%s4830 + $0x54] sm:$0xf]
  %v4853 = vld [vmem:[%s4830 + $0x58] sm:$0xf]
  %v4854 = vld [vmem:[%s4830 + $0x5c] sm:$0xf]
  %v4855 = vld [vmem:[%s4830 + $0x60] sm:$0xf]
  %v4856 = vld [vmem:[%s4830 + $0x64] sm:$0xf]
  %v4857 = vld [vmem:[%s4830 + $0x68] sm:$0xf]
  %v4858 = vld [vmem:[%s4830 + $0x6c] sm:$0xf]
  %v4859 = vld [vmem:[%s4830 + $0x70] sm:$0xf]
  %v4860 = vld [vmem:[%s4830 + $0x74] sm:$0xf]
  %v4861 = vld [vmem:[%s4830 + $0x78] sm:$0xf]
  %v4862 = vld [vmem:[%s4830 + $0x7c] sm:$0xf]
  %v4863 = vld [vmem:[%s4830 + $0x80] sm:$0xf]
  %v4864 = vld [vmem:[%s4830 + $0x84] sm:$0xf]
  %v4865 = vld [vmem:[%s4830 + $0x88] sm:$0xf]
  %v4866 = vld [vmem:[%s4830 + $0x8c] sm:$0xf]
  %v4867 = vld [vmem:[%s4830 + $0x90] sm:$0xf]
  %v4868 = vld [vmem:[%s4830 + $0x94] sm:$0xf]
  %v4869 = vld [vmem:[%s4830 + $0x98] sm:$0xf]
  %v4870 = vld [vmem:[%s4830 + $0x9c] sm:$0xf]
  %v4871 = vld [vmem:[%s4830 + $0xa0] sm:$0xf]
  %v4872 = vld [vmem:[%s4830 + $0xa4] sm:$0xf]
  %v4873 = vld [vmem:[%s4830 + $0xa8] sm:$0xf]
  %v4874 = vld [vmem:[%s4830 + $0xac] sm:$0xf]
  %v4875 = vld [vmem:[%s4830 + $0xb0] sm:$0xf]
  %v4876 = vld [vmem:[%s4830 + $0xb4] sm:$0xf]
  %v4877 = vld [vmem:[%s4830 + $0xb8] sm:$0xf]
  %v4878 = vld [vmem:[%s4830 + $0xbc] sm:$0xf]
  %v4879 = vld [vmem:[%s4830 + $0xc0] sm:$0xf]
  %v4880 = vld [vmem:[%s4830 + $0xc4] sm:$0xf]
  %v4881 = vld [vmem:[%s4830 + $0xc8] sm:$0xf]
  %v4882 = vld [vmem:[%s4830 + $0xcc] sm:$0xf]
  %v4883 = vld [vmem:[%s4830 + $0xd0] sm:$0xf]
  %v4884 = vld [vmem:[%s4830 + $0xd4] sm:$0xf]
  %v4885 = vld [vmem:[%s4830 + $0xd8] sm:$0xf]
  %v4886 = vld [vmem:[%s4830 + $0xdc] sm:$0xf]
  %v4887 = vld [vmem:[%s4830 + $0xe0] sm:$0xf]
  %v4888 = vld [vmem:[%s4830 + $0xe4] sm:$0xf]
  %v4889 = vld [vmem:[%s4830 + $0xe8] sm:$0xf]
  %v4890 = vld [vmem:[%s4830 + $0xec] sm:$0xf]
  %v4891 = vld [vmem:[%s4830 + $0xf0] sm:$0xf]
  %v4892 = vld [vmem:[%s4830 + $0xf4] sm:$0xf]
  %v4893 = vld [vmem:[%s4830 + $0xf8] sm:$0xf]
  %v4894 = vld [vmem:[%s4830 + $0xfc] sm:$0xf]
  %v4895 = vld [vmem:[%s4830 + $0x100] sm:$0xf]
  %v4896 = vld [vmem:[%s4830 + $0x104] sm:$0xf]
  %v4897 = vld [vmem:[%s4830 + $0x108] sm:$0xf]
  %v4898 = vld [vmem:[%s4830 + $0x10c] sm:$0xf]
  %v4899 = vld [vmem:[%s4830 + $0x110] sm:$0xf]
  %v4900 = vld [vmem:[%s4830 + $0x114] sm:$0xf]
  %v4901 = vld [vmem:[%s4830 + $0x118] sm:$0xf]
  %v4902 = vld [vmem:[%s4830 + $0x11c] sm:$0xf]
  %v4903 = vld [vmem:[%s4830 + $0x120] sm:$0xf]
  %v4904 = vld [vmem:[%s4830 + $0x124] sm:$0xf]
  %v4905 = vld [vmem:[%s4830 + $0x128] sm:$0xf]
  %v4906 = vld [vmem:[%s4830 + $0x12c] sm:$0xf]
  %v4907 = vld [vmem:[%s4830 + $0x130] sm:$0xf]
  %v4908 = vld [vmem:[%s4830 + $0x134] sm:$0xf]
  %v4909 = vld [vmem:[%s4830 + $0x138] sm:$0xf]
  %v4910 = vld [vmem:[%s4830 + $0x13c] sm:$0xf]
  %v4911 = vld [vmem:[%s4830 + $0x140] sm:$0xf]
  %v4912 = vld [vmem:[%s4830 + $0x144] sm:$0xf]
  %v4913 = vld [vmem:[%s4830 + $0x148] sm:$0xf]
  %v4914 = vld [vmem:[%s4830 + $0x14c] sm:$0xf]
  %v4915 = vld [vmem:[%s4830 + $0x150] sm:$0xf]
  %v4916 = vld [vmem:[%s4830 + $0x154] sm:$0xf]
  %v4917 = vld [vmem:[%s4830 + $0x158] sm:$0xf]
  %v4918 = vld [vmem:[%s4830 + $0x15c] sm:$0xf]
  %v4919 = vld [vmem:[%s4830 + $0x160] sm:$0xf]
  %v4920 = vld [vmem:[%s4830 + $0x164] sm:$0xf]
  %v4921 = vld [vmem:[%s4830 + $0x168] sm:$0xf]
  %v4922 = vld [vmem:[%s4830 + $0x16c] sm:$0xf]
  %v4923 = vld [vmem:[%s4830 + $0x170] sm:$0xf]
  %v4924 = vld [vmem:[%s4830 + $0x174] sm:$0xf]
  %v4925 = vld [vmem:[%s4830 + $0x178] sm:$0xf]
  %v4926 = vld [vmem:[%s4830 + $0x17c] sm:$0xf]
  %v4927 = vld [vmem:[%s4830 + $0x180] sm:$0xf]
  %v4928 = vld [vmem:[%s4830 + $0x184] sm:$0xf]
  %v4929 = vld [vmem:[%s4830 + $0x188] sm:$0xf]
  %v4930 = vld [vmem:[%s4830 + $0x18c] sm:$0xf]
  %v4931 = vld [vmem:[%s4830 + $0x190] sm:$0xf]
  %v4932 = vld [vmem:[%s4830 + $0x194] sm:$0xf]
  %v4933 = vld [vmem:[%s4830 + $0x198] sm:$0xf]
  %v4934 = vld [vmem:[%s4830 + $0x19c] sm:$0xf]
  %v4935 = vld [vmem:[%s4830 + $0x1a0] sm:$0xf]
  %v4936 = vld [vmem:[%s4830 + $0x1a4] sm:$0xf]
  %v4937 = vld [vmem:[%s4830 + $0x1a8] sm:$0xf]
  %v4938 = vld [vmem:[%s4830 + $0x1ac] sm:$0xf]
  %v4939 = vld [vmem:[%s4830 + $0x1b0] sm:$0xf]
  %v4940 = vld [vmem:[%s4830 + $0x1b4] sm:$0xf]
  %v4941 = vld [vmem:[%s4830 + $0x1b8] sm:$0xf]
  %v4942 = vld [vmem:[%s4830 + $0x1bc] sm:$0xf]
  %v4943 = vld [vmem:[%s4830 + $0x1c0] sm:$0xf]
  %v4944 = vld [vmem:[%s4830 + $0x1c4] sm:$0xf]
  %v4945 = vld [vmem:[%s4830 + $0x1c8] sm:$0xf]
  %v4946 = vld [vmem:[%s4830 + $0x1cc] sm:$0xf]
  %v4947 = vld [vmem:[%s4830 + $0x1d0] sm:$0xf]
  %v4948 = vld [vmem:[%s4830 + $0x1d4] sm:$0xf]
  %v4949 = vld [vmem:[%s4830 + $0x1d8] sm:$0xf]
  %v4950 = vld [vmem:[%s4830 + $0x1dc] sm:$0xf]
  %v4951 = vld [vmem:[%s4830 + $0x1e0] sm:$0xf]
  %v4952 = vld [vmem:[%s4830 + $0x1e4] sm:$0xf]
  %v4953 = vld [vmem:[%s4830 + $0x1e8] sm:$0xf]
  %v4954 = vld [vmem:[%s4830 + $0x1ec] sm:$0xf]
  %v4955 = vld [vmem:[%s4830 + $0x1f0] sm:$0xf]
  %v4956 = vld [vmem:[%s4830 + $0x1f4] sm:$0xf]
  %v4957 = vld [vmem:[%s4830 + $0x1f8] sm:$0xf]
  %v4958 = vld [vmem:[%s4830 + $0x1fc] sm:$0xf]
  %v4959 = vld [vmem:[%s4830 + $0x200] sm:$0xf]
  %v4960 = vld [vmem:[%s4830 + $0x204] sm:$0xf]
  %v4961 = vld [vmem:[%s4830 + $0x208] sm:$0xf]
  %v4962 = vld [vmem:[%s4830 + $0x20c] sm:$0xf]
  %v4963 = vld [vmem:[%s4830 + $0x210] sm:$0xf]
  %v4964 = vld [vmem:[%s4830 + $0x214] sm:$0xf]
  %v4965 = vld [vmem:[%s4830 + $0x218] sm:$0xf]
  %v4966 = vld [vmem:[%s4830 + $0x21c] sm:$0xf]
  %v4967 = vld [vmem:[%s4830 + $0x220] sm:$0xf]
  %v4968 = vld [vmem:[%s4830 + $0x224] sm:$0xf]
  %v4969 = vld [vmem:[%s4830 + $0x228] sm:$0xf]
  %v4970 = vld [vmem:[%s4830 + $0x22c] sm:$0xf]
  %v4971 = vld [vmem:[%s4830 + $0x230] sm:$0xf]
  %v4972 = vld [vmem:[%s4830 + $0x234] sm:$0xf]
  %v4973 = vld [vmem:[%s4830 + $0x238] sm:$0xf]
  %v4974 = vld [vmem:[%s4830 + $0x23c] sm:$0xf]
  %v4975 = vld [vmem:[%s4830 + $0x240] sm:$0xf]
  %v4976 = vld [vmem:[%s4830 + $0x244] sm:$0xf]
  %v4977 = vld [vmem:[%s4830 + $0x248] sm:$0xf]
  %v4978 = vld [vmem:[%s4830 + $0x24c] sm:$0xf]
  %v4979 = vld [vmem:[%s4830 + $0x250] sm:$0xf]
  %v4980 = vld [vmem:[%s4830 + $0x254] sm:$0xf]
  %v4981 = vld [vmem:[%s4830 + $0x258] sm:$0xf]
  %v4982 = vld [vmem:[%s4830 + $0x25c] sm:$0xf]
  %v4983 = vld [vmem:[%s4830 + $0x260] sm:$0xf]
  %v4984 = vld [vmem:[%s4830 + $0x264] sm:$0xf]
  %v4985 = vld [vmem:[%s4830 + $0x268] sm:$0xf]
  %v4986 = vld [vmem:[%s4830 + $0x26c] sm:$0xf]
  %v4987 = vld [vmem:[%s4830 + $0x270] sm:$0xf]
  %v4988 = vld [vmem:[%s4830 + $0x274] sm:$0xf]
  %v4989 = vld [vmem:[%s4830 + $0x278] sm:$0xf]
  %v4990 = vld [vmem:[%s4830 + $0x27c] sm:$0xf]
  %v4991 = vld [vmem:[%s4830 + $0x280] sm:$0xf]
  %v4992 = vld [vmem:[%s4830 + $0x284] sm:$0xf]
  %v4993 = vld [vmem:[%s4830 + $0x288] sm:$0xf]
  %v4994 = vld [vmem:[%s4830 + $0x28c] sm:$0xf]
  %v4995 = vld [vmem:[%s4830 + $0x290] sm:$0xf]
  %v4996 = vld [vmem:[%s4830 + $0x294] sm:$0xf]
  %v4997 = vld [vmem:[%s4830 + $0x298] sm:$0xf]
  %v4998 = vld [vmem:[%s4830 + $0x29c] sm:$0xf]
  %v4999 = vld [vmem:[%s4830 + $0x2a0] sm:$0xf]
  %v5000 = vld [vmem:[%s4830 + $0x2a4] sm:$0xf]
  %v5001 = vld [vmem:[%s4830 + $0x2a8] sm:$0xf]
  %v5002 = vld [vmem:[%s4830 + $0x2ac] sm:$0xf]
  %v5003 = vld [vmem:[%s4830 + $0x2b0] sm:$0xf]
  %v5004 = vld [vmem:[%s4830 + $0x2b4] sm:$0xf]
  %v5005 = vld [vmem:[%s4830 + $0x2b8] sm:$0xf]
  %v5006 = vld [vmem:[%s4830 + $0x2bc] sm:$0xf]
  %v5007 = vld [vmem:[%s4830 + $0x2c0] sm:$0xf]
  %v5008 = vld [vmem:[%s4830 + $0x2c4] sm:$0xf]
  %v5009 = vld [vmem:[%s4830 + $0x2c8] sm:$0xf]
  %v5010 = vld [vmem:[%s4830 + $0x2cc] sm:$0xf]
  %v5011 = vld [vmem:[%s4830 + $0x2d0] sm:$0xf]
  %v5012 = vld [vmem:[%s4830 + $0x2d4] sm:$0xf]
  %v5013 = vld [vmem:[%s4830 + $0x2d8] sm:$0xf]
  %v5014 = vld [vmem:[%s4830 + $0x2dc] sm:$0xf]
  %v5015 = vld [vmem:[%s4830 + $0x2e0] sm:$0xf]
  %v5016 = vld [vmem:[%s4830 + $0x2e4] sm:$0xf]
  %v5017 = vld [vmem:[%s4830 + $0x2e8] sm:$0xf]
  %v5018 = vld [vmem:[%s4830 + $0x2ec] sm:$0xf]
  %v5019 = vld [vmem:[%s4830 + $0x2f0] sm:$0xf]
  %v5020 = vld [vmem:[%s4830 + $0x2f4] sm:$0xf]
  %v5021 = vld [vmem:[%s4830 + $0x2f8] sm:$0xf]
  %v5022 = vld [vmem:[%s4830 + $0x2fc] sm:$0xf]
  %v5023 = vld [vmem:[%s4830 + $0x300] sm:$0xf]
  %v5024 = vld [vmem:[%s4830 + $0x304] sm:$0xf]
  %v5025 = vld [vmem:[%s4830 + $0x308] sm:$0xf]
  %v5026 = vld [vmem:[%s4830 + $0x30c] sm:$0xf]
  %v5027 = vld [vmem:[%s4830 + $0x310] sm:$0xf]
  %v5028 = vld [vmem:[%s4830 + $0x314] sm:$0xf]
  %v5029 = vld [vmem:[%s4830 + $0x318] sm:$0xf]
  %v5030 = vld [vmem:[%s4830 + $0x31c] sm:$0xf]
  %v5031 = vld [vmem:[%s4830 + $0x320] sm:$0xf]
  %v5032 = vld [vmem:[%s4830 + $0x324] sm:$0xf]
  %v5033 = vld [vmem:[%s4830 + $0x328] sm:$0xf]
  %v5034 = vld [vmem:[%s4830 + $0x32c] sm:$0xf]
  %v5035 = vld [vmem:[%s4830 + $0x330] sm:$0xf]
  %v5036 = vld [vmem:[%s4830 + $0x334] sm:$0xf]
  %v5037 = vld [vmem:[%s4830 + $0x338] sm:$0xf]
  %v5038 = vld [vmem:[%s4830 + $0x33c] sm:$0xf]
  %v5039 = vld [vmem:[%s4830 + $0x340] sm:$0xf]
  %v5040 = vld [vmem:[%s4830 + $0x344] sm:$0xf]
  %v5041 = vld [vmem:[%s4830 + $0x348] sm:$0xf]
  %v5042 = vld [vmem:[%s4830 + $0x34c] sm:$0xf]
  %v5043 = vld [vmem:[%s4830 + $0x350] sm:$0xf]
  %v5044 = vld [vmem:[%s4830 + $0x354] sm:$0xf]
  %v5045 = vld [vmem:[%s4830 + $0x358] sm:$0xf]
  %v5046 = vld [vmem:[%s4830 + $0x35c] sm:$0xf]
  %v5047 = vld [vmem:[%s4830 + $0x360] sm:$0xf]
  %v5048 = vld [vmem:[%s4830 + $0x364] sm:$0xf]
  %v5049 = vld [vmem:[%s4830 + $0x368] sm:$0xf]
  %v5050 = vld [vmem:[%s4830 + $0x36c] sm:$0xf]
  %v5051 = vld [vmem:[%s4830 + $0x370] sm:$0xf]
  %v5052 = vld [vmem:[%s4830 + $0x374] sm:$0xf]
  %v5053 = vld [vmem:[%s4830 + $0x378] sm:$0xf]
  %v5054 = vld [vmem:[%s4830 + $0x37c] sm:$0xf]
  %v5055 = vld [vmem:[%s4830 + $0x380] sm:$0xf]
  %v5056 = vld [vmem:[%s4830 + $0x384] sm:$0xf]
  %v5057 = vld [vmem:[%s4830 + $0x388] sm:$0xf]
  %v5058 = vld [vmem:[%s4830 + $0x38c] sm:$0xf]
  %v5059 = vld [vmem:[%s4830 + $0x390] sm:$0xf]
  %v5060 = vld [vmem:[%s4830 + $0x394] sm:$0xf]
  %v5061 = vld [vmem:[%s4830 + $0x398] sm:$0xf]
  %v5062 = vld [vmem:[%s4830 + $0x39c] sm:$0xf]
  %v5063 = vld [vmem:[%s4830 + $0x3a0] sm:$0xf]
  %v5064 = vld [vmem:[%s4830 + $0x3a4] sm:$0xf]
  %v5065 = vld [vmem:[%s4830 + $0x3a8] sm:$0xf]
  %v5066 = vld [vmem:[%s4830 + $0x3ac] sm:$0xf]
  %v5067 = vld [vmem:[%s4830 + $0x3b0] sm:$0xf]
  %v5068 = vld [vmem:[%s4830 + $0x3b4] sm:$0xf]
  %v5069 = vld [vmem:[%s4830 + $0x3b8] sm:$0xf]
  %v5070 = vld [vmem:[%s4830 + $0x3bc] sm:$0xf]
  %v5071 = vld [vmem:[%s4830 + $0x3c0] sm:$0xf]
  %v5072 = vld [vmem:[%s4830 + $0x3c4] sm:$0xf]
  %v5073 = vld [vmem:[%s4830 + $0x3c8] sm:$0xf]
  %v5074 = vld [vmem:[%s4830 + $0x3cc] sm:$0xf]
  %v5075 = vld [vmem:[%s4830 + $0x3d0] sm:$0xf]
  %v5076 = vld [vmem:[%s4830 + $0x3d4] sm:$0xf]
  %v5077 = vld [vmem:[%s4830 + $0x3d8] sm:$0xf]
  %v5078 = vld [vmem:[%s4830 + $0x3dc] sm:$0xf]
  %v5079 = vld [vmem:[%s4830 + $0x3e0] sm:$0xf]
  %v5080 = vld [vmem:[%s4830 + $0x3e4] sm:$0xf]
  %v5081 = vld [vmem:[%s4830 + $0x3e8] sm:$0xf]
  %v5082 = vld [vmem:[%s4830 + $0x3ec] sm:$0xf]
  %v5083 = vld [vmem:[%s4830 + $0x3f0] sm:$0xf]
  %v5084 = vld [vmem:[%s4830 + $0x3f4] sm:$0xf]
  %v5085 = vld [vmem:[%s4830 + $0x3f8] sm:$0xf]
  %v5086 = vld [vmem:[%s4830 + $0x3fc] sm:$0xf]
  %v5087 = vpack.c.bf16 %v4829, %v4828
  %v5090 = vlaneseq
  %v5091 = vshrl.u32 %v5090, 7
  %v5092 = vsub.s32 0, %v5091
  %v5093 = vrot.slane %v3678, %v5092
  %v5094 = vlaneseq
  %v5095 = vshrl.u32 %v5094, 7
  %v5096 = vsub.s32 1, %v5095
  %v5097 = vrot.slane %v3678, %v5096
  %v5098 = vlaneseq
  %v5099 = vshrl.u32 %v5098, 7
  %v5100 = vsub.s32 2, %v5099
  %v5101 = vrot.slane %v3678, %v5100
  %v5102 = vlaneseq
  %v5103 = vshrl.u32 %v5102, 7
  %v5104 = vsub.s32 3, %v5103
  %v5105 = vrot.slane %v3678, %v5104
  %v5106 = vlaneseq
  %v5107 = vshrl.u32 %v5106, 7
  %v5108 = vsub.s32 4, %v5107
  %v5109 = vrot.slane %v3678, %v5108
  %v5110 = vlaneseq
  %v5111 = vshrl.u32 %v5110, 7
  %v5112 = vsub.s32 5, %v5111
  %v5113 = vrot.slane %v3678, %v5112
  %v5114 = vlaneseq
  %v5115 = vshrl.u32 %v5114, 7
  %v5116 = vsub.s32 6, %v5115
  %v5117 = vrot.slane %v3678, %v5116
  %v5118 = vlaneseq
  %v5119 = vshrl.u32 %v5118, 7
  %v5120 = vsub.s32 7, %v5119
  %v5121 = vrot.slane %v3678, %v5120
  %v5122 = vlaneseq
  %v5123 = vshrl.u32 %v5122, 7
  %v5124 = vsub.s32 0, %v5123
  %v5125 = vrot.slane %v3679, %v5124
  %v5126 = vlaneseq
  %v5127 = vshrl.u32 %v5126, 7
  %v5128 = vsub.s32 1, %v5127
  %v5129 = vrot.slane %v3679, %v5128
  %v5130 = vlaneseq
  %v5131 = vshrl.u32 %v5130, 7
  %v5132 = vsub.s32 2, %v5131
  %v5133 = vrot.slane %v3679, %v5132
  %v5134 = vlaneseq
  %v5135 = vshrl.u32 %v5134, 7
  %v5136 = vsub.s32 3, %v5135
  %v5137 = vrot.slane %v3679, %v5136
  %v5138 = vlaneseq
  %v5139 = vshrl.u32 %v5138, 7
  %v5140 = vsub.s32 4, %v5139
  %v5141 = vrot.slane %v3679, %v5140
  %v5142 = vlaneseq
  %v5143 = vshrl.u32 %v5142, 7
  %v5144 = vsub.s32 5, %v5143
  %v5145 = vrot.slane %v3679, %v5144
  %v5146 = vlaneseq
  %v5147 = vshrl.u32 %v5146, 7
  %v5148 = vsub.s32 6, %v5147
  %v5149 = vrot.slane %v3679, %v5148
  %v5150 = vlaneseq
  %v5151 = vshrl.u32 %v5150, 7
  %v5152 = vsub.s32 7, %v5151
  %v5153 = vrot.slane %v3679, %v5152
  %v5426 = vunpack.c.l.b16 %v4831
  %v5427 = vunpack.c.l.b16 %v4832
  %v5428 = vunpack.c.l.b16 %v4833
  %v5429 = vunpack.c.l.b16 %v4834
  %v5430 = vunpack.c.l.b16 %v4835
  %v5431 = vunpack.c.l.b16 %v4836
  %v5432 = vunpack.c.l.b16 %v4837
  %v5433 = vunpack.c.l.b16 %v4838
  %v5434 = vunpack.c.l.b16 %v4839
  %v5435 = vunpack.c.l.b16 %v4840
  %v5436 = vunpack.c.l.b16 %v4841
  %v5437 = vunpack.c.l.b16 %v4842
  %v5438 = vunpack.c.l.b16 %v4843
  %v5439 = vunpack.c.l.b16 %v4844
  %v5440 = vunpack.c.l.b16 %v4845
  %v5441 = vunpack.c.l.b16 %v4846
  %v5442 = vunpack.c.l.b16 %v4847
  %v5443 = vunpack.c.l.b16 %v4848
  %v5444 = vunpack.c.l.b16 %v4849
  %v5445 = vunpack.c.l.b16 %v4850
  %v5446 = vunpack.c.l.b16 %v4851
  %v5447 = vunpack.c.l.b16 %v4852
  %v5448 = vunpack.c.l.b16 %v4853
  %v5449 = vunpack.c.l.b16 %v4854
  %v5450 = vunpack.c.l.b16 %v4855
  %v5451 = vunpack.c.l.b16 %v4856
  %v5452 = vunpack.c.l.b16 %v4857
  %v5453 = vunpack.c.l.b16 %v4858
  %v5454 = vunpack.c.l.b16 %v4859
  %v5455 = vunpack.c.l.b16 %v4860
  %v5456 = vunpack.c.l.b16 %v4861
  %v5457 = vunpack.c.l.b16 %v4862
  %v5458 = vunpack.c.l.b16 %v4863
  %v5459 = vunpack.c.l.b16 %v4864
  %v5460 = vunpack.c.l.b16 %v4865
  %v5461 = vunpack.c.l.b16 %v4866
  %v5462 = vunpack.c.l.b16 %v4867
  %v5463 = vunpack.c.l.b16 %v4868
  %v5464 = vunpack.c.l.b16 %v4869
  %v5465 = vunpack.c.l.b16 %v4870
  %v5466 = vunpack.c.l.b16 %v4871
  %v5467 = vunpack.c.l.b16 %v4872
  %v5468 = vunpack.c.l.b16 %v4873
  %v5469 = vunpack.c.l.b16 %v4874
  %v5470 = vunpack.c.l.b16 %v4875
  %v5471 = vunpack.c.l.b16 %v4876
  %v5472 = vunpack.c.l.b16 %v4877
  %v5473 = vunpack.c.l.b16 %v4878
  %v5474 = vunpack.c.l.b16 %v4879
  %v5475 = vunpack.c.l.b16 %v4880
  %v5476 = vunpack.c.l.b16 %v4881
  %v5477 = vunpack.c.l.b16 %v4882
  %v5478 = vunpack.c.l.b16 %v4883
  %v5479 = vunpack.c.l.b16 %v4884
  %v5480 = vunpack.c.l.b16 %v4885
  %v5481 = vunpack.c.l.b16 %v4886
  %v5482 = vunpack.c.l.b16 %v4887
  %v5483 = vunpack.c.l.b16 %v4888
  %v5484 = vunpack.c.l.b16 %v4889
  %v5485 = vunpack.c.l.b16 %v4890
  %v5486 = vunpack.c.l.b16 %v4891
  %v5487 = vunpack.c.l.b16 %v4892
  %v5488 = vunpack.c.l.b16 %v4893
  %v5489 = vunpack.c.l.b16 %v4894
  %v5490 = vunpack.c.l.b16 %v4895
  %v5491 = vunpack.c.l.b16 %v4896
  %v5492 = vunpack.c.l.b16 %v4897
  %v5493 = vunpack.c.l.b16 %v4898
  %v5494 = vunpack.c.l.b16 %v4899
  %v5495 = vunpack.c.l.b16 %v4900
  %v5496 = vunpack.c.l.b16 %v4901
  %v5497 = vunpack.c.l.b16 %v4902
  %v5498 = vunpack.c.l.b16 %v4903
  %v5499 = vunpack.c.l.b16 %v4904
  %v5500 = vunpack.c.l.b16 %v4905
  %v5501 = vunpack.c.l.b16 %v4906
  %v5502 = vunpack.c.l.b16 %v4907
  %v5503 = vunpack.c.l.b16 %v4908
  %v5504 = vunpack.c.l.b16 %v4909
  %v5505 = vunpack.c.l.b16 %v4910
  %v5506 = vunpack.c.l.b16 %v4911
  %v5507 = vunpack.c.l.b16 %v4912
  %v5508 = vunpack.c.l.b16 %v4913
  %v5509 = vunpack.c.l.b16 %v4914
  %v5510 = vunpack.c.l.b16 %v4915
  %v5511 = vunpack.c.l.b16 %v4916
  %v5512 = vunpack.c.l.b16 %v4917
  %v5513 = vunpack.c.l.b16 %v4918
  %v5514 = vunpack.c.l.b16 %v4919
  %v5515 = vunpack.c.l.b16 %v4920
  %v5516 = vunpack.c.l.b16 %v4921
  %v5517 = vunpack.c.l.b16 %v4922
  %v5518 = vunpack.c.l.b16 %v4923
  %v5519 = vunpack.c.l.b16 %v4924
  %v5520 = vunpack.c.l.b16 %v4925
  %v5521 = vunpack.c.l.b16 %v4926
  %v5522 = vunpack.c.l.b16 %v4927
  %v5523 = vunpack.c.l.b16 %v4928
  %v5524 = vunpack.c.l.b16 %v4929
  %v5525 = vunpack.c.l.b16 %v4930
  %v5526 = vunpack.c.l.b16 %v4931
  %v5527 = vunpack.c.l.b16 %v4932
  %v5528 = vunpack.c.l.b16 %v4933
  %v5529 = vunpack.c.l.b16 %v4934
  %v5530 = vunpack.c.l.b16 %v4935
  %v5531 = vunpack.c.l.b16 %v4936
  %v5532 = vunpack.c.l.b16 %v4937
  %v5533 = vunpack.c.l.b16 %v4938
  %v5534 = vunpack.c.l.b16 %v4939
  %v5535 = vunpack.c.l.b16 %v4940
  %v5536 = vunpack.c.l.b16 %v4941
  %v5537 = vunpack.c.l.b16 %v4942
  %v5538 = vunpack.c.l.b16 %v4943
  %v5539 = vunpack.c.l.b16 %v4944
  %v5540 = vunpack.c.l.b16 %v4945
  %v5541 = vunpack.c.l.b16 %v4946
  %v5542 = vunpack.c.l.b16 %v4947
  %v5543 = vunpack.c.l.b16 %v4948
  %v5544 = vunpack.c.l.b16 %v4949
  %v5545 = vunpack.c.l.b16 %v4950
  %v5546 = vunpack.c.l.b16 %v4951
  %v5547 = vunpack.c.l.b16 %v4952
  %v5548 = vunpack.c.l.b16 %v4953
  %v5549 = vunpack.c.l.b16 %v4954
  %v5550 = vunpack.c.l.b16 %v4955
  %v5551 = vunpack.c.l.b16 %v4956
  %v5552 = vunpack.c.l.b16 %v4957
  %v5553 = vunpack.c.l.b16 %v4958
  %v5554 = vunpack.c.l.b16 %v4959
  %v5555 = vunpack.c.l.b16 %v4960
  %v5556 = vunpack.c.l.b16 %v4961
  %v5557 = vunpack.c.l.b16 %v4962
  %v5558 = vunpack.c.l.b16 %v4963
  %v5559 = vunpack.c.l.b16 %v4964
  %v5560 = vunpack.c.l.b16 %v4965
  %v5561 = vunpack.c.l.b16 %v4966
  %v5562 = vunpack.c.l.b16 %v4967
  %v5563 = vunpack.c.l.b16 %v4968
  %v5564 = vunpack.c.l.b16 %v4969
  %v5565 = vunpack.c.l.b16 %v4970
  %v5566 = vunpack.c.l.b16 %v4971
  %v5567 = vunpack.c.l.b16 %v4972
  %v5568 = vunpack.c.l.b16 %v4973
  %v5569 = vunpack.c.l.b16 %v4974
  %v5570 = vunpack.c.l.b16 %v4975
  %v5571 = vunpack.c.l.b16 %v4976
  %v5572 = vunpack.c.l.b16 %v4977
  %v5573 = vunpack.c.l.b16 %v4978
  %v5574 = vunpack.c.l.b16 %v4979
  %v5575 = vunpack.c.l.b16 %v4980
  %v5576 = vunpack.c.l.b16 %v4981
  %v5577 = vunpack.c.l.b16 %v4982
  %v5578 = vunpack.c.l.b16 %v4983
  %v5579 = vunpack.c.l.b16 %v4984
  %v5580 = vunpack.c.l.b16 %v4985
  %v5581 = vunpack.c.l.b16 %v4986
  %v5582 = vunpack.c.l.b16 %v4987
  %v5583 = vunpack.c.l.b16 %v4988
  %v5584 = vunpack.c.l.b16 %v4989
  %v5585 = vunpack.c.l.b16 %v4990
  %v5586 = vunpack.c.l.b16 %v4991
  %v5587 = vunpack.c.l.b16 %v4992
  %v5588 = vunpack.c.l.b16 %v4993
  %v5589 = vunpack.c.l.b16 %v4994
  %v5590 = vunpack.c.l.b16 %v4995
  %v5591 = vunpack.c.l.b16 %v4996
  %v5592 = vunpack.c.l.b16 %v4997
  %v5593 = vunpack.c.l.b16 %v4998
  %v5594 = vunpack.c.l.b16 %v4999
  %v5595 = vunpack.c.l.b16 %v5000
  %v5596 = vunpack.c.l.b16 %v5001
  %v5597 = vunpack.c.l.b16 %v5002
  %v5598 = vunpack.c.l.b16 %v5003
  %v5599 = vunpack.c.l.b16 %v5004
  %v5600 = vunpack.c.l.b16 %v5005
  %v5601 = vunpack.c.l.b16 %v5006
  %v5602 = vunpack.c.l.b16 %v5007
  %v5603 = vunpack.c.l.b16 %v5008
  %v5604 = vunpack.c.l.b16 %v5009
  %v5605 = vunpack.c.l.b16 %v5010
  %v5606 = vunpack.c.l.b16 %v5011
  %v5607 = vunpack.c.l.b16 %v5012
  %v5608 = vunpack.c.l.b16 %v5013
  %v5609 = vunpack.c.l.b16 %v5014
  %v5610 = vunpack.c.l.b16 %v5015
  %v5611 = vunpack.c.l.b16 %v5016
  %v5612 = vunpack.c.l.b16 %v5017
  %v5613 = vunpack.c.l.b16 %v5018
  %v5614 = vunpack.c.l.b16 %v5019
  %v5615 = vunpack.c.l.b16 %v5020
  %v5616 = vunpack.c.l.b16 %v5021
  %v5617 = vunpack.c.l.b16 %v5022
  %v5618 = vunpack.c.l.b16 %v5023
  %v5619 = vunpack.c.l.b16 %v5024
  %v5620 = vunpack.c.l.b16 %v5025
  %v5621 = vunpack.c.l.b16 %v5026
  %v5622 = vunpack.c.l.b16 %v5027
  %v5623 = vunpack.c.l.b16 %v5028
  %v5624 = vunpack.c.l.b16 %v5029
  %v5625 = vunpack.c.l.b16 %v5030
  %v5626 = vunpack.c.l.b16 %v5031
  %v5627 = vunpack.c.l.b16 %v5032
  %v5628 = vunpack.c.l.b16 %v5033
  %v5629 = vunpack.c.l.b16 %v5034
  %v5630 = vunpack.c.l.b16 %v5035
  %v5631 = vunpack.c.l.b16 %v5036
  %v5632 = vunpack.c.l.b16 %v5037
  %v5633 = vunpack.c.l.b16 %v5038
  %v5634 = vunpack.c.l.b16 %v5039
  %v5635 = vunpack.c.l.b16 %v5040
  %v5636 = vunpack.c.l.b16 %v5041
  %v5637 = vunpack.c.l.b16 %v5042
  %v5638 = vunpack.c.l.b16 %v5043
  %v5639 = vunpack.c.l.b16 %v5044
  %v5640 = vunpack.c.l.b16 %v5045
  %v5641 = vunpack.c.l.b16 %v5046
  %v5642 = vunpack.c.l.b16 %v5047
  %v5643 = vunpack.c.l.b16 %v5048
  %v5644 = vunpack.c.l.b16 %v5049
  %v5645 = vunpack.c.l.b16 %v5050
  %v5646 = vunpack.c.l.b16 %v5051
  %v5647 = vunpack.c.l.b16 %v5052
  %v5648 = vunpack.c.l.b16 %v5053
  %v5649 = vunpack.c.l.b16 %v5054
  %v5650 = vunpack.c.l.b16 %v5055
  %v5651 = vunpack.c.l.b16 %v5056
  %v5652 = vunpack.c.l.b16 %v5057
  %v5653 = vunpack.c.l.b16 %v5058
  %v5654 = vunpack.c.l.b16 %v5059
  %v5655 = vunpack.c.l.b16 %v5060
  %v5656 = vunpack.c.l.b16 %v5061
  %v5657 = vunpack.c.l.b16 %v5062
  %v5658 = vunpack.c.l.b16 %v5063
  %v5659 = vunpack.c.l.b16 %v5064
  %v5660 = vunpack.c.l.b16 %v5065
  %v5661 = vunpack.c.l.b16 %v5066
  %v5662 = vunpack.c.l.b16 %v5067
  %v5663 = vunpack.c.l.b16 %v5068
  %v5664 = vunpack.c.l.b16 %v5069
  %v5665 = vunpack.c.l.b16 %v5070
  %v5666 = vunpack.c.l.b16 %v5071
  %v5667 = vunpack.c.l.b16 %v5072
  %v5668 = vunpack.c.l.b16 %v5073
  %v5669 = vunpack.c.l.b16 %v5074
  %v5670 = vunpack.c.l.b16 %v5075
  %v5671 = vunpack.c.l.b16 %v5076
  %v5672 = vunpack.c.l.b16 %v5077
  %v5673 = vunpack.c.l.b16 %v5078
  %v5674 = vunpack.c.l.b16 %v5079
  %v5675 = vunpack.c.l.b16 %v5080
  %v5676 = vunpack.c.l.b16 %v5081
  %v5677 = vunpack.c.l.b16 %v5082
  %v5678 = vunpack.c.l.b16 %v5083
  %v5679 = vunpack.c.l.b16 %v5084
  %v5680 = vunpack.c.l.b16 %v5085
  %v5681 = vunpack.c.l.b16 %v5086
  %v5682 = vpack.c.b16 %v5427, %v5426
  %v5683 = vpack.c.b16 %v5429, %v5428
  %v5684 = vpack.c.b16 %v5431, %v5430
  %v5685 = vpack.c.b16 %v5433, %v5432
  %v5686 = vpack.c.b16 %v5435, %v5434
  %v5687 = vpack.c.b16 %v5437, %v5436
  %v5688 = vpack.c.b16 %v5439, %v5438
  %v5689 = vpack.c.b16 %v5441, %v5440
  %v5690 = vpack.c.b16 %v5443, %v5442
  %v5691 = vpack.c.b16 %v5445, %v5444
  %v5692 = vpack.c.b16 %v5447, %v5446
  %v5693 = vpack.c.b16 %v5449, %v5448
  %v5694 = vpack.c.b16 %v5451, %v5450
  %v5695 = vpack.c.b16 %v5453, %v5452
  %v5696 = vpack.c.b16 %v5455, %v5454
  %v5697 = vpack.c.b16 %v5457, %v5456
  %v5698 = vpack.c.b16 %v5459, %v5458
  %v5699 = vpack.c.b16 %v5461, %v5460
  %v5700 = vpack.c.b16 %v5463, %v5462
  %v5701 = vpack.c.b16 %v5465, %v5464
  %v5702 = vpack.c.b16 %v5467, %v5466
  %v5703 = vpack.c.b16 %v5469, %v5468
  %v5704 = vpack.c.b16 %v5471, %v5470
  %v5705 = vpack.c.b16 %v5473, %v5472
  %v5706 = vpack.c.b16 %v5475, %v5474
  %v5707 = vpack.c.b16 %v5477, %v5476
  %v5708 = vpack.c.b16 %v5479, %v5478
  %v5709 = vpack.c.b16 %v5481, %v5480
  %v5710 = vpack.c.b16 %v5483, %v5482
  %v5711 = vpack.c.b16 %v5485, %v5484
  %v5712 = vpack.c.b16 %v5487, %v5486
  %v5713 = vpack.c.b16 %v5489, %v5488
  %v5714 = vpack.c.b16 %v5491, %v5490
  %v5715 = vpack.c.b16 %v5493, %v5492
  %v5716 = vpack.c.b16 %v5495, %v5494
  %v5717 = vpack.c.b16 %v5497, %v5496
  %v5718 = vpack.c.b16 %v5499, %v5498
  %v5719 = vpack.c.b16 %v5501, %v5500
  %v5720 = vpack.c.b16 %v5503, %v5502
  %v5721 = vpack.c.b16 %v5505, %v5504
  %v5722 = vpack.c.b16 %v5507, %v5506
  %v5723 = vpack.c.b16 %v5509, %v5508
  %v5724 = vpack.c.b16 %v5511, %v5510
  %v5725 = vpack.c.b16 %v5513, %v5512
  %v5726 = vpack.c.b16 %v5515, %v5514
  %v5727 = vpack.c.b16 %v5517, %v5516
  %v5728 = vpack.c.b16 %v5519, %v5518
  %v5729 = vpack.c.b16 %v5521, %v5520
  %v5730 = vpack.c.b16 %v5523, %v5522
  %v5731 = vpack.c.b16 %v5525, %v5524
  %v5732 = vpack.c.b16 %v5527, %v5526
  %v5733 = vpack.c.b16 %v5529, %v5528
  %v5734 = vpack.c.b16 %v5531, %v5530
  %v5735 = vpack.c.b16 %v5533, %v5532
  %v5736 = vpack.c.b16 %v5535, %v5534
  %v5737 = vpack.c.b16 %v5537, %v5536
  %v5738 = vpack.c.b16 %v5539, %v5538
  %v5739 = vpack.c.b16 %v5541, %v5540
  %v5740 = vpack.c.b16 %v5543, %v5542
  %v5741 = vpack.c.b16 %v5545, %v5544
  %v5742 = vpack.c.b16 %v5547, %v5546
  %v5743 = vpack.c.b16 %v5549, %v5548
  %v5744 = vpack.c.b16 %v5551, %v5550
  %v5745 = vpack.c.b16 %v5553, %v5552
  %v5746 = vpack.c.b16 %v5555, %v5554
  %v5747 = vpack.c.b16 %v5557, %v5556
  %v5748 = vpack.c.b16 %v5559, %v5558
  %v5749 = vpack.c.b16 %v5561, %v5560
  %v5750 = vpack.c.b16 %v5563, %v5562
  %v5751 = vpack.c.b16 %v5565, %v5564
  %v5752 = vpack.c.b16 %v5567, %v5566
  %v5753 = vpack.c.b16 %v5569, %v5568
  %v5754 = vpack.c.b16 %v5571, %v5570
  %v5755 = vpack.c.b16 %v5573, %v5572
  %v5756 = vpack.c.b16 %v5575, %v5574
  %v5757 = vpack.c.b16 %v5577, %v5576
  %v5758 = vpack.c.b16 %v5579, %v5578
  %v5759 = vpack.c.b16 %v5581, %v5580
  %v5760 = vpack.c.b16 %v5583, %v5582
  %v5761 = vpack.c.b16 %v5585, %v5584
  %v5762 = vpack.c.b16 %v5587, %v5586
  %v5763 = vpack.c.b16 %v5589, %v5588
  %v5764 = vpack.c.b16 %v5591, %v5590
  %v5765 = vpack.c.b16 %v5593, %v5592
  %v5766 = vpack.c.b16 %v5595, %v5594
  %v5767 = vpack.c.b16 %v5597, %v5596
  %v5768 = vpack.c.b16 %v5599, %v5598
  %v5769 = vpack.c.b16 %v5601, %v5600
  %v5770 = vpack.c.b16 %v5603, %v5602
  %v5771 = vpack.c.b16 %v5605, %v5604
  %v5772 = vpack.c.b16 %v5607, %v5606
  %v5773 = vpack.c.b16 %v5609, %v5608
  %v5774 = vpack.c.b16 %v5611, %v5610
  %v5775 = vpack.c.b16 %v5613, %v5612
  %v5776 = vpack.c.b16 %v5615, %v5614
  %v5777 = vpack.c.b16 %v5617, %v5616
  %v5778 = vpack.c.b16 %v5619, %v5618
  %v5779 = vpack.c.b16 %v5621, %v5620
  %v5780 = vpack.c.b16 %v5623, %v5622
  %v5781 = vpack.c.b16 %v5625, %v5624
  %v5782 = vpack.c.b16 %v5627, %v5626
  %v5783 = vpack.c.b16 %v5629, %v5628
  %v5784 = vpack.c.b16 %v5631, %v5630
  %v5785 = vpack.c.b16 %v5633, %v5632
  %v5786 = vpack.c.b16 %v5635, %v5634
  %v5787 = vpack.c.b16 %v5637, %v5636
  %v5788 = vpack.c.b16 %v5639, %v5638
  %v5789 = vpack.c.b16 %v5641, %v5640
  %v5790 = vpack.c.b16 %v5643, %v5642
  %v5791 = vpack.c.b16 %v5645, %v5644
  %v5792 = vpack.c.b16 %v5647, %v5646
  %v5793 = vpack.c.b16 %v5649, %v5648
  %v5794 = vpack.c.b16 %v5651, %v5650
  %v5795 = vpack.c.b16 %v5653, %v5652
  %v5796 = vpack.c.b16 %v5655, %v5654
  %v5797 = vpack.c.b16 %v5657, %v5656
  %v5798 = vpack.c.b16 %v5659, %v5658
  %v5799 = vpack.c.b16 %v5661, %v5660
  %v5800 = vpack.c.b16 %v5663, %v5662
  %v5801 = vpack.c.b16 %v5665, %v5664
  %v5802 = vpack.c.b16 %v5667, %v5666
  %v5803 = vpack.c.b16 %v5669, %v5668
  %v5804 = vpack.c.b16 %v5671, %v5670
  %v5805 = vpack.c.b16 %v5673, %v5672
  %v5806 = vpack.c.b16 %v5675, %v5674
  %v5807 = vpack.c.b16 %v5677, %v5676
  %v5808 = vpack.c.b16 %v5679, %v5678
  %v5809 = vpack.c.b16 %v5681, %v5680
  %v5811 = vsel %vm117, %v5087, 0
  %v5814 = vsel %vm117, %v5682, 0
  %v5817 = vsel %vm117, %v5683, 0
  %v5820 = vsel %vm117, %v5684, 0
  %v5823 = vsel %vm117, %v5685, 0
  %v5826 = vsel %vm117, %v5686, 0
  %v5829 = vsel %vm117, %v5687, 0
  %v5832 = vsel %vm117, %v5688, 0
  %v5835 = vsel %vm117, %v5689, 0
  %v5838 = vsel %vm117, %v5690, 0
  %v5841 = vsel %vm117, %v5691, 0
  %v5844 = vsel %vm117, %v5692, 0
  %v5847 = vsel %vm117, %v5693, 0
  %v5850 = vsel %vm117, %v5694, 0
  %v5853 = vsel %vm117, %v5695, 0
  %v5856 = vsel %vm117, %v5696, 0
  %v5859 = vsel %vm117, %v5697, 0
  %v5862 = vsel %vm117, %v5698, 0
  %v5865 = vsel %vm117, %v5699, 0
  %v5868 = vsel %vm117, %v5700, 0
  %v5871 = vsel %vm117, %v5701, 0
  %v5874 = vsel %vm117, %v5702, 0
  %v5877 = vsel %vm117, %v5703, 0
  %v5880 = vsel %vm117, %v5704, 0
  %v5883 = vsel %vm117, %v5705, 0
  %v5886 = vsel %vm117, %v5706, 0
  %v5889 = vsel %vm117, %v5707, 0
  %v5892 = vsel %vm117, %v5708, 0
  %v5895 = vsel %vm117, %v5709, 0
  %v5898 = vsel %vm117, %v5710, 0
  %v5901 = vsel %vm117, %v5711, 0
  %v5904 = vsel %vm117, %v5712, 0
  %v5907 = vsel %vm117, %v5713, 0
  %v5910 = vsel %vm117, %v5714, 0
  %v5913 = vsel %vm117, %v5715, 0
  %v5916 = vsel %vm117, %v5716, 0
  %v5919 = vsel %vm117, %v5717, 0
  %v5922 = vsel %vm117, %v5718, 0
  %v5925 = vsel %vm117, %v5719, 0
  %v5928 = vsel %vm117, %v5720, 0
  %v5931 = vsel %vm117, %v5721, 0
  %v5934 = vsel %vm117, %v5722, 0
  %v5937 = vsel %vm117, %v5723, 0
  %v5940 = vsel %vm117, %v5724, 0
  %v5943 = vsel %vm117, %v5725, 0
  %v5946 = vsel %vm117, %v5726, 0
  %v5949 = vsel %vm117, %v5727, 0
  %v5952 = vsel %vm117, %v5728, 0
  %v5955 = vsel %vm117, %v5729, 0
  %v5958 = vsel %vm117, %v5730, 0
  %v5961 = vsel %vm117, %v5731, 0
  %v5964 = vsel %vm117, %v5732, 0
  %v5967 = vsel %vm117, %v5733, 0
  %v5970 = vsel %vm117, %v5734, 0
  %v5973 = vsel %vm117, %v5735, 0
  %v5976 = vsel %vm117, %v5736, 0
  %v5979 = vsel %vm117, %v5737, 0
  %v5982 = vsel %vm117, %v5738, 0
  %v5985 = vsel %vm117, %v5739, 0
  %v5988 = vsel %vm117, %v5740, 0
  %v5991 = vsel %vm117, %v5741, 0
  %v5994 = vsel %vm117, %v5742, 0
  %v5997 = vsel %vm117, %v5743, 0
  %v6000 = vsel %vm117, %v5744, 0
  %v6003 = vsel %vm117, %v5745, 0
  %v6006 = vsel %vm117, %v5746, 0
  %v6009 = vsel %vm117, %v5747, 0
  %v6012 = vsel %vm117, %v5748, 0
  %v6015 = vsel %vm117, %v5749, 0
  %v6018 = vsel %vm117, %v5750, 0
  %v6021 = vsel %vm117, %v5751, 0
  %v6024 = vsel %vm117, %v5752, 0
  %v6027 = vsel %vm117, %v5753, 0
  %v6030 = vsel %vm117, %v5754, 0
  %v6033 = vsel %vm117, %v5755, 0
  %v6036 = vsel %vm117, %v5756, 0
  %v6039 = vsel %vm117, %v5757, 0
  %v6042 = vsel %vm117, %v5758, 0
  %v6045 = vsel %vm117, %v5759, 0
  %v6048 = vsel %vm117, %v5760, 0
  %v6051 = vsel %vm117, %v5761, 0
  %v6054 = vsel %vm117, %v5762, 0
  %v6057 = vsel %vm117, %v5763, 0
  %v6060 = vsel %vm117, %v5764, 0
  %v6063 = vsel %vm117, %v5765, 0
  %v6066 = vsel %vm117, %v5766, 0
  %v6069 = vsel %vm117, %v5767, 0
  %v6072 = vsel %vm117, %v5768, 0
  %v6075 = vsel %vm117, %v5769, 0
  %v6078 = vsel %vm117, %v5770, 0
  %v6081 = vsel %vm117, %v5771, 0
  %v6084 = vsel %vm117, %v5772, 0
  %v6087 = vsel %vm117, %v5773, 0
  %v6090 = vsel %vm117, %v5774, 0
  %v6093 = vsel %vm117, %v5775, 0
  %v6096 = vsel %vm117, %v5776, 0
  %v6099 = vsel %vm117, %v5777, 0
  %v6102 = vsel %vm117, %v5778, 0
  %v6105 = vsel %vm117, %v5779, 0
  %v6108 = vsel %vm117, %v5780, 0
  %v6111 = vsel %vm117, %v5781, 0
  %v6114 = vsel %vm117, %v5782, 0
  %v6117 = vsel %vm117, %v5783, 0
  %v6120 = vsel %vm117, %v5784, 0
  %v6123 = vsel %vm117, %v5785, 0
  %v6126 = vsel %vm117, %v5786, 0
  %v6129 = vsel %vm117, %v5787, 0
  %v6132 = vsel %vm117, %v5788, 0
  %v6135 = vsel %vm117, %v5789, 0
  %v6138 = vsel %vm117, %v5790, 0
  %v6141 = vsel %vm117, %v5791, 0
  %v6144 = vsel %vm117, %v5792, 0
  %v6147 = vsel %vm117, %v5793, 0
  %v6150 = vsel %vm117, %v5794, 0
  %v6153 = vsel %vm117, %v5795, 0
  %v6156 = vsel %vm117, %v5796, 0
  %v6159 = vsel %vm117, %v5797, 0
  %v6162 = vsel %vm117, %v5798, 0
  %v6165 = vsel %vm117, %v5799, 0
  %v6168 = vsel %vm117, %v5800, 0
  %v6171 = vsel %vm117, %v5801, 0
  %v6174 = vsel %vm117, %v5802, 0
  %v6177 = vsel %vm117, %v5803, 0
  %v6180 = vsel %vm117, %v5804, 0
  %v6183 = vsel %vm117, %v5805, 0
  %v6186 = vsel %vm117, %v5806, 0
  %v6189 = vsel %vm117, %v5807, 0
  %v6192 = vsel %vm117, %v5808, 0
  %v6195 = vsel %vm117, %v5809, 0
  %6197 = vmatprep.subr.bf16.mxu0 0
  %6198 = vmatpush1.bf16.xpose.msra.mxu0 %v5814
  %6199 = vmatprep.subr.bf16.mxu0 0
  %6200 = vmatpush1.bf16.xpose.msra.mxu0 %v5817
  %6201 = vmatprep.subr.bf16.mxu0 0
  %6202 = vmatpush1.bf16.xpose.msra.mxu0 %v5820
  %6203 = vmatprep.subr.bf16.mxu0 0
  %6204 = vmatpush1.bf16.xpose.msra.mxu0 %v5823
  %6205 = vmatprep.subr.bf16.mxu0 0
  %6206 = vmatpush1.bf16.xpose.msra.mxu0 %v5826
  %6207 = vmatprep.subr.bf16.mxu0 0
  %6208 = vmatpush1.bf16.xpose.msra.mxu0 %v5829
  %6209 = vmatprep.subr.bf16.mxu0 0
  %6210 = vmatpush1.bf16.xpose.msra.mxu0 %v5832
  %6211 = vmatprep.subr.bf16.mxu0 0
  %6212 = vmatpush1.bf16.xpose.msra.mxu0 %v5835
  %6213 = vmatprep.subr.bf16.mxu0 0
  %6214 = vmatpush1.bf16.xpose.msra.mxu0 %v5838
  %6215 = vmatprep.subr.bf16.mxu0 0
  %6216 = vmatpush1.bf16.xpose.msra.mxu0 %v5841
  %6217 = vmatprep.subr.bf16.mxu0 0
  %6218 = vmatpush1.bf16.xpose.msra.mxu0 %v5844
  %6219 = vmatprep.subr.bf16.mxu0 0
  %6220 = vmatpush1.bf16.xpose.msra.mxu0 %v5847
  %6221 = vmatprep.subr.bf16.mxu0 0
  %6222 = vmatpush1.bf16.xpose.msra.mxu0 %v5850
  %6223 = vmatprep.subr.bf16.mxu0 0
  %6224 = vmatpush1.bf16.xpose.msra.mxu0 %v5853
  %6225 = vmatprep.subr.bf16.mxu0 0
  %6226 = vmatpush1.bf16.xpose.msra.mxu0 %v5856
  %6227 = vmatprep.subr.bf16.mxu0 0
  %6228 = vmatpush1.bf16.xpose.msra.mxu0 %v5859
  %6229 = vmatprep.mubr.bf16.mxu0 0
  %6230 = vmatmul.mubr.bf16.gmra.mrb[0].mxu0 %v5811
  %v6231 = vpop.f32.mrb[0].mxu0
  %v6232 = vadd.f32 %v5093, %v6231
  %v6233 = vpop.f32.mrb[0].mxu0
  %v6234 = vadd.f32 %v5097, %v6233
  %v6235 = vpop.f32.mrb[0].mxu0
  %v6236 = vadd.f32 %v5093, %v6235
  %v6237 = vpop.f32.mrb[0].mxu0
  %v6238 = vadd.f32 %v5097, %v6237
  %6239 = vdwg.mxu0
  %6240 = vmatprep.subr.bf16.mxu0 0
  %6241 = vmatpush1.bf16.xpose.msra.mxu0 %v5862
  %6242 = vmatprep.subr.bf16.mxu0 0
  %6243 = vmatpush1.bf16.xpose.msra.mxu0 %v5865
  %6244 = vmatprep.subr.bf16.mxu0 0
  %6245 = vmatpush1.bf16.xpose.msra.mxu0 %v5868
  %6246 = vmatprep.subr.bf16.mxu0 0
  %6247 = vmatpush1.bf16.xpose.msra.mxu0 %v5871
  %6248 = vmatprep.subr.bf16.mxu0 0
  %6249 = vmatpush1.bf16.xpose.msra.mxu0 %v5874
  %6250 = vmatprep.subr.bf16.mxu0 0
  %6251 = vmatpush1.bf16.xpose.msra.mxu0 %v5877
  %6252 = vmatprep.subr.bf16.mxu0 0
  %6253 = vmatpush1.bf16.xpose.msra.mxu0 %v5880
  %6254 = vmatprep.subr.bf16.mxu0 0
  %6255 = vmatpush1.bf16.xpose.msra.mxu0 %v5883
  %6256 = vmatprep.subr.bf16.mxu0 0
  %6257 = vmatpush1.bf16.xpose.msra.mxu0 %v5886
  %6258 = vmatprep.subr.bf16.mxu0 0
  %6259 = vmatpush1.bf16.xpose.msra.mxu0 %v5889
  %6260 = vmatprep.subr.bf16.mxu0 0
  %6261 = vmatpush1.bf16.xpose.msra.mxu0 %v5892
  %6262 = vmatprep.subr.bf16.mxu0 0
  %6263 = vmatpush1.bf16.xpose.msra.mxu0 %v5895
  %6264 = vmatprep.subr.bf16.mxu0 0
  %6265 = vmatpush1.bf16.xpose.msra.mxu0 %v5898
  %6266 = vmatprep.subr.bf16.mxu0 0
  %6267 = vmatpush1.bf16.xpose.msra.mxu0 %v5901
  %6268 = vmatprep.subr.bf16.mxu0 0
  %6269 = vmatpush1.bf16.xpose.msra.mxu0 %v5904
  %6270 = vmatprep.subr.bf16.mxu0 0
  %6271 = vmatpush1.bf16.xpose.msra.mxu0 %v5907
  %6272 = vmatprep.mubr.bf16.mxu0 0
  %6273 = vmatmul.mubr.bf16.gmra.mrb[0].mxu0 %v5811
  %v6274 = vpop.f32.mrb[0].mxu0
  %v6275 = vadd.f32 %v5101, %v6274
  %v6276 = vpop.f32.mrb[0].mxu0
  %v6277 = vadd.f32 %v5105, %v6276
  %v6278 = vpop.f32.mrb[0].mxu0
  %v6279 = vadd.f32 %v5101, %v6278
  %v6280 = vpop.f32.mrb[0].mxu0
  %v6281 = vadd.f32 %v5105, %v6280
  %6282 = vdwg.mxu0
  %6283 = vmatprep.subr.bf16.mxu0 0
  %6284 = vmatpush1.bf16.xpose.msra.mxu0 %v5910
  %6285 = vmatprep.subr.bf16.mxu0 0
  %6286 = vmatpush1.bf16.xpose.msra.mxu0 %v5913
  %6287 = vmatprep.subr.bf16.mxu0 0
  %6288 = vmatpush1.bf16.xpose.msra.mxu0 %v5916
  %6289 = vmatprep.subr.bf16.mxu0 0
  %6290 = vmatpush1.bf16.xpose.msra.mxu0 %v5919
  %6291 = vmatprep.subr.bf16.mxu0 0
  %6292 = vmatpush1.bf16.xpose.msra.mxu0 %v5922
  %6293 = vmatprep.subr.bf16.mxu0 0
  %6294 = vmatpush1.bf16.xpose.msra.mxu0 %v5925
  %6295 = vmatprep.subr.bf16.mxu0 0
  %6296 = vmatpush1.bf16.xpose.msra.mxu0 %v5928
  %6297 = vmatprep.subr.bf16.mxu0 0
  %6298 = vmatpush1.bf16.xpose.msra.mxu0 %v5931
  %6299 = vmatprep.subr.bf16.mxu0 0
  %6300 = vmatpush1.bf16.xpose.msra.mxu0 %v5934
  %6301 = vmatprep.subr.bf16.mxu0 0
  %6302 = vmatpush1.bf16.xpose.msra.mxu0 %v5937
  %6303 = vmatprep.subr.bf16.mxu0 0
  %6304 = vmatpush1.bf16.xpose.msra.mxu0 %v5940
  %6305 = vmatprep.subr.bf16.mxu0 0
  %6306 = vmatpush1.bf16.xpose.msra.mxu0 %v5943
  %6307 = vmatprep.subr.bf16.mxu0 0
  %6308 = vmatpush1.bf16.xpose.msra.mxu0 %v5946
  %6309 = vmatprep.subr.bf16.mxu0 0
  %6310 = vmatpush1.bf16.xpose.msra.mxu0 %v5949
  %6311 = vmatprep.subr.bf16.mxu0 0
  %6312 = vmatpush1.bf16.xpose.msra.mxu0 %v5952
  %6313 = vmatprep.subr.bf16.mxu0 0
  %6314 = vmatpush1.bf16.xpose.msra.mxu0 %v5955
  %6315 = vmatprep.mubr.bf16.mxu0 0
  %6316 = vmatmul.mubr.bf16.gmra.mrb[0].mxu0 %v5811
  %v6317 = vpop.f32.mrb[0].mxu0
  %v6318 = vadd.f32 %v5109, %v6317
  %v6319 = vpop.f32.mrb[0].mxu0
  %v6320 = vadd.f32 %v5113, %v6319
  %v6321 = vpop.f32.mrb[0].mxu0
  %v6322 = vadd.f32 %v5109, %v6321
  %v6323 = vpop.f32.mrb[0].mxu0
  %v6324 = vadd.f32 %v5113, %v6323
  %6325 = vdwg.mxu0
  %6326 = vmatprep.subr.bf16.mxu0 0
  %6327 = vmatpush1.bf16.xpose.msra.mxu0 %v5958
  %6328 = vmatprep.subr.bf16.mxu0 0
  %6329 = vmatpush1.bf16.xpose.msra.mxu0 %v5961
  %6330 = vmatprep.subr.bf16.mxu0 0
  %6331 = vmatpush1.bf16.xpose.msra.mxu0 %v5964
  %6332 = vmatprep.subr.bf16.mxu0 0
  %6333 = vmatpush1.bf16.xpose.msra.mxu0 %v5967
  %6334 = vmatprep.subr.bf16.mxu0 0
  %6335 = vmatpush1.bf16.xpose.msra.mxu0 %v5970
  %6336 = vmatprep.subr.bf16.mxu0 0
  %6337 = vmatpush1.bf16.xpose.msra.mxu0 %v5973
  %6338 = vmatprep.subr.bf16.mxu0 0
  %6339 = vmatpush1.bf16.xpose.msra.mxu0 %v5976
  %6340 = vmatprep.subr.bf16.mxu0 0
  %6341 = vmatpush1.bf16.xpose.msra.mxu0 %v5979
  %6342 = vmatprep.subr.bf16.mxu0 0
  %6343 = vmatpush1.bf16.xpose.msra.mxu0 %v5982
  %6344 = vmatprep.subr.bf16.mxu0 0
  %6345 = vmatpush1.bf16.xpose.msra.mxu0 %v5985
  %6346 = vmatprep.subr.bf16.mxu0 0
  %6347 = vmatpush1.bf16.xpose.msra.mxu0 %v5988
  %6348 = vmatprep.subr.bf16.mxu0 0
  %6349 = vmatpush1.bf16.xpose.msra.mxu0 %v5991
  %6350 = vmatprep.subr.bf16.mxu0 0
  %6351 = vmatpush1.bf16.xpose.msra.mxu0 %v5994
  %6352 = vmatprep.subr.bf16.mxu0 0
  %6353 = vmatpush1.bf16.xpose.msra.mxu0 %v5997
  %6354 = vmatprep.subr.bf16.mxu0 0
  %6355 = vmatpush1.bf16.xpose.msra.mxu0 %v6000
  %6356 = vmatprep.subr.bf16.mxu0 0
  %6357 = vmatpush1.bf16.xpose.msra.mxu0 %v6003
  %6358 = vmatprep.mubr.bf16.mxu0 0
  %6359 = vmatmul.mubr.bf16.gmra.mrb[0].mxu0 %v5811
  %v6360 = vpop.f32.mrb[0].mxu0
  %v6361 = vadd.f32 %v5117, %v6360
  %v6362 = vpop.f32.mrb[0].mxu0
  %v6363 = vadd.f32 %v5121, %v6362
  %v6364 = vpop.f32.mrb[0].mxu0
  %v6365 = vadd.f32 %v5117, %v6364
  %v6366 = vpop.f32.mrb[0].mxu0
  %v6367 = vadd.f32 %v5121, %v6366
  %6368 = vdwg.mxu0
  %6369 = vmatprep.subr.bf16.mxu0 0
  %6370 = vmatpush1.bf16.xpose.msra.mxu0 %v6006
  %6371 = vmatprep.subr.bf16.mxu0 0
  %6372 = vmatpush1.bf16.xpose.msra.mxu0 %v6009
  %6373 = vmatprep.subr.bf16.mxu0 0
  %6374 = vmatpush1.bf16.xpose.msra.mxu0 %v6012
  %6375 = vmatprep.subr.bf16.mxu0 0
  %6376 = vmatpush1.bf16.xpose.msra.mxu0 %v6015
  %6377 = vmatprep.subr.bf16.mxu0 0
  %6378 = vmatpush1.bf16.xpose.msra.mxu0 %v6018
  %6379 = vmatprep.subr.bf16.mxu0 0
  %6380 = vmatpush1.bf16.xpose.msra.mxu0 %v6021
  %6381 = vmatprep.subr.bf16.mxu0 0
  %6382 = vmatpush1.bf16.xpose.msra.mxu0 %v6024
  %6383 = vmatprep.subr.bf16.mxu0 0
  %6384 = vmatpush1.bf16.xpose.msra.mxu0 %v6027
  %6385 = vmatprep.subr.bf16.mxu0 0
  %6386 = vmatpush1.bf16.xpose.msra.mxu0 %v6030
  %6387 = vmatprep.subr.bf16.mxu0 0
  %6388 = vmatpush1.bf16.xpose.msra.mxu0 %v6033
  %6389 = vmatprep.subr.bf16.mxu0 0
  %6390 = vmatpush1.bf16.xpose.msra.mxu0 %v6036
  %6391 = vmatprep.subr.bf16.mxu0 0
  %6392 = vmatpush1.bf16.xpose.msra.mxu0 %v6039
  %6393 = vmatprep.subr.bf16.mxu0 0
  %6394 = vmatpush1.bf16.xpose.msra.mxu0 %v6042
  %6395 = vmatprep.subr.bf16.mxu0 0
  %6396 = vmatpush1.bf16.xpose.msra.mxu0 %v6045
  %6397 = vmatprep.subr.bf16.mxu0 0
  %6398 = vmatpush1.bf16.xpose.msra.mxu0 %v6048
  %6399 = vmatprep.subr.bf16.mxu0 0
  %6400 = vmatpush1.bf16.xpose.msra.mxu0 %v6051
  %6401 = vmatprep.mubr.bf16.mxu0 0
  %6402 = vmatmul.mubr.bf16.gmra.mrb[0].mxu0 %v5811
  %v6403 = vpop.f32.mrb[0].mxu0
  %v6404 = vadd.f32 %v5125, %v6403
  %v6405 = vpop.f32.mrb[0].mxu0
  %v6406 = vadd.f32 %v5129, %v6405
  %v6407 = vpop.f32.mrb[0].mxu0
  %v6408 = vadd.f32 %v5125, %v6407
  %v6409 = vpop.f32.mrb[0].mxu0
  %v6410 = vadd.f32 %v5129, %v6409
  %6411 = vdwg.mxu0
  %6412 = vmatprep.subr.bf16.mxu0 0
  %6413 = vmatpush1.bf16.xpose.msra.mxu0 %v6054
  %6414 = vmatprep.subr.bf16.mxu0 0
  %6415 = vmatpush1.bf16.xpose.msra.mxu0 %v6057
  %6416 = vmatprep.subr.bf16.mxu0 0
  %6417 = vmatpush1.bf16.xpose.msra.mxu0 %v6060
  %6418 = vmatprep.subr.bf16.mxu0 0
  %6419 = vmatpush1.bf16.xpose.msra.mxu0 %v6063
  %6420 = vmatprep.subr.bf16.mxu0 0
  %6421 = vmatpush1.bf16.xpose.msra.mxu0 %v6066
  %6422 = vmatprep.subr.bf16.mxu0 0
  %6423 = vmatpush1.bf16.xpose.msra.mxu0 %v6069
  %6424 = vmatprep.subr.bf16.mxu0 0
  %6425 = vmatpush1.bf16.xpose.msra.mxu0 %v6072
  %6426 = vmatprep.subr.bf16.mxu0 0
  %6427 = vmatpush1.bf16.xpose.msra.mxu0 %v6075
  %6428 = vmatprep.subr.bf16.mxu0 0
  %6429 = vmatpush1.bf16.xpose.msra.mxu0 %v6078
  %6430 = vmatprep.subr.bf16.mxu0 0
  %6431 = vmatpush1.bf16.xpose.msra.mxu0 %v6081
  %6432 = vmatprep.subr.bf16.mxu0 0
  %6433 = vmatpush1.bf16.xpose.msra.mxu0 %v6084
  %6434 = vmatprep.subr.bf16.mxu0 0
  %6435 = vmatpush1.bf16.xpose.msra.mxu0 %v6087
  %6436 = vmatprep.subr.bf16.mxu0 0
  %6437 = vmatpush1.bf16.xpose.msra.mxu0 %v6090
  %6438 = vmatprep.subr.bf16.mxu0 0
  %6439 = vmatpush1.bf16.xpose.msra.mxu0 %v6093
  %6440 = vmatprep.subr.bf16.mxu0 0
  %6441 = vmatpush1.bf16.xpose.msra.mxu0 %v6096
  %6442 = vmatprep.subr.bf16.mxu0 0
  %6443 = vmatpush1.bf16.xpose.msra.mxu0 %v6099
  %6444 = vmatprep.mubr.bf16.mxu0 0
  %6445 = vmatmul.mubr.bf16.gmra.mrb[0].mxu0 %v5811
  %v6446 = vpop.f32.mrb[0].mxu0
  %v6447 = vadd.f32 %v5133, %v6446
  %v6448 = vpop.f32.mrb[0].mxu0
  %v6449 = vadd.f32 %v5137, %v6448
  %v6450 = vpop.f32.mrb[0].mxu0
  %v6451 = vadd.f32 %v5133, %v6450
  %v6452 = vpop.f32.mrb[0].mxu0
  %v6453 = vadd.f32 %v5137, %v6452
  %6454 = vdwg.mxu0
  %6455 = vmatprep.subr.bf16.mxu0 0
  %6456 = vmatpush1.bf16.xpose.msra.mxu0 %v6102
  %6457 = vmatprep.subr.bf16.mxu0 0
  %6458 = vmatpush1.bf16.xpose.msra.mxu0 %v6105
  %6459 = vmatprep.subr.bf16.mxu0 0
  %6460 = vmatpush1.bf16.xpose.msra.mxu0 %v6108
  %6461 = vmatprep.subr.bf16.mxu0 0
  %6462 = vmatpush1.bf16.xpose.msra.mxu0 %v6111
  %6463 = vmatprep.subr.bf16.mxu0 0
  %6464 = vmatpush1.bf16.xpose.msra.mxu0 %v6114
  %6465 = vmatprep.subr.bf16.mxu0 0
  %6466 = vmatpush1.bf16.xpose.msra.mxu0 %v6117
  %6467 = vmatprep.subr.bf16.mxu0 0
  %6468 = vmatpush1.bf16.xpose.msra.mxu0 %v6120
  %6469 = vmatprep.subr.bf16.mxu0 0
  %6470 = vmatpush1.bf16.xpose.msra.mxu0 %v6123
  %6471 = vmatprep.subr.bf16.mxu0 0
  %6472 = vmatpush1.bf16.xpose.msra.mxu0 %v6126
  %6473 = vmatprep.subr.bf16.mxu0 0
  %6474 = vmatpush1.bf16.xpose.msra.mxu0 %v6129
  %6475 = vmatprep.subr.bf16.mxu0 0
  %6476 = vmatpush1.bf16.xpose.msra.mxu0 %v6132
  %6477 = vmatprep.subr.bf16.mxu0 0
  %6478 = vmatpush1.bf16.xpose.msra.mxu0 %v6135
  %6479 = vmatprep.subr.bf16.mxu0 0
  %6480 = vmatpush1.bf16.xpose.msra.mxu0 %v6138
  %6481 = vmatprep.subr.bf16.mxu0 0
  %6482 = vmatpush1.bf16.xpose.msra.mxu0 %v6141
  %6483 = vmatprep.subr.bf16.mxu0 0
  %6484 = vmatpush1.bf16.xpose.msra.mxu0 %v6144
  %6485 = vmatprep.subr.bf16.mxu0 0
  %6486 = vmatpush1.bf16.xpose.msra.mxu0 %v6147
  %6487 = vmatprep.mubr.bf16.mxu0 0
  %6488 = vmatmul.mubr.bf16.gmra.mrb[0].mxu0 %v5811
  %v6489 = vpop.f32.mrb[0].mxu0
  %v6490 = vadd.f32 %v5141, %v6489
  %v6491 = vpop.f32.mrb[0].mxu0
  %v6492 = vadd.f32 %v5145, %v6491
  %v6493 = vpop.f32.mrb[0].mxu0
  %v6494 = vadd.f32 %v5141, %v6493
  %v6495 = vpop.f32.mrb[0].mxu0
  %v6496 = vadd.f32 %v5145, %v6495
  %6497 = vdwg.mxu0
  %6498 = vmatprep.subr.bf16.mxu0 0
  %6499 = vmatpush1.bf16.xpose.msra.mxu0 %v6150
  %6500 = vmatprep.subr.bf16.mxu0 0
  %6501 = vmatpush1.bf16.xpose.msra.mxu0 %v6153
  %6502 = vmatprep.subr.bf16.mxu0 0
  %6503 = vmatpush1.bf16.xpose.msra.mxu0 %v6156
  %6504 = vmatprep.subr.bf16.mxu0 0
  %6505 = vmatpush1.bf16.xpose.msra.mxu0 %v6159
  %6506 = vmatprep.subr.bf16.mxu0 0
  %6507 = vmatpush1.bf16.xpose.msra.mxu0 %v6162
  %6508 = vmatprep.subr.bf16.mxu0 0
  %6509 = vmatpush1.bf16.xpose.msra.mxu0 %v6165
  %6510 = vmatprep.subr.bf16.mxu0 0
  %6511 = vmatpush1.bf16.xpose.msra.mxu0 %v6168
  %6512 = vmatprep.subr.bf16.mxu0 0
  %6513 = vmatpush1.bf16.xpose.msra.mxu0 %v6171
  %6514 = vmatprep.subr.bf16.mxu0 0
  %6515 = vmatpush1.bf16.xpose.msra.mxu0 %v6174
  %6516 = vmatprep.subr.bf16.mxu0 0
  %6517 = vmatpush1.bf16.xpose.msra.mxu0 %v6177
  %6518 = vmatprep.subr.bf16.mxu0 0
  %6519 = vmatpush1.bf16.xpose.msra.mxu0 %v6180
  %6520 = vmatprep.subr.bf16.mxu0 0
  %6521 = vmatpush1.bf16.xpose.msra.mxu0 %v6183
  %6522 = vmatprep.subr.bf16.mxu0 0
  %6523 = vmatpush1.bf16.xpose.msra.mxu0 %v6186
  %6524 = vmatprep.subr.bf16.mxu0 0
  %6525 = vmatpush1.bf16.xpose.msra.mxu0 %v6189
  %6526 = vmatprep.subr.bf16.mxu0 0
  %6527 = vmatpush1.bf16.xpose.msra.mxu0 %v6192
  %6528 = vmatprep.subr.bf16.mxu0 0
  %6529 = vmatpush1.bf16.xpose.msra.mxu0 %v6195
  %6530 = vmatprep.mubr.bf16.mxu0 0
  %6531 = vmatmul.mubr.bf16.gmra.mrb[0].mxu0 %v5811
  %v6532 = vpop.f32.mrb[0].mxu0
  %v6533 = vadd.f32 %v5149, %v6532
  %v6534 = vpop.f32.mrb[0].mxu0
  %v6535 = vadd.f32 %v5153, %v6534
  %v6536 = vpop.f32.mrb[0].mxu0
  %v6537 = vadd.f32 %v5149, %v6536
  %v6538 = vpop.f32.mrb[0].mxu0
  %v6539 = vadd.f32 %v5153, %v6538
  %6540 = vdwg.mxu0
  %v6541 = vmax.f32 %v6232, 0.0
  %v6542 = vmax.f32 %v6234, 0.0
  %v6543 = vmax.f32 %v6275, 0.0
  %v6544 = vmax.f32 %v6277, 0.0
  %v6545 = vmax.f32 %v6318, 0.0
  %v6546 = vmax.f32 %v6320, 0.0
  %v6547 = vmax.f32 %v6361, 0.0
  %v6548 = vmax.f32 %v6363, 0.0
  %v6549 = vmax.f32 %v6404, 0.0
  %v6550 = vmax.f32 %v6406, 0.0
  %v6551 = vmax.f32 %v6447, 0.0
  %v6552 = vmax.f32 %v6449, 0.0
  %v6553 = vmax.f32 %v6490, 0.0
  %v6554 = vmax.f32 %v6492, 0.0
  %v6555 = vmax.f32 %v6533, 0.0
  %v6556 = vmax.f32 %v6535, 0.0
  %v6557 = vmax.f32 %v6236, 0.0
  %v6558 = vmax.f32 %v6238, 0.0
  %v6559 = vmax.f32 %v6279, 0.0
  %v6560 = vmax.f32 %v6281, 0.0
  %v6561 = vmax.f32 %v6322, 0.0
  %v6562 = vmax.f32 %v6324, 0.0
  %v6563 = vmax.f32 %v6365, 0.0
  %v6564 = vmax.f32 %v6367, 0.0
  %v6565 = vmax.f32 %v6408, 0.0
  %v6566 = vmax.f32 %v6410, 0.0
  %v6567 = vmax.f32 %v6451, 0.0
  %v6568 = vmax.f32 %v6453, 0.0
  %v6569 = vmax.f32 %v6494, 0.0
  %v6570 = vmax.f32 %v6496, 0.0
  %v6571 = vmax.f32 %v6537, 0.0
  %v6572 = vmax.f32 %v6539, 0.0
  %s6573 = scalar_lea.vmem %s9, 256
  %v6574 = vld [vmem:[%s6573] sm:$0xff]
  %v6575 = vld [vmem:[%s6573 + $0x8] sm:$0xff]
  %v6576 = vld [vmem:[%s6573 + $0x10] sm:$0xff]
  %v6577 = vld [vmem:[%s6573 + $0x18] sm:$0xff]
  %v6578 = vld [vmem:[%s6573 + $0x20] sm:$0xff]
  %v6579 = vld [vmem:[%s6573 + $0x28] sm:$0xff]
  %v6580 = vld [vmem:[%s6573 + $0x30] sm:$0xff]
  %v6581 = vld [vmem:[%s6573 + $0x38] sm:$0xff]
  %v6582 = vld [vmem:[%s6573 + $0x40] sm:$0xff]
  %v6583 = vld [vmem:[%s6573 + $0x48] sm:$0xff]
  %v6584 = vld [vmem:[%s6573 + $0x50] sm:$0xff]
  %v6585 = vld [vmem:[%s6573 + $0x58] sm:$0xff]
  %v6586 = vld [vmem:[%s6573 + $0x60] sm:$0xff]
  %v6587 = vld [vmem:[%s6573 + $0x68] sm:$0xff]
  %v6588 = vld [vmem:[%s6573 + $0x70] sm:$0xff]
  %v6589 = vld [vmem:[%s6573 + $0x78] sm:$0xff]
  %v6590 = vld [vmem:[%s6573 + $0x80] sm:$0xff]
  %v6591 = vld [vmem:[%s6573 + $0x88] sm:$0xff]
  %v6592 = vld [vmem:[%s6573 + $0x90] sm:$0xff]
  %v6593 = vld [vmem:[%s6573 + $0x98] sm:$0xff]
  %v6594 = vld [vmem:[%s6573 + $0xa0] sm:$0xff]
  %v6595 = vld [vmem:[%s6573 + $0xa8] sm:$0xff]
  %v6596 = vld [vmem:[%s6573 + $0xb0] sm:$0xff]
  %v6597 = vld [vmem:[%s6573 + $0xb8] sm:$0xff]
  %v6598 = vld [vmem:[%s6573 + $0xc0] sm:$0xff]
  %v6599 = vld [vmem:[%s6573 + $0xc8] sm:$0xff]
  %v6600 = vld [vmem:[%s6573 + $0xd0] sm:$0xff]
  %v6601 = vld [vmem:[%s6573 + $0xd8] sm:$0xff]
  %v6602 = vld [vmem:[%s6573 + $0xe0] sm:$0xff]
  %v6603 = vld [vmem:[%s6573 + $0xe8] sm:$0xff]
  %v6604 = vld [vmem:[%s6573 + $0xf0] sm:$0xff]
  %v6605 = vld [vmem:[%s6573 + $0xf8] sm:$0xff]
  %v6606 = vpack.c.bf16 %v6557, %v6541
  %v6607 = vpack.c.bf16 %v6558, %v6542
  %v6608 = vpack.c.bf16 %v6559, %v6543
  %v6609 = vpack.c.bf16 %v6560, %v6544
  %v6610 = vpack.c.bf16 %v6561, %v6545
  %v6611 = vpack.c.bf16 %v6562, %v6546
  %v6612 = vpack.c.bf16 %v6563, %v6547
  %v6613 = vpack.c.bf16 %v6564, %v6548
  %v6614 = vpack.c.bf16 %v6565, %v6549
  %v6615 = vpack.c.bf16 %v6566, %v6550
  %v6616 = vpack.c.bf16 %v6567, %v6551
  %v6617 = vpack.c.bf16 %v6568, %v6552
  %v6618 = vpack.c.bf16 %v6569, %v6553
  %v6619 = vpack.c.bf16 %v6570, %v6554
  %v6620 = vpack.c.bf16 %v6571, %v6555
  %v6621 = vpack.c.bf16 %v6572, %v6556
  %v6622 = vlaneseq
  %v6623 = vshrl.u32 %v6622, 7
  %v6624 = vsub.s32 6, %v6623
  %v6625 = vrot.slane %v3675, %v6624
  %v6658 = vunpack.c.l.b16 %v6574
  %v6659 = vunpack.c.h.b16 %v6574
  %v6660 = vunpack.c.l.b16 %v6575
  %v6661 = vunpack.c.h.b16 %v6575
  %v6662 = vunpack.c.l.b16 %v6576
  %v6663 = vunpack.c.h.b16 %v6576
  %v6664 = vunpack.c.l.b16 %v6577
  %v6665 = vunpack.c.h.b16 %v6577
  %v6666 = vunpack.c.l.b16 %v6578
  %v6667 = vunpack.c.h.b16 %v6578
  %v6668 = vunpack.c.l.b16 %v6579
  %v6669 = vunpack.c.h.b16 %v6579
  %v6670 = vunpack.c.l.b16 %v6580
  %v6671 = vunpack.c.h.b16 %v6580
  %v6672 = vunpack.c.l.b16 %v6581
  %v6673 = vunpack.c.h.b16 %v6581
  %v6674 = vunpack.c.l.b16 %v6582
  %v6675 = vunpack.c.h.b16 %v6582
  %v6676 = vunpack.c.l.b16 %v6583
  %v6677 = vunpack.c.h.b16 %v6583
  %v6678 = vunpack.c.l.b16 %v6584
  %v6679 = vunpack.c.h.b16 %v6584
  %v6680 = vunpack.c.l.b16 %v6585
  %v6681 = vunpack.c.h.b16 %v6585
  %v6682 = vunpack.c.l.b16 %v6586
  %v6683 = vunpack.c.h.b16 %v6586
  %v6684 = vunpack.c.l.b16 %v6587
  %v6685 = vunpack.c.h.b16 %v6587
  %v6686 = vunpack.c.l.b16 %v6588
  %v6687 = vunpack.c.h.b16 %v6588
  %v6688 = vunpack.c.l.b16 %v6589
  %v6689 = vunpack.c.h.b16 %v6589
  %v6690 = vunpack.c.l.b16 %v6590
  %v6691 = vunpack.c.h.b16 %v6590
  %v6692 = vunpack.c.l.b16 %v6591
  %v6693 = vunpack.c.h.b16 %v6591
  %v6694 = vunpack.c.l.b16 %v6592
  %v6695 = vunpack.c.h.b16 %v6592
  %v6696 = vunpack.c.l.b16 %v6593
  %v6697 = vunpack.c.h.b16 %v6593
  %v6698 = vunpack.c.l.b16 %v6594
  %v6699 = vunpack.c.h.b16 %v6594
  %v6700 = vunpack.c.l.b16 %v6595
  %v6701 = vunpack.c.h.b16 %v6595
  %v6702 = vunpack.c.l.b16 %v6596
  %v6703 = vunpack.c.h.b16 %v6596
  %v6704 = vunpack.c.l.b16 %v6597
  %v6705 = vunpack.c.h.b16 %v6597
  %v6706 = vunpack.c.l.b16 %v6598
  %v6707 = vunpack.c.h.b16 %v6598
  %v6708 = vunpack.c.l.b16 %v6599
  %v6709 = vunpack.c.h.b16 %v6599
  %v6710 = vunpack.c.l.b16 %v6600
  %v6711 = vunpack.c.h.b16 %v6600
  %v6712 = vunpack.c.l.b16 %v6601
  %v6713 = vunpack.c.h.b16 %v6601
  %v6714 = vunpack.c.l.b16 %v6602
  %v6715 = vunpack.c.h.b16 %v6602
  %v6716 = vunpack.c.l.b16 %v6603
  %v6717 = vunpack.c.h.b16 %v6603
  %v6718 = vunpack.c.l.b16 %v6604
  %v6719 = vunpack.c.h.b16 %v6604
  %v6720 = vunpack.c.l.b16 %v6605
  %v6721 = vunpack.c.h.b16 %v6605
  %v6722 = vpack.c.b16 %v6674, %v6658
  %v6723 = vpack.c.b16 %v6675, %v6659
  %v6724 = vpack.c.b16 %v6676, %v6660
  %v6725 = vpack.c.b16 %v6677, %v6661
  %v6726 = vpack.c.b16 %v6678, %v6662
  %v6727 = vpack.c.b16 %v6679, %v6663
  %v6728 = vpack.c.b16 %v6680, %v6664
  %v6729 = vpack.c.b16 %v6681, %v6665
  %v6730 = vpack.c.b16 %v6682, %v6666
  %v6731 = vpack.c.b16 %v6683, %v6667
  %v6732 = vpack.c.b16 %v6684, %v6668
  %v6733 = vpack.c.b16 %v6685, %v6669
  %v6734 = vpack.c.b16 %v6686, %v6670
  %v6735 = vpack.c.b16 %v6687, %v6671
  %v6736 = vpack.c.b16 %v6688, %v6672
  %v6737 = vpack.c.b16 %v6689, %v6673
  %v6738 = vpack.c.b16 %v6706, %v6690
  %v6739 = vpack.c.b16 %v6707, %v6691
  %v6740 = vpack.c.b16 %v6708, %v6692
  %v6741 = vpack.c.b16 %v6709, %v6693
  %v6742 = vpack.c.b16 %v6710, %v6694
  %v6743 = vpack.c.b16 %v6711, %v6695
  %v6744 = vpack.c.b16 %v6712, %v6696
  %v6745 = vpack.c.b16 %v6713, %v6697
  %v6746 = vpack.c.b16 %v6714, %v6698
  %v6747 = vpack.c.b16 %v6715, %v6699
  %v6748 = vpack.c.b16 %v6716, %v6700
  %v6749 = vpack.c.b16 %v6717, %v6701
  %v6750 = vpack.c.b16 %v6718, %v6702
  %v6751 = vpack.c.b16 %v6719, %v6703
  %v6752 = vpack.c.b16 %v6720, %v6704
  %v6753 = vpack.c.b16 %v6721, %v6705
  %6786 = vmatprep.subr.bf16.mxu0 %v6723
  %6787 = vmatpush1.bf16.xpose.msra.mxu0 %v6722
  %6788 = vmatprep.subr.bf16.mxu0 %v6739
  %6789 = vmatpush1.bf16.xpose.msra.mxu0 %v6738
  %6790 = vmatprep.subr.bf16.mxu0 0
  %6791 = vmatpush1.bf16.xpose.msra.mxu0 0
  %6792 = vmatprep.subr.bf16.mxu0 0
  %6793 = vmatpush1.bf16.xpose.msra.mxu0 0
  %6794 = vmatprep.subr.bf16.mxu0 0
  %6795 = vmatpush1.bf16.xpose.msra.mxu0 0
  %6796 = vmatprep.subr.bf16.mxu0 0
  %6797 = vmatpush1.bf16.xpose.msra.mxu0 0
  %6798 = vmatprep.subr.bf16.mxu0 0
  %6799 = vmatpush1.bf16.xpose.msra.mxu0 0
  %6800 = vmatprep.subr.bf16.mxu0 0
  %6801 = vmatpush1.bf16.xpose.msra.mxu0 0
  %6802 = vmatprep.subr.bf16.mxu0 0
  %6803 = vmatpush1.bf16.xpose.msra.mxu0 0
  %6804 = vmatprep.subr.bf16.mxu0 0
  %6805 = vmatpush1.bf16.xpose.msra.mxu0 0
  %6806 = vmatprep.subr.bf16.mxu0 0
  %6807 = vmatpush1.bf16.xpose.msra.mxu0 0
  %6808 = vmatprep.subr.bf16.mxu0 0
  %6809 = vmatpush1.bf16.xpose.msra.mxu0 0
  %6810 = vmatprep.subr.bf16.mxu0 0
  %6811 = vmatpush1.bf16.xpose.msra.mxu0 0
  %6812 = vmatprep.subr.bf16.mxu0 0
  %6813 = vmatpush1.bf16.xpose.msra.mxu0 0
  %6814 = vmatprep.subr.bf16.mxu0 0
  %6815 = vmatpush1.bf16.xpose.msra.mxu0 0
  %6816 = vmatprep.subr.bf16.mxu0 0
  %6817 = vmatpush1.bf16.xpose.msra.mxu0 0
  %6818 = vmatprep.mubr.bf16.mxu0 %v6607
  %6819 = vmatmul.mubr.bf16.gmra.mrb[0].mxu0 %v6606
  %v6820 = vpop.f32.mrb[0].mxu0
  %v6821 = vadd.f32 %v6625, %v6820
  %v6822 = vpop.f32.mrb[0].mxu0
  %v6823 = vpop.f32.mrb[0].mxu0
  %v6824 = vadd.f32 %v6625, %v6823
  %v6825 = vpop.f32.mrb[0].mxu0
  %6826 = vdwg.mxu0
  %6827 = vmatprep.subr.bf16.mxu0 %v6725
  %6828 = vmatpush1.bf16.xpose.msra.mxu0 %v6724
  %6829 = vmatprep.subr.bf16.mxu0 %v6741
  %6830 = vmatpush1.bf16.xpose.msra.mxu0 %v6740
  %6831 = vmatprep.subr.bf16.mxu0 0
  %6832 = vmatpush1.bf16.xpose.msra.mxu0 0
  %6833 = vmatprep.subr.bf16.mxu0 0
  %6834 = vmatpush1.bf16.xpose.msra.mxu0 0
  %6835 = vmatprep.subr.bf16.mxu0 0
  %6836 = vmatpush1.bf16.xpose.msra.mxu0 0
  %6837 = vmatprep.subr.bf16.mxu0 0
  %6838 = vmatpush1.bf16.xpose.msra.mxu0 0
  %6839 = vmatprep.subr.bf16.mxu0 0
  %6840 = vmatpush1.bf16.xpose.msra.mxu0 0
  %6841 = vmatprep.subr.bf16.mxu0 0
  %6842 = vmatpush1.bf16.xpose.msra.mxu0 0
  %6843 = vmatprep.subr.bf16.mxu0 0
  %6844 = vmatpush1.bf16.xpose.msra.mxu0 0
  %6845 = vmatprep.subr.bf16.mxu0 0
  %6846 = vmatpush1.bf16.xpose.msra.mxu0 0
  %6847 = vmatprep.subr.bf16.mxu0 0
  %6848 = vmatpush1.bf16.xpose.msra.mxu0 0
  %6849 = vmatprep.subr.bf16.mxu0 0
  %6850 = vmatpush1.bf16.xpose.msra.mxu0 0
  %6851 = vmatprep.subr.bf16.mxu0 0
  %6852 = vmatpush1.bf16.xpose.msra.mxu0 0
  %6853 = vmatprep.subr.bf16.mxu0 0
  %6854 = vmatpush1.bf16.xpose.msra.mxu0 0
  %6855 = vmatprep.subr.bf16.mxu0 0
  %6856 = vmatpush1.bf16.xpose.msra.mxu0 0
  %6857 = vmatprep.subr.bf16.mxu0 0
  %6858 = vmatpush1.bf16.xpose.msra.mxu0 0
  %6859 = vmatprep.mubr.bf16.mxu0 %v6609
  %6860 = vmatmul.mubr.bf16.gmra.mrb[0].mxu0 %v6608
  %v6861 = vpop.f32.mrb[0].mxu0
  %v6862 = vadd.f32 %v6821, %v6861
  %v6863 = vpop.f32.mrb[0].mxu0
  %v6864 = vpop.f32.mrb[0].mxu0
  %v6865 = vadd.f32 %v6824, %v6864
  %v6866 = vpop.f32.mrb[0].mxu0
  %6867 = vdwg.mxu0
  %6868 = vmatprep.subr.bf16.mxu0 %v6727
  %6869 = vmatpush1.bf16.xpose.msra.mxu0 %v6726
  %6870 = vmatprep.subr.bf16.mxu0 %v6743
  %6871 = vmatpush1.bf16.xpose.msra.mxu0 %v6742
  %6872 = vmatprep.subr.bf16.mxu0 0
  %6873 = vmatpush1.bf16.xpose.msra.mxu0 0
  %6874 = vmatprep.subr.bf16.mxu0 0
  %6875 = vmatpush1.bf16.xpose.msra.mxu0 0
  %6876 = vmatprep.subr.bf16.mxu0 0
  %6877 = vmatpush1.bf16.xpose.msra.mxu0 0
  %6878 = vmatprep.subr.bf16.mxu0 0
  %6879 = vmatpush1.bf16.xpose.msra.mxu0 0
  %6880 = vmatprep.subr.bf16.mxu0 0
  %6881 = vmatpush1.bf16.xpose.msra.mxu0 0
  %6882 = vmatprep.subr.bf16.mxu0 0
  %6883 = vmatpush1.bf16.xpose.msra.mxu0 0
  %6884 = vmatprep.subr.bf16.mxu0 0
  %6885 = vmatpush1.bf16.xpose.msra.mxu0 0
  %6886 = vmatprep.subr.bf16.mxu0 0
  %6887 = vmatpush1.bf16.xpose.msra.mxu0 0
  %6888 = vmatprep.subr.bf16.mxu0 0
  %6889 = vmatpush1.bf16.xpose.msra.mxu0 0
  %6890 = vmatprep.subr.bf16.mxu0 0
  %6891 = vmatpush1.bf16.xpose.msra.mxu0 0
  %6892 = vmatprep.subr.bf16.mxu0 0
  %6893 = vmatpush1.bf16.xpose.msra.mxu0 0
  %6894 = vmatprep.subr.bf16.mxu0 0
  %6895 = vmatpush1.bf16.xpose.msra.mxu0 0
  %6896 = vmatprep.subr.bf16.mxu0 0
  %6897 = vmatpush1.bf16.xpose.msra.mxu0 0
  %6898 = vmatprep.subr.bf16.mxu0 0
  %6899 = vmatpush1.bf16.xpose.msra.mxu0 0
  %6900 = vmatprep.mubr.bf16.mxu0 %v6611
  %6901 = vmatmul.mubr.bf16.gmra.mrb[0].mxu0 %v6610
  %v6902 = vpop.f32.mrb[0].mxu0
  %v6903 = vadd.f32 %v6862, %v6902
  %v6904 = vpop.f32.mrb[0].mxu0
  %v6905 = vpop.f32.mrb[0].mxu0
  %v6906 = vadd.f32 %v6865, %v6905
  %v6907 = vpop.f32.mrb[0].mxu0
  %6908 = vdwg.mxu0
  %6909 = vmatprep.subr.bf16.mxu0 %v6729
  %6910 = vmatpush1.bf16.xpose.msra.mxu0 %v6728
  %6911 = vmatprep.subr.bf16.mxu0 %v6745
  %6912 = vmatpush1.bf16.xpose.msra.mxu0 %v6744
  %6913 = vmatprep.subr.bf16.mxu0 0
  %6914 = vmatpush1.bf16.xpose.msra.mxu0 0
  %6915 = vmatprep.subr.bf16.mxu0 0
  %6916 = vmatpush1.bf16.xpose.msra.mxu0 0
  %6917 = vmatprep.subr.bf16.mxu0 0
  %6918 = vmatpush1.bf16.xpose.msra.mxu0 0
  %6919 = vmatprep.subr.bf16.mxu0 0
  %6920 = vmatpush1.bf16.xpose.msra.mxu0 0
  %6921 = vmatprep.subr.bf16.mxu0 0
  %6922 = vmatpush1.bf16.xpose.msra.mxu0 0
  %6923 = vmatprep.subr.bf16.mxu0 0
  %6924 = vmatpush1.bf16.xpose.msra.mxu0 0
  %6925 = vmatprep.subr.bf16.mxu0 0
  %6926 = vmatpush1.bf16.xpose.msra.mxu0 0
  %6927 = vmatprep.subr.bf16.mxu0 0
  %6928 = vmatpush1.bf16.xpose.msra.mxu0 0
  %6929 = vmatprep.subr.bf16.mxu0 0
  %6930 = vmatpush1.bf16.xpose.msra.mxu0 0
  %6931 = vmatprep.subr.bf16.mxu0 0
  %6932 = vmatpush1.bf16.xpose.msra.mxu0 0
  %6933 = vmatprep.subr.bf16.mxu0 0
  %6934 = vmatpush1.bf16.xpose.msra.mxu0 0
  %6935 = vmatprep.subr.bf16.mxu0 0
  %6936 = vmatpush1.bf16.xpose.msra.mxu0 0
  %6937 = vmatprep.subr.bf16.mxu0 0
  %6938 = vmatpush1.bf16.xpose.msra.mxu0 0
  %6939 = vmatprep.subr.bf16.mxu0 0
  %6940 = vmatpush1.bf16.xpose.msra.mxu0 0
  %6941 = vmatprep.mubr.bf16.mxu0 %v6613
  %6942 = vmatmul.mubr.bf16.gmra.mrb[0].mxu0 %v6612
  %v6943 = vpop.f32.mrb[0].mxu0
  %v6944 = vadd.f32 %v6903, %v6943
  %v6945 = vpop.f32.mrb[0].mxu0
  %v6946 = vpop.f32.mrb[0].mxu0
  %v6947 = vadd.f32 %v6906, %v6946
  %v6948 = vpop.f32.mrb[0].mxu0
  %6949 = vdwg.mxu0
  %6950 = vmatprep.subr.bf16.mxu0 %v6731
  %6951 = vmatpush1.bf16.xpose.msra.mxu0 %v6730
  %6952 = vmatprep.subr.bf16.mxu0 %v6747
  %6953 = vmatpush1.bf16.xpose.msra.mxu0 %v6746
  %6954 = vmatprep.subr.bf16.mxu0 0
  %6955 = vmatpush1.bf16.xpose.msra.mxu0 0
  %6956 = vmatprep.subr.bf16.mxu0 0
  %6957 = vmatpush1.bf16.xpose.msra.mxu0 0
  %6958 = vmatprep.subr.bf16.mxu0 0
  %6959 = vmatpush1.bf16.xpose.msra.mxu0 0
  %6960 = vmatprep.subr.bf16.mxu0 0
  %6961 = vmatpush1.bf16.xpose.msra.mxu0 0
  %6962 = vmatprep.subr.bf16.mxu0 0
  %6963 = vmatpush1.bf16.xpose.msra.mxu0 0
  %6964 = vmatprep.subr.bf16.mxu0 0
  %6965 = vmatpush1.bf16.xpose.msra.mxu0 0
  %6966 = vmatprep.subr.bf16.mxu0 0
  %6967 = vmatpush1.bf16.xpose.msra.mxu0 0
  %6968 = vmatprep.subr.bf16.mxu0 0
  %6969 = vmatpush1.bf16.xpose.msra.mxu0 0
  %6970 = vmatprep.subr.bf16.mxu0 0
  %6971 = vmatpush1.bf16.xpose.msra.mxu0 0
  %6972 = vmatprep.subr.bf16.mxu0 0
  %6973 = vmatpush1.bf16.xpose.msra.mxu0 0
  %6974 = vmatprep.subr.bf16.mxu0 0
  %6975 = vmatpush1.bf16.xpose.msra.mxu0 0
  %6976 = vmatprep.subr.bf16.mxu0 0
  %6977 = vmatpush1.bf16.xpose.msra.mxu0 0
  %6978 = vmatprep.subr.bf16.mxu0 0
  %6979 = vmatpush1.bf16.xpose.msra.mxu0 0
  %6980 = vmatprep.subr.bf16.mxu0 0
  %6981 = vmatpush1.bf16.xpose.msra.mxu0 0
  %6982 = vmatprep.mubr.bf16.mxu0 %v6615
  %6983 = vmatmul.mubr.bf16.gmra.mrb[0].mxu0 %v6614
  %v6984 = vpop.f32.mrb[0].mxu0
  %v6985 = vadd.f32 %v6944, %v6984
  %v6986 = vpop.f32.mrb[0].mxu0
  %v6987 = vpop.f32.mrb[0].mxu0
  %v6988 = vadd.f32 %v6947, %v6987
  %v6989 = vpop.f32.mrb[0].mxu0
  %6990 = vdwg.mxu0
  %6991 = vmatprep.subr.bf16.mxu0 %v6733
  %6992 = vmatpush1.bf16.xpose.msra.mxu0 %v6732
  %6993 = vmatprep.subr.bf16.mxu0 %v6749
  %6994 = vmatpush1.bf16.xpose.msra.mxu0 %v6748
  %6995 = vmatprep.subr.bf16.mxu0 0
  %6996 = vmatpush1.bf16.xpose.msra.mxu0 0
  %6997 = vmatprep.subr.bf16.mxu0 0
  %6998 = vmatpush1.bf16.xpose.msra.mxu0 0
  %6999 = vmatprep.subr.bf16.mxu0 0
  %7000 = vmatpush1.bf16.xpose.msra.mxu0 0
  %7001 = vmatprep.subr.bf16.mxu0 0
  %7002 = vmatpush1.bf16.xpose.msra.mxu0 0
  %7003 = vmatprep.subr.bf16.mxu0 0
  %7004 = vmatpush1.bf16.xpose.msra.mxu0 0
  %7005 = vmatprep.subr.bf16.mxu0 0
  %7006 = vmatpush1.bf16.xpose.msra.mxu0 0
  %7007 = vmatprep.subr.bf16.mxu0 0
  %7008 = vmatpush1.bf16.xpose.msra.mxu0 0
  %7009 = vmatprep.subr.bf16.mxu0 0
  %7010 = vmatpush1.bf16.xpose.msra.mxu0 0
  %7011 = vmatprep.subr.bf16.mxu0 0
  %7012 = vmatpush1.bf16.xpose.msra.mxu0 0
  %7013 = vmatprep.subr.bf16.mxu0 0
  %7014 = vmatpush1.bf16.xpose.msra.mxu0 0
  %7015 = vmatprep.subr.bf16.mxu0 0
  %7016 = vmatpush1.bf16.xpose.msra.mxu0 0
  %7017 = vmatprep.subr.bf16.mxu0 0
  %7018 = vmatpush1.bf16.xpose.msra.mxu0 0
  %7019 = vmatprep.subr.bf16.mxu0 0
  %7020 = vmatpush1.bf16.xpose.msra.mxu0 0
  %7021 = vmatprep.subr.bf16.mxu0 0
  %7022 = vmatpush1.bf16.xpose.msra.mxu0 0
  %7023 = vmatprep.mubr.bf16.mxu0 %v6617
  %7024 = vmatmul.mubr.bf16.gmra.mrb[0].mxu0 %v6616
  %v7025 = vpop.f32.mrb[0].mxu0
  %v7026 = vadd.f32 %v6985, %v7025
  %v7027 = vpop.f32.mrb[0].mxu0
  %v7028 = vpop.f32.mrb[0].mxu0
  %v7029 = vadd.f32 %v6988, %v7028
  %v7030 = vpop.f32.mrb[0].mxu0
  %7031 = vdwg.mxu0
  %7032 = vmatprep.subr.bf16.mxu0 %v6735
  %7033 = vmatpush1.bf16.xpose.msra.mxu0 %v6734
  %7034 = vmatprep.subr.bf16.mxu0 %v6751
  %7035 = vmatpush1.bf16.xpose.msra.mxu0 %v6750
  %7036 = vmatprep.subr.bf16.mxu0 0
  %7037 = vmatpush1.bf16.xpose.msra.mxu0 0
  %7038 = vmatprep.subr.bf16.mxu0 0
  %7039 = vmatpush1.bf16.xpose.msra.mxu0 0
  %7040 = vmatprep.subr.bf16.mxu0 0
  %7041 = vmatpush1.bf16.xpose.msra.mxu0 0
  %7042 = vmatprep.subr.bf16.mxu0 0
  %7043 = vmatpush1.bf16.xpose.msra.mxu0 0
  %7044 = vmatprep.subr.bf16.mxu0 0
  %7045 = vmatpush1.bf16.xpose.msra.mxu0 0
  %7046 = vmatprep.subr.bf16.mxu0 0
  %7047 = vmatpush1.bf16.xpose.msra.mxu0 0
  %7048 = vmatprep.subr.bf16.mxu0 0
  %7049 = vmatpush1.bf16.xpose.msra.mxu0 0
  %7050 = vmatprep.subr.bf16.mxu0 0
  %7051 = vmatpush1.bf16.xpose.msra.mxu0 0
  %7052 = vmatprep.subr.bf16.mxu0 0
  %7053 = vmatpush1.bf16.xpose.msra.mxu0 0
  %7054 = vmatprep.subr.bf16.mxu0 0
  %7055 = vmatpush1.bf16.xpose.msra.mxu0 0
  %7056 = vmatprep.subr.bf16.mxu0 0
  %7057 = vmatpush1.bf16.xpose.msra.mxu0 0
  %7058 = vmatprep.subr.bf16.mxu0 0
  %7059 = vmatpush1.bf16.xpose.msra.mxu0 0
  %7060 = vmatprep.subr.bf16.mxu0 0
  %7061 = vmatpush1.bf16.xpose.msra.mxu0 0
  %7062 = vmatprep.subr.bf16.mxu0 0
  %7063 = vmatpush1.bf16.xpose.msra.mxu0 0
  %7064 = vmatprep.mubr.bf16.mxu0 %v6619
  %7065 = vmatmul.mubr.bf16.gmra.mrb[0].mxu0 %v6618
  %v7066 = vpop.f32.mrb[0].mxu0
  %v7067 = vadd.f32 %v7026, %v7066
  %v7068 = vpop.f32.mrb[0].mxu0
  %v7069 = vpop.f32.mrb[0].mxu0
  %v7070 = vadd.f32 %v7029, %v7069
  %v7071 = vpop.f32.mrb[0].mxu0
  %7072 = vdwg.mxu0
  %7073 = vmatprep.subr.bf16.mxu0 %v6737
  %7074 = vmatpush1.bf16.xpose.msra.mxu0 %v6736
  %7075 = vmatprep.subr.bf16.mxu0 %v6753
  %7076 = vmatpush1.bf16.xpose.msra.mxu0 %v6752
  %7077 = vmatprep.subr.bf16.mxu0 0
  %7078 = vmatpush1.bf16.xpose.msra.mxu0 0
  %7079 = vmatprep.subr.bf16.mxu0 0
  %7080 = vmatpush1.bf16.xpose.msra.mxu0 0
  %7081 = vmatprep.subr.bf16.mxu0 0
  %7082 = vmatpush1.bf16.xpose.msra.mxu0 0
  %7083 = vmatprep.subr.bf16.mxu0 0
  %7084 = vmatpush1.bf16.xpose.msra.mxu0 0
  %7085 = vmatprep.subr.bf16.mxu0 0
  %7086 = vmatpush1.bf16.xpose.msra.mxu0 0
  %7087 = vmatprep.subr.bf16.mxu0 0
  %7088 = vmatpush1.bf16.xpose.msra.mxu0 0
  %7089 = vmatprep.subr.bf16.mxu0 0
  %7090 = vmatpush1.bf16.xpose.msra.mxu0 0
  %7091 = vmatprep.subr.bf16.mxu0 0
  %7092 = vmatpush1.bf16.xpose.msra.mxu0 0
  %7093 = vmatprep.subr.bf16.mxu0 0
  %7094 = vmatpush1.bf16.xpose.msra.mxu0 0
  %7095 = vmatprep.subr.bf16.mxu0 0
  %7096 = vmatpush1.bf16.xpose.msra.mxu0 0
  %7097 = vmatprep.subr.bf16.mxu0 0
  %7098 = vmatpush1.bf16.xpose.msra.mxu0 0
  %7099 = vmatprep.subr.bf16.mxu0 0
  %7100 = vmatpush1.bf16.xpose.msra.mxu0 0
  %7101 = vmatprep.subr.bf16.mxu0 0
  %7102 = vmatpush1.bf16.xpose.msra.mxu0 0
  %7103 = vmatprep.subr.bf16.mxu0 0
  %7104 = vmatpush1.bf16.xpose.msra.mxu0 0
  %7105 = vmatprep.mubr.bf16.mxu0 %v6621
  %7106 = vmatmul.mubr.bf16.gmra.mrb[0].mxu0 %v6620
  %v7107 = vpop.f32.mrb[0].mxu0
  %v7108 = vadd.f32 %v7067, %v7107
  %v7109 = vpop.f32.mrb[0].mxu0
  %v7110 = vpop.f32.mrb[0].mxu0
  %v7111 = vadd.f32 %v7070, %v7110
  %v7112 = vpop.f32.mrb[0].mxu0
  %7113 = vdwg.mxu0
  %v7114 = vadd.f32 %v4828, %v7108
  %v7115 = vadd.f32 %v4829, %v7111
  %v7116 = vsel %vm117, %v7114, 0.0
  %7117 = vadd.xlane.f32.xlu0 %v7116
  %v7118 = vpop.xlane.xlu0 %7117
  %v7119 = vsel %vm117, %v7115, 0.0
  %7120 = vadd.xlane.f32.xlu0 %v7119
  %v7121 = vpop.xlane.xlu0 %7120
  %v7122 = vmul.f32 %v7118, %v124
  %v7123 = vmul.f32 %v7121, %v124
  %v7124 = vsub.f32 %v7114, %v7122
  %v7125 = vsub.f32 %v7115, %v7123
  %v7126 = vmul.f32 %v7124, %v7124
  %v7127 = vmul.f32 %v7125, %v7125
  %v7128 = vsel %vm117, %v7126, 0.0
  %7129 = vadd.xlane.f32.xlu0 %v7128
  %v7130 = vpop.xlane.xlu0 %7129
  %v7131 = vsel %vm117, %v7127, 0.0
  %7132 = vadd.xlane.f32.xlu0 %v7131
  %v7133 = vpop.xlane.xlu0 %7132
  %v7134 = vmul.f32 %v7130, %v124
  %v7135 = vmul.f32 %v7133, %v124
  %v7136 = vadd.f32 %v7134, 1e-05
  %v7137 = vadd.f32 %v7135, 1e-05
  %v7138 = vrsqrt.pop %v7136
  %v7139 = vrsqrt.pop %v7137
  %v7140 = vmul.f32 %v7124, %v7138
  %v7141 = vmul.f32 %v7125, %v7139
  %v7142 = vlaneseq
  %v7143 = vshrl.u32 %v7142, 7
  %v7144 = vsub.s32 7, %v7143
  %v7145 = vrot.slane %v3675, %v7144
  %v7146 = vmul.f32 %v7140, %v7145
  %v7147 = vmul.f32 %v7141, %v7145
  %v7148 = vlaneseq
  %v7149 = vshrl.u32 %v7148, 7
  %v7150 = vsub.s32 0, %v7149
  %v7151 = vrot.slane %v3676, %v7150
  %v7152 = vadd.f32 %v7146, %v7151
  %v7153 = vadd.f32 %v7147, %v7151
  %v7154 = vld [vmem:[%s12] sm:$0x3]
  %v7155 = vlaneseq
  %v7156 = vshrl.u32 %v7155, 7
  %v7157 = vsub.s32 0, %v7156
  %v7158 = vrot.slane %v7154, %v7157
  %v7159 = vmul.f32 %v7152, %v7158
  %v7160 = vmul.f32 %v7153, %v7158
  %v7161 = vsel %vm117, %v7159, 0.0
  %7162 = vadd.xlane.f32.xlu0 %v7161
  %v7163 = vpop.xlane.xlu0 %7162
  %v7164 = vsel %vm117, %v7160, 0.0
  %7165 = vadd.xlane.f32.xlu0 %v7164
  %v7166 = vpop.xlane.xlu0 %7165
  %v7167 = vlaneseq
  %v7168 = vshrl.u32 %v7167, 7
  %v7169 = vsub.s32 1, %v7168
  %v7170 = vrot.slane %v7154, %v7169
  %v7171 = vadd.f32 %v7163, %v7170
  %v7172 = vadd.f32 %v7166, %v7170
  %vm7173 = vcmask 7168
  %7174 = vst.msk [vmem:[%s13] sm:$0xff] %vm7173, %v7171
  %7175 = vst.msk [vmem:[%s13 + $0x8] sm:$0xff] %vm7173, %v7172
  // Predicated region
  $region54: #{sad_forward.1} parent=0 // pred_check
    _
  $region55: #{sad_forward.1} parent=0 // pred_check_branch
    %7177 = sbr.rel (0) target = $region57
  $region56: #{sad_forward.1} parent=0 // pred_region
    _
  $region57: #{sad_forward.1} parent=0 // pred_fallthru
    _
  // Predicated region
  $region58: #{sad_forward.1} parent=0 // pred_check
    _
  $region59: #{sad_forward.1} parent=0 // pred_check_branch
    %7179 = sbr.rel (0) target = $region61
  $region60: #{sad_forward.1} parent=0 // pred_region
    _
  $region61: #{sad_forward.1} parent=0 // pred_fallthru
    _

</llo_original>
